<compile_context>
chip_gen: v7x
topology: tpu7x:2x2x1
jax: 0.10.0
libtpu: 0.0.40
codegen_flags: <defaults>
</compile_context>

<pallas_src>
import functools

import jax
import jax.numpy as jnp
from jax.experimental import pallas as pl
from jax.experimental.pallas import tpu as pltpu


def _round_up(x, m):
    return (x + m - 1) // m * m


def lstm_kernel(x_ref,                        # (T*Bt, D)   bf16, row = t*Bt + b
                wih0_ref, whh0_ref, b0_ref,   # layer-0 params (bf16 weights, f32 bias)
                wih1_ref, whh1_ref, b1_ref,   # layer-1 params
                wfc_ref, bfc_ref,             # classifier head
                out_ref,                      # (Bt, Cp)    f32
                gates_ref,                    # VMEM scratch (T*Bt, 4*Hp) f32
                *, T, Bt, Hp):

    def gate_math(g, c):
        # Gate layout [i | f | o | g]: one contiguous sigmoid slice, one tanh.
        sig = jax.nn.sigmoid(g[:, :3 * Hp])
        i = sig[:, 0 * Hp:1 * Hp]
        f = sig[:, 1 * Hp:2 * Hp]
        o = sig[:, 2 * Hp:3 * Hp]
        gg = jnp.tanh(g[:, 3 * Hp:4 * Hp])
        c_new = f * c + i * gg
        h_new = o * jnp.tanh(c_new)
        return h_new, c_new

    zeros = jnp.zeros((Bt, Hp), jnp.float32)

    # ---- layer 0: hoisted input projection (one big MXU GEMM, all timesteps) ----
    gates_ref[...] = jnp.dot(x_ref[...], wih0_ref[...],
                             preferred_element_type=jnp.float32) + b0_ref[...]

    # Hoist the layer-1 bias broadcast out of the unrolled loop (JAX does not
    # CSE broadcast_in_dim).
    b1_full = jnp.broadcast_to(b1_ref[...], (Bt, 4 * Hp))

    # ---- wavefront-interleaved recurrences (fully unrolled, T static) ----
    # Iteration t: layer 1 consumes h0 (= layer-0 output at step t-1) BEFORE
    # layer 0 overwrites it with step t's output; the two chains inside an
    # iteration are independent, so MXU / EUP / VPU work overlaps.
    h0, c0 = zeros, zeros
    h1, c1 = zeros, zeros
    for t in range(T + 1):
        if t >= 1:
            # layer-1 step t-1: per-step input projection of h0 + recurrence.
            g1 = jnp.dot(h0.astype(jnp.bfloat16), wih1_ref[...],
                         preferred_element_type=jnp.float32) + b1_full
            if t > 1:                         # h1 == 0 at its first step
                g1 = g1 + jnp.dot(h1.astype(jnp.bfloat16), whh1_ref[...],
                                  preferred_element_type=jnp.float32)
            h1, c1 = gate_math(g1, c1)
        if t < T:
            # layer-0 step t: precomputed input gates + recurrent matmul.
            g0 = gates_ref[t * Bt:(t + 1) * Bt, :]
            if t > 0:                         # h0 == 0 at step 0 -> skip matmul
                g0 = g0 + jnp.dot(h0.astype(jnp.bfloat16), whh0_ref[...],
                                  preferred_element_type=jnp.float32)
            h0, c0 = gate_math(g0, c0)

    # ---- classifier head on hn[-1]: lane-dense (Bt, Cp) store ----
    out_ref[...] = jnp.dot(h1.astype(jnp.bfloat16), wfc_ref[...],
                           preferred_element_type=jnp.float32) + bfc_ref[...]


def _prepare_params(params, hidden_dim, num_classes, Hp, Cp):
    """Pad each gate block to Hp columns (lane-aligned), reorder gates from
    PyTorch's [i|f|g|o] to [i|f|o|g], pad hidden rows to Hp and classes to Cp;
    cast matmul weights to bf16 (accumulation is f32).  Zero padding keeps
    padded h/c exactly zero through the recurrence."""
    H = hidden_dim

    def gate_pad(w):
        # (..., 4H) -> (..., 4Hp) with gate order [i | f | o | g].
        i, f, g, o = [w[..., k * H:(k + 1) * H] for k in range(4)]
        pad = [(0, 0)] * (w.ndim - 1) + [(0, Hp - H)]
        return jnp.concatenate([jnp.pad(p, pad) for p in (i, f, o, g)], axis=-1)

    def row_pad(w):
        return jnp.pad(w, ((0, Hp - H), (0, 0)))

    wih0 = gate_pad(params["wih0"]).astype(jnp.bfloat16)             # (D,  4Hp)
    whh0 = gate_pad(row_pad(params["whh0"])).astype(jnp.bfloat16)    # (Hp, 4Hp)
    b0 = gate_pad(params["b0"]).astype(jnp.float32)                  # (1,  4Hp)
    wih1 = gate_pad(row_pad(params["wih1"])).astype(jnp.bfloat16)
    whh1 = gate_pad(row_pad(params["whh1"])).astype(jnp.bfloat16)
    b1 = gate_pad(params["b1"]).astype(jnp.float32)
    wfc = jnp.pad(params["wfc"],
                  ((0, Hp - H), (0, Cp - num_classes))).astype(jnp.bfloat16)
    bfc = jnp.pad(params["bfc"],
                  ((0, 0), (0, Cp - num_classes))).astype(jnp.float32)
    return wih0, whh0, b0, wih1, whh1, b1, wfc, bfc


@functools.partial(jax.jit,
                   static_argnames=("hidden_dim", "num_classes", "batch_tile"))
def lstm_forward(x, params, *, hidden_dim, num_classes, batch_tile=None):
    B, C, H, W = x.shape
    T, D = H, W * C

    # Adaptive batch tile: aim for >= 2 sublane-aligned grid tiles when the
    # batch allows (one per v7x TensorCore); cap at 64 rows so the per-step
    # (Bt, 4*Hp) f32 gate temporaries stay within the 64-vreg budget.
    if batch_tile is None:
        if B > 8:
            batch_tile = min(_round_up((B + 1) // 2, 8), 64)
        else:
            batch_tile = 8
    Bt = batch_tile
    Bp = _round_up(B, Bt)
    n_tiles = Bp // Bt
    Hp = _round_up(hidden_dim, 128)
    G = 4 * Hp
    Cp = _round_up(num_classes, 128)

    # torch glue: permute(0,2,3,1).reshape(B, H, W*C).  Done in bf16 so the
    # pre-kernel relayout moves half the bytes.
    seq = jnp.transpose(x.astype(jnp.bfloat16), (0, 2, 3, 1)).reshape(B, T, D)
    # Pad batch to a multiple of the batch tile, go time-major inside each tile
    # and flatten (t, b) so the hoisted input matmul is a single (T*Bt, D) GEMM.
    seq = jnp.pad(seq, ((0, Bp - B), (0, 0), (0, 0)))
    seq = seq.reshape(n_tiles, Bt, T, D).transpose(0, 2, 1, 3)       # (nt,T,Bt,D)
    seq = seq.reshape(n_tiles, T * Bt, D)

    w = _prepare_params(params, hidden_dim, num_classes, Hp, Cp)

    # VMEM budget estimate (double-buffered input/output/weight blocks + the
    # gates scratch).  Only raise the scoped limit if we exceed v5e's 16 MiB
    # default; never above v7x's 64 MiB physical VMEM.
    vmem_est = (2 * T * Bt * D * 2                 # x block, bf16, 2 buffers
                + 2 * Bt * Cp * 4                  # out block, f32, 2 buffers
                + 2 * sum(a.size * a.dtype.itemsize for a in w)
                + T * Bt * G * 4)                  # gates scratch, f32
    vmem_limit = None
    if vmem_est > 16 * 2**20:
        vmem_limit = int(min(max(vmem_est * 5 // 4, 32 * 2**20), 64 * 2**20))

    def full_spec(arr):
        # Whole array resident in VMEM; same block for every grid step.
        return pl.BlockSpec(arr.shape, lambda i: (0,) * arr.ndim)

    kernel = functools.partial(lstm_kernel, T=T, Bt=Bt, Hp=Hp)
    out = pl.pallas_call(
        kernel,
        out_shape=jax.ShapeDtypeStruct((n_tiles, Bt, Cp), jnp.float32),
        grid=(n_tiles,),
        in_specs=[pl.BlockSpec((None, T * Bt, D), lambda i: (i, 0, 0))]
                 + [full_spec(a) for a in w],
        out_specs=pl.BlockSpec((None, Bt, Cp), lambda i: (i, 0, 0)),
        scratch_shapes=[pltpu.VMEM((T * Bt, G), jnp.float32)],   # precomputed gates
        compiler_params=pltpu.CompilerParams(
            dimension_semantics=("parallel",),   # batch shards -> both v7x TCs
            vmem_limit_bytes=vmem_limit),
    )(seq, *w)

    return out.reshape(n_tiles * Bt, Cp)[:B, :num_classes]


def lstm_reference(x, params, hidden_dim, num_classes):
    """Pure-JAX f32 reference with PyTorch LSTM semantics (for validation)."""
    B, C, H, W = x.shape
    seq = jnp.transpose(x, (0, 2, 3, 1)).reshape(B, H, W * C).astype(jnp.float32)

    def run_layer(seq_bf, wih, whh, b):
        def step(carry, x_t):
            h, c = carry
            gates = x_t @ wih + h @ whh + b
            i, f, g, o = jnp.split(gates, 4, axis=-1)
            c = jax.nn.sigmoid(f) * c + jax.nn.sigmoid(i) * jnp.tanh(g)
            h = jax.nn.sigmoid(o) * jnp.tanh(c)
            return (h, c), h

        zeros = jnp.zeros((B, hidden_dim), jnp.float32)
        _, hs = jax.lax.scan(step, (zeros, zeros), jnp.swapaxes(seq_bf, 0, 1))
        return jnp.swapaxes(hs, 0, 1)

    h1 = run_layer(seq, params["wih0"], params["whh0"], params["b0"])
    h2 = run_layer(h1, params["wih1"], params["whh1"], params["b1"])
    return h2[:, -1, :] @ params["wfc"] + params["bfc"]


def init_params(key, input_dim, hidden_dim, num_classes):
    ks = jax.random.split(key, 8)
    s = 1.0 / jnp.sqrt(hidden_dim).astype(jnp.float32)

    def u(k, shape):
        return jax.random.uniform(k, shape, jnp.float32, -s, s)

    return dict(
        # gate order along the 4H axis matches PyTorch: [i | f | g | o]
        wih0=u(ks[0], (input_dim, 4 * hidden_dim)),
        whh0=u(ks[1], (hidden_dim, 4 * hidden_dim)),
        b0=u(ks[2], (1, 4 * hidden_dim)),            # b_ih + b_hh combined
        wih1=u(ks[3], (hidden_dim, 4 * hidden_dim)),
        whh1=u(ks[4], (hidden_dim, 4 * hidden_dim)),
        b1=u(ks[5], (1, 4 * hidden_dim)),
        wfc=u(ks[6], (hidden_dim, num_classes)),     # (H, num_classes) == W_fc.T
        bfc=u(ks[7], (1, num_classes)),
    )


if __name__ == "__main__":
    # Small shapes consistent with the module's forward: seq_len = H, D = W*C.
    B, C, H, W = 2, 4, 16, 16
    hidden_dim, num_classes = 128, 10     # hidden_dim matches the module default
    input_dim = W * C                     # 64

    key = jax.random.PRNGKey(0)
    kx, kp = jax.random.split(key)
    x = jax.random.normal(kx, (B, C, H, W), jnp.float32)
    params = init_params(kp, input_dim, hidden_dim, num_classes)

    out = lstm_forward(x, params, hidden_dim=hidden_dim, num_classes=num_classes)
    out = jax.block_until_ready(out)

    ref = lstm_reference(x, params, hidden_dim, num_classes)
    assert out.shape == (B, num_classes), out.shape
    # bf16 matmul operands (f32 accumulation) vs. pure-f32 reference.
    assert jnp.allclose(out, ref, atol=2e-2, rtol=2e-2), (out, ref)

    print("KERNEL_OK")
</pallas_src>

<mosaic_0001>
module attributes {stable_mosaic.version = 11 : i64} {
  func.func @lstm_kernel(%arg0: i32, %arg1: memref<1x128x64xbf16, #tpu.memory_space<vmem>>, %arg2: memref<64x512xbf16, #tpu.memory_space<vmem>>, %arg3: memref<128x512xbf16, #tpu.memory_space<vmem>>, %arg4: memref<1x512xf32, #tpu.memory_space<vmem>>, %arg5: memref<128x512xbf16, #tpu.memory_space<vmem>>, %arg6: memref<128x512xbf16, #tpu.memory_space<vmem>>, %arg7: memref<1x512xf32, #tpu.memory_space<vmem>>, %arg8: memref<128x128xbf16, #tpu.memory_space<vmem>>, %arg9: memref<1x128xf32, #tpu.memory_space<vmem>>, %arg10: memref<1x8x128xf32, #tpu.memory_space<vmem>>, %arg11: memref<128x512xf32, #tpu.memory_space<vmem>>) attributes {dimension_semantics = [#tpu.dimension_semantics<parallel>], iteration_bounds = array<i64: 1>, scalar_prefetch = 0 : i64, scratch_operands = 1 : i64, tpu.core_type = #tpu.core_type<tc>, window_params = [{transform_indices = @transform_0, window_bounds = array<i64: 1, 128, 64>}, {pipeline_mode = #tpu.pipeline_mode<synchronous>, transform_indices = @transform_1, window_bounds = array<i64: 64, 512>}, {pipeline_mode = #tpu.pipeline_mode<synchronous>, transform_indices = @transform_2, window_bounds = array<i64: 128, 512>}, {pipeline_mode = #tpu.pipeline_mode<synchronous>, transform_indices = @transform_3, window_bounds = array<i64: 1, 512>}, {pipeline_mode = #tpu.pipeline_mode<synchronous>, transform_indices = @transform_4, window_bounds = array<i64: 128, 512>}, {pipeline_mode = #tpu.pipeline_mode<synchronous>, transform_indices = @transform_5, window_bounds = array<i64: 128, 512>}, {pipeline_mode = #tpu.pipeline_mode<synchronous>, transform_indices = @transform_6, window_bounds = array<i64: 1, 512>}, {pipeline_mode = #tpu.pipeline_mode<synchronous>, transform_indices = @transform_7, window_bounds = array<i64: 128, 128>}, {pipeline_mode = #tpu.pipeline_mode<synchronous>, transform_indices = @transform_8, window_bounds = array<i64: 1, 128>}, {transform_indices = @transform_9, window_bounds = array<i64: 1, 8, 128>}]} {
    %cst = arith.constant 0.000000e+00 : f32
    %0 = vector.broadcast %cst : f32 to vector<8x128xf32>
    %c0 = arith.constant 0 : index
    %c0_0 = arith.constant 0 : index
    %c0_1 = arith.constant 0 : index
    %1 = vector.load %arg1[%c0, %c0_0, %c0_1] : memref<1x128x64xbf16, #tpu.memory_space<vmem>>, vector<1x128x64xbf16>
    %2 = vector.shape_cast %1 : vector<1x128x64xbf16> to vector<128x64xbf16>
    %c0_2 = arith.constant 0 : index
    %c0_3 = arith.constant 0 : index
    %3 = vector.load %arg2[%c0_2, %c0_3] : memref<64x512xbf16, #tpu.memory_space<vmem>>, vector<64x512xbf16>
    %cst_4 = arith.constant dense<0.000000e+00> : vector<128x512xf32>
    %4 = tpu.matmul %2, %3, %cst_4 {dimension_numbers = #tpu.dot_dimension_numbers<[1], [0], [0], [1], [0, 0, 1, 1], [], []>} : vector<128x64xbf16>, vector<64x512xbf16>, vector<128x512xf32> -> vector<128x512xf32>
    %c0_5 = arith.constant 0 : index
    %c0_6 = arith.constant 0 : index
    %5 = vector.load %arg4[%c0_5, %c0_6] : memref<1x512xf32, #tpu.memory_space<vmem>>, vector<1x512xf32>
    %6 = vector.broadcast %5 : vector<1x512xf32> to vector<128x512xf32>
    %7 = arith.addf %4, %6 : vector<128x512xf32>
    %c0_7 = arith.constant 0 : index
    %c0_8 = arith.constant 0 : index
    %8 = vector.load %arg11[%c0_7, %c0_8] : memref<128x512xf32, #tpu.memory_space<vmem>>, vector<128x512xf32>
    tpu.vector_store %arg11[%c0_7, %c0_8], %7 {strides = array<i32>} : memref<128x512xf32, #tpu.memory_space<vmem>>, vector<128x512xf32>,
    %c0_9 = arith.constant 0 : index
    %c0_10 = arith.constant 0 : index
    %9 = vector.load %arg7[%c0_9, %c0_10] : memref<1x512xf32, #tpu.memory_space<vmem>>, vector<1x512xf32>
    %10 = vector.shape_cast %9 : vector<1x512xf32> to vector<1x512xf32>
    %11 = vector.broadcast %10 : vector<1x512xf32> to vector<8x512xf32>
    %c0_11 = arith.constant 0 : index
    %c0_12 = arith.constant 0 : index
    %12 = vector.load %arg11[%c0_11, %c0_12] : memref<128x512xf32, #tpu.memory_space<vmem>>, vector<8x512xf32>
    %13 = vector.extract_strided_slice %12 {offsets = [0, 0], sizes = [8, 384], strides = [1, 1]} : vector<8x512xf32> to vector<8x384xf32>
    %14 = arith.negf %13 : vector<8x384xf32>
    %15 = math.exp %14 : vector<8x384xf32>
    %cst_13 = arith.constant 1.000000e+00 : f32
    %16 = vector.broadcast %cst_13 : f32 to vector<8x384xf32>
    %17 = arith.addf %16, %15 : vector<8x384xf32>
    %18 = arith.divf %16, %17 : vector<8x384xf32>
    %19 = vector.extract_strided_slice %18 {offsets = [0, 0], sizes = [8, 128], strides = [1, 1]} : vector<8x384xf32> to vector<8x128xf32>
    %20 = vector.extract_strided_slice %18 {offsets = [0, 128], sizes = [8, 128], strides = [1, 1]} : vector<8x384xf32> to vector<8x128xf32>
    %21 = vector.extract_strided_slice %18 {offsets = [0, 256], sizes = [8, 128], strides = [1, 1]} : vector<8x384xf32> to vector<8x128xf32>
    %22 = vector.extract_strided_slice %12 {offsets = [0, 384], sizes = [8, 128], strides = [1, 1]} : vector<8x512xf32> to vector<8x128xf32>
    %23 = math.tanh %22 : vector<8x128xf32>
    %24 = arith.mulf %20, %0 : vector<8x128xf32>
    %25 = arith.mulf %19, %23 : vector<8x128xf32>
    %26 = arith.addf %24, %25 : vector<8x128xf32>
    %27 = math.tanh %26 : vector<8x128xf32>
    %28 = arith.mulf %21, %27 : vector<8x128xf32>
    %29 = arith.truncf %28 : vector<8x128xf32> to vector<8x128xbf16>
    %c0_14 = arith.constant 0 : index
    %c0_15 = arith.constant 0 : index
    %30 = vector.load %arg5[%c0_14, %c0_15] : memref<128x512xbf16, #tpu.memory_space<vmem>>, vector<128x512xbf16>
    %cst_16 = arith.constant dense<0.000000e+00> : vector<8x512xf32>
    %31 = tpu.matmul %29, %30, %cst_16 {dimension_numbers = #tpu.dot_dimension_numbers<[1], [0], [0], [1], [0, 0, 1, 1], [], []>} : vector<8x128xbf16>, vector<128x512xbf16>, vector<8x512xf32> -> vector<8x512xf32>
    %32 = arith.addf %31, %11 : vector<8x512xf32>
    %33 = vector.extract_strided_slice %32 {offsets = [0, 0], sizes = [8, 384], strides = [1, 1]} : vector<8x512xf32> to vector<8x384xf32>
    %34 = arith.negf %33 : vector<8x384xf32>
    %35 = math.exp %34 : vector<8x384xf32>
    %cst_17 = arith.constant 1.000000e+00 : f32
    %36 = vector.broadcast %cst_17 : f32 to vector<8x384xf32>
    %37 = arith.addf %36, %35 : vector<8x384xf32>
    %38 = arith.divf %36, %37 : vector<8x384xf32>
    %39 = vector.extract_strided_slice %38 {offsets = [0, 0], sizes = [8, 128], strides = [1, 1]} : vector<8x384xf32> to vector<8x128xf32>
    %40 = vector.extract_strided_slice %38 {offsets = [0, 128], sizes = [8, 128], strides = [1, 1]} : vector<8x384xf32> to vector<8x128xf32>
    %41 = vector.extract_strided_slice %38 {offsets = [0, 256], sizes = [8, 128], strides = [1, 1]} : vector<8x384xf32> to vector<8x128xf32>
    %42 = vector.extract_strided_slice %32 {offsets = [0, 384], sizes = [8, 128], strides = [1, 1]} : vector<8x512xf32> to vector<8x128xf32>
    %43 = math.tanh %42 : vector<8x128xf32>
    %44 = arith.mulf %40, %0 : vector<8x128xf32>
    %45 = arith.mulf %39, %43 : vector<8x128xf32>
    %46 = arith.addf %44, %45 : vector<8x128xf32>
    %47 = math.tanh %46 : vector<8x128xf32>
    %48 = arith.mulf %41, %47 : vector<8x128xf32>
    %c8 = arith.constant 8 : index
    %c0_18 = arith.constant 0 : index
    %49 = vector.load %arg11[%c8, %c0_18] : memref<128x512xf32, #tpu.memory_space<vmem>>, vector<8x512xf32>
    %50 = arith.truncf %28 : vector<8x128xf32> to vector<8x128xbf16>
    %c0_19 = arith.constant 0 : index
    %c0_20 = arith.constant 0 : index
    %51 = vector.load %arg3[%c0_19, %c0_20] : memref<128x512xbf16, #tpu.memory_space<vmem>>, vector<128x512xbf16>
    %cst_21 = arith.constant dense<0.000000e+00> : vector<8x512xf32>
    %52 = tpu.matmul %50, %51, %cst_21 {dimension_numbers = #tpu.dot_dimension_numbers<[1], [0], [0], [1], [0, 0, 1, 1], [], []>} : vector<8x128xbf16>, vector<128x512xbf16>, vector<8x512xf32> -> vector<8x512xf32>
    %53 = arith.addf %49, %52 : vector<8x512xf32>
    %54 = vector.extract_strided_slice %53 {offsets = [0, 0], sizes = [8, 384], strides = [1, 1]} : vector<8x512xf32> to vector<8x384xf32>
    %55 = arith.negf %54 : vector<8x384xf32>
    %56 = math.exp %55 : vector<8x384xf32>
    %cst_22 = arith.constant 1.000000e+00 : f32
    %57 = vector.broadcast %cst_22 : f32 to vector<8x384xf32>
    %58 = arith.addf %57, %56 : vector<8x384xf32>
    %59 = arith.divf %57, %58 : vector<8x384xf32>
    %60 = vector.extract_strided_slice %59 {offsets = [0, 0], sizes = [8, 128], strides = [1, 1]} : vector<8x384xf32> to vector<8x128xf32>
    %61 = vector.extract_strided_slice %59 {offsets = [0, 128], sizes = [8, 128], strides = [1, 1]} : vector<8x384xf32> to vector<8x128xf32>
    %62 = vector.extract_strided_slice %59 {offsets = [0, 256], sizes = [8, 128], strides = [1, 1]} : vector<8x384xf32> to vector<8x128xf32>
    %63 = vector.extract_strided_slice %53 {offsets = [0, 384], sizes = [8, 128], strides = [1, 1]} : vector<8x512xf32> to vector<8x128xf32>
    %64 = math.tanh %63 : vector<8x128xf32>
    %65 = arith.mulf %61, %26 : vector<8x128xf32>
    %66 = arith.mulf %60, %64 : vector<8x128xf32>
    %67 = arith.addf %65, %66 : vector<8x128xf32>
    %68 = math.tanh %67 : vector<8x128xf32>
    %69 = arith.mulf %62, %68 : vector<8x128xf32>
    %70 = arith.truncf %69 : vector<8x128xf32> to vector<8x128xbf16>
    %c0_23 = arith.constant 0 : index
    %c0_24 = arith.constant 0 : index
    %71 = vector.load %arg5[%c0_23, %c0_24] : memref<128x512xbf16, #tpu.memory_space<vmem>>, vector<128x512xbf16>
    %cst_25 = arith.constant dense<0.000000e+00> : vector<8x512xf32>
    %72 = tpu.matmul %70, %71, %cst_25 {dimension_numbers = #tpu.dot_dimension_numbers<[1], [0], [0], [1], [0, 0, 1, 1], [], []>} : vector<8x128xbf16>, vector<128x512xbf16>, vector<8x512xf32> -> vector<8x512xf32>
    %73 = arith.addf %72, %11 : vector<8x512xf32>
    %74 = arith.truncf %48 : vector<8x128xf32> to vector<8x128xbf16>
    %c0_26 = arith.constant 0 : index
    %c0_27 = arith.constant 0 : index
    %75 = vector.load %arg6[%c0_26, %c0_27] : memref<128x512xbf16, #tpu.memory_space<vmem>>, vector<128x512xbf16>
    %cst_28 = arith.constant dense<0.000000e+00> : vector<8x512xf32>
    %76 = tpu.matmul %74, %75, %cst_28 {dimension_numbers = #tpu.dot_dimension_numbers<[1], [0], [0], [1], [0, 0, 1, 1], [], []>} : vector<8x128xbf16>, vector<128x512xbf16>, vector<8x512xf32> -> vector<8x512xf32>
    %77 = arith.addf %73, %76 : vector<8x512xf32>
    %78 = vector.extract_strided_slice %77 {offsets = [0, 0], sizes = [8, 384], strides = [1, 1]} : vector<8x512xf32> to vector<8x384xf32>
    %79 = arith.negf %78 : vector<8x384xf32>
    %80 = math.exp %79 : vector<8x384xf32>
    %cst_29 = arith.constant 1.000000e+00 : f32
    %81 = vector.broadcast %cst_29 : f32 to vector<8x384xf32>
    %82 = arith.addf %81, %80 : vector<8x384xf32>
    %83 = arith.divf %81, %82 : vector<8x384xf32>
    %84 = vector.extract_strided_slice %83 {offsets = [0, 0], sizes = [8, 128], strides = [1, 1]} : vector<8x384xf32> to vector<8x128xf32>
    %85 = vector.extract_strided_slice %83 {offsets = [0, 128], sizes = [8, 128], strides = [1, 1]} : vector<8x384xf32> to vector<8x128xf32>
    %86 = vector.extract_strided_slice %83 {offsets = [0, 256], sizes = [8, 128], strides = [1, 1]} : vector<8x384xf32> to vector<8x128xf32>
    %87 = vector.extract_strided_slice %77 {offsets = [0, 384], sizes = [8, 128], strides = [1, 1]} : vector<8x512xf32> to vector<8x128xf32>
    %88 = math.tanh %87 : vector<8x128xf32>
    %89 = arith.mulf %85, %46 : vector<8x128xf32>
    %90 = arith.mulf %84, %88 : vector<8x128xf32>
    %91 = arith.addf %89, %90 : vector<8x128xf32>
    %92 = math.tanh %91 : vector<8x128xf32>
    %93 = arith.mulf %86, %92 : vector<8x128xf32>
    %c16 = arith.constant 16 : index
    %c0_30 = arith.constant 0 : index
    %94 = vector.load %arg11[%c16, %c0_30] : memref<128x512xf32, #tpu.memory_space<vmem>>, vector<8x512xf32>
    %95 = arith.truncf %69 : vector<8x128xf32> to vector<8x128xbf16>
    %c0_31 = arith.constant 0 : index
    %c0_32 = arith.constant 0 : index
    %96 = vector.load %arg3[%c0_31, %c0_32] : memref<128x512xbf16, #tpu.memory_space<vmem>>, vector<128x512xbf16>
    %cst_33 = arith.constant dense<0.000000e+00> : vector<8x512xf32>
    %97 = tpu.matmul %95, %96, %cst_33 {dimension_numbers = #tpu.dot_dimension_numbers<[1], [0], [0], [1], [0, 0, 1, 1], [], []>} : vector<8x128xbf16>, vector<128x512xbf16>, vector<8x512xf32> -> vector<8x512xf32>
    %98 = arith.addf %94, %97 : vector<8x512xf32>
    %99 = vector.extract_strided_slice %98 {offsets = [0, 0], sizes = [8, 384], strides = [1, 1]} : vector<8x512xf32> to vector<8x384xf32>
    %100 = arith.negf %99 : vector<8x384xf32>
    %101 = math.exp %100 : vector<8x384xf32>
    %cst_34 = arith.constant 1.000000e+00 : f32
    %102 = vector.broadcast %cst_34 : f32 to vector<8x384xf32>
    %103 = arith.addf %102, %101 : vector<8x384xf32>
    %104 = arith.divf %102, %103 : vector<8x384xf32>
    %105 = vector.extract_strided_slice %104 {offsets = [0, 0], sizes = [8, 128], strides = [1, 1]} : vector<8x384xf32> to vector<8x128xf32>
    %106 = vector.extract_strided_slice %104 {offsets = [0, 128], sizes = [8, 128], strides = [1, 1]} : vector<8x384xf32> to vector<8x128xf32>
    %107 = vector.extract_strided_slice %104 {offsets = [0, 256], sizes = [8, 128], strides = [1, 1]} : vector<8x384xf32> to vector<8x128xf32>
    %108 = vector.extract_strided_slice %98 {offsets = [0, 384], sizes = [8, 128], strides = [1, 1]} : vector<8x512xf32> to vector<8x128xf32>
    %109 = math.tanh %108 : vector<8x128xf32>
    %110 = arith.mulf %106, %67 : vector<8x128xf32>
    %111 = arith.mulf %105, %109 : vector<8x128xf32>
    %112 = arith.addf %110, %111 : vector<8x128xf32>
    %113 = math.tanh %112 : vector<8x128xf32>
    %114 = arith.mulf %107, %113 : vector<8x128xf32>
    %115 = arith.truncf %114 : vector<8x128xf32> to vector<8x128xbf16>
    %c0_35 = arith.constant 0 : index
    %c0_36 = arith.constant 0 : index
    %116 = vector.load %arg5[%c0_35, %c0_36] : memref<128x512xbf16, #tpu.memory_space<vmem>>, vector<128x512xbf16>
    %cst_37 = arith.constant dense<0.000000e+00> : vector<8x512xf32>
    %117 = tpu.matmul %115, %116, %cst_37 {dimension_numbers = #tpu.dot_dimension_numbers<[1], [0], [0], [1], [0, 0, 1, 1], [], []>} : vector<8x128xbf16>, vector<128x512xbf16>, vector<8x512xf32> -> vector<8x512xf32>
    %118 = arith.addf %117, %11 : vector<8x512xf32>
    %119 = arith.truncf %93 : vector<8x128xf32> to vector<8x128xbf16>
    %c0_38 = arith.constant 0 : index
    %c0_39 = arith.constant 0 : index
    %120 = vector.load %arg6[%c0_38, %c0_39] : memref<128x512xbf16, #tpu.memory_space<vmem>>, vector<128x512xbf16>
    %cst_40 = arith.constant dense<0.000000e+00> : vector<8x512xf32>
    %121 = tpu.matmul %119, %120, %cst_40 {dimension_numbers = #tpu.dot_dimension_numbers<[1], [0], [0], [1], [0, 0, 1, 1], [], []>} : vector<8x128xbf16>, vector<128x512xbf16>, vector<8x512xf32> -> vector<8x512xf32>
    %122 = arith.addf %118, %121 : vector<8x512xf32>
    %123 = vector.extract_strided_slice %122 {offsets = [0, 0], sizes = [8, 384], strides = [1, 1]} : vector<8x512xf32> to vector<8x384xf32>
    %124 = arith.negf %123 : vector<8x384xf32>
    %125 = math.exp %124 : vector<8x384xf32>
    %cst_41 = arith.constant 1.000000e+00 : f32
    %126 = vector.broadcast %cst_41 : f32 to vector<8x384xf32>
    %127 = arith.addf %126, %125 : vector<8x384xf32>
    %128 = arith.divf %126, %127 : vector<8x384xf32>
    %129 = vector.extract_strided_slice %128 {offsets = [0, 0], sizes = [8, 128], strides = [1, 1]} : vector<8x384xf32> to vector<8x128xf32>
    %130 = vector.extract_strided_slice %128 {offsets = [0, 128], sizes = [8, 128], strides = [1, 1]} : vector<8x384xf32> to vector<8x128xf32>
    %131 = vector.extract_strided_slice %128 {offsets = [0, 256], sizes = [8, 128], strides = [1, 1]} : vector<8x384xf32> to vector<8x128xf32>
    %132 = vector.extract_strided_slice %122 {offsets = [0, 384], sizes = [8, 128], strides = [1, 1]} : vector<8x512xf32> to vector<8x128xf32>
    %133 = math.tanh %132 : vector<8x128xf32>
    %134 = arith.mulf %130, %91 : vector<8x128xf32>
    %135 = arith.mulf %129, %133 : vector<8x128xf32>
    %136 = arith.addf %134, %135 : vector<8x128xf32>
    %137 = math.tanh %136 : vector<8x128xf32>
    %138 = arith.mulf %131, %137 : vector<8x128xf32>
    %c24 = arith.constant 24 : index
    %c0_42 = arith.constant 0 : index
    %139 = vector.load %arg11[%c24, %c0_42] : memref<128x512xf32, #tpu.memory_space<vmem>>, vector<8x512xf32>
    %140 = arith.truncf %114 : vector<8x128xf32> to vector<8x128xbf16>
    %c0_43 = arith.constant 0 : index
    %c0_44 = arith.constant 0 : index
    %141 = vector.load %arg3[%c0_43, %c0_44] : memref<128x512xbf16, #tpu.memory_space<vmem>>, vector<128x512xbf16>
    %cst_45 = arith.constant dense<0.000000e+00> : vector<8x512xf32>
    %142 = tpu.matmul %140, %141, %cst_45 {dimension_numbers = #tpu.dot_dimension_numbers<[1], [0], [0], [1], [0, 0, 1, 1], [], []>} : vector<8x128xbf16>, vector<128x512xbf16>, vector<8x512xf32> -> vector<8x512xf32>
    %143 = arith.addf %139, %142 : vector<8x512xf32>
    %144 = vector.extract_strided_slice %143 {offsets = [0, 0], sizes = [8, 384], strides = [1, 1]} : vector<8x512xf32> to vector<8x384xf32>
    %145 = arith.negf %144 : vector<8x384xf32>
    %146 = math.exp %145 : vector<8x384xf32>
    %cst_46 = arith.constant 1.000000e+00 : f32
    %147 = vector.broadcast %cst_46 : f32 to vector<8x384xf32>
    %148 = arith.addf %147, %146 : vector<8x384xf32>
    %149 = arith.divf %147, %148 : vector<8x384xf32>
    %150 = vector.extract_strided_slice %149 {offsets = [0, 0], sizes = [8, 128], strides = [1, 1]} : vector<8x384xf32> to vector<8x128xf32>
    %151 = vector.extract_strided_slice %149 {offsets = [0, 128], sizes = [8, 128], strides = [1, 1]} : vector<8x384xf32> to vector<8x128xf32>
    %152 = vector.extract_strided_slice %149 {offsets = [0, 256], sizes = [8, 128], strides = [1, 1]} : vector<8x384xf32> to vector<8x128xf32>
    %153 = vector.extract_strided_slice %143 {offsets = [0, 384], sizes = [8, 128], strides = [1, 1]} : vector<8x512xf32> to vector<8x128xf32>
    %154 = math.tanh %153 : vector<8x128xf32>
    %155 = arith.mulf %151, %112 : vector<8x128xf32>
    %156 = arith.mulf %150, %154 : vector<8x128xf32>
    %157 = arith.addf %155, %156 : vector<8x128xf32>
    %158 = math.tanh %157 : vector<8x128xf32>
    %159 = arith.mulf %152, %158 : vector<8x128xf32>
    %160 = arith.truncf %159 : vector<8x128xf32> to vector<8x128xbf16>
    %c0_47 = arith.constant 0 : index
    %c0_48 = arith.constant 0 : index
    %161 = vector.load %arg5[%c0_47, %c0_48] : memref<128x512xbf16, #tpu.memory_space<vmem>>, vector<128x512xbf16>
    %cst_49 = arith.constant dense<0.000000e+00> : vector<8x512xf32>
    %162 = tpu.matmul %160, %161, %cst_49 {dimension_numbers = #tpu.dot_dimension_numbers<[1], [0], [0], [1], [0, 0, 1, 1], [], []>} : vector<8x128xbf16>, vector<128x512xbf16>, vector<8x512xf32> -> vector<8x512xf32>
    %163 = arith.addf %162, %11 : vector<8x512xf32>
    %164 = arith.truncf %138 : vector<8x128xf32> to vector<8x128xbf16>
    %c0_50 = arith.constant 0 : index
    %c0_51 = arith.constant 0 : index
    %165 = vector.load %arg6[%c0_50, %c0_51] : memref<128x512xbf16, #tpu.memory_space<vmem>>, vector<128x512xbf16>
    %cst_52 = arith.constant dense<0.000000e+00> : vector<8x512xf32>
    %166 = tpu.matmul %164, %165, %cst_52 {dimension_numbers = #tpu.dot_dimension_numbers<[1], [0], [0], [1], [0, 0, 1, 1], [], []>} : vector<8x128xbf16>, vector<128x512xbf16>, vector<8x512xf32> -> vector<8x512xf32>
    %167 = arith.addf %163, %166 : vector<8x512xf32>
    %168 = vector.extract_strided_slice %167 {offsets = [0, 0], sizes = [8, 384], strides = [1, 1]} : vector<8x512xf32> to vector<8x384xf32>
    %169 = arith.negf %168 : vector<8x384xf32>
    %170 = math.exp %169 : vector<8x384xf32>
    %cst_53 = arith.constant 1.000000e+00 : f32
    %171 = vector.broadcast %cst_53 : f32 to vector<8x384xf32>
    %172 = arith.addf %171, %170 : vector<8x384xf32>
    %173 = arith.divf %171, %172 : vector<8x384xf32>
    %174 = vector.extract_strided_slice %173 {offsets = [0, 0], sizes = [8, 128], strides = [1, 1]} : vector<8x384xf32> to vector<8x128xf32>
    %175 = vector.extract_strided_slice %173 {offsets = [0, 128], sizes = [8, 128], strides = [1, 1]} : vector<8x384xf32> to vector<8x128xf32>
    %176 = vector.extract_strided_slice %173 {offsets = [0, 256], sizes = [8, 128], strides = [1, 1]} : vector<8x384xf32> to vector<8x128xf32>
    %177 = vector.extract_strided_slice %167 {offsets = [0, 384], sizes = [8, 128], strides = [1, 1]} : vector<8x512xf32> to vector<8x128xf32>
    %178 = math.tanh %177 : vector<8x128xf32>
    %179 = arith.mulf %175, %136 : vector<8x128xf32>
    %180 = arith.mulf %174, %178 : vector<8x128xf32>
    %181 = arith.addf %179, %180 : vector<8x128xf32>
    %182 = math.tanh %181 : vector<8x128xf32>
    %183 = arith.mulf %176, %182 : vector<8x128xf32>
    %c32 = arith.constant 32 : index
    %c0_54 = arith.constant 0 : index
    %184 = vector.load %arg11[%c32, %c0_54] : memref<128x512xf32, #tpu.memory_space<vmem>>, vector<8x512xf32>
    %185 = arith.truncf %159 : vector<8x128xf32> to vector<8x128xbf16>
    %c0_55 = arith.constant 0 : index
    %c0_56 = arith.constant 0 : index
    %186 = vector.load %arg3[%c0_55, %c0_56] : memref<128x512xbf16, #tpu.memory_space<vmem>>, vector<128x512xbf16>
    %cst_57 = arith.constant dense<0.000000e+00> : vector<8x512xf32>
    %187 = tpu.matmul %185, %186, %cst_57 {dimension_numbers = #tpu.dot_dimension_numbers<[1], [0], [0], [1], [0, 0, 1, 1], [], []>} : vector<8x128xbf16>, vector<128x512xbf16>, vector<8x512xf32> -> vector<8x512xf32>
    %188 = arith.addf %184, %187 : vector<8x512xf32>
    %189 = vector.extract_strided_slice %188 {offsets = [0, 0], sizes = [8, 384], strides = [1, 1]} : vector<8x512xf32> to vector<8x384xf32>
    %190 = arith.negf %189 : vector<8x384xf32>
    %191 = math.exp %190 : vector<8x384xf32>
    %cst_58 = arith.constant 1.000000e+00 : f32
    %192 = vector.broadcast %cst_58 : f32 to vector<8x384xf32>
    %193 = arith.addf %192, %191 : vector<8x384xf32>
    %194 = arith.divf %192, %193 : vector<8x384xf32>
    %195 = vector.extract_strided_slice %194 {offsets = [0, 0], sizes = [8, 128], strides = [1, 1]} : vector<8x384xf32> to vector<8x128xf32>
    %196 = vector.extract_strided_slice %194 {offsets = [0, 128], sizes = [8, 128], strides = [1, 1]} : vector<8x384xf32> to vector<8x128xf32>
    %197 = vector.extract_strided_slice %194 {offsets = [0, 256], sizes = [8, 128], strides = [1, 1]} : vector<8x384xf32> to vector<8x128xf32>
    %198 = vector.extract_strided_slice %188 {offsets = [0, 384], sizes = [8, 128], strides = [1, 1]} : vector<8x512xf32> to vector<8x128xf32>
    %199 = math.tanh %198 : vector<8x128xf32>
    %200 = arith.mulf %196, %157 : vector<8x128xf32>
    %201 = arith.mulf %195, %199 : vector<8x128xf32>
    %202 = arith.addf %200, %201 : vector<8x128xf32>
    %203 = math.tanh %202 : vector<8x128xf32>
    %204 = arith.mulf %197, %203 : vector<8x128xf32>
    %205 = arith.truncf %204 : vector<8x128xf32> to vector<8x128xbf16>
    %c0_59 = arith.constant 0 : index
    %c0_60 = arith.constant 0 : index
    %206 = vector.load %arg5[%c0_59, %c0_60] : memref<128x512xbf16, #tpu.memory_space<vmem>>, vector<128x512xbf16>
    %cst_61 = arith.constant dense<0.000000e+00> : vector<8x512xf32>
    %207 = tpu.matmul %205, %206, %cst_61 {dimension_numbers = #tpu.dot_dimension_numbers<[1], [0], [0], [1], [0, 0, 1, 1], [], []>} : vector<8x128xbf16>, vector<128x512xbf16>, vector<8x512xf32> -> vector<8x512xf32>
    %208 = arith.addf %207, %11 : vector<8x512xf32>
    %209 = arith.truncf %183 : vector<8x128xf32> to vector<8x128xbf16>
    %c0_62 = arith.constant 0 : index
    %c0_63 = arith.constant 0 : index
    %210 = vector.load %arg6[%c0_62, %c0_63] : memref<128x512xbf16, #tpu.memory_space<vmem>>, vector<128x512xbf16>
    %cst_64 = arith.constant dense<0.000000e+00> : vector<8x512xf32>
    %211 = tpu.matmul %209, %210, %cst_64 {dimension_numbers = #tpu.dot_dimension_numbers<[1], [0], [0], [1], [0, 0, 1, 1], [], []>} : vector<8x128xbf16>, vector<128x512xbf16>, vector<8x512xf32> -> vector<8x512xf32>
    %212 = arith.addf %208, %211 : vector<8x512xf32>
    %213 = vector.extract_strided_slice %212 {offsets = [0, 0], sizes = [8, 384], strides = [1, 1]} : vector<8x512xf32> to vector<8x384xf32>
    %214 = arith.negf %213 : vector<8x384xf32>
    %215 = math.exp %214 : vector<8x384xf32>
    %cst_65 = arith.constant 1.000000e+00 : f32
    %216 = vector.broadcast %cst_65 : f32 to vector<8x384xf32>
    %217 = arith.addf %216, %215 : vector<8x384xf32>
    %218 = arith.divf %216, %217 : vector<8x384xf32>
    %219 = vector.extract_strided_slice %218 {offsets = [0, 0], sizes = [8, 128], strides = [1, 1]} : vector<8x384xf32> to vector<8x128xf32>
    %220 = vector.extract_strided_slice %218 {offsets = [0, 128], sizes = [8, 128], strides = [1, 1]} : vector<8x384xf32> to vector<8x128xf32>
    %221 = vector.extract_strided_slice %218 {offsets = [0, 256], sizes = [8, 128], strides = [1, 1]} : vector<8x384xf32> to vector<8x128xf32>
    %222 = vector.extract_strided_slice %212 {offsets = [0, 384], sizes = [8, 128], strides = [1, 1]} : vector<8x512xf32> to vector<8x128xf32>
    %223 = math.tanh %222 : vector<8x128xf32>
    %224 = arith.mulf %220, %181 : vector<8x128xf32>
    %225 = arith.mulf %219, %223 : vector<8x128xf32>
    %226 = arith.addf %224, %225 : vector<8x128xf32>
    %227 = math.tanh %226 : vector<8x128xf32>
    %228 = arith.mulf %221, %227 : vector<8x128xf32>
    %c40 = arith.constant 40 : index
    %c0_66 = arith.constant 0 : index
    %229 = vector.load %arg11[%c40, %c0_66] : memref<128x512xf32, #tpu.memory_space<vmem>>, vector<8x512xf32>
    %230 = arith.truncf %204 : vector<8x128xf32> to vector<8x128xbf16>
    %c0_67 = arith.constant 0 : index
    %c0_68 = arith.constant 0 : index
    %231 = vector.load %arg3[%c0_67, %c0_68] : memref<128x512xbf16, #tpu.memory_space<vmem>>, vector<128x512xbf16>
    %cst_69 = arith.constant dense<0.000000e+00> : vector<8x512xf32>
    %232 = tpu.matmul %230, %231, %cst_69 {dimension_numbers = #tpu.dot_dimension_numbers<[1], [0], [0], [1], [0, 0, 1, 1], [], []>} : vector<8x128xbf16>, vector<128x512xbf16>, vector<8x512xf32> -> vector<8x512xf32>
    %233 = arith.addf %229, %232 : vector<8x512xf32>
    %234 = vector.extract_strided_slice %233 {offsets = [0, 0], sizes = [8, 384], strides = [1, 1]} : vector<8x512xf32> to vector<8x384xf32>
    %235 = arith.negf %234 : vector<8x384xf32>
    %236 = math.exp %235 : vector<8x384xf32>
    %cst_70 = arith.constant 1.000000e+00 : f32
    %237 = vector.broadcast %cst_70 : f32 to vector<8x384xf32>
    %238 = arith.addf %237, %236 : vector<8x384xf32>
    %239 = arith.divf %237, %238 : vector<8x384xf32>
    %240 = vector.extract_strided_slice %239 {offsets = [0, 0], sizes = [8, 128], strides = [1, 1]} : vector<8x384xf32> to vector<8x128xf32>
    %241 = vector.extract_strided_slice %239 {offsets = [0, 128], sizes = [8, 128], strides = [1, 1]} : vector<8x384xf32> to vector<8x128xf32>
    %242 = vector.extract_strided_slice %239 {offsets = [0, 256], sizes = [8, 128], strides = [1, 1]} : vector<8x384xf32> to vector<8x128xf32>
    %243 = vector.extract_strided_slice %233 {offsets = [0, 384], sizes = [8, 128], strides = [1, 1]} : vector<8x512xf32> to vector<8x128xf32>
    %244 = math.tanh %243 : vector<8x128xf32>
    %245 = arith.mulf %241, %202 : vector<8x128xf32>
    %246 = arith.mulf %240, %244 : vector<8x128xf32>
    %247 = arith.addf %245, %246 : vector<8x128xf32>
    %248 = math.tanh %247 : vector<8x128xf32>
    %249 = arith.mulf %242, %248 : vector<8x128xf32>
    %250 = arith.truncf %249 : vector<8x128xf32> to vector<8x128xbf16>
    %c0_71 = arith.constant 0 : index
    %c0_72 = arith.constant 0 : index
    %251 = vector.load %arg5[%c0_71, %c0_72] : memref<128x512xbf16, #tpu.memory_space<vmem>>, vector<128x512xbf16>
    %cst_73 = arith.constant dense<0.000000e+00> : vector<8x512xf32>
    %252 = tpu.matmul %250, %251, %cst_73 {dimension_numbers = #tpu.dot_dimension_numbers<[1], [0], [0], [1], [0, 0, 1, 1], [], []>} : vector<8x128xbf16>, vector<128x512xbf16>, vector<8x512xf32> -> vector<8x512xf32>
    %253 = arith.addf %252, %11 : vector<8x512xf32>
    %254 = arith.truncf %228 : vector<8x128xf32> to vector<8x128xbf16>
    %c0_74 = arith.constant 0 : index
    %c0_75 = arith.constant 0 : index
    %255 = vector.load %arg6[%c0_74, %c0_75] : memref<128x512xbf16, #tpu.memory_space<vmem>>, vector<128x512xbf16>
    %cst_76 = arith.constant dense<0.000000e+00> : vector<8x512xf32>
    %256 = tpu.matmul %254, %255, %cst_76 {dimension_numbers = #tpu.dot_dimension_numbers<[1], [0], [0], [1], [0, 0, 1, 1], [], []>} : vector<8x128xbf16>, vector<128x512xbf16>, vector<8x512xf32> -> vector<8x512xf32>
    %257 = arith.addf %253, %256 : vector<8x512xf32>
    %258 = vector.extract_strided_slice %257 {offsets = [0, 0], sizes = [8, 384], strides = [1, 1]} : vector<8x512xf32> to vector<8x384xf32>
    %259 = arith.negf %258 : vector<8x384xf32>
    %260 = math.exp %259 : vector<8x384xf32>
    %cst_77 = arith.constant 1.000000e+00 : f32
    %261 = vector.broadcast %cst_77 : f32 to vector<8x384xf32>
    %262 = arith.addf %261, %260 : vector<8x384xf32>
    %263 = arith.divf %261, %262 : vector<8x384xf32>
    %264 = vector.extract_strided_slice %263 {offsets = [0, 0], sizes = [8, 128], strides = [1, 1]} : vector<8x384xf32> to vector<8x128xf32>
    %265 = vector.extract_strided_slice %263 {offsets = [0, 128], sizes = [8, 128], strides = [1, 1]} : vector<8x384xf32> to vector<8x128xf32>
    %266 = vector.extract_strided_slice %263 {offsets = [0, 256], sizes = [8, 128], strides = [1, 1]} : vector<8x384xf32> to vector<8x128xf32>
    %267 = vector.extract_strided_slice %257 {offsets = [0, 384], sizes = [8, 128], strides = [1, 1]} : vector<8x512xf32> to vector<8x128xf32>
    %268 = math.tanh %267 : vector<8x128xf32>
    %269 = arith.mulf %265, %226 : vector<8x128xf32>
    %270 = arith.mulf %264, %268 : vector<8x128xf32>
    %271 = arith.addf %269, %270 : vector<8x128xf32>
    %272 = math.tanh %271 : vector<8x128xf32>
    %273 = arith.mulf %266, %272 : vector<8x128xf32>
    %c48 = arith.constant 48 : index
    %c0_78 = arith.constant 0 : index
    %274 = vector.load %arg11[%c48, %c0_78] : memref<128x512xf32, #tpu.memory_space<vmem>>, vector<8x512xf32>
    %275 = arith.truncf %249 : vector<8x128xf32> to vector<8x128xbf16>
    %c0_79 = arith.constant 0 : index
    %c0_80 = arith.constant 0 : index
    %276 = vector.load %arg3[%c0_79, %c0_80] : memref<128x512xbf16, #tpu.memory_space<vmem>>, vector<128x512xbf16>
    %cst_81 = arith.constant dense<0.000000e+00> : vector<8x512xf32>
    %277 = tpu.matmul %275, %276, %cst_81 {dimension_numbers = #tpu.dot_dimension_numbers<[1], [0], [0], [1], [0, 0, 1, 1], [], []>} : vector<8x128xbf16>, vector<128x512xbf16>, vector<8x512xf32> -> vector<8x512xf32>
    %278 = arith.addf %274, %277 : vector<8x512xf32>
    %279 = vector.extract_strided_slice %278 {offsets = [0, 0], sizes = [8, 384], strides = [1, 1]} : vector<8x512xf32> to vector<8x384xf32>
    %280 = arith.negf %279 : vector<8x384xf32>
    %281 = math.exp %280 : vector<8x384xf32>
    %cst_82 = arith.constant 1.000000e+00 : f32
    %282 = vector.broadcast %cst_82 : f32 to vector<8x384xf32>
    %283 = arith.addf %282, %281 : vector<8x384xf32>
    %284 = arith.divf %282, %283 : vector<8x384xf32>
    %285 = vector.extract_strided_slice %284 {offsets = [0, 0], sizes = [8, 128], strides = [1, 1]} : vector<8x384xf32> to vector<8x128xf32>
    %286 = vector.extract_strided_slice %284 {offsets = [0, 128], sizes = [8, 128], strides = [1, 1]} : vector<8x384xf32> to vector<8x128xf32>
    %287 = vector.extract_strided_slice %284 {offsets = [0, 256], sizes = [8, 128], strides = [1, 1]} : vector<8x384xf32> to vector<8x128xf32>
    %288 = vector.extract_strided_slice %278 {offsets = [0, 384], sizes = [8, 128], strides = [1, 1]} : vector<8x512xf32> to vector<8x128xf32>
    %289 = math.tanh %288 : vector<8x128xf32>
    %290 = arith.mulf %286, %247 : vector<8x128xf32>
    %291 = arith.mulf %285, %289 : vector<8x128xf32>
    %292 = arith.addf %290, %291 : vector<8x128xf32>
    %293 = math.tanh %292 : vector<8x128xf32>
    %294 = arith.mulf %287, %293 : vector<8x128xf32>
    %295 = arith.truncf %294 : vector<8x128xf32> to vector<8x128xbf16>
    %c0_83 = arith.constant 0 : index
    %c0_84 = arith.constant 0 : index
    %296 = vector.load %arg5[%c0_83, %c0_84] : memref<128x512xbf16, #tpu.memory_space<vmem>>, vector<128x512xbf16>
    %cst_85 = arith.constant dense<0.000000e+00> : vector<8x512xf32>
    %297 = tpu.matmul %295, %296, %cst_85 {dimension_numbers = #tpu.dot_dimension_numbers<[1], [0], [0], [1], [0, 0, 1, 1], [], []>} : vector<8x128xbf16>, vector<128x512xbf16>, vector<8x512xf32> -> vector<8x512xf32>
    %298 = arith.addf %297, %11 : vector<8x512xf32>
    %299 = arith.truncf %273 : vector<8x128xf32> to vector<8x128xbf16>
    %c0_86 = arith.constant 0 : index
    %c0_87 = arith.constant 0 : index
    %300 = vector.load %arg6[%c0_86, %c0_87] : memref<128x512xbf16, #tpu.memory_space<vmem>>, vector<128x512xbf16>
    %cst_88 = arith.constant dense<0.000000e+00> : vector<8x512xf32>
    %301 = tpu.matmul %299, %300, %cst_88 {dimension_numbers = #tpu.dot_dimension_numbers<[1], [0], [0], [1], [0, 0, 1, 1], [], []>} : vector<8x128xbf16>, vector<128x512xbf16>, vector<8x512xf32> -> vector<8x512xf32>
    %302 = arith.addf %298, %301 : vector<8x512xf32>
    %303 = vector.extract_strided_slice %302 {offsets = [0, 0], sizes = [8, 384], strides = [1, 1]} : vector<8x512xf32> to vector<8x384xf32>
    %304 = arith.negf %303 : vector<8x384xf32>
    %305 = math.exp %304 : vector<8x384xf32>
    %cst_89 = arith.constant 1.000000e+00 : f32
    %306 = vector.broadcast %cst_89 : f32 to vector<8x384xf32>
    %307 = arith.addf %306, %305 : vector<8x384xf32>
    %308 = arith.divf %306, %307 : vector<8x384xf32>
    %309 = vector.extract_strided_slice %308 {offsets = [0, 0], sizes = [8, 128], strides = [1, 1]} : vector<8x384xf32> to vector<8x128xf32>
    %310 = vector.extract_strided_slice %308 {offsets = [0, 128], sizes = [8, 128], strides = [1, 1]} : vector<8x384xf32> to vector<8x128xf32>
    %311 = vector.extract_strided_slice %308 {offsets = [0, 256], sizes = [8, 128], strides = [1, 1]} : vector<8x384xf32> to vector<8x128xf32>
    %312 = vector.extract_strided_slice %302 {offsets = [0, 384], sizes = [8, 128], strides = [1, 1]} : vector<8x512xf32> to vector<8x128xf32>
    %313 = math.tanh %312 : vector<8x128xf32>
    %314 = arith.mulf %310, %271 : vector<8x128xf32>
    %315 = arith.mulf %309, %313 : vector<8x128xf32>
    %316 = arith.addf %314, %315 : vector<8x128xf32>
    %317 = math.tanh %316 : vector<8x128xf32>
    %318 = arith.mulf %311, %317 : vector<8x128xf32>
    %c56 = arith.constant 56 : index
    %c0_90 = arith.constant 0 : index
    %319 = vector.load %arg11[%c56, %c0_90] : memref<128x512xf32, #tpu.memory_space<vmem>>, vector<8x512xf32>
    %320 = arith.truncf %294 : vector<8x128xf32> to vector<8x128xbf16>
    %c0_91 = arith.constant 0 : index
    %c0_92 = arith.constant 0 : index
    %321 = vector.load %arg3[%c0_91, %c0_92] : memref<128x512xbf16, #tpu.memory_space<vmem>>, vector<128x512xbf16>
    %cst_93 = arith.constant dense<0.000000e+00> : vector<8x512xf32>
    %322 = tpu.matmul %320, %321, %cst_93 {dimension_numbers = #tpu.dot_dimension_numbers<[1], [0], [0], [1], [0, 0, 1, 1], [], []>} : vector<8x128xbf16>, vector<128x512xbf16>, vector<8x512xf32> -> vector<8x512xf32>
    %323 = arith.addf %319, %322 : vector<8x512xf32>
    %324 = vector.extract_strided_slice %323 {offsets = [0, 0], sizes = [8, 384], strides = [1, 1]} : vector<8x512xf32> to vector<8x384xf32>
    %325 = arith.negf %324 : vector<8x384xf32>
    %326 = math.exp %325 : vector<8x384xf32>
    %cst_94 = arith.constant 1.000000e+00 : f32
    %327 = vector.broadcast %cst_94 : f32 to vector<8x384xf32>
    %328 = arith.addf %327, %326 : vector<8x384xf32>
    %329 = arith.divf %327, %328 : vector<8x384xf32>
    %330 = vector.extract_strided_slice %329 {offsets = [0, 0], sizes = [8, 128], strides = [1, 1]} : vector<8x384xf32> to vector<8x128xf32>
    %331 = vector.extract_strided_slice %329 {offsets = [0, 128], sizes = [8, 128], strides = [1, 1]} : vector<8x384xf32> to vector<8x128xf32>
    %332 = vector.extract_strided_slice %329 {offsets = [0, 256], sizes = [8, 128], strides = [1, 1]} : vector<8x384xf32> to vector<8x128xf32>
    %333 = vector.extract_strided_slice %323 {offsets = [0, 384], sizes = [8, 128], strides = [1, 1]} : vector<8x512xf32> to vector<8x128xf32>
    %334 = math.tanh %333 : vector<8x128xf32>
    %335 = arith.mulf %331, %292 : vector<8x128xf32>
    %336 = arith.mulf %330, %334 : vector<8x128xf32>
    %337 = arith.addf %335, %336 : vector<8x128xf32>
    %338 = math.tanh %337 : vector<8x128xf32>
    %339 = arith.mulf %332, %338 : vector<8x128xf32>
    %340 = arith.truncf %339 : vector<8x128xf32> to vector<8x128xbf16>
    %c0_95 = arith.constant 0 : index
    %c0_96 = arith.constant 0 : index
    %341 = vector.load %arg5[%c0_95, %c0_96] : memref<128x512xbf16, #tpu.memory_space<vmem>>, vector<128x512xbf16>
    %cst_97 = arith.constant dense<0.000000e+00> : vector<8x512xf32>
    %342 = tpu.matmul %340, %341, %cst_97 {dimension_numbers = #tpu.dot_dimension_numbers<[1], [0], [0], [1], [0, 0, 1, 1], [], []>} : vector<8x128xbf16>, vector<128x512xbf16>, vector<8x512xf32> -> vector<8x512xf32>
    %343 = arith.addf %342, %11 : vector<8x512xf32>
    %344 = arith.truncf %318 : vector<8x128xf32> to vector<8x128xbf16>
    %c0_98 = arith.constant 0 : index
    %c0_99 = arith.constant 0 : index
    %345 = vector.load %arg6[%c0_98, %c0_99] : memref<128x512xbf16, #tpu.memory_space<vmem>>, vector<128x512xbf16>
    %cst_100 = arith.constant dense<0.000000e+00> : vector<8x512xf32>
    %346 = tpu.matmul %344, %345, %cst_100 {dimension_numbers = #tpu.dot_dimension_numbers<[1], [0], [0], [1], [0, 0, 1, 1], [], []>} : vector<8x128xbf16>, vector<128x512xbf16>, vector<8x512xf32> -> vector<8x512xf32>
    %347 = arith.addf %343, %346 : vector<8x512xf32>
    %348 = vector.extract_strided_slice %347 {offsets = [0, 0], sizes = [8, 384], strides = [1, 1]} : vector<8x512xf32> to vector<8x384xf32>
    %349 = arith.negf %348 : vector<8x384xf32>
    %350 = math.exp %349 : vector<8x384xf32>
    %cst_101 = arith.constant 1.000000e+00 : f32
    %351 = vector.broadcast %cst_101 : f32 to vector<8x384xf32>
    %352 = arith.addf %351, %350 : vector<8x384xf32>
    %353 = arith.divf %351, %352 : vector<8x384xf32>
    %354 = vector.extract_strided_slice %353 {offsets = [0, 0], sizes = [8, 128], strides = [1, 1]} : vector<8x384xf32> to vector<8x128xf32>
    %355 = vector.extract_strided_slice %353 {offsets = [0, 128], sizes = [8, 128], strides = [1, 1]} : vector<8x384xf32> to vector<8x128xf32>
    %356 = vector.extract_strided_slice %353 {offsets = [0, 256], sizes = [8, 128], strides = [1, 1]} : vector<8x384xf32> to vector<8x128xf32>
    %357 = vector.extract_strided_slice %347 {offsets = [0, 384], sizes = [8, 128], strides = [1, 1]} : vector<8x512xf32> to vector<8x128xf32>
    %358 = math.tanh %357 : vector<8x128xf32>
    %359 = arith.mulf %355, %316 : vector<8x128xf32>
    %360 = arith.mulf %354, %358 : vector<8x128xf32>
    %361 = arith.addf %359, %360 : vector<8x128xf32>
    %362 = math.tanh %361 : vector<8x128xf32>
    %363 = arith.mulf %356, %362 : vector<8x128xf32>
    %c64 = arith.constant 64 : index
    %c0_102 = arith.constant 0 : index
    %364 = vector.load %arg11[%c64, %c0_102] : memref<128x512xf32, #tpu.memory_space<vmem>>, vector<8x512xf32>
    %365 = arith.truncf %339 : vector<8x128xf32> to vector<8x128xbf16>
    %c0_103 = arith.constant 0 : index
    %c0_104 = arith.constant 0 : index
    %366 = vector.load %arg3[%c0_103, %c0_104] : memref<128x512xbf16, #tpu.memory_space<vmem>>, vector<128x512xbf16>
    %cst_105 = arith.constant dense<0.000000e+00> : vector<8x512xf32>
    %367 = tpu.matmul %365, %366, %cst_105 {dimension_numbers = #tpu.dot_dimension_numbers<[1], [0], [0], [1], [0, 0, 1, 1], [], []>} : vector<8x128xbf16>, vector<128x512xbf16>, vector<8x512xf32> -> vector<8x512xf32>
    %368 = arith.addf %364, %367 : vector<8x512xf32>
    %369 = vector.extract_strided_slice %368 {offsets = [0, 0], sizes = [8, 384], strides = [1, 1]} : vector<8x512xf32> to vector<8x384xf32>
    %370 = arith.negf %369 : vector<8x384xf32>
    %371 = math.exp %370 : vector<8x384xf32>
    %cst_106 = arith.constant 1.000000e+00 : f32
    %372 = vector.broadcast %cst_106 : f32 to vector<8x384xf32>
    %373 = arith.addf %372, %371 : vector<8x384xf32>
    %374 = arith.divf %372, %373 : vector<8x384xf32>
    %375 = vector.extract_strided_slice %374 {offsets = [0, 0], sizes = [8, 128], strides = [1, 1]} : vector<8x384xf32> to vector<8x128xf32>
    %376 = vector.extract_strided_slice %374 {offsets = [0, 128], sizes = [8, 128], strides = [1, 1]} : vector<8x384xf32> to vector<8x128xf32>
    %377 = vector.extract_strided_slice %374 {offsets = [0, 256], sizes = [8, 128], strides = [1, 1]} : vector<8x384xf32> to vector<8x128xf32>
    %378 = vector.extract_strided_slice %368 {offsets = [0, 384], sizes = [8, 128], strides = [1, 1]} : vector<8x512xf32> to vector<8x128xf32>
    %379 = math.tanh %378 : vector<8x128xf32>
    %380 = arith.mulf %376, %337 : vector<8x128xf32>
    %381 = arith.mulf %375, %379 : vector<8x128xf32>
    %382 = arith.addf %380, %381 : vector<8x128xf32>
    %383 = math.tanh %382 : vector<8x128xf32>
    %384 = arith.mulf %377, %383 : vector<8x128xf32>
    %385 = arith.truncf %384 : vector<8x128xf32> to vector<8x128xbf16>
    %c0_107 = arith.constant 0 : index
    %c0_108 = arith.constant 0 : index
    %386 = vector.load %arg5[%c0_107, %c0_108] : memref<128x512xbf16, #tpu.memory_space<vmem>>, vector<128x512xbf16>
    %cst_109 = arith.constant dense<0.000000e+00> : vector<8x512xf32>
    %387 = tpu.matmul %385, %386, %cst_109 {dimension_numbers = #tpu.dot_dimension_numbers<[1], [0], [0], [1], [0, 0, 1, 1], [], []>} : vector<8x128xbf16>, vector<128x512xbf16>, vector<8x512xf32> -> vector<8x512xf32>
    %388 = arith.addf %387, %11 : vector<8x512xf32>
    %389 = arith.truncf %363 : vector<8x128xf32> to vector<8x128xbf16>
    %c0_110 = arith.constant 0 : index
    %c0_111 = arith.constant 0 : index
    %390 = vector.load %arg6[%c0_110, %c0_111] : memref<128x512xbf16, #tpu.memory_space<vmem>>, vector<128x512xbf16>
    %cst_112 = arith.constant dense<0.000000e+00> : vector<8x512xf32>
    %391 = tpu.matmul %389, %390, %cst_112 {dimension_numbers = #tpu.dot_dimension_numbers<[1], [0], [0], [1], [0, 0, 1, 1], [], []>} : vector<8x128xbf16>, vector<128x512xbf16>, vector<8x512xf32> -> vector<8x512xf32>
    %392 = arith.addf %388, %391 : vector<8x512xf32>
    %393 = vector.extract_strided_slice %392 {offsets = [0, 0], sizes = [8, 384], strides = [1, 1]} : vector<8x512xf32> to vector<8x384xf32>
    %394 = arith.negf %393 : vector<8x384xf32>
    %395 = math.exp %394 : vector<8x384xf32>
    %cst_113 = arith.constant 1.000000e+00 : f32
    %396 = vector.broadcast %cst_113 : f32 to vector<8x384xf32>
    %397 = arith.addf %396, %395 : vector<8x384xf32>
    %398 = arith.divf %396, %397 : vector<8x384xf32>
    %399 = vector.extract_strided_slice %398 {offsets = [0, 0], sizes = [8, 128], strides = [1, 1]} : vector<8x384xf32> to vector<8x128xf32>
    %400 = vector.extract_strided_slice %398 {offsets = [0, 128], sizes = [8, 128], strides = [1, 1]} : vector<8x384xf32> to vector<8x128xf32>
    %401 = vector.extract_strided_slice %398 {offsets = [0, 256], sizes = [8, 128], strides = [1, 1]} : vector<8x384xf32> to vector<8x128xf32>
    %402 = vector.extract_strided_slice %392 {offsets = [0, 384], sizes = [8, 128], strides = [1, 1]} : vector<8x512xf32> to vector<8x128xf32>
    %403 = math.tanh %402 : vector<8x128xf32>
    %404 = arith.mulf %400, %361 : vector<8x128xf32>
    %405 = arith.mulf %399, %403 : vector<8x128xf32>
    %406 = arith.addf %404, %405 : vector<8x128xf32>
    %407 = math.tanh %406 : vector<8x128xf32>
    %408 = arith.mulf %401, %407 : vector<8x128xf32>
    %c72 = arith.constant 72 : index
    %c0_114 = arith.constant 0 : index
    %409 = vector.load %arg11[%c72, %c0_114] : memref<128x512xf32, #tpu.memory_space<vmem>>, vector<8x512xf32>
    %410 = arith.truncf %384 : vector<8x128xf32> to vector<8x128xbf16>
    %c0_115 = arith.constant 0 : index
    %c0_116 = arith.constant 0 : index
    %411 = vector.load %arg3[%c0_115, %c0_116] : memref<128x512xbf16, #tpu.memory_space<vmem>>, vector<128x512xbf16>
    %cst_117 = arith.constant dense<0.000000e+00> : vector<8x512xf32>
    %412 = tpu.matmul %410, %411, %cst_117 {dimension_numbers = #tpu.dot_dimension_numbers<[1], [0], [0], [1], [0, 0, 1, 1], [], []>} : vector<8x128xbf16>, vector<128x512xbf16>, vector<8x512xf32> -> vector<8x512xf32>
    %413 = arith.addf %409, %412 : vector<8x512xf32>
    %414 = vector.extract_strided_slice %413 {offsets = [0, 0], sizes = [8, 384], strides = [1, 1]} : vector<8x512xf32> to vector<8x384xf32>
    %415 = arith.negf %414 : vector<8x384xf32>
    %416 = math.exp %415 : vector<8x384xf32>
    %cst_118 = arith.constant 1.000000e+00 : f32
    %417 = vector.broadcast %cst_118 : f32 to vector<8x384xf32>
    %418 = arith.addf %417, %416 : vector<8x384xf32>
    %419 = arith.divf %417, %418 : vector<8x384xf32>
    %420 = vector.extract_strided_slice %419 {offsets = [0, 0], sizes = [8, 128], strides = [1, 1]} : vector<8x384xf32> to vector<8x128xf32>
    %421 = vector.extract_strided_slice %419 {offsets = [0, 128], sizes = [8, 128], strides = [1, 1]} : vector<8x384xf32> to vector<8x128xf32>
    %422 = vector.extract_strided_slice %419 {offsets = [0, 256], sizes = [8, 128], strides = [1, 1]} : vector<8x384xf32> to vector<8x128xf32>
    %423 = vector.extract_strided_slice %413 {offsets = [0, 384], sizes = [8, 128], strides = [1, 1]} : vector<8x512xf32> to vector<8x128xf32>
    %424 = math.tanh %423 : vector<8x128xf32>
    %425 = arith.mulf %421, %382 : vector<8x128xf32>
    %426 = arith.mulf %420, %424 : vector<8x128xf32>
    %427 = arith.addf %425, %426 : vector<8x128xf32>
    %428 = math.tanh %427 : vector<8x128xf32>
    %429 = arith.mulf %422, %428 : vector<8x128xf32>
    %430 = arith.truncf %429 : vector<8x128xf32> to vector<8x128xbf16>
    %c0_119 = arith.constant 0 : index
    %c0_120 = arith.constant 0 : index
    %431 = vector.load %arg5[%c0_119, %c0_120] : memref<128x512xbf16, #tpu.memory_space<vmem>>, vector<128x512xbf16>
    %cst_121 = arith.constant dense<0.000000e+00> : vector<8x512xf32>
    %432 = tpu.matmul %430, %431, %cst_121 {dimension_numbers = #tpu.dot_dimension_numbers<[1], [0], [0], [1], [0, 0, 1, 1], [], []>} : vector<8x128xbf16>, vector<128x512xbf16>, vector<8x512xf32> -> vector<8x512xf32>
    %433 = arith.addf %432, %11 : vector<8x512xf32>
    %434 = arith.truncf %408 : vector<8x128xf32> to vector<8x128xbf16>
    %c0_122 = arith.constant 0 : index
    %c0_123 = arith.constant 0 : index
    %435 = vector.load %arg6[%c0_122, %c0_123] : memref<128x512xbf16, #tpu.memory_space<vmem>>, vector<128x512xbf16>
    %cst_124 = arith.constant dense<0.000000e+00> : vector<8x512xf32>
    %436 = tpu.matmul %434, %435, %cst_124 {dimension_numbers = #tpu.dot_dimension_numbers<[1], [0], [0], [1], [0, 0, 1, 1], [], []>} : vector<8x128xbf16>, vector<128x512xbf16>, vector<8x512xf32> -> vector<8x512xf32>
    %437 = arith.addf %433, %436 : vector<8x512xf32>
    %438 = vector.extract_strided_slice %437 {offsets = [0, 0], sizes = [8, 384], strides = [1, 1]} : vector<8x512xf32> to vector<8x384xf32>
    %439 = arith.negf %438 : vector<8x384xf32>
    %440 = math.exp %439 : vector<8x384xf32>
    %cst_125 = arith.constant 1.000000e+00 : f32
    %441 = vector.broadcast %cst_125 : f32 to vector<8x384xf32>
    %442 = arith.addf %441, %440 : vector<8x384xf32>
    %443 = arith.divf %441, %442 : vector<8x384xf32>
    %444 = vector.extract_strided_slice %443 {offsets = [0, 0], sizes = [8, 128], strides = [1, 1]} : vector<8x384xf32> to vector<8x128xf32>
    %445 = vector.extract_strided_slice %443 {offsets = [0, 128], sizes = [8, 128], strides = [1, 1]} : vector<8x384xf32> to vector<8x128xf32>
    %446 = vector.extract_strided_slice %443 {offsets = [0, 256], sizes = [8, 128], strides = [1, 1]} : vector<8x384xf32> to vector<8x128xf32>
    %447 = vector.extract_strided_slice %437 {offsets = [0, 384], sizes = [8, 128], strides = [1, 1]} : vector<8x512xf32> to vector<8x128xf32>
    %448 = math.tanh %447 : vector<8x128xf32>
    %449 = arith.mulf %445, %406 : vector<8x128xf32>
    %450 = arith.mulf %444, %448 : vector<8x128xf32>
    %451 = arith.addf %449, %450 : vector<8x128xf32>
    %452 = math.tanh %451 : vector<8x128xf32>
    %453 = arith.mulf %446, %452 : vector<8x128xf32>
    %c80 = arith.constant 80 : index
    %c0_126 = arith.constant 0 : index
    %454 = vector.load %arg11[%c80, %c0_126] : memref<128x512xf32, #tpu.memory_space<vmem>>, vector<8x512xf32>
    %455 = arith.truncf %429 : vector<8x128xf32> to vector<8x128xbf16>
    %c0_127 = arith.constant 0 : index
    %c0_128 = arith.constant 0 : index
    %456 = vector.load %arg3[%c0_127, %c0_128] : memref<128x512xbf16, #tpu.memory_space<vmem>>, vector<128x512xbf16>
    %cst_129 = arith.constant dense<0.000000e+00> : vector<8x512xf32>
    %457 = tpu.matmul %455, %456, %cst_129 {dimension_numbers = #tpu.dot_dimension_numbers<[1], [0], [0], [1], [0, 0, 1, 1], [], []>} : vector<8x128xbf16>, vector<128x512xbf16>, vector<8x512xf32> -> vector<8x512xf32>
    %458 = arith.addf %454, %457 : vector<8x512xf32>
    %459 = vector.extract_strided_slice %458 {offsets = [0, 0], sizes = [8, 384], strides = [1, 1]} : vector<8x512xf32> to vector<8x384xf32>
    %460 = arith.negf %459 : vector<8x384xf32>
    %461 = math.exp %460 : vector<8x384xf32>
    %cst_130 = arith.constant 1.000000e+00 : f32
    %462 = vector.broadcast %cst_130 : f32 to vector<8x384xf32>
    %463 = arith.addf %462, %461 : vector<8x384xf32>
    %464 = arith.divf %462, %463 : vector<8x384xf32>
    %465 = vector.extract_strided_slice %464 {offsets = [0, 0], sizes = [8, 128], strides = [1, 1]} : vector<8x384xf32> to vector<8x128xf32>
    %466 = vector.extract_strided_slice %464 {offsets = [0, 128], sizes = [8, 128], strides = [1, 1]} : vector<8x384xf32> to vector<8x128xf32>
    %467 = vector.extract_strided_slice %464 {offsets = [0, 256], sizes = [8, 128], strides = [1, 1]} : vector<8x384xf32> to vector<8x128xf32>
    %468 = vector.extract_strided_slice %458 {offsets = [0, 384], sizes = [8, 128], strides = [1, 1]} : vector<8x512xf32> to vector<8x128xf32>
    %469 = math.tanh %468 : vector<8x128xf32>
    %470 = arith.mulf %466, %427 : vector<8x128xf32>
    %471 = arith.mulf %465, %469 : vector<8x128xf32>
    %472 = arith.addf %470, %471 : vector<8x128xf32>
    %473 = math.tanh %472 : vector<8x128xf32>
    %474 = arith.mulf %467, %473 : vector<8x128xf32>
    %475 = arith.truncf %474 : vector<8x128xf32> to vector<8x128xbf16>
    %c0_131 = arith.constant 0 : index
    %c0_132 = arith.constant 0 : index
    %476 = vector.load %arg5[%c0_131, %c0_132] : memref<128x512xbf16, #tpu.memory_space<vmem>>, vector<128x512xbf16>
    %cst_133 = arith.constant dense<0.000000e+00> : vector<8x512xf32>
    %477 = tpu.matmul %475, %476, %cst_133 {dimension_numbers = #tpu.dot_dimension_numbers<[1], [0], [0], [1], [0, 0, 1, 1], [], []>} : vector<8x128xbf16>, vector<128x512xbf16>, vector<8x512xf32> -> vector<8x512xf32>
    %478 = arith.addf %477, %11 : vector<8x512xf32>
    %479 = arith.truncf %453 : vector<8x128xf32> to vector<8x128xbf16>
    %c0_134 = arith.constant 0 : index
    %c0_135 = arith.constant 0 : index
    %480 = vector.load %arg6[%c0_134, %c0_135] : memref<128x512xbf16, #tpu.memory_space<vmem>>, vector<128x512xbf16>
    %cst_136 = arith.constant dense<0.000000e+00> : vector<8x512xf32>
    %481 = tpu.matmul %479, %480, %cst_136 {dimension_numbers = #tpu.dot_dimension_numbers<[1], [0], [0], [1], [0, 0, 1, 1], [], []>} : vector<8x128xbf16>, vector<128x512xbf16>, vector<8x512xf32> -> vector<8x512xf32>
    %482 = arith.addf %478, %481 : vector<8x512xf32>
    %483 = vector.extract_strided_slice %482 {offsets = [0, 0], sizes = [8, 384], strides = [1, 1]} : vector<8x512xf32> to vector<8x384xf32>
    %484 = arith.negf %483 : vector<8x384xf32>
    %485 = math.exp %484 : vector<8x384xf32>
    %cst_137 = arith.constant 1.000000e+00 : f32
    %486 = vector.broadcast %cst_137 : f32 to vector<8x384xf32>
    %487 = arith.addf %486, %485 : vector<8x384xf32>
    %488 = arith.divf %486, %487 : vector<8x384xf32>
    %489 = vector.extract_strided_slice %488 {offsets = [0, 0], sizes = [8, 128], strides = [1, 1]} : vector<8x384xf32> to vector<8x128xf32>
    %490 = vector.extract_strided_slice %488 {offsets = [0, 128], sizes = [8, 128], strides = [1, 1]} : vector<8x384xf32> to vector<8x128xf32>
    %491 = vector.extract_strided_slice %488 {offsets = [0, 256], sizes = [8, 128], strides = [1, 1]} : vector<8x384xf32> to vector<8x128xf32>
    %492 = vector.extract_strided_slice %482 {offsets = [0, 384], sizes = [8, 128], strides = [1, 1]} : vector<8x512xf32> to vector<8x128xf32>
    %493 = math.tanh %492 : vector<8x128xf32>
    %494 = arith.mulf %490, %451 : vector<8x128xf32>
    %495 = arith.mulf %489, %493 : vector<8x128xf32>
    %496 = arith.addf %494, %495 : vector<8x128xf32>
    %497 = math.tanh %496 : vector<8x128xf32>
    %498 = arith.mulf %491, %497 : vector<8x128xf32>
    %c88 = arith.constant 88 : index
    %c0_138 = arith.constant 0 : index
    %499 = vector.load %arg11[%c88, %c0_138] : memref<128x512xf32, #tpu.memory_space<vmem>>, vector<8x512xf32>
    %500 = arith.truncf %474 : vector<8x128xf32> to vector<8x128xbf16>
    %c0_139 = arith.constant 0 : index
    %c0_140 = arith.constant 0 : index
    %501 = vector.load %arg3[%c0_139, %c0_140] : memref<128x512xbf16, #tpu.memory_space<vmem>>, vector<128x512xbf16>
    %cst_141 = arith.constant dense<0.000000e+00> : vector<8x512xf32>
    %502 = tpu.matmul %500, %501, %cst_141 {dimension_numbers = #tpu.dot_dimension_numbers<[1], [0], [0], [1], [0, 0, 1, 1], [], []>} : vector<8x128xbf16>, vector<128x512xbf16>, vector<8x512xf32> -> vector<8x512xf32>
    %503 = arith.addf %499, %502 : vector<8x512xf32>
    %504 = vector.extract_strided_slice %503 {offsets = [0, 0], sizes = [8, 384], strides = [1, 1]} : vector<8x512xf32> to vector<8x384xf32>
    %505 = arith.negf %504 : vector<8x384xf32>
    %506 = math.exp %505 : vector<8x384xf32>
    %cst_142 = arith.constant 1.000000e+00 : f32
    %507 = vector.broadcast %cst_142 : f32 to vector<8x384xf32>
    %508 = arith.addf %507, %506 : vector<8x384xf32>
    %509 = arith.divf %507, %508 : vector<8x384xf32>
    %510 = vector.extract_strided_slice %509 {offsets = [0, 0], sizes = [8, 128], strides = [1, 1]} : vector<8x384xf32> to vector<8x128xf32>
    %511 = vector.extract_strided_slice %509 {offsets = [0, 128], sizes = [8, 128], strides = [1, 1]} : vector<8x384xf32> to vector<8x128xf32>
    %512 = vector.extract_strided_slice %509 {offsets = [0, 256], sizes = [8, 128], strides = [1, 1]} : vector<8x384xf32> to vector<8x128xf32>
    %513 = vector.extract_strided_slice %503 {offsets = [0, 384], sizes = [8, 128], strides = [1, 1]} : vector<8x512xf32> to vector<8x128xf32>
    %514 = math.tanh %513 : vector<8x128xf32>
    %515 = arith.mulf %511, %472 : vector<8x128xf32>
    %516 = arith.mulf %510, %514 : vector<8x128xf32>
    %517 = arith.addf %515, %516 : vector<8x128xf32>
    %518 = math.tanh %517 : vector<8x128xf32>
    %519 = arith.mulf %512, %518 : vector<8x128xf32>
    %520 = arith.truncf %519 : vector<8x128xf32> to vector<8x128xbf16>
    %c0_143 = arith.constant 0 : index
    %c0_144 = arith.constant 0 : index
    %521 = vector.load %arg5[%c0_143, %c0_144] : memref<128x512xbf16, #tpu.memory_space<vmem>>, vector<128x512xbf16>
    %cst_145 = arith.constant dense<0.000000e+00> : vector<8x512xf32>
    %522 = tpu.matmul %520, %521, %cst_145 {dimension_numbers = #tpu.dot_dimension_numbers<[1], [0], [0], [1], [0, 0, 1, 1], [], []>} : vector<8x128xbf16>, vector<128x512xbf16>, vector<8x512xf32> -> vector<8x512xf32>
    %523 = arith.addf %522, %11 : vector<8x512xf32>
    %524 = arith.truncf %498 : vector<8x128xf32> to vector<8x128xbf16>
    %c0_146 = arith.constant 0 : index
    %c0_147 = arith.constant 0 : index
    %525 = vector.load %arg6[%c0_146, %c0_147] : memref<128x512xbf16, #tpu.memory_space<vmem>>, vector<128x512xbf16>
    %cst_148 = arith.constant dense<0.000000e+00> : vector<8x512xf32>
    %526 = tpu.matmul %524, %525, %cst_148 {dimension_numbers = #tpu.dot_dimension_numbers<[1], [0], [0], [1], [0, 0, 1, 1], [], []>} : vector<8x128xbf16>, vector<128x512xbf16>, vector<8x512xf32> -> vector<8x512xf32>
    %527 = arith.addf %523, %526 : vector<8x512xf32>
    %528 = vector.extract_strided_slice %527 {offsets = [0, 0], sizes = [8, 384], strides = [1, 1]} : vector<8x512xf32> to vector<8x384xf32>
    %529 = arith.negf %528 : vector<8x384xf32>
    %530 = math.exp %529 : vector<8x384xf32>
    %cst_149 = arith.constant 1.000000e+00 : f32
    %531 = vector.broadcast %cst_149 : f32 to vector<8x384xf32>
    %532 = arith.addf %531, %530 : vector<8x384xf32>
    %533 = arith.divf %531, %532 : vector<8x384xf32>
    %534 = vector.extract_strided_slice %533 {offsets = [0, 0], sizes = [8, 128], strides = [1, 1]} : vector<8x384xf32> to vector<8x128xf32>
    %535 = vector.extract_strided_slice %533 {offsets = [0, 128], sizes = [8, 128], strides = [1, 1]} : vector<8x384xf32> to vector<8x128xf32>
    %536 = vector.extract_strided_slice %533 {offsets = [0, 256], sizes = [8, 128], strides = [1, 1]} : vector<8x384xf32> to vector<8x128xf32>
    %537 = vector.extract_strided_slice %527 {offsets = [0, 384], sizes = [8, 128], strides = [1, 1]} : vector<8x512xf32> to vector<8x128xf32>
    %538 = math.tanh %537 : vector<8x128xf32>
    %539 = arith.mulf %535, %496 : vector<8x128xf32>
    %540 = arith.mulf %534, %538 : vector<8x128xf32>
    %541 = arith.addf %539, %540 : vector<8x128xf32>
    %542 = math.tanh %541 : vector<8x128xf32>
    %543 = arith.mulf %536, %542 : vector<8x128xf32>
    %c96 = arith.constant 96 : index
    %c0_150 = arith.constant 0 : index
    %544 = vector.load %arg11[%c96, %c0_150] : memref<128x512xf32, #tpu.memory_space<vmem>>, vector<8x512xf32>
    %545 = arith.truncf %519 : vector<8x128xf32> to vector<8x128xbf16>
    %c0_151 = arith.constant 0 : index
    %c0_152 = arith.constant 0 : index
    %546 = vector.load %arg3[%c0_151, %c0_152] : memref<128x512xbf16, #tpu.memory_space<vmem>>, vector<128x512xbf16>
    %cst_153 = arith.constant dense<0.000000e+00> : vector<8x512xf32>
    %547 = tpu.matmul %545, %546, %cst_153 {dimension_numbers = #tpu.dot_dimension_numbers<[1], [0], [0], [1], [0, 0, 1, 1], [], []>} : vector<8x128xbf16>, vector<128x512xbf16>, vector<8x512xf32> -> vector<8x512xf32>
    %548 = arith.addf %544, %547 : vector<8x512xf32>
    %549 = vector.extract_strided_slice %548 {offsets = [0, 0], sizes = [8, 384], strides = [1, 1]} : vector<8x512xf32> to vector<8x384xf32>
    %550 = arith.negf %549 : vector<8x384xf32>
    %551 = math.exp %550 : vector<8x384xf32>
    %cst_154 = arith.constant 1.000000e+00 : f32
    %552 = vector.broadcast %cst_154 : f32 to vector<8x384xf32>
    %553 = arith.addf %552, %551 : vector<8x384xf32>
    %554 = arith.divf %552, %553 : vector<8x384xf32>
    %555 = vector.extract_strided_slice %554 {offsets = [0, 0], sizes = [8, 128], strides = [1, 1]} : vector<8x384xf32> to vector<8x128xf32>
    %556 = vector.extract_strided_slice %554 {offsets = [0, 128], sizes = [8, 128], strides = [1, 1]} : vector<8x384xf32> to vector<8x128xf32>
    %557 = vector.extract_strided_slice %554 {offsets = [0, 256], sizes = [8, 128], strides = [1, 1]} : vector<8x384xf32> to vector<8x128xf32>
    %558 = vector.extract_strided_slice %548 {offsets = [0, 384], sizes = [8, 128], strides = [1, 1]} : vector<8x512xf32> to vector<8x128xf32>
    %559 = math.tanh %558 : vector<8x128xf32>
    %560 = arith.mulf %556, %517 : vector<8x128xf32>
    %561 = arith.mulf %555, %559 : vector<8x128xf32>
    %562 = arith.addf %560, %561 : vector<8x128xf32>
    %563 = math.tanh %562 : vector<8x128xf32>
    %564 = arith.mulf %557, %563 : vector<8x128xf32>
    %565 = arith.truncf %564 : vector<8x128xf32> to vector<8x128xbf16>
    %c0_155 = arith.constant 0 : index
    %c0_156 = arith.constant 0 : index
    %566 = vector.load %arg5[%c0_155, %c0_156] : memref<128x512xbf16, #tpu.memory_space<vmem>>, vector<128x512xbf16>
    %cst_157 = arith.constant dense<0.000000e+00> : vector<8x512xf32>
    %567 = tpu.matmul %565, %566, %cst_157 {dimension_numbers = #tpu.dot_dimension_numbers<[1], [0], [0], [1], [0, 0, 1, 1], [], []>} : vector<8x128xbf16>, vector<128x512xbf16>, vector<8x512xf32> -> vector<8x512xf32>
    %568 = arith.addf %567, %11 : vector<8x512xf32>
    %569 = arith.truncf %543 : vector<8x128xf32> to vector<8x128xbf16>
    %c0_158 = arith.constant 0 : index
    %c0_159 = arith.constant 0 : index
    %570 = vector.load %arg6[%c0_158, %c0_159] : memref<128x512xbf16, #tpu.memory_space<vmem>>, vector<128x512xbf16>
    %cst_160 = arith.constant dense<0.000000e+00> : vector<8x512xf32>
    %571 = tpu.matmul %569, %570, %cst_160 {dimension_numbers = #tpu.dot_dimension_numbers<[1], [0], [0], [1], [0, 0, 1, 1], [], []>} : vector<8x128xbf16>, vector<128x512xbf16>, vector<8x512xf32> -> vector<8x512xf32>
    %572 = arith.addf %568, %571 : vector<8x512xf32>
    %573 = vector.extract_strided_slice %572 {offsets = [0, 0], sizes = [8, 384], strides = [1, 1]} : vector<8x512xf32> to vector<8x384xf32>
    %574 = arith.negf %573 : vector<8x384xf32>
    %575 = math.exp %574 : vector<8x384xf32>
    %cst_161 = arith.constant 1.000000e+00 : f32
    %576 = vector.broadcast %cst_161 : f32 to vector<8x384xf32>
    %577 = arith.addf %576, %575 : vector<8x384xf32>
    %578 = arith.divf %576, %577 : vector<8x384xf32>
    %579 = vector.extract_strided_slice %578 {offsets = [0, 0], sizes = [8, 128], strides = [1, 1]} : vector<8x384xf32> to vector<8x128xf32>
    %580 = vector.extract_strided_slice %578 {offsets = [0, 128], sizes = [8, 128], strides = [1, 1]} : vector<8x384xf32> to vector<8x128xf32>
    %581 = vector.extract_strided_slice %578 {offsets = [0, 256], sizes = [8, 128], strides = [1, 1]} : vector<8x384xf32> to vector<8x128xf32>
    %582 = vector.extract_strided_slice %572 {offsets = [0, 384], sizes = [8, 128], strides = [1, 1]} : vector<8x512xf32> to vector<8x128xf32>
    %583 = math.tanh %582 : vector<8x128xf32>
    %584 = arith.mulf %580, %541 : vector<8x128xf32>
    %585 = arith.mulf %579, %583 : vector<8x128xf32>
    %586 = arith.addf %584, %585 : vector<8x128xf32>
    %587 = math.tanh %586 : vector<8x128xf32>
    %588 = arith.mulf %581, %587 : vector<8x128xf32>
    %c104 = arith.constant 104 : index
    %c0_162 = arith.constant 0 : index
    %589 = vector.load %arg11[%c104, %c0_162] : memref<128x512xf32, #tpu.memory_space<vmem>>, vector<8x512xf32>
    %590 = arith.truncf %564 : vector<8x128xf32> to vector<8x128xbf16>
    %c0_163 = arith.constant 0 : index
    %c0_164 = arith.constant 0 : index
    %591 = vector.load %arg3[%c0_163, %c0_164] : memref<128x512xbf16, #tpu.memory_space<vmem>>, vector<128x512xbf16>
    %cst_165 = arith.constant dense<0.000000e+00> : vector<8x512xf32>
    %592 = tpu.matmul %590, %591, %cst_165 {dimension_numbers = #tpu.dot_dimension_numbers<[1], [0], [0], [1], [0, 0, 1, 1], [], []>} : vector<8x128xbf16>, vector<128x512xbf16>, vector<8x512xf32> -> vector<8x512xf32>
    %593 = arith.addf %589, %592 : vector<8x512xf32>
    %594 = vector.extract_strided_slice %593 {offsets = [0, 0], sizes = [8, 384], strides = [1, 1]} : vector<8x512xf32> to vector<8x384xf32>
    %595 = arith.negf %594 : vector<8x384xf32>
    %596 = math.exp %595 : vector<8x384xf32>
    %cst_166 = arith.constant 1.000000e+00 : f32
    %597 = vector.broadcast %cst_166 : f32 to vector<8x384xf32>
    %598 = arith.addf %597, %596 : vector<8x384xf32>
    %599 = arith.divf %597, %598 : vector<8x384xf32>
    %600 = vector.extract_strided_slice %599 {offsets = [0, 0], sizes = [8, 128], strides = [1, 1]} : vector<8x384xf32> to vector<8x128xf32>
    %601 = vector.extract_strided_slice %599 {offsets = [0, 128], sizes = [8, 128], strides = [1, 1]} : vector<8x384xf32> to vector<8x128xf32>
    %602 = vector.extract_strided_slice %599 {offsets = [0, 256], sizes = [8, 128], strides = [1, 1]} : vector<8x384xf32> to vector<8x128xf32>
    %603 = vector.extract_strided_slice %593 {offsets = [0, 384], sizes = [8, 128], strides = [1, 1]} : vector<8x512xf32> to vector<8x128xf32>
    %604 = math.tanh %603 : vector<8x128xf32>
    %605 = arith.mulf %601, %562 : vector<8x128xf32>
    %606 = arith.mulf %600, %604 : vector<8x128xf32>
    %607 = arith.addf %605, %606 : vector<8x128xf32>
    %608 = math.tanh %607 : vector<8x128xf32>
    %609 = arith.mulf %602, %608 : vector<8x128xf32>
    %610 = arith.truncf %609 : vector<8x128xf32> to vector<8x128xbf16>
    %c0_167 = arith.constant 0 : index
    %c0_168 = arith.constant 0 : index
    %611 = vector.load %arg5[%c0_167, %c0_168] : memref<128x512xbf16, #tpu.memory_space<vmem>>, vector<128x512xbf16>
    %cst_169 = arith.constant dense<0.000000e+00> : vector<8x512xf32>
    %612 = tpu.matmul %610, %611, %cst_169 {dimension_numbers = #tpu.dot_dimension_numbers<[1], [0], [0], [1], [0, 0, 1, 1], [], []>} : vector<8x128xbf16>, vector<128x512xbf16>, vector<8x512xf32> -> vector<8x512xf32>
    %613 = arith.addf %612, %11 : vector<8x512xf32>
    %614 = arith.truncf %588 : vector<8x128xf32> to vector<8x128xbf16>
    %c0_170 = arith.constant 0 : index
    %c0_171 = arith.constant 0 : index
    %615 = vector.load %arg6[%c0_170, %c0_171] : memref<128x512xbf16, #tpu.memory_space<vmem>>, vector<128x512xbf16>
    %cst_172 = arith.constant dense<0.000000e+00> : vector<8x512xf32>
    %616 = tpu.matmul %614, %615, %cst_172 {dimension_numbers = #tpu.dot_dimension_numbers<[1], [0], [0], [1], [0, 0, 1, 1], [], []>} : vector<8x128xbf16>, vector<128x512xbf16>, vector<8x512xf32> -> vector<8x512xf32>
    %617 = arith.addf %613, %616 : vector<8x512xf32>
    %618 = vector.extract_strided_slice %617 {offsets = [0, 0], sizes = [8, 384], strides = [1, 1]} : vector<8x512xf32> to vector<8x384xf32>
    %619 = arith.negf %618 : vector<8x384xf32>
    %620 = math.exp %619 : vector<8x384xf32>
    %cst_173 = arith.constant 1.000000e+00 : f32
    %621 = vector.broadcast %cst_173 : f32 to vector<8x384xf32>
    %622 = arith.addf %621, %620 : vector<8x384xf32>
    %623 = arith.divf %621, %622 : vector<8x384xf32>
    %624 = vector.extract_strided_slice %623 {offsets = [0, 0], sizes = [8, 128], strides = [1, 1]} : vector<8x384xf32> to vector<8x128xf32>
    %625 = vector.extract_strided_slice %623 {offsets = [0, 128], sizes = [8, 128], strides = [1, 1]} : vector<8x384xf32> to vector<8x128xf32>
    %626 = vector.extract_strided_slice %623 {offsets = [0, 256], sizes = [8, 128], strides = [1, 1]} : vector<8x384xf32> to vector<8x128xf32>
    %627 = vector.extract_strided_slice %617 {offsets = [0, 384], sizes = [8, 128], strides = [1, 1]} : vector<8x512xf32> to vector<8x128xf32>
    %628 = math.tanh %627 : vector<8x128xf32>
    %629 = arith.mulf %625, %586 : vector<8x128xf32>
    %630 = arith.mulf %624, %628 : vector<8x128xf32>
    %631 = arith.addf %629, %630 : vector<8x128xf32>
    %632 = math.tanh %631 : vector<8x128xf32>
    %633 = arith.mulf %626, %632 : vector<8x128xf32>
    %c112 = arith.constant 112 : index
    %c0_174 = arith.constant 0 : index
    %634 = vector.load %arg11[%c112, %c0_174] : memref<128x512xf32, #tpu.memory_space<vmem>>, vector<8x512xf32>
    %635 = arith.truncf %609 : vector<8x128xf32> to vector<8x128xbf16>
    %c0_175 = arith.constant 0 : index
    %c0_176 = arith.constant 0 : index
    %636 = vector.load %arg3[%c0_175, %c0_176] : memref<128x512xbf16, #tpu.memory_space<vmem>>, vector<128x512xbf16>
    %cst_177 = arith.constant dense<0.000000e+00> : vector<8x512xf32>
    %637 = tpu.matmul %635, %636, %cst_177 {dimension_numbers = #tpu.dot_dimension_numbers<[1], [0], [0], [1], [0, 0, 1, 1], [], []>} : vector<8x128xbf16>, vector<128x512xbf16>, vector<8x512xf32> -> vector<8x512xf32>
    %638 = arith.addf %634, %637 : vector<8x512xf32>
    %639 = vector.extract_strided_slice %638 {offsets = [0, 0], sizes = [8, 384], strides = [1, 1]} : vector<8x512xf32> to vector<8x384xf32>
    %640 = arith.negf %639 : vector<8x384xf32>
    %641 = math.exp %640 : vector<8x384xf32>
    %cst_178 = arith.constant 1.000000e+00 : f32
    %642 = vector.broadcast %cst_178 : f32 to vector<8x384xf32>
    %643 = arith.addf %642, %641 : vector<8x384xf32>
    %644 = arith.divf %642, %643 : vector<8x384xf32>
    %645 = vector.extract_strided_slice %644 {offsets = [0, 0], sizes = [8, 128], strides = [1, 1]} : vector<8x384xf32> to vector<8x128xf32>
    %646 = vector.extract_strided_slice %644 {offsets = [0, 128], sizes = [8, 128], strides = [1, 1]} : vector<8x384xf32> to vector<8x128xf32>
    %647 = vector.extract_strided_slice %644 {offsets = [0, 256], sizes = [8, 128], strides = [1, 1]} : vector<8x384xf32> to vector<8x128xf32>
    %648 = vector.extract_strided_slice %638 {offsets = [0, 384], sizes = [8, 128], strides = [1, 1]} : vector<8x512xf32> to vector<8x128xf32>
    %649 = math.tanh %648 : vector<8x128xf32>
    %650 = arith.mulf %646, %607 : vector<8x128xf32>
    %651 = arith.mulf %645, %649 : vector<8x128xf32>
    %652 = arith.addf %650, %651 : vector<8x128xf32>
    %653 = math.tanh %652 : vector<8x128xf32>
    %654 = arith.mulf %647, %653 : vector<8x128xf32>
    %655 = arith.truncf %654 : vector<8x128xf32> to vector<8x128xbf16>
    %c0_179 = arith.constant 0 : index
    %c0_180 = arith.constant 0 : index
    %656 = vector.load %arg5[%c0_179, %c0_180] : memref<128x512xbf16, #tpu.memory_space<vmem>>, vector<128x512xbf16>
    %cst_181 = arith.constant dense<0.000000e+00> : vector<8x512xf32>
    %657 = tpu.matmul %655, %656, %cst_181 {dimension_numbers = #tpu.dot_dimension_numbers<[1], [0], [0], [1], [0, 0, 1, 1], [], []>} : vector<8x128xbf16>, vector<128x512xbf16>, vector<8x512xf32> -> vector<8x512xf32>
    %658 = arith.addf %657, %11 : vector<8x512xf32>
    %659 = arith.truncf %633 : vector<8x128xf32> to vector<8x128xbf16>
    %c0_182 = arith.constant 0 : index
    %c0_183 = arith.constant 0 : index
    %660 = vector.load %arg6[%c0_182, %c0_183] : memref<128x512xbf16, #tpu.memory_space<vmem>>, vector<128x512xbf16>
    %cst_184 = arith.constant dense<0.000000e+00> : vector<8x512xf32>
    %661 = tpu.matmul %659, %660, %cst_184 {dimension_numbers = #tpu.dot_dimension_numbers<[1], [0], [0], [1], [0, 0, 1, 1], [], []>} : vector<8x128xbf16>, vector<128x512xbf16>, vector<8x512xf32> -> vector<8x512xf32>
    %662 = arith.addf %658, %661 : vector<8x512xf32>
    %663 = vector.extract_strided_slice %662 {offsets = [0, 0], sizes = [8, 384], strides = [1, 1]} : vector<8x512xf32> to vector<8x384xf32>
    %664 = arith.negf %663 : vector<8x384xf32>
    %665 = math.exp %664 : vector<8x384xf32>
    %cst_185 = arith.constant 1.000000e+00 : f32
    %666 = vector.broadcast %cst_185 : f32 to vector<8x384xf32>
    %667 = arith.addf %666, %665 : vector<8x384xf32>
    %668 = arith.divf %666, %667 : vector<8x384xf32>
    %669 = vector.extract_strided_slice %668 {offsets = [0, 0], sizes = [8, 128], strides = [1, 1]} : vector<8x384xf32> to vector<8x128xf32>
    %670 = vector.extract_strided_slice %668 {offsets = [0, 128], sizes = [8, 128], strides = [1, 1]} : vector<8x384xf32> to vector<8x128xf32>
    %671 = vector.extract_strided_slice %668 {offsets = [0, 256], sizes = [8, 128], strides = [1, 1]} : vector<8x384xf32> to vector<8x128xf32>
    %672 = vector.extract_strided_slice %662 {offsets = [0, 384], sizes = [8, 128], strides = [1, 1]} : vector<8x512xf32> to vector<8x128xf32>
    %673 = math.tanh %672 : vector<8x128xf32>
    %674 = arith.mulf %670, %631 : vector<8x128xf32>
    %675 = arith.mulf %669, %673 : vector<8x128xf32>
    %676 = arith.addf %674, %675 : vector<8x128xf32>
    %677 = math.tanh %676 : vector<8x128xf32>
    %678 = arith.mulf %671, %677 : vector<8x128xf32>
    %c120 = arith.constant 120 : index
    %c0_186 = arith.constant 0 : index
    %679 = vector.load %arg11[%c120, %c0_186] : memref<128x512xf32, #tpu.memory_space<vmem>>, vector<8x512xf32>
    %680 = arith.truncf %654 : vector<8x128xf32> to vector<8x128xbf16>
    %c0_187 = arith.constant 0 : index
    %c0_188 = arith.constant 0 : index
    %681 = vector.load %arg3[%c0_187, %c0_188] : memref<128x512xbf16, #tpu.memory_space<vmem>>, vector<128x512xbf16>
    %cst_189 = arith.constant dense<0.000000e+00> : vector<8x512xf32>
    %682 = tpu.matmul %680, %681, %cst_189 {dimension_numbers = #tpu.dot_dimension_numbers<[1], [0], [0], [1], [0, 0, 1, 1], [], []>} : vector<8x128xbf16>, vector<128x512xbf16>, vector<8x512xf32> -> vector<8x512xf32>
    %683 = arith.addf %679, %682 : vector<8x512xf32>
    %684 = vector.extract_strided_slice %683 {offsets = [0, 0], sizes = [8, 384], strides = [1, 1]} : vector<8x512xf32> to vector<8x384xf32>
    %685 = arith.negf %684 : vector<8x384xf32>
    %686 = math.exp %685 : vector<8x384xf32>
    %cst_190 = arith.constant 1.000000e+00 : f32
    %687 = vector.broadcast %cst_190 : f32 to vector<8x384xf32>
    %688 = arith.addf %687, %686 : vector<8x384xf32>
    %689 = arith.divf %687, %688 : vector<8x384xf32>
    %690 = vector.extract_strided_slice %689 {offsets = [0, 0], sizes = [8, 128], strides = [1, 1]} : vector<8x384xf32> to vector<8x128xf32>
    %691 = vector.extract_strided_slice %689 {offsets = [0, 128], sizes = [8, 128], strides = [1, 1]} : vector<8x384xf32> to vector<8x128xf32>
    %692 = vector.extract_strided_slice %689 {offsets = [0, 256], sizes = [8, 128], strides = [1, 1]} : vector<8x384xf32> to vector<8x128xf32>
    %693 = vector.extract_strided_slice %683 {offsets = [0, 384], sizes = [8, 128], strides = [1, 1]} : vector<8x512xf32> to vector<8x128xf32>
    %694 = math.tanh %693 : vector<8x128xf32>
    %695 = arith.mulf %691, %652 : vector<8x128xf32>
    %696 = arith.mulf %690, %694 : vector<8x128xf32>
    %697 = arith.addf %695, %696 : vector<8x128xf32>
    %698 = math.tanh %697 : vector<8x128xf32>
    %699 = arith.mulf %692, %698 : vector<8x128xf32>
    %700 = arith.truncf %699 : vector<8x128xf32> to vector<8x128xbf16>
    %c0_191 = arith.constant 0 : index
    %c0_192 = arith.constant 0 : index
    %701 = vector.load %arg5[%c0_191, %c0_192] : memref<128x512xbf16, #tpu.memory_space<vmem>>, vector<128x512xbf16>
    %cst_193 = arith.constant dense<0.000000e+00> : vector<8x512xf32>
    %702 = tpu.matmul %700, %701, %cst_193 {dimension_numbers = #tpu.dot_dimension_numbers<[1], [0], [0], [1], [0, 0, 1, 1], [], []>} : vector<8x128xbf16>, vector<128x512xbf16>, vector<8x512xf32> -> vector<8x512xf32>
    %703 = arith.addf %702, %11 : vector<8x512xf32>
    %704 = arith.truncf %678 : vector<8x128xf32> to vector<8x128xbf16>
    %c0_194 = arith.constant 0 : index
    %c0_195 = arith.constant 0 : index
    %705 = vector.load %arg6[%c0_194, %c0_195] : memref<128x512xbf16, #tpu.memory_space<vmem>>, vector<128x512xbf16>
    %cst_196 = arith.constant dense<0.000000e+00> : vector<8x512xf32>
    %706 = tpu.matmul %704, %705, %cst_196 {dimension_numbers = #tpu.dot_dimension_numbers<[1], [0], [0], [1], [0, 0, 1, 1], [], []>} : vector<8x128xbf16>, vector<128x512xbf16>, vector<8x512xf32> -> vector<8x512xf32>
    %707 = arith.addf %703, %706 : vector<8x512xf32>
    %708 = vector.extract_strided_slice %707 {offsets = [0, 0], sizes = [8, 384], strides = [1, 1]} : vector<8x512xf32> to vector<8x384xf32>
    %709 = arith.negf %708 : vector<8x384xf32>
    %710 = math.exp %709 : vector<8x384xf32>
    %cst_197 = arith.constant 1.000000e+00 : f32
    %711 = vector.broadcast %cst_197 : f32 to vector<8x384xf32>
    %712 = arith.addf %711, %710 : vector<8x384xf32>
    %713 = arith.divf %711, %712 : vector<8x384xf32>
    %714 = vector.extract_strided_slice %713 {offsets = [0, 0], sizes = [8, 128], strides = [1, 1]} : vector<8x384xf32> to vector<8x128xf32>
    %715 = vector.extract_strided_slice %713 {offsets = [0, 128], sizes = [8, 128], strides = [1, 1]} : vector<8x384xf32> to vector<8x128xf32>
    %716 = vector.extract_strided_slice %713 {offsets = [0, 256], sizes = [8, 128], strides = [1, 1]} : vector<8x384xf32> to vector<8x128xf32>
    %717 = vector.extract_strided_slice %707 {offsets = [0, 384], sizes = [8, 128], strides = [1, 1]} : vector<8x512xf32> to vector<8x128xf32>
    %718 = math.tanh %717 : vector<8x128xf32>
    %719 = arith.mulf %715, %676 : vector<8x128xf32>
    %720 = arith.mulf %714, %718 : vector<8x128xf32>
    %721 = arith.addf %719, %720 : vector<8x128xf32>
    %722 = math.tanh %721 : vector<8x128xf32>
    %723 = arith.mulf %716, %722 : vector<8x128xf32>
    %724 = arith.truncf %723 : vector<8x128xf32> to vector<8x128xbf16>
    %c0_198 = arith.constant 0 : index
    %c0_199 = arith.constant 0 : index
    %725 = vector.load %arg8[%c0_198, %c0_199] : memref<128x128xbf16, #tpu.memory_space<vmem>>, vector<128x128xbf16>
    %cst_200 = arith.constant dense<0.000000e+00> : vector<8x128xf32>
    %726 = tpu.matmul %724, %725, %cst_200 {dimension_numbers = #tpu.dot_dimension_numbers<[1], [0], [0], [1], [0, 0, 1, 1], [], []>} : vector<8x128xbf16>, vector<128x128xbf16>, vector<8x128xf32> -> vector<8x128xf32>
    %c0_201 = arith.constant 0 : index
    %c0_202 = arith.constant 0 : index
    %727 = vector.load %arg9[%c0_201, %c0_202] : memref<1x128xf32, #tpu.memory_space<vmem>>, vector<1x128xf32>
    %728 = vector.broadcast %727 : vector<1x128xf32> to vector<8x128xf32>
    %729 = arith.addf %726, %728 : vector<8x128xf32>
    %c0_203 = arith.constant 0 : index
    %c0_204 = arith.constant 0 : index
    %c0_205 = arith.constant 0 : index
    %730 = vector.load %arg10[%c0_203, %c0_204, %c0_205] : memref<1x8x128xf32, #tpu.memory_space<vmem>>, vector<1x8x128xf32>
    %731 = vector.shape_cast %730 : vector<1x8x128xf32> to vector<8x128xf32>
    %732 = vector.shape_cast %729 : vector<8x128xf32> to vector<1x8x128xf32>
    tpu.vector_store %arg10[%c0_203, %c0_204, %c0_205], %732 {strides = array<i32>} : memref<1x8x128xf32, #tpu.memory_space<vmem>>, vector<1x8x128xf32>,
    return
  }
  func.func @transform_0(%arg0: i32) -> (i32, i32, i32) {
    %c0_i32 = arith.constant 0 : i32
    %c0_i32_0 = arith.constant 0 : i32
    %c0_i32_1 = arith.constant 0 : i32
    return %arg0, %c0_i32, %c0_i32_0 : i32, i32, i32
  }
  func.func @transform_1(%arg0: i32) -> (i32, i32) {
    %c0_i32 = arith.constant 0 : i32
    %c0_i32_0 = arith.constant 0 : i32
    %c0_i32_1 = arith.constant 0 : i32
    return %c0_i32, %c0_i32_0 : i32, i32
  }
  func.func @transform_2(%arg0: i32) -> (i32, i32) {
    %c0_i32 = arith.constant 0 : i32
    %c0_i32_0 = arith.constant 0 : i32
    %c0_i32_1 = arith.constant 0 : i32
    return %c0_i32, %c0_i32_0 : i32, i32
  }
  func.func @transform_3(%arg0: i32) -> (i32, i32) {
    %c0_i32 = arith.constant 0 : i32
    %c0_i32_0 = arith.constant 0 : i32
    %c0_i32_1 = arith.constant 0 : i32
    return %c0_i32, %c0_i32_0 : i32, i32
  }
  func.func @transform_4(%arg0: i32) -> (i32, i32) {
    %c0_i32 = arith.constant 0 : i32
    %c0_i32_0 = arith.constant 0 : i32
    %c0_i32_1 = arith.constant 0 : i32
    return %c0_i32, %c0_i32_0 : i32, i32
  }
  func.func @transform_5(%arg0: i32) -> (i32, i32) {
    %c0_i32 = arith.constant 0 : i32
    %c0_i32_0 = arith.constant 0 : i32
    %c0_i32_1 = arith.constant 0 : i32
    return %c0_i32, %c0_i32_0 : i32, i32
  }
  func.func @transform_6(%arg0: i32) -> (i32, i32) {
    %c0_i32 = arith.constant 0 : i32
    %c0_i32_0 = arith.constant 0 : i32
    %c0_i32_1 = arith.constant 0 : i32
    return %c0_i32, %c0_i32_0 : i32, i32
  }
  func.func @transform_7(%arg0: i32) -> (i32, i32) {
    %c0_i32 = arith.constant 0 : i32
    %c0_i32_0 = arith.constant 0 : i32
    %c0_i32_1 = arith.constant 0 : i32
    return %c0_i32, %c0_i32_0 : i32, i32
  }
  func.func @transform_8(%arg0: i32) -> (i32, i32) {
    %c0_i32 = arith.constant 0 : i32
    %c0_i32_0 = arith.constant 0 : i32
    %c0_i32_1 = arith.constant 0 : i32
    return %c0_i32, %c0_i32_0 : i32, i32
  }
  func.func @transform_9(%arg0: i32) -> (i32, i32, i32) {
    %c0_i32 = arith.constant 0 : i32
    %c0_i32_0 = arith.constant 0 : i32
    %c0_i32_1 = arith.constant 0 : i32
    return %arg0, %c0_i32, %c0_i32_0 : i32, i32, i32
  }
}

</mosaic_0001>

<llo_original>
// kernel: lstm_forward.1
$region0: #{lstm_forward.1}
  #allocation0 [shape = 'u32[]', space=smem, size = 0x4, offset = 0x4, fixed_abs, tag = 'smem constant byte address 0x4 - core index']
  #allocation1 [shape = 'u32[144,128]{1,0:T(1,128)}', space=vmem, size = 0x12000, scoped, tag = 'internal scratch']
  #allocation2 [shape = 'f32[128,512]{1,0:T(8,128)}', space=vmem, size = 0x40000, scoped, tag = 'scratch operand']
  %s0 = inlined_call_operand.vmem [shape: bf16[1,128,64], index: 0, kind: input, shape index: {}]
  %s1 = inlined_call_operand.vmem [shape: bf16[64,512], index: 1, kind: input, shape index: {}]
  %s2 = inlined_call_operand.vmem [shape: bf16[128,512], index: 2, kind: input, shape index: {}]
  %s3 = inlined_call_operand.vmem [shape: f32[1,512], index: 3, kind: input, shape index: {}]
  %s4 = inlined_call_operand.vmem [shape: bf16[128,512], index: 4, kind: input, shape index: {}]
  %s5 = inlined_call_operand.vmem [shape: bf16[128,512], index: 5, kind: input, shape index: {}]
  %s6 = inlined_call_operand.vmem [shape: f32[1,512], index: 6, kind: input, shape index: {}]
  %s7 = inlined_call_operand.vmem [shape: bf16[128,128], index: 7, kind: input, shape index: {}]
  %s8 = inlined_call_operand.vmem [shape: f32[1,128], index: 8, kind: input, shape index: {}]
  %s9 = inlined_call_operand.vmem [shape: f32[1,8,128], index: 9, kind: output, shape index: {}]
  %s10 = sld [smem:[#allocation0]]
  $region46: #{lstm_forward.1} parent=0
    _
  %s12 = ssub.s32 1, %s10
  %s13 = scalar_select 0, %s12, %s10
  // Predicated region
  $region2: #{lstm_forward.1} parent=0 // pred_check
    _
  $region3: #{lstm_forward.1} parent=0 // pred_check_branch
    %15 = sbr.rel (0) target = $region5
  $region4: #{lstm_forward.1} parent=0 // pred_region
    _
  $region5: #{lstm_forward.1} parent=0 // pred_fallthru
    _
  // Predicated region
  $region6: #{lstm_forward.1} parent=0 // pred_check
    _
  $region7: #{lstm_forward.1} parent=0 // pred_check_branch
    %17 = sbr.rel (0) target = $region9
  $region8: #{lstm_forward.1} parent=0 // pred_region
    _
  $region9: #{lstm_forward.1} parent=0 // pred_fallthru
    _
  // Predicated region
  $region10: #{lstm_forward.1} parent=0 // pred_check
    _
  $region11: #{lstm_forward.1} parent=0 // pred_check_branch
    %19 = sbr.rel (0) target = $region13
  $region12: #{lstm_forward.1} parent=0 // pred_region
    _
  $region13: #{lstm_forward.1} parent=0 // pred_fallthru
    _
  // Predicated region
  $region14: #{lstm_forward.1} parent=0 // pred_check
    _
  $region15: #{lstm_forward.1} parent=0 // pred_check_branch
    %21 = sbr.rel (0) target = $region17
  $region16: #{lstm_forward.1} parent=0 // pred_region
    _
  $region17: #{lstm_forward.1} parent=0 // pred_fallthru
    _
  // Predicated region
  $region18: #{lstm_forward.1} parent=0 // pred_check
    _
  $region19: #{lstm_forward.1} parent=0 // pred_check_branch
    %23 = sbr.rel (0) target = $region21
  $region20: #{lstm_forward.1} parent=0 // pred_region
    _
  $region21: #{lstm_forward.1} parent=0 // pred_fallthru
    _
  // Predicated region
  $region22: #{lstm_forward.1} parent=0 // pred_check
    _
  $region23: #{lstm_forward.1} parent=0 // pred_check_branch
    %25 = sbr.rel (0) target = $region25
  $region24: #{lstm_forward.1} parent=0 // pred_region
    _
  $region25: #{lstm_forward.1} parent=0 // pred_fallthru
    _
  // Predicated region
  $region26: #{lstm_forward.1} parent=0 // pred_check
    _
  $region27: #{lstm_forward.1} parent=0 // pred_check_branch
    %27 = sbr.rel (0) target = $region29
  $region28: #{lstm_forward.1} parent=0 // pred_region
    _
  $region29: #{lstm_forward.1} parent=0 // pred_fallthru
    _
  // Predicated region
  $region30: #{lstm_forward.1} parent=0 // pred_check
    _
  $region31: #{lstm_forward.1} parent=0 // pred_check_branch
    %29 = sbr.rel (0) target = $region33
  $region32: #{lstm_forward.1} parent=0 // pred_region
    _
  $region33: #{lstm_forward.1} parent=0 // pred_fallthru
    _
  // Predicated region
  $region34: #{lstm_forward.1} parent=0 // pred_check
    _
  $region35: #{lstm_forward.1} parent=0 // pred_check_branch
    %31 = sbr.rel (0) target = $region37
  $region36: #{lstm_forward.1} parent=0 // pred_region
    _
  $region37: #{lstm_forward.1} parent=0 // pred_fallthru
    _
  %v33 = vld [vmem:[%s0] sm:$0xf]
  %v34 = vld [vmem:[%s0 + $0x4] sm:$0xf]
  %v35 = vld [vmem:[%s0 + $0x8] sm:$0xf]
  %v36 = vld [vmem:[%s0 + $0xc] sm:$0xf]
  %v37 = vld [vmem:[%s0 + $0x10] sm:$0xf]
  %v38 = vld [vmem:[%s0 + $0x14] sm:$0xf]
  %v39 = vld [vmem:[%s0 + $0x18] sm:$0xf]
  %v40 = vld [vmem:[%s0 + $0x1c] sm:$0xf]
  %v41 = vld [vmem:[%s0 + $0x20] sm:$0xf]
  %v42 = vld [vmem:[%s0 + $0x24] sm:$0xf]
  %v43 = vld [vmem:[%s0 + $0x28] sm:$0xf]
  %v44 = vld [vmem:[%s0 + $0x2c] sm:$0xf]
  %v45 = vld [vmem:[%s0 + $0x30] sm:$0xf]
  %v46 = vld [vmem:[%s0 + $0x34] sm:$0xf]
  %v47 = vld [vmem:[%s0 + $0x38] sm:$0xf]
  %v48 = vld [vmem:[%s0 + $0x3c] sm:$0xf]
  %v49 = vld [vmem:[%s1] sm:$0xff]
  %v50 = vld [vmem:[%s1 + $0x8] sm:$0xff]
  %v51 = vld [vmem:[%s1 + $0x10] sm:$0xff]
  %v52 = vld [vmem:[%s1 + $0x18] sm:$0xff]
  %v53 = vld [vmem:[%s1 + $0x20] sm:$0xff]
  %v54 = vld [vmem:[%s1 + $0x28] sm:$0xff]
  %v55 = vld [vmem:[%s1 + $0x30] sm:$0xff]
  %v56 = vld [vmem:[%s1 + $0x38] sm:$0xff]
  %v57 = vld [vmem:[%s1 + $0x40] sm:$0xff]
  %v58 = vld [vmem:[%s1 + $0x48] sm:$0xff]
  %v59 = vld [vmem:[%s1 + $0x50] sm:$0xff]
  %v60 = vld [vmem:[%s1 + $0x58] sm:$0xff]
  %v61 = vld [vmem:[%s1 + $0x60] sm:$0xff]
  %v62 = vld [vmem:[%s1 + $0x68] sm:$0xff]
  %v63 = vld [vmem:[%s1 + $0x70] sm:$0xff]
  %v64 = vld [vmem:[%s1 + $0x78] sm:$0xff]
  %v65 = vld [vmem:[%s3] sm:$0xf]
  %v67 = vlaneseq
  %v68 = vshrl.u32 %v67, 7
  %v69 = vsub.s32 0, %v68
  %v70 = vrot.slane %v65, %v69
  %v71 = vlaneseq
  %v72 = vshrl.u32 %v71, 7
  %v73 = vsub.s32 1, %v72
  %v74 = vrot.slane %v65, %v73
  %v75 = vlaneseq
  %v76 = vshrl.u32 %v75, 7
  %v77 = vsub.s32 2, %v76
  %v78 = vrot.slane %v65, %v77
  %v79 = vlaneseq
  %v80 = vshrl.u32 %v79, 7
  %v81 = vsub.s32 3, %v80
  %v82 = vrot.slane %v65, %v81
  %v103 = vunpack.c.l.b16 %v33
  %v104 = vunpack.c.l.b16 %v34
  %v105 = vunpack.c.l.b16 %v35
  %v106 = vunpack.c.l.b16 %v36
  %v107 = vunpack.c.l.b16 %v37
  %v108 = vunpack.c.l.b16 %v38
  %v109 = vunpack.c.l.b16 %v39
  %v110 = vunpack.c.l.b16 %v40
  %v111 = vunpack.c.l.b16 %v41
  %v112 = vunpack.c.l.b16 %v42
  %v113 = vunpack.c.l.b16 %v43
  %v114 = vunpack.c.l.b16 %v44
  %v115 = vunpack.c.l.b16 %v45
  %v116 = vunpack.c.l.b16 %v46
  %v117 = vunpack.c.l.b16 %v47
  %v118 = vunpack.c.l.b16 %v48
  %v119 = vpack.c.b16 %v104, %v103
  %v120 = vpack.c.b16 %v106, %v105
  %v121 = vpack.c.b16 %v108, %v107
  %v122 = vpack.c.b16 %v110, %v109
  %v123 = vpack.c.b16 %v112, %v111
  %v124 = vpack.c.b16 %v114, %v113
  %v125 = vpack.c.b16 %v116, %v115
  %v126 = vpack.c.b16 %v118, %v117
  %v143 = vunpack.c.l.b16 %v49
  %v144 = vunpack.c.h.b16 %v49
  %v145 = vunpack.c.l.b16 %v50
  %v146 = vunpack.c.h.b16 %v50
  %v147 = vunpack.c.l.b16 %v51
  %v148 = vunpack.c.h.b16 %v51
  %v149 = vunpack.c.l.b16 %v52
  %v150 = vunpack.c.h.b16 %v52
  %v151 = vunpack.c.l.b16 %v53
  %v152 = vunpack.c.h.b16 %v53
  %v153 = vunpack.c.l.b16 %v54
  %v154 = vunpack.c.h.b16 %v54
  %v155 = vunpack.c.l.b16 %v55
  %v156 = vunpack.c.h.b16 %v55
  %v157 = vunpack.c.l.b16 %v56
  %v158 = vunpack.c.h.b16 %v56
  %v159 = vunpack.c.l.b16 %v57
  %v160 = vunpack.c.h.b16 %v57
  %v161 = vunpack.c.l.b16 %v58
  %v162 = vunpack.c.h.b16 %v58
  %v163 = vunpack.c.l.b16 %v59
  %v164 = vunpack.c.h.b16 %v59
  %v165 = vunpack.c.l.b16 %v60
  %v166 = vunpack.c.h.b16 %v60
  %v167 = vunpack.c.l.b16 %v61
  %v168 = vunpack.c.h.b16 %v61
  %v169 = vunpack.c.l.b16 %v62
  %v170 = vunpack.c.h.b16 %v62
  %v171 = vunpack.c.l.b16 %v63
  %v172 = vunpack.c.h.b16 %v63
  %v173 = vunpack.c.l.b16 %v64
  %v174 = vunpack.c.h.b16 %v64
  %v175 = vpack.c.b16 %v147, %v143
  %v176 = vpack.c.b16 %v148, %v144
  %v177 = vpack.c.b16 %v149, %v145
  %v178 = vpack.c.b16 %v150, %v146
  %v179 = vpack.c.b16 %v155, %v151
  %v180 = vpack.c.b16 %v156, %v152
  %v181 = vpack.c.b16 %v157, %v153
  %v182 = vpack.c.b16 %v158, %v154
  %v183 = vpack.c.b16 %v163, %v159
  %v184 = vpack.c.b16 %v164, %v160
  %v185 = vpack.c.b16 %v165, %v161
  %v186 = vpack.c.b16 %v166, %v162
  %v187 = vpack.c.b16 %v171, %v167
  %v188 = vpack.c.b16 %v172, %v168
  %v189 = vpack.c.b16 %v173, %v169
  %v190 = vpack.c.b16 %v174, %v170
  %vm207 = vcmask 523264
  %v209 = vsel %vm207, %v119, 0
  %v212 = vsel %vm207, %v120, 0
  %v215 = vsel %vm207, %v121, 0
  %v218 = vsel %vm207, %v122, 0
  %v221 = vsel %vm207, %v123, 0
  %v224 = vsel %vm207, %v124, 0
  %v227 = vsel %vm207, %v125, 0
  %v230 = vsel %vm207, %v126, 0
  %232 = vmatprep.subr.bf16.mxu0 %v176
  %233 = vmatpush1.bf16.msra.mxu0 %v175
  %234 = vmatprep.subr.bf16.mxu0 %v180
  %235 = vmatpush1.bf16.msra.mxu0 %v179
  %236 = vmatprep.subr.bf16.mxu0 %v184
  %237 = vmatpush1.bf16.msra.mxu0 %v183
  %238 = vmatprep.subr.bf16.mxu0 %v188
  %239 = vmatpush1.bf16.msra.mxu0 %v187
  %240 = vmatprep.subr.bf16.mxu0 0
  %241 = vmatpush1.bf16.msra.mxu0 0
  %242 = vmatprep.subr.bf16.mxu0 0
  %243 = vmatpush1.bf16.msra.mxu0 0
  %244 = vmatprep.subr.bf16.mxu0 0
  %245 = vmatpush1.bf16.msra.mxu0 0
  %246 = vmatprep.subr.bf16.mxu0 0
  %247 = vmatpush1.bf16.msra.mxu0 0
  %248 = vmatprep.subr.bf16.mxu0 0
  %249 = vmatpush1.bf16.msra.mxu0 0
  %250 = vmatprep.subr.bf16.mxu0 0
  %251 = vmatpush1.bf16.msra.mxu0 0
  %252 = vmatprep.subr.bf16.mxu0 0
  %253 = vmatpush1.bf16.msra.mxu0 0
  %254 = vmatprep.subr.bf16.mxu0 0
  %255 = vmatpush1.bf16.msra.mxu0 0
  %256 = vmatprep.subr.bf16.mxu0 0
  %257 = vmatpush1.bf16.msra.mxu0 0
  %258 = vmatprep.subr.bf16.mxu0 0
  %259 = vmatpush1.bf16.msra.mxu0 0
  %260 = vmatprep.subr.bf16.mxu0 0
  %261 = vmatpush1.bf16.msra.mxu0 0
  %262 = vmatprep.subr.bf16.mxu0 0
  %263 = vmatpush1.bf16.msra.mxu0 0
  %264 = vmatprep.mubr.bf16.mxu0 0
  %265 = vmatmul.mubr.bf16.gmra.mrb[0].mxu0 %v209
  %v266 = vpop.f32.mrb[0].mxu0
  %v267 = vadd.f32 %v70, %v266
  %v268 = vpop.f32.mrb[0].mxu0
  %v269 = vadd.f32 %v74, %v268
  %v270 = vpop.f32.mrb[0].mxu0
  %v271 = vadd.f32 %v70, %v270
  %v272 = vpop.f32.mrb[0].mxu0
  %v273 = vadd.f32 %v74, %v272
  %274 = vmatprep.mubr.bf16.mxu0 0
  %275 = vmatmul.mubr.bf16.gmra.mrb[0].mxu0 %v212
  %v276 = vpop.f32.mrb[0].mxu0
  %v277 = vadd.f32 %v70, %v276
  %v278 = vpop.f32.mrb[0].mxu0
  %v279 = vadd.f32 %v74, %v278
  %v280 = vpop.f32.mrb[0].mxu0
  %v281 = vadd.f32 %v70, %v280
  %v282 = vpop.f32.mrb[0].mxu0
  %v283 = vadd.f32 %v74, %v282
  %284 = vmatprep.mubr.bf16.mxu0 0
  %285 = vmatmul.mubr.bf16.gmra.mrb[0].mxu0 %v215
  %v286 = vpop.f32.mrb[0].mxu0
  %v287 = vadd.f32 %v70, %v286
  %v288 = vpop.f32.mrb[0].mxu0
  %v289 = vadd.f32 %v74, %v288
  %v290 = vpop.f32.mrb[0].mxu0
  %v291 = vadd.f32 %v70, %v290
  %v292 = vpop.f32.mrb[0].mxu0
  %v293 = vadd.f32 %v74, %v292
  %294 = vmatprep.mubr.bf16.mxu0 0
  %295 = vmatmul.mubr.bf16.gmra.mrb[0].mxu0 %v218
  %v296 = vpop.f32.mrb[0].mxu0
  %v297 = vadd.f32 %v70, %v296
  %v298 = vpop.f32.mrb[0].mxu0
  %v299 = vadd.f32 %v74, %v298
  %v300 = vpop.f32.mrb[0].mxu0
  %v301 = vadd.f32 %v70, %v300
  %v302 = vpop.f32.mrb[0].mxu0
  %v303 = vadd.f32 %v74, %v302
  %304 = vmatprep.mubr.bf16.mxu0 0
  %305 = vmatmul.mubr.bf16.gmra.mrb[0].mxu0 %v221
  %v306 = vpop.f32.mrb[0].mxu0
  %v307 = vadd.f32 %v70, %v306
  %v308 = vpop.f32.mrb[0].mxu0
  %v309 = vadd.f32 %v74, %v308
  %v310 = vpop.f32.mrb[0].mxu0
  %v311 = vadd.f32 %v70, %v310
  %v312 = vpop.f32.mrb[0].mxu0
  %v313 = vadd.f32 %v74, %v312
  %314 = vmatprep.mubr.bf16.mxu0 0
  %315 = vmatmul.mubr.bf16.gmra.mrb[0].mxu0 %v224
  %v316 = vpop.f32.mrb[0].mxu0
  %v317 = vadd.f32 %v70, %v316
  %v318 = vpop.f32.mrb[0].mxu0
  %v319 = vadd.f32 %v74, %v318
  %v320 = vpop.f32.mrb[0].mxu0
  %v321 = vadd.f32 %v70, %v320
  %v322 = vpop.f32.mrb[0].mxu0
  %v323 = vadd.f32 %v74, %v322
  %324 = vmatprep.mubr.bf16.mxu0 0
  %325 = vmatmul.mubr.bf16.gmra.mrb[0].mxu0 %v227
  %v326 = vpop.f32.mrb[0].mxu0
  %v327 = vadd.f32 %v70, %v326
  %v328 = vpop.f32.mrb[0].mxu0
  %v329 = vadd.f32 %v74, %v328
  %v330 = vpop.f32.mrb[0].mxu0
  %v331 = vadd.f32 %v70, %v330
  %v332 = vpop.f32.mrb[0].mxu0
  %v333 = vadd.f32 %v74, %v332
  %334 = vmatprep.mubr.bf16.mxu0 0
  %335 = vmatmul.mubr.bf16.gmra.mrb[0].mxu0 %v230
  %v336 = vpop.f32.mrb[0].mxu0
  %v337 = vadd.f32 %v70, %v336
  %v338 = vpop.f32.mrb[0].mxu0
  %v339 = vadd.f32 %v74, %v338
  %v340 = vpop.f32.mrb[0].mxu0
  %v341 = vadd.f32 %v70, %v340
  %v342 = vpop.f32.mrb[0].mxu0
  %v343 = vadd.f32 %v74, %v342
  %344 = vdwg.mxu0
  %345 = vmatprep.subr.bf16.mxu0 %v178
  %346 = vmatpush1.bf16.msra.mxu0 %v177
  %347 = vmatprep.subr.bf16.mxu0 %v182
  %348 = vmatpush1.bf16.msra.mxu0 %v181
  %349 = vmatprep.subr.bf16.mxu0 %v186
  %350 = vmatpush1.bf16.msra.mxu0 %v185
  %351 = vmatprep.subr.bf16.mxu0 %v190
  %352 = vmatpush1.bf16.msra.mxu0 %v189
  %353 = vmatprep.subr.bf16.mxu0 0
  %354 = vmatpush1.bf16.msra.mxu0 0
  %355 = vmatprep.subr.bf16.mxu0 0
  %356 = vmatpush1.bf16.msra.mxu0 0
  %357 = vmatprep.subr.bf16.mxu0 0
  %358 = vmatpush1.bf16.msra.mxu0 0
  %359 = vmatprep.subr.bf16.mxu0 0
  %360 = vmatpush1.bf16.msra.mxu0 0
  %361 = vmatprep.subr.bf16.mxu0 0
  %362 = vmatpush1.bf16.msra.mxu0 0
  %363 = vmatprep.subr.bf16.mxu0 0
  %364 = vmatpush1.bf16.msra.mxu0 0
  %365 = vmatprep.subr.bf16.mxu0 0
  %366 = vmatpush1.bf16.msra.mxu0 0
  %367 = vmatprep.subr.bf16.mxu0 0
  %368 = vmatpush1.bf16.msra.mxu0 0
  %369 = vmatprep.subr.bf16.mxu0 0
  %370 = vmatpush1.bf16.msra.mxu0 0
  %371 = vmatprep.subr.bf16.mxu0 0
  %372 = vmatpush1.bf16.msra.mxu0 0
  %373 = vmatprep.subr.bf16.mxu0 0
  %374 = vmatpush1.bf16.msra.mxu0 0
  %375 = vmatprep.subr.bf16.mxu0 0
  %376 = vmatpush1.bf16.msra.mxu0 0
  %377 = vmatprep.mubr.bf16.mxu0 0
  %378 = vmatmul.mubr.bf16.gmra.mrb[0].mxu0 %v209
  %v379 = vpop.f32.mrb[0].mxu0
  %v380 = vadd.f32 %v78, %v379
  %v381 = vpop.f32.mrb[0].mxu0
  %v382 = vadd.f32 %v82, %v381
  %v383 = vpop.f32.mrb[0].mxu0
  %v384 = vadd.f32 %v78, %v383
  %v385 = vpop.f32.mrb[0].mxu0
  %v386 = vadd.f32 %v82, %v385
  %387 = vmatprep.mubr.bf16.mxu0 0
  %388 = vmatmul.mubr.bf16.gmra.mrb[0].mxu0 %v212
  %v389 = vpop.f32.mrb[0].mxu0
  %v390 = vadd.f32 %v78, %v389
  %v391 = vpop.f32.mrb[0].mxu0
  %v392 = vadd.f32 %v82, %v391
  %v393 = vpop.f32.mrb[0].mxu0
  %v394 = vadd.f32 %v78, %v393
  %v395 = vpop.f32.mrb[0].mxu0
  %v396 = vadd.f32 %v82, %v395
  %397 = vmatprep.mubr.bf16.mxu0 0
  %398 = vmatmul.mubr.bf16.gmra.mrb[0].mxu0 %v215
  %v399 = vpop.f32.mrb[0].mxu0
  %v400 = vadd.f32 %v78, %v399
  %v401 = vpop.f32.mrb[0].mxu0
  %v402 = vadd.f32 %v82, %v401
  %v403 = vpop.f32.mrb[0].mxu0
  %v404 = vadd.f32 %v78, %v403
  %v405 = vpop.f32.mrb[0].mxu0
  %v406 = vadd.f32 %v82, %v405
  %407 = vmatprep.mubr.bf16.mxu0 0
  %408 = vmatmul.mubr.bf16.gmra.mrb[0].mxu0 %v218
  %v409 = vpop.f32.mrb[0].mxu0
  %v410 = vadd.f32 %v78, %v409
  %v411 = vpop.f32.mrb[0].mxu0
  %v412 = vadd.f32 %v82, %v411
  %v413 = vpop.f32.mrb[0].mxu0
  %v414 = vadd.f32 %v78, %v413
  %v415 = vpop.f32.mrb[0].mxu0
  %v416 = vadd.f32 %v82, %v415
  %417 = vmatprep.mubr.bf16.mxu0 0
  %418 = vmatmul.mubr.bf16.gmra.mrb[0].mxu0 %v221
  %v419 = vpop.f32.mrb[0].mxu0
  %v420 = vadd.f32 %v78, %v419
  %v421 = vpop.f32.mrb[0].mxu0
  %v422 = vadd.f32 %v82, %v421
  %v423 = vpop.f32.mrb[0].mxu0
  %v424 = vadd.f32 %v78, %v423
  %v425 = vpop.f32.mrb[0].mxu0
  %v426 = vadd.f32 %v82, %v425
  %427 = vmatprep.mubr.bf16.mxu0 0
  %428 = vmatmul.mubr.bf16.gmra.mrb[0].mxu0 %v224
  %v429 = vpop.f32.mrb[0].mxu0
  %v430 = vadd.f32 %v78, %v429
  %v431 = vpop.f32.mrb[0].mxu0
  %v432 = vadd.f32 %v82, %v431
  %v433 = vpop.f32.mrb[0].mxu0
  %v434 = vadd.f32 %v78, %v433
  %v435 = vpop.f32.mrb[0].mxu0
  %v436 = vadd.f32 %v82, %v435
  %437 = vmatprep.mubr.bf16.mxu0 0
  %438 = vmatmul.mubr.bf16.gmra.mrb[0].mxu0 %v227
  %v439 = vpop.f32.mrb[0].mxu0
  %v440 = vadd.f32 %v78, %v439
  %v441 = vpop.f32.mrb[0].mxu0
  %v442 = vadd.f32 %v82, %v441
  %v443 = vpop.f32.mrb[0].mxu0
  %v444 = vadd.f32 %v78, %v443
  %v445 = vpop.f32.mrb[0].mxu0
  %v446 = vadd.f32 %v82, %v445
  %447 = vmatprep.mubr.bf16.mxu0 0
  %448 = vmatmul.mubr.bf16.gmra.mrb[0].mxu0 %v230
  %v449 = vpop.f32.mrb[0].mxu0
  %v450 = vadd.f32 %v78, %v449
  %v451 = vpop.f32.mrb[0].mxu0
  %v452 = vadd.f32 %v82, %v451
  %v453 = vpop.f32.mrb[0].mxu0
  %v454 = vadd.f32 %v78, %v453
  %v455 = vpop.f32.mrb[0].mxu0
  %v456 = vadd.f32 %v82, %v455
  %457 = vdwg.mxu0
  %458 = vst [vmem:[#allocation2] sm:$0xff] %v267
  %459 = vst [vmem:[#allocation2 + $0x8] sm:$0xff] %v269
  %460 = vst [vmem:[#allocation2 + $0x10] sm:$0xff] %v380
  %461 = vst [vmem:[#allocation2 + $0x18] sm:$0xff] %v382
  %462 = vst [vmem:[#allocation2 + $0x20] sm:$0xff] %v271
  %463 = vst [vmem:[#allocation2 + $0x28] sm:$0xff] %v273
  %464 = vst [vmem:[#allocation2 + $0x30] sm:$0xff] %v384
  %465 = vst [vmem:[#allocation2 + $0x38] sm:$0xff] %v386
  %466 = vst [vmem:[#allocation2 + $0x40] sm:$0xff] %v277
  %467 = vst [vmem:[#allocation2 + $0x48] sm:$0xff] %v279
  %468 = vst [vmem:[#allocation2 + $0x50] sm:$0xff] %v390
  %469 = vst [vmem:[#allocation2 + $0x58] sm:$0xff] %v392
  %470 = vst [vmem:[#allocation2 + $0x60] sm:$0xff] %v281
  %471 = vst [vmem:[#allocation2 + $0x68] sm:$0xff] %v283
  %472 = vst [vmem:[#allocation2 + $0x70] sm:$0xff] %v394
  %473 = vst [vmem:[#allocation2 + $0x78] sm:$0xff] %v396
  %474 = vst [vmem:[#allocation2 + $0x80] sm:$0xff] %v287
  %475 = vst [vmem:[#allocation2 + $0x88] sm:$0xff] %v289
  %476 = vst [vmem:[#allocation2 + $0x90] sm:$0xff] %v400
  %477 = vst [vmem:[#allocation2 + $0x98] sm:$0xff] %v402
  %478 = vst [vmem:[#allocation2 + $0xa0] sm:$0xff] %v291
  %479 = vst [vmem:[#allocation2 + $0xa8] sm:$0xff] %v293
  %480 = vst [vmem:[#allocation2 + $0xb0] sm:$0xff] %v404
  %481 = vst [vmem:[#allocation2 + $0xb8] sm:$0xff] %v406
  %482 = vst [vmem:[#allocation2 + $0xc0] sm:$0xff] %v297
  %483 = vst [vmem:[#allocation2 + $0xc8] sm:$0xff] %v299
  %484 = vst [vmem:[#allocation2 + $0xd0] sm:$0xff] %v410
  %485 = vst [vmem:[#allocation2 + $0xd8] sm:$0xff] %v412
  %486 = vst [vmem:[#allocation2 + $0xe0] sm:$0xff] %v301
  %487 = vst [vmem:[#allocation2 + $0xe8] sm:$0xff] %v303
  %488 = vst [vmem:[#allocation2 + $0xf0] sm:$0xff] %v414
  %489 = vst [vmem:[#allocation2 + $0xf8] sm:$0xff] %v416
  %490 = vst [vmem:[#allocation2 + $0x100] sm:$0xff] %v307
  %491 = vst [vmem:[#allocation2 + $0x108] sm:$0xff] %v309
  %492 = vst [vmem:[#allocation2 + $0x110] sm:$0xff] %v420
  %493 = vst [vmem:[#allocation2 + $0x118] sm:$0xff] %v422
  %494 = vst [vmem:[#allocation2 + $0x120] sm:$0xff] %v311
  %495 = vst [vmem:[#allocation2 + $0x128] sm:$0xff] %v313
  %496 = vst [vmem:[#allocation2 + $0x130] sm:$0xff] %v424
  %497 = vst [vmem:[#allocation2 + $0x138] sm:$0xff] %v426
  %498 = vst [vmem:[#allocation2 + $0x140] sm:$0xff] %v317
  %499 = vst [vmem:[#allocation2 + $0x148] sm:$0xff] %v319
  %500 = vst [vmem:[#allocation2 + $0x150] sm:$0xff] %v430
  %501 = vst [vmem:[#allocation2 + $0x158] sm:$0xff] %v432
  %502 = vst [vmem:[#allocation2 + $0x160] sm:$0xff] %v321
  %503 = vst [vmem:[#allocation2 + $0x168] sm:$0xff] %v323
  %504 = vst [vmem:[#allocation2 + $0x170] sm:$0xff] %v434
  %505 = vst [vmem:[#allocation2 + $0x178] sm:$0xff] %v436
  %506 = vst [vmem:[#allocation2 + $0x180] sm:$0xff] %v327
  %507 = vst [vmem:[#allocation2 + $0x188] sm:$0xff] %v329
  %508 = vst [vmem:[#allocation2 + $0x190] sm:$0xff] %v440
  %509 = vst [vmem:[#allocation2 + $0x198] sm:$0xff] %v442
  %510 = vst [vmem:[#allocation2 + $0x1a0] sm:$0xff] %v331
  %511 = vst [vmem:[#allocation2 + $0x1a8] sm:$0xff] %v333
  %512 = vst [vmem:[#allocation2 + $0x1b0] sm:$0xff] %v444
  %513 = vst [vmem:[#allocation2 + $0x1b8] sm:$0xff] %v446
  %514 = vst [vmem:[#allocation2 + $0x1c0] sm:$0xff] %v337
  %515 = vst [vmem:[#allocation2 + $0x1c8] sm:$0xff] %v339
  %516 = vst [vmem:[#allocation2 + $0x1d0] sm:$0xff] %v450
  %517 = vst [vmem:[#allocation2 + $0x1d8] sm:$0xff] %v452
  %518 = vst [vmem:[#allocation2 + $0x1e0] sm:$0xff] %v341
  %519 = vst [vmem:[#allocation2 + $0x1e8] sm:$0xff] %v343
  %520 = vst [vmem:[#allocation2 + $0x1f0] sm:$0xff] %v454
  %521 = vst [vmem:[#allocation2 + $0x1f8] sm:$0xff] %v456
  %v522 = vld [vmem:[%s6] sm:$0xf]
  %v524 = vlaneseq
  %v525 = vshrl.u32 %v524, 7
  %v526 = vsub.s32 0, %v525
  %v527 = vrot.slane %v522, %v526
  %v528 = vlaneseq
  %v529 = vshrl.u32 %v528, 7
  %v530 = vsub.s32 1, %v529
  %v531 = vrot.slane %v522, %v530
  %v532 = vlaneseq
  %v533 = vshrl.u32 %v532, 7
  %v534 = vsub.s32 2, %v533
  %v535 = vrot.slane %v522, %v534
  %v536 = vlaneseq
  %v537 = vshrl.u32 %v536, 7
  %v538 = vsub.s32 3, %v537
  %v539 = vrot.slane %v522, %v538
  %v544 = vld [vmem:[#allocation2] sm:$0xff]
  %v545 = vld [vmem:[#allocation2 + $0x8] sm:$0xff]
  %v546 = vld [vmem:[#allocation2 + $0x10] sm:$0xff]
  %v547 = vld [vmem:[#allocation2 + $0x18] sm:$0xff]
  %v548 = vxor.u32 %v544, 2147483648
  %v549 = vxor.u32 %v545, 2147483648
  %v550 = vxor.u32 %v546, 2147483648
  %v551 = vmul.f32 %v548, 1.442695
  %v552 = vpow.pop %v551
  %v553 = vmul.f32 %v549, 1.442695
  %v554 = vpow.pop %v553
  %v555 = vmul.f32 %v550, 1.442695
  %v556 = vpow.pop %v555
  %v557 = vadd.f32 %v552, 1.0
  %v558 = vadd.f32 %v554, 1.0
  %v559 = vadd.f32 %v556, 1.0
  %v560 = vrcp.pop %v557
  %v561 = vmul.f32 1.0, %v560
  %v562 = vrcp.pop %v558
  %v563 = vmul.f32 1.0, %v562
  %v564 = vrcp.pop %v559
  %v565 = vmul.f32 1.0, %v564
  %v566 = vtanh.pop %v547
  %v567 = vmul.f32 %v563, 0.0
  %v568 = vmul.f32 %v561, %v566
  %v569 = vadd.f32 %v567, %v568
  %v570 = vtanh.pop %v569
  %v571 = vmul.f32 %v565, %v570
  %v572 = vpack.c.bf16 %v571, %v571
  %v573 = vld [vmem:[%s4] sm:$0xff]
  %v574 = vld [vmem:[%s4 + $0x8] sm:$0xff]
  %v575 = vld [vmem:[%s4 + $0x10] sm:$0xff]
  %v576 = vld [vmem:[%s4 + $0x18] sm:$0xff]
  %v577 = vld [vmem:[%s4 + $0x20] sm:$0xff]
  %v578 = vld [vmem:[%s4 + $0x28] sm:$0xff]
  %v579 = vld [vmem:[%s4 + $0x30] sm:$0xff]
  %v580 = vld [vmem:[%s4 + $0x38] sm:$0xff]
  %v581 = vld [vmem:[%s4 + $0x40] sm:$0xff]
  %v582 = vld [vmem:[%s4 + $0x48] sm:$0xff]
  %v583 = vld [vmem:[%s4 + $0x50] sm:$0xff]
  %v584 = vld [vmem:[%s4 + $0x58] sm:$0xff]
  %v585 = vld [vmem:[%s4 + $0x60] sm:$0xff]
  %v586 = vld [vmem:[%s4 + $0x68] sm:$0xff]
  %v587 = vld [vmem:[%s4 + $0x70] sm:$0xff]
  %v588 = vld [vmem:[%s4 + $0x78] sm:$0xff]
  %v589 = vld [vmem:[%s4 + $0x80] sm:$0xff]
  %v590 = vld [vmem:[%s4 + $0x88] sm:$0xff]
  %v591 = vld [vmem:[%s4 + $0x90] sm:$0xff]
  %v592 = vld [vmem:[%s4 + $0x98] sm:$0xff]
  %v593 = vld [vmem:[%s4 + $0xa0] sm:$0xff]
  %v594 = vld [vmem:[%s4 + $0xa8] sm:$0xff]
  %v595 = vld [vmem:[%s4 + $0xb0] sm:$0xff]
  %v596 = vld [vmem:[%s4 + $0xb8] sm:$0xff]
  %v597 = vld [vmem:[%s4 + $0xc0] sm:$0xff]
  %v598 = vld [vmem:[%s4 + $0xc8] sm:$0xff]
  %v599 = vld [vmem:[%s4 + $0xd0] sm:$0xff]
  %v600 = vld [vmem:[%s4 + $0xd8] sm:$0xff]
  %v601 = vld [vmem:[%s4 + $0xe0] sm:$0xff]
  %v602 = vld [vmem:[%s4 + $0xe8] sm:$0xff]
  %v603 = vld [vmem:[%s4 + $0xf0] sm:$0xff]
  %v604 = vld [vmem:[%s4 + $0xf8] sm:$0xff]
  %v637 = vunpack.c.l.b16 %v573
  %v638 = vunpack.c.h.b16 %v573
  %v639 = vunpack.c.l.b16 %v574
  %v640 = vunpack.c.h.b16 %v574
  %v641 = vunpack.c.l.b16 %v575
  %v642 = vunpack.c.h.b16 %v575
  %v643 = vunpack.c.l.b16 %v576
  %v644 = vunpack.c.h.b16 %v576
  %v645 = vunpack.c.l.b16 %v577
  %v646 = vunpack.c.h.b16 %v577
  %v647 = vunpack.c.l.b16 %v578
  %v648 = vunpack.c.h.b16 %v578
  %v649 = vunpack.c.l.b16 %v579
  %v650 = vunpack.c.h.b16 %v579
  %v651 = vunpack.c.l.b16 %v580
  %v652 = vunpack.c.h.b16 %v580
  %v653 = vunpack.c.l.b16 %v581
  %v654 = vunpack.c.h.b16 %v581
  %v655 = vunpack.c.l.b16 %v582
  %v656 = vunpack.c.h.b16 %v582
  %v657 = vunpack.c.l.b16 %v583
  %v658 = vunpack.c.h.b16 %v583
  %v659 = vunpack.c.l.b16 %v584
  %v660 = vunpack.c.h.b16 %v584
  %v661 = vunpack.c.l.b16 %v585
  %v662 = vunpack.c.h.b16 %v585
  %v663 = vunpack.c.l.b16 %v586
  %v664 = vunpack.c.h.b16 %v586
  %v665 = vunpack.c.l.b16 %v587
  %v666 = vunpack.c.h.b16 %v587
  %v667 = vunpack.c.l.b16 %v588
  %v668 = vunpack.c.h.b16 %v588
  %v669 = vunpack.c.l.b16 %v589
  %v670 = vunpack.c.h.b16 %v589
  %v671 = vunpack.c.l.b16 %v590
  %v672 = vunpack.c.h.b16 %v590
  %v673 = vunpack.c.l.b16 %v591
  %v674 = vunpack.c.h.b16 %v591
  %v675 = vunpack.c.l.b16 %v592
  %v676 = vunpack.c.h.b16 %v592
  %v677 = vunpack.c.l.b16 %v593
  %v678 = vunpack.c.h.b16 %v593
  %v679 = vunpack.c.l.b16 %v594
  %v680 = vunpack.c.h.b16 %v594
  %v681 = vunpack.c.l.b16 %v595
  %v682 = vunpack.c.h.b16 %v595
  %v683 = vunpack.c.l.b16 %v596
  %v684 = vunpack.c.h.b16 %v596
  %v685 = vunpack.c.l.b16 %v597
  %v686 = vunpack.c.h.b16 %v597
  %v687 = vunpack.c.l.b16 %v598
  %v688 = vunpack.c.h.b16 %v598
  %v689 = vunpack.c.l.b16 %v599
  %v690 = vunpack.c.h.b16 %v599
  %v691 = vunpack.c.l.b16 %v600
  %v692 = vunpack.c.h.b16 %v600
  %v693 = vunpack.c.l.b16 %v601
  %v694 = vunpack.c.h.b16 %v601
  %v695 = vunpack.c.l.b16 %v602
  %v696 = vunpack.c.h.b16 %v602
  %v697 = vunpack.c.l.b16 %v603
  %v698 = vunpack.c.h.b16 %v603
  %v699 = vunpack.c.l.b16 %v604
  %v700 = vunpack.c.h.b16 %v604
  %v701 = vpack.c.b16 %v641, %v637
  %v702 = vpack.c.b16 %v642, %v638
  %v703 = vpack.c.b16 %v643, %v639
  %v704 = vpack.c.b16 %v644, %v640
  %v705 = vpack.c.b16 %v649, %v645
  %v706 = vpack.c.b16 %v650, %v646
  %v707 = vpack.c.b16 %v651, %v647
  %v708 = vpack.c.b16 %v652, %v648
  %v709 = vpack.c.b16 %v657, %v653
  %v710 = vpack.c.b16 %v658, %v654
  %v711 = vpack.c.b16 %v659, %v655
  %v712 = vpack.c.b16 %v660, %v656
  %v713 = vpack.c.b16 %v665, %v661
  %v714 = vpack.c.b16 %v666, %v662
  %v715 = vpack.c.b16 %v667, %v663
  %v716 = vpack.c.b16 %v668, %v664
  %v717 = vpack.c.b16 %v673, %v669
  %v718 = vpack.c.b16 %v674, %v670
  %v719 = vpack.c.b16 %v675, %v671
  %v720 = vpack.c.b16 %v676, %v672
  %v721 = vpack.c.b16 %v681, %v677
  %v722 = vpack.c.b16 %v682, %v678
  %v723 = vpack.c.b16 %v683, %v679
  %v724 = vpack.c.b16 %v684, %v680
  %v725 = vpack.c.b16 %v689, %v685
  %v726 = vpack.c.b16 %v690, %v686
  %v727 = vpack.c.b16 %v691, %v687
  %v728 = vpack.c.b16 %v692, %v688
  %v729 = vpack.c.b16 %v697, %v693
  %v730 = vpack.c.b16 %v698, %v694
  %v731 = vpack.c.b16 %v699, %v695
  %v732 = vpack.c.b16 %v700, %v696
  %765 = vmatprep.subr.bf16.mxu0 %v702
  %766 = vmatpush1.bf16.msra.mxu0 %v701
  %767 = vmatprep.subr.bf16.mxu0 %v706
  %768 = vmatpush1.bf16.msra.mxu0 %v705
  %769 = vmatprep.subr.bf16.mxu0 %v710
  %770 = vmatpush1.bf16.msra.mxu0 %v709
  %771 = vmatprep.subr.bf16.mxu0 %v714
  %772 = vmatpush1.bf16.msra.mxu0 %v713
  %773 = vmatprep.subr.bf16.mxu0 %v718
  %774 = vmatpush1.bf16.msra.mxu0 %v717
  %775 = vmatprep.subr.bf16.mxu0 %v722
  %776 = vmatpush1.bf16.msra.mxu0 %v721
  %777 = vmatprep.subr.bf16.mxu0 %v726
  %778 = vmatpush1.bf16.msra.mxu0 %v725
  %779 = vmatprep.subr.bf16.mxu0 %v730
  %780 = vmatpush1.bf16.msra.mxu0 %v729
  %781 = vmatprep.subr.bf16.mxu0 0
  %782 = vmatpush1.bf16.msra.mxu0 0
  %783 = vmatprep.subr.bf16.mxu0 0
  %784 = vmatpush1.bf16.msra.mxu0 0
  %785 = vmatprep.subr.bf16.mxu0 0
  %786 = vmatpush1.bf16.msra.mxu0 0
  %787 = vmatprep.subr.bf16.mxu0 0
  %788 = vmatpush1.bf16.msra.mxu0 0
  %789 = vmatprep.subr.bf16.mxu0 0
  %790 = vmatpush1.bf16.msra.mxu0 0
  %791 = vmatprep.subr.bf16.mxu0 0
  %792 = vmatpush1.bf16.msra.mxu0 0
  %793 = vmatprep.subr.bf16.mxu0 0
  %794 = vmatpush1.bf16.msra.mxu0 0
  %795 = vmatprep.subr.bf16.mxu0 0
  %796 = vmatpush1.bf16.msra.mxu0 0
  %797 = vmatprep.mubr.bf16.mxu0 0
  %798 = vmatmul.mubr.bf16.gmra.mrb[0].mxu0 %v572
  %v799 = vpop.f32.mrb[0].mxu0
  %v800 = vadd.f32 %v527, %v799
  %v801 = vpop.f32.mrb[0].mxu0
  %v802 = vadd.f32 %v531, %v801
  %v803 = vpop.f32.mrb[0].mxu0
  %v804 = vpop.f32.mrb[0].mxu0
  %805 = vdwg.mxu0
  %806 = vmatprep.subr.bf16.mxu0 %v704
  %807 = vmatpush1.bf16.msra.mxu0 %v703
  %808 = vmatprep.subr.bf16.mxu0 %v708
  %809 = vmatpush1.bf16.msra.mxu0 %v707
  %810 = vmatprep.subr.bf16.mxu0 %v712
  %811 = vmatpush1.bf16.msra.mxu0 %v711
  %812 = vmatprep.subr.bf16.mxu0 %v716
  %813 = vmatpush1.bf16.msra.mxu0 %v715
  %814 = vmatprep.subr.bf16.mxu0 %v720
  %815 = vmatpush1.bf16.msra.mxu0 %v719
  %816 = vmatprep.subr.bf16.mxu0 %v724
  %817 = vmatpush1.bf16.msra.mxu0 %v723
  %818 = vmatprep.subr.bf16.mxu0 %v728
  %819 = vmatpush1.bf16.msra.mxu0 %v727
  %820 = vmatprep.subr.bf16.mxu0 %v732
  %821 = vmatpush1.bf16.msra.mxu0 %v731
  %822 = vmatprep.subr.bf16.mxu0 0
  %823 = vmatpush1.bf16.msra.mxu0 0
  %824 = vmatprep.subr.bf16.mxu0 0
  %825 = vmatpush1.bf16.msra.mxu0 0
  %826 = vmatprep.subr.bf16.mxu0 0
  %827 = vmatpush1.bf16.msra.mxu0 0
  %828 = vmatprep.subr.bf16.mxu0 0
  %829 = vmatpush1.bf16.msra.mxu0 0
  %830 = vmatprep.subr.bf16.mxu0 0
  %831 = vmatpush1.bf16.msra.mxu0 0
  %832 = vmatprep.subr.bf16.mxu0 0
  %833 = vmatpush1.bf16.msra.mxu0 0
  %834 = vmatprep.subr.bf16.mxu0 0
  %835 = vmatpush1.bf16.msra.mxu0 0
  %836 = vmatprep.subr.bf16.mxu0 0
  %837 = vmatpush1.bf16.msra.mxu0 0
  %838 = vmatprep.mubr.bf16.mxu0 0
  %839 = vmatmul.mubr.bf16.gmra.mrb[0].mxu0 %v572
  %v840 = vpop.f32.mrb[0].mxu0
  %v841 = vadd.f32 %v535, %v840
  %v842 = vpop.f32.mrb[0].mxu0
  %v843 = vadd.f32 %v539, %v842
  %v844 = vpop.f32.mrb[0].mxu0
  %v845 = vpop.f32.mrb[0].mxu0
  %846 = vdwg.mxu0
  %v847 = vxor.u32 %v800, 2147483648
  %v848 = vxor.u32 %v802, 2147483648
  %v849 = vxor.u32 %v841, 2147483648
  %v850 = vmul.f32 %v847, 1.442695
  %v851 = vpow.pop %v850
  %v852 = vmul.f32 %v848, 1.442695
  %v853 = vpow.pop %v852
  %v854 = vmul.f32 %v849, 1.442695
  %v855 = vpow.pop %v854
  %v856 = vadd.f32 %v851, 1.0
  %v857 = vadd.f32 %v853, 1.0
  %v858 = vadd.f32 %v855, 1.0
  %v859 = vrcp.pop %v856
  %v860 = vmul.f32 1.0, %v859
  %v861 = vrcp.pop %v857
  %v862 = vmul.f32 1.0, %v861
  %v863 = vrcp.pop %v858
  %v864 = vmul.f32 1.0, %v863
  %v865 = vtanh.pop %v843
  %v866 = vmul.f32 %v862, 0.0
  %v867 = vmul.f32 %v860, %v865
  %v868 = vadd.f32 %v866, %v867
  %v869 = vtanh.pop %v868
  %v870 = vmul.f32 %v864, %v869
  %v871 = vld [vmem:[#allocation2 + $0x20] sm:$0xff]
  %v872 = vld [vmem:[#allocation2 + $0x28] sm:$0xff]
  %v873 = vld [vmem:[#allocation2 + $0x30] sm:$0xff]
  %v874 = vld [vmem:[#allocation2 + $0x38] sm:$0xff]
  %v875 = vld [vmem:[%s2] sm:$0xff]
  %v876 = vld [vmem:[%s2 + $0x8] sm:$0xff]
  %v877 = vld [vmem:[%s2 + $0x10] sm:$0xff]
  %v878 = vld [vmem:[%s2 + $0x18] sm:$0xff]
  %v879 = vld [vmem:[%s2 + $0x20] sm:$0xff]
  %v880 = vld [vmem:[%s2 + $0x28] sm:$0xff]
  %v881 = vld [vmem:[%s2 + $0x30] sm:$0xff]
  %v882 = vld [vmem:[%s2 + $0x38] sm:$0xff]
  %v883 = vld [vmem:[%s2 + $0x40] sm:$0xff]
  %v884 = vld [vmem:[%s2 + $0x48] sm:$0xff]
  %v885 = vld [vmem:[%s2 + $0x50] sm:$0xff]
  %v886 = vld [vmem:[%s2 + $0x58] sm:$0xff]
  %v887 = vld [vmem:[%s2 + $0x60] sm:$0xff]
  %v888 = vld [vmem:[%s2 + $0x68] sm:$0xff]
  %v889 = vld [vmem:[%s2 + $0x70] sm:$0xff]
  %v890 = vld [vmem:[%s2 + $0x78] sm:$0xff]
  %v891 = vld [vmem:[%s2 + $0x80] sm:$0xff]
  %v892 = vld [vmem:[%s2 + $0x88] sm:$0xff]
  %v893 = vld [vmem:[%s2 + $0x90] sm:$0xff]
  %v894 = vld [vmem:[%s2 + $0x98] sm:$0xff]
  %v895 = vld [vmem:[%s2 + $0xa0] sm:$0xff]
  %v896 = vld [vmem:[%s2 + $0xa8] sm:$0xff]
  %v897 = vld [vmem:[%s2 + $0xb0] sm:$0xff]
  %v898 = vld [vmem:[%s2 + $0xb8] sm:$0xff]
  %v899 = vld [vmem:[%s2 + $0xc0] sm:$0xff]
  %v900 = vld [vmem:[%s2 + $0xc8] sm:$0xff]
  %v901 = vld [vmem:[%s2 + $0xd0] sm:$0xff]
  %v902 = vld [vmem:[%s2 + $0xd8] sm:$0xff]
  %v903 = vld [vmem:[%s2 + $0xe0] sm:$0xff]
  %v904 = vld [vmem:[%s2 + $0xe8] sm:$0xff]
  %v905 = vld [vmem:[%s2 + $0xf0] sm:$0xff]
  %v906 = vld [vmem:[%s2 + $0xf8] sm:$0xff]
  %v939 = vunpack.c.l.b16 %v875
  %v940 = vunpack.c.h.b16 %v875
  %v941 = vunpack.c.l.b16 %v876
  %v942 = vunpack.c.h.b16 %v876
  %v943 = vunpack.c.l.b16 %v877
  %v944 = vunpack.c.h.b16 %v877
  %v945 = vunpack.c.l.b16 %v878
  %v946 = vunpack.c.h.b16 %v878
  %v947 = vunpack.c.l.b16 %v879
  %v948 = vunpack.c.h.b16 %v879
  %v949 = vunpack.c.l.b16 %v880
  %v950 = vunpack.c.h.b16 %v880
  %v951 = vunpack.c.l.b16 %v881
  %v952 = vunpack.c.h.b16 %v881
  %v953 = vunpack.c.l.b16 %v882
  %v954 = vunpack.c.h.b16 %v882
  %v955 = vunpack.c.l.b16 %v883
  %v956 = vunpack.c.h.b16 %v883
  %v957 = vunpack.c.l.b16 %v884
  %v958 = vunpack.c.h.b16 %v884
  %v959 = vunpack.c.l.b16 %v885
  %v960 = vunpack.c.h.b16 %v885
  %v961 = vunpack.c.l.b16 %v886
  %v962 = vunpack.c.h.b16 %v886
  %v963 = vunpack.c.l.b16 %v887
  %v964 = vunpack.c.h.b16 %v887
  %v965 = vunpack.c.l.b16 %v888
  %v966 = vunpack.c.h.b16 %v888
  %v967 = vunpack.c.l.b16 %v889
  %v968 = vunpack.c.h.b16 %v889
  %v969 = vunpack.c.l.b16 %v890
  %v970 = vunpack.c.h.b16 %v890
  %v971 = vunpack.c.l.b16 %v891
  %v972 = vunpack.c.h.b16 %v891
  %v973 = vunpack.c.l.b16 %v892
  %v974 = vunpack.c.h.b16 %v892
  %v975 = vunpack.c.l.b16 %v893
  %v976 = vunpack.c.h.b16 %v893
  %v977 = vunpack.c.l.b16 %v894
  %v978 = vunpack.c.h.b16 %v894
  %v979 = vunpack.c.l.b16 %v895
  %v980 = vunpack.c.h.b16 %v895
  %v981 = vunpack.c.l.b16 %v896
  %v982 = vunpack.c.h.b16 %v896
  %v983 = vunpack.c.l.b16 %v897
  %v984 = vunpack.c.h.b16 %v897
  %v985 = vunpack.c.l.b16 %v898
  %v986 = vunpack.c.h.b16 %v898
  %v987 = vunpack.c.l.b16 %v899
  %v988 = vunpack.c.h.b16 %v899
  %v989 = vunpack.c.l.b16 %v900
  %v990 = vunpack.c.h.b16 %v900
  %v991 = vunpack.c.l.b16 %v901
  %v992 = vunpack.c.h.b16 %v901
  %v993 = vunpack.c.l.b16 %v902
  %v994 = vunpack.c.h.b16 %v902
  %v995 = vunpack.c.l.b16 %v903
  %v996 = vunpack.c.h.b16 %v903
  %v997 = vunpack.c.l.b16 %v904
  %v998 = vunpack.c.h.b16 %v904
  %v999 = vunpack.c.l.b16 %v905
  %v1000 = vunpack.c.h.b16 %v905
  %v1001 = vunpack.c.l.b16 %v906
  %v1002 = vunpack.c.h.b16 %v906
  %v1003 = vpack.c.b16 %v943, %v939
  %v1004 = vpack.c.b16 %v944, %v940
  %v1005 = vpack.c.b16 %v945, %v941
  %v1006 = vpack.c.b16 %v946, %v942
  %v1007 = vpack.c.b16 %v951, %v947
  %v1008 = vpack.c.b16 %v952, %v948
  %v1009 = vpack.c.b16 %v953, %v949
  %v1010 = vpack.c.b16 %v954, %v950
  %v1011 = vpack.c.b16 %v959, %v955
  %v1012 = vpack.c.b16 %v960, %v956
  %v1013 = vpack.c.b16 %v961, %v957
  %v1014 = vpack.c.b16 %v962, %v958
  %v1015 = vpack.c.b16 %v967, %v963
  %v1016 = vpack.c.b16 %v968, %v964
  %v1017 = vpack.c.b16 %v969, %v965
  %v1018 = vpack.c.b16 %v970, %v966
  %v1019 = vpack.c.b16 %v975, %v971
  %v1020 = vpack.c.b16 %v976, %v972
  %v1021 = vpack.c.b16 %v977, %v973
  %v1022 = vpack.c.b16 %v978, %v974
  %v1023 = vpack.c.b16 %v983, %v979
  %v1024 = vpack.c.b16 %v984, %v980
  %v1025 = vpack.c.b16 %v985, %v981
  %v1026 = vpack.c.b16 %v986, %v982
  %v1027 = vpack.c.b16 %v991, %v987
  %v1028 = vpack.c.b16 %v992, %v988
  %v1029 = vpack.c.b16 %v993, %v989
  %v1030 = vpack.c.b16 %v994, %v990
  %v1031 = vpack.c.b16 %v999, %v995
  %v1032 = vpack.c.b16 %v1000, %v996
  %v1033 = vpack.c.b16 %v1001, %v997
  %v1034 = vpack.c.b16 %v1002, %v998
  %1067 = vmatprep.subr.bf16.mxu0 %v1004
  %1068 = vmatpush1.bf16.msra.mxu0 %v1003
  %1069 = vmatprep.subr.bf16.mxu0 %v1008
  %1070 = vmatpush1.bf16.msra.mxu0 %v1007
  %1071 = vmatprep.subr.bf16.mxu0 %v1012
  %1072 = vmatpush1.bf16.msra.mxu0 %v1011
  %1073 = vmatprep.subr.bf16.mxu0 %v1016
  %1074 = vmatpush1.bf16.msra.mxu0 %v1015
  %1075 = vmatprep.subr.bf16.mxu0 %v1020
  %1076 = vmatpush1.bf16.msra.mxu0 %v1019
  %1077 = vmatprep.subr.bf16.mxu0 %v1024
  %1078 = vmatpush1.bf16.msra.mxu0 %v1023
  %1079 = vmatprep.subr.bf16.mxu0 %v1028
  %1080 = vmatpush1.bf16.msra.mxu0 %v1027
  %1081 = vmatprep.subr.bf16.mxu0 %v1032
  %1082 = vmatpush1.bf16.msra.mxu0 %v1031
  %1083 = vmatprep.subr.bf16.mxu0 0
  %1084 = vmatpush1.bf16.msra.mxu0 0
  %1085 = vmatprep.subr.bf16.mxu0 0
  %1086 = vmatpush1.bf16.msra.mxu0 0
  %1087 = vmatprep.subr.bf16.mxu0 0
  %1088 = vmatpush1.bf16.msra.mxu0 0
  %1089 = vmatprep.subr.bf16.mxu0 0
  %1090 = vmatpush1.bf16.msra.mxu0 0
  %1091 = vmatprep.subr.bf16.mxu0 0
  %1092 = vmatpush1.bf16.msra.mxu0 0
  %1093 = vmatprep.subr.bf16.mxu0 0
  %1094 = vmatpush1.bf16.msra.mxu0 0
  %1095 = vmatprep.subr.bf16.mxu0 0
  %1096 = vmatpush1.bf16.msra.mxu0 0
  %1097 = vmatprep.subr.bf16.mxu0 0
  %1098 = vmatpush1.bf16.msra.mxu0 0
  %1099 = vmatprep.mubr.bf16.mxu0 0
  %1100 = vmatmul.mubr.bf16.gmra.mrb[0].mxu0 %v572
  %v1101 = vpop.f32.mrb[0].mxu0
  %v1102 = vadd.f32 0.0, %v1101
  %v1103 = vpop.f32.mrb[0].mxu0
  %v1104 = vadd.f32 0.0, %v1103
  %v1105 = vpop.f32.mrb[0].mxu0
  %v1106 = vpop.f32.mrb[0].mxu0
  %1107 = vdwg.mxu0
  %1108 = vmatprep.subr.bf16.mxu0 %v1006
  %1109 = vmatpush1.bf16.msra.mxu0 %v1005
  %1110 = vmatprep.subr.bf16.mxu0 %v1010
  %1111 = vmatpush1.bf16.msra.mxu0 %v1009
  %1112 = vmatprep.subr.bf16.mxu0 %v1014
  %1113 = vmatpush1.bf16.msra.mxu0 %v1013
  %1114 = vmatprep.subr.bf16.mxu0 %v1018
  %1115 = vmatpush1.bf16.msra.mxu0 %v1017
  %1116 = vmatprep.subr.bf16.mxu0 %v1022
  %1117 = vmatpush1.bf16.msra.mxu0 %v1021
  %1118 = vmatprep.subr.bf16.mxu0 %v1026
  %1119 = vmatpush1.bf16.msra.mxu0 %v1025
  %1120 = vmatprep.subr.bf16.mxu0 %v1030
  %1121 = vmatpush1.bf16.msra.mxu0 %v1029
  %1122 = vmatprep.subr.bf16.mxu0 %v1034
  %1123 = vmatpush1.bf16.msra.mxu0 %v1033
  %1124 = vmatprep.subr.bf16.mxu0 0
  %1125 = vmatpush1.bf16.msra.mxu0 0
  %1126 = vmatprep.subr.bf16.mxu0 0
  %1127 = vmatpush1.bf16.msra.mxu0 0
  %1128 = vmatprep.subr.bf16.mxu0 0
  %1129 = vmatpush1.bf16.msra.mxu0 0
  %1130 = vmatprep.subr.bf16.mxu0 0
  %1131 = vmatpush1.bf16.msra.mxu0 0
  %1132 = vmatprep.subr.bf16.mxu0 0
  %1133 = vmatpush1.bf16.msra.mxu0 0
  %1134 = vmatprep.subr.bf16.mxu0 0
  %1135 = vmatpush1.bf16.msra.mxu0 0
  %1136 = vmatprep.subr.bf16.mxu0 0
  %1137 = vmatpush1.bf16.msra.mxu0 0
  %1138 = vmatprep.subr.bf16.mxu0 0
  %1139 = vmatpush1.bf16.msra.mxu0 0
  %1140 = vmatprep.mubr.bf16.mxu0 0
  %1141 = vmatmul.mubr.bf16.gmra.mrb[0].mxu0 %v572
  %v1142 = vpop.f32.mrb[0].mxu0
  %v1143 = vadd.f32 0.0, %v1142
  %v1144 = vpop.f32.mrb[0].mxu0
  %v1145 = vadd.f32 0.0, %v1144
  %v1146 = vpop.f32.mrb[0].mxu0
  %v1147 = vpop.f32.mrb[0].mxu0
  %1148 = vdwg.mxu0
  %v1149 = vadd.f32 %v871, %v1102
  %v1150 = vadd.f32 %v872, %v1104
  %v1151 = vadd.f32 %v873, %v1143
  %v1152 = vadd.f32 %v874, %v1145
  %v1153 = vxor.u32 %v1149, 2147483648
  %v1154 = vxor.u32 %v1150, 2147483648
  %v1155 = vxor.u32 %v1151, 2147483648
  %v1156 = vmul.f32 %v1153, 1.442695
  %v1157 = vpow.pop %v1156
  %v1158 = vmul.f32 %v1154, 1.442695
  %v1159 = vpow.pop %v1158
  %v1160 = vmul.f32 %v1155, 1.442695
  %v1161 = vpow.pop %v1160
  %v1162 = vadd.f32 %v1157, 1.0
  %v1163 = vadd.f32 %v1159, 1.0
  %v1164 = vadd.f32 %v1161, 1.0
  %v1165 = vrcp.pop %v1162
  %v1166 = vmul.f32 1.0, %v1165
  %v1167 = vrcp.pop %v1163
  %v1168 = vmul.f32 1.0, %v1167
  %v1169 = vrcp.pop %v1164
  %v1170 = vmul.f32 1.0, %v1169
  %v1171 = vtanh.pop %v1152
  %v1172 = vmul.f32 %v1168, %v569
  %v1173 = vmul.f32 %v1166, %v1171
  %v1174 = vadd.f32 %v1172, %v1173
  %v1175 = vtanh.pop %v1174
  %v1176 = vmul.f32 %v1170, %v1175
  %v1177 = vpack.c.bf16 %v1176, %v1176
  %1178 = vmatprep.subr.bf16.mxu0 %v702
  %1179 = vmatpush1.bf16.msra.mxu0 %v701
  %1180 = vmatprep.subr.bf16.mxu0 %v706
  %1181 = vmatpush1.bf16.msra.mxu0 %v705
  %1182 = vmatprep.subr.bf16.mxu0 %v710
  %1183 = vmatpush1.bf16.msra.mxu0 %v709
  %1184 = vmatprep.subr.bf16.mxu0 %v714
  %1185 = vmatpush1.bf16.msra.mxu0 %v713
  %1186 = vmatprep.subr.bf16.mxu0 %v718
  %1187 = vmatpush1.bf16.msra.mxu0 %v717
  %1188 = vmatprep.subr.bf16.mxu0 %v722
  %1189 = vmatpush1.bf16.msra.mxu0 %v721
  %1190 = vmatprep.subr.bf16.mxu0 %v726
  %1191 = vmatpush1.bf16.msra.mxu0 %v725
  %1192 = vmatprep.subr.bf16.mxu0 %v730
  %1193 = vmatpush1.bf16.msra.mxu0 %v729
  %1194 = vmatprep.subr.bf16.mxu0 0
  %1195 = vmatpush1.bf16.msra.mxu0 0
  %1196 = vmatprep.subr.bf16.mxu0 0
  %1197 = vmatpush1.bf16.msra.mxu0 0
  %1198 = vmatprep.subr.bf16.mxu0 0
  %1199 = vmatpush1.bf16.msra.mxu0 0
  %1200 = vmatprep.subr.bf16.mxu0 0
  %1201 = vmatpush1.bf16.msra.mxu0 0
  %1202 = vmatprep.subr.bf16.mxu0 0
  %1203 = vmatpush1.bf16.msra.mxu0 0
  %1204 = vmatprep.subr.bf16.mxu0 0
  %1205 = vmatpush1.bf16.msra.mxu0 0
  %1206 = vmatprep.subr.bf16.mxu0 0
  %1207 = vmatpush1.bf16.msra.mxu0 0
  %1208 = vmatprep.subr.bf16.mxu0 0
  %1209 = vmatpush1.bf16.msra.mxu0 0
  %1210 = vmatprep.mubr.bf16.mxu0 0
  %1211 = vmatmul.mubr.bf16.gmra.mrb[0].mxu0 %v1177
  %v1212 = vpop.f32.mrb[0].mxu0
  %v1213 = vadd.f32 %v527, %v1212
  %v1214 = vpop.f32.mrb[0].mxu0
  %v1215 = vadd.f32 %v531, %v1214
  %v1216 = vpop.f32.mrb[0].mxu0
  %v1217 = vpop.f32.mrb[0].mxu0
  %1218 = vdwg.mxu0
  %1219 = vmatprep.subr.bf16.mxu0 %v704
  %1220 = vmatpush1.bf16.msra.mxu0 %v703
  %1221 = vmatprep.subr.bf16.mxu0 %v708
  %1222 = vmatpush1.bf16.msra.mxu0 %v707
  %1223 = vmatprep.subr.bf16.mxu0 %v712
  %1224 = vmatpush1.bf16.msra.mxu0 %v711
  %1225 = vmatprep.subr.bf16.mxu0 %v716
  %1226 = vmatpush1.bf16.msra.mxu0 %v715
  %1227 = vmatprep.subr.bf16.mxu0 %v720
  %1228 = vmatpush1.bf16.msra.mxu0 %v719
  %1229 = vmatprep.subr.bf16.mxu0 %v724
  %1230 = vmatpush1.bf16.msra.mxu0 %v723
  %1231 = vmatprep.subr.bf16.mxu0 %v728
  %1232 = vmatpush1.bf16.msra.mxu0 %v727
  %1233 = vmatprep.subr.bf16.mxu0 %v732
  %1234 = vmatpush1.bf16.msra.mxu0 %v731
  %1235 = vmatprep.subr.bf16.mxu0 0
  %1236 = vmatpush1.bf16.msra.mxu0 0
  %1237 = vmatprep.subr.bf16.mxu0 0
  %1238 = vmatpush1.bf16.msra.mxu0 0
  %1239 = vmatprep.subr.bf16.mxu0 0
  %1240 = vmatpush1.bf16.msra.mxu0 0
  %1241 = vmatprep.subr.bf16.mxu0 0
  %1242 = vmatpush1.bf16.msra.mxu0 0
  %1243 = vmatprep.subr.bf16.mxu0 0
  %1244 = vmatpush1.bf16.msra.mxu0 0
  %1245 = vmatprep.subr.bf16.mxu0 0
  %1246 = vmatpush1.bf16.msra.mxu0 0
  %1247 = vmatprep.subr.bf16.mxu0 0
  %1248 = vmatpush1.bf16.msra.mxu0 0
  %1249 = vmatprep.subr.bf16.mxu0 0
  %1250 = vmatpush1.bf16.msra.mxu0 0
  %1251 = vmatprep.mubr.bf16.mxu0 0
  %1252 = vmatmul.mubr.bf16.gmra.mrb[0].mxu0 %v1177
  %v1253 = vpop.f32.mrb[0].mxu0
  %v1254 = vadd.f32 %v535, %v1253
  %v1255 = vpop.f32.mrb[0].mxu0
  %v1256 = vadd.f32 %v539, %v1255
  %v1257 = vpop.f32.mrb[0].mxu0
  %v1258 = vpop.f32.mrb[0].mxu0
  %1259 = vdwg.mxu0
  %v1260 = vpack.c.bf16 %v870, %v870
  %v1261 = vld [vmem:[%s5] sm:$0xff]
  %v1262 = vld [vmem:[%s5 + $0x8] sm:$0xff]
  %v1263 = vld [vmem:[%s5 + $0x10] sm:$0xff]
  %v1264 = vld [vmem:[%s5 + $0x18] sm:$0xff]
  %v1265 = vld [vmem:[%s5 + $0x20] sm:$0xff]
  %v1266 = vld [vmem:[%s5 + $0x28] sm:$0xff]
  %v1267 = vld [vmem:[%s5 + $0x30] sm:$0xff]
  %v1268 = vld [vmem:[%s5 + $0x38] sm:$0xff]
  %v1269 = vld [vmem:[%s5 + $0x40] sm:$0xff]
  %v1270 = vld [vmem:[%s5 + $0x48] sm:$0xff]
  %v1271 = vld [vmem:[%s5 + $0x50] sm:$0xff]
  %v1272 = vld [vmem:[%s5 + $0x58] sm:$0xff]
  %v1273 = vld [vmem:[%s5 + $0x60] sm:$0xff]
  %v1274 = vld [vmem:[%s5 + $0x68] sm:$0xff]
  %v1275 = vld [vmem:[%s5 + $0x70] sm:$0xff]
  %v1276 = vld [vmem:[%s5 + $0x78] sm:$0xff]
  %v1277 = vld [vmem:[%s5 + $0x80] sm:$0xff]
  %v1278 = vld [vmem:[%s5 + $0x88] sm:$0xff]
  %v1279 = vld [vmem:[%s5 + $0x90] sm:$0xff]
  %v1280 = vld [vmem:[%s5 + $0x98] sm:$0xff]
  %v1281 = vld [vmem:[%s5 + $0xa0] sm:$0xff]
  %v1282 = vld [vmem:[%s5 + $0xa8] sm:$0xff]
  %v1283 = vld [vmem:[%s5 + $0xb0] sm:$0xff]
  %v1284 = vld [vmem:[%s5 + $0xb8] sm:$0xff]
  %v1285 = vld [vmem:[%s5 + $0xc0] sm:$0xff]
  %v1286 = vld [vmem:[%s5 + $0xc8] sm:$0xff]
  %v1287 = vld [vmem:[%s5 + $0xd0] sm:$0xff]
  %v1288 = vld [vmem:[%s5 + $0xd8] sm:$0xff]
  %v1289 = vld [vmem:[%s5 + $0xe0] sm:$0xff]
  %v1290 = vld [vmem:[%s5 + $0xe8] sm:$0xff]
  %v1291 = vld [vmem:[%s5 + $0xf0] sm:$0xff]
  %v1292 = vld [vmem:[%s5 + $0xf8] sm:$0xff]
  %v1325 = vunpack.c.l.b16 %v1261
  %v1326 = vunpack.c.h.b16 %v1261
  %v1327 = vunpack.c.l.b16 %v1262
  %v1328 = vunpack.c.h.b16 %v1262
  %v1329 = vunpack.c.l.b16 %v1263
  %v1330 = vunpack.c.h.b16 %v1263
  %v1331 = vunpack.c.l.b16 %v1264
  %v1332 = vunpack.c.h.b16 %v1264
  %v1333 = vunpack.c.l.b16 %v1265
  %v1334 = vunpack.c.h.b16 %v1265
  %v1335 = vunpack.c.l.b16 %v1266
  %v1336 = vunpack.c.h.b16 %v1266
  %v1337 = vunpack.c.l.b16 %v1267
  %v1338 = vunpack.c.h.b16 %v1267
  %v1339 = vunpack.c.l.b16 %v1268
  %v1340 = vunpack.c.h.b16 %v1268
  %v1341 = vunpack.c.l.b16 %v1269
  %v1342 = vunpack.c.h.b16 %v1269
  %v1343 = vunpack.c.l.b16 %v1270
  %v1344 = vunpack.c.h.b16 %v1270
  %v1345 = vunpack.c.l.b16 %v1271
  %v1346 = vunpack.c.h.b16 %v1271
  %v1347 = vunpack.c.l.b16 %v1272
  %v1348 = vunpack.c.h.b16 %v1272
  %v1349 = vunpack.c.l.b16 %v1273
  %v1350 = vunpack.c.h.b16 %v1273
  %v1351 = vunpack.c.l.b16 %v1274
  %v1352 = vunpack.c.h.b16 %v1274
  %v1353 = vunpack.c.l.b16 %v1275
  %v1354 = vunpack.c.h.b16 %v1275
  %v1355 = vunpack.c.l.b16 %v1276
  %v1356 = vunpack.c.h.b16 %v1276
  %v1357 = vunpack.c.l.b16 %v1277
  %v1358 = vunpack.c.h.b16 %v1277
  %v1359 = vunpack.c.l.b16 %v1278
  %v1360 = vunpack.c.h.b16 %v1278
  %v1361 = vunpack.c.l.b16 %v1279
  %v1362 = vunpack.c.h.b16 %v1279
  %v1363 = vunpack.c.l.b16 %v1280
  %v1364 = vunpack.c.h.b16 %v1280
  %v1365 = vunpack.c.l.b16 %v1281
  %v1366 = vunpack.c.h.b16 %v1281
  %v1367 = vunpack.c.l.b16 %v1282
  %v1368 = vunpack.c.h.b16 %v1282
  %v1369 = vunpack.c.l.b16 %v1283
  %v1370 = vunpack.c.h.b16 %v1283
  %v1371 = vunpack.c.l.b16 %v1284
  %v1372 = vunpack.c.h.b16 %v1284
  %v1373 = vunpack.c.l.b16 %v1285
  %v1374 = vunpack.c.h.b16 %v1285
  %v1375 = vunpack.c.l.b16 %v1286
  %v1376 = vunpack.c.h.b16 %v1286
  %v1377 = vunpack.c.l.b16 %v1287
  %v1378 = vunpack.c.h.b16 %v1287
  %v1379 = vunpack.c.l.b16 %v1288
  %v1380 = vunpack.c.h.b16 %v1288
  %v1381 = vunpack.c.l.b16 %v1289
  %v1382 = vunpack.c.h.b16 %v1289
  %v1383 = vunpack.c.l.b16 %v1290
  %v1384 = vunpack.c.h.b16 %v1290
  %v1385 = vunpack.c.l.b16 %v1291
  %v1386 = vunpack.c.h.b16 %v1291
  %v1387 = vunpack.c.l.b16 %v1292
  %v1388 = vunpack.c.h.b16 %v1292
  %v1389 = vpack.c.b16 %v1329, %v1325
  %v1390 = vpack.c.b16 %v1330, %v1326
  %v1391 = vpack.c.b16 %v1331, %v1327
  %v1392 = vpack.c.b16 %v1332, %v1328
  %v1393 = vpack.c.b16 %v1337, %v1333
  %v1394 = vpack.c.b16 %v1338, %v1334
  %v1395 = vpack.c.b16 %v1339, %v1335
  %v1396 = vpack.c.b16 %v1340, %v1336
  %v1397 = vpack.c.b16 %v1345, %v1341
  %v1398 = vpack.c.b16 %v1346, %v1342
  %v1399 = vpack.c.b16 %v1347, %v1343
  %v1400 = vpack.c.b16 %v1348, %v1344
  %v1401 = vpack.c.b16 %v1353, %v1349
  %v1402 = vpack.c.b16 %v1354, %v1350
  %v1403 = vpack.c.b16 %v1355, %v1351
  %v1404 = vpack.c.b16 %v1356, %v1352
  %v1405 = vpack.c.b16 %v1361, %v1357
  %v1406 = vpack.c.b16 %v1362, %v1358
  %v1407 = vpack.c.b16 %v1363, %v1359
  %v1408 = vpack.c.b16 %v1364, %v1360
  %v1409 = vpack.c.b16 %v1369, %v1365
  %v1410 = vpack.c.b16 %v1370, %v1366
  %v1411 = vpack.c.b16 %v1371, %v1367
  %v1412 = vpack.c.b16 %v1372, %v1368
  %v1413 = vpack.c.b16 %v1377, %v1373
  %v1414 = vpack.c.b16 %v1378, %v1374
  %v1415 = vpack.c.b16 %v1379, %v1375
  %v1416 = vpack.c.b16 %v1380, %v1376
  %v1417 = vpack.c.b16 %v1385, %v1381
  %v1418 = vpack.c.b16 %v1386, %v1382
  %v1419 = vpack.c.b16 %v1387, %v1383
  %v1420 = vpack.c.b16 %v1388, %v1384
  %1453 = vmatprep.subr.bf16.mxu0 %v1390
  %1454 = vmatpush1.bf16.msra.mxu0 %v1389
  %1455 = vmatprep.subr.bf16.mxu0 %v1394
  %1456 = vmatpush1.bf16.msra.mxu0 %v1393
  %1457 = vmatprep.subr.bf16.mxu0 %v1398
  %1458 = vmatpush1.bf16.msra.mxu0 %v1397
  %1459 = vmatprep.subr.bf16.mxu0 %v1402
  %1460 = vmatpush1.bf16.msra.mxu0 %v1401
  %1461 = vmatprep.subr.bf16.mxu0 %v1406
  %1462 = vmatpush1.bf16.msra.mxu0 %v1405
  %1463 = vmatprep.subr.bf16.mxu0 %v1410
  %1464 = vmatpush1.bf16.msra.mxu0 %v1409
  %1465 = vmatprep.subr.bf16.mxu0 %v1414
  %1466 = vmatpush1.bf16.msra.mxu0 %v1413
  %1467 = vmatprep.subr.bf16.mxu0 %v1418
  %1468 = vmatpush1.bf16.msra.mxu0 %v1417
  %1469 = vmatprep.subr.bf16.mxu0 0
  %1470 = vmatpush1.bf16.msra.mxu0 0
  %1471 = vmatprep.subr.bf16.mxu0 0
  %1472 = vmatpush1.bf16.msra.mxu0 0
  %1473 = vmatprep.subr.bf16.mxu0 0
  %1474 = vmatpush1.bf16.msra.mxu0 0
  %1475 = vmatprep.subr.bf16.mxu0 0
  %1476 = vmatpush1.bf16.msra.mxu0 0
  %1477 = vmatprep.subr.bf16.mxu0 0
  %1478 = vmatpush1.bf16.msra.mxu0 0
  %1479 = vmatprep.subr.bf16.mxu0 0
  %1480 = vmatpush1.bf16.msra.mxu0 0
  %1481 = vmatprep.subr.bf16.mxu0 0
  %1482 = vmatpush1.bf16.msra.mxu0 0
  %1483 = vmatprep.subr.bf16.mxu0 0
  %1484 = vmatpush1.bf16.msra.mxu0 0
  %1485 = vmatprep.mubr.bf16.mxu0 0
  %1486 = vmatmul.mubr.bf16.gmra.mrb[0].mxu0 %v1260
  %v1487 = vpop.f32.mrb[0].mxu0
  %v1488 = vadd.f32 0.0, %v1487
  %v1489 = vpop.f32.mrb[0].mxu0
  %v1490 = vadd.f32 0.0, %v1489
  %v1491 = vpop.f32.mrb[0].mxu0
  %v1492 = vpop.f32.mrb[0].mxu0
  %1493 = vdwg.mxu0
  %1494 = vmatprep.subr.bf16.mxu0 %v1392
  %1495 = vmatpush1.bf16.msra.mxu0 %v1391
  %1496 = vmatprep.subr.bf16.mxu0 %v1396
  %1497 = vmatpush1.bf16.msra.mxu0 %v1395
  %1498 = vmatprep.subr.bf16.mxu0 %v1400
  %1499 = vmatpush1.bf16.msra.mxu0 %v1399
  %1500 = vmatprep.subr.bf16.mxu0 %v1404
  %1501 = vmatpush1.bf16.msra.mxu0 %v1403
  %1502 = vmatprep.subr.bf16.mxu0 %v1408
  %1503 = vmatpush1.bf16.msra.mxu0 %v1407
  %1504 = vmatprep.subr.bf16.mxu0 %v1412
  %1505 = vmatpush1.bf16.msra.mxu0 %v1411
  %1506 = vmatprep.subr.bf16.mxu0 %v1416
  %1507 = vmatpush1.bf16.msra.mxu0 %v1415
  %1508 = vmatprep.subr.bf16.mxu0 %v1420
  %1509 = vmatpush1.bf16.msra.mxu0 %v1419
  %1510 = vmatprep.subr.bf16.mxu0 0
  %1511 = vmatpush1.bf16.msra.mxu0 0
  %1512 = vmatprep.subr.bf16.mxu0 0
  %1513 = vmatpush1.bf16.msra.mxu0 0
  %1514 = vmatprep.subr.bf16.mxu0 0
  %1515 = vmatpush1.bf16.msra.mxu0 0
  %1516 = vmatprep.subr.bf16.mxu0 0
  %1517 = vmatpush1.bf16.msra.mxu0 0
  %1518 = vmatprep.subr.bf16.mxu0 0
  %1519 = vmatpush1.bf16.msra.mxu0 0
  %1520 = vmatprep.subr.bf16.mxu0 0
  %1521 = vmatpush1.bf16.msra.mxu0 0
  %1522 = vmatprep.subr.bf16.mxu0 0
  %1523 = vmatpush1.bf16.msra.mxu0 0
  %1524 = vmatprep.subr.bf16.mxu0 0
  %1525 = vmatpush1.bf16.msra.mxu0 0
  %1526 = vmatprep.mubr.bf16.mxu0 0
  %1527 = vmatmul.mubr.bf16.gmra.mrb[0].mxu0 %v1260
  %v1528 = vpop.f32.mrb[0].mxu0
  %v1529 = vadd.f32 0.0, %v1528
  %v1530 = vpop.f32.mrb[0].mxu0
  %v1531 = vadd.f32 0.0, %v1530
  %v1532 = vpop.f32.mrb[0].mxu0
  %v1533 = vpop.f32.mrb[0].mxu0
  %1534 = vdwg.mxu0
  %v1535 = vadd.f32 %v1213, %v1488
  %v1536 = vadd.f32 %v1215, %v1490
  %v1537 = vadd.f32 %v1254, %v1529
  %v1538 = vadd.f32 %v1256, %v1531
  %v1539 = vxor.u32 %v1535, 2147483648
  %v1540 = vxor.u32 %v1536, 2147483648
  %v1541 = vxor.u32 %v1537, 2147483648
  %v1542 = vmul.f32 %v1539, 1.442695
  %v1543 = vpow.pop %v1542
  %v1544 = vmul.f32 %v1540, 1.442695
  %v1545 = vpow.pop %v1544
  %v1546 = vmul.f32 %v1541, 1.442695
  %v1547 = vpow.pop %v1546
  %v1548 = vadd.f32 %v1543, 1.0
  %v1549 = vadd.f32 %v1545, 1.0
  %v1550 = vadd.f32 %v1547, 1.0
  %v1551 = vrcp.pop %v1548
  %v1552 = vmul.f32 1.0, %v1551
  %v1553 = vrcp.pop %v1549
  %v1554 = vmul.f32 1.0, %v1553
  %v1555 = vrcp.pop %v1550
  %v1556 = vmul.f32 1.0, %v1555
  %v1557 = vtanh.pop %v1538
  %v1558 = vmul.f32 %v1554, %v868
  %v1559 = vmul.f32 %v1552, %v1557
  %v1560 = vadd.f32 %v1558, %v1559
  %v1561 = vtanh.pop %v1560
  %v1562 = vmul.f32 %v1556, %v1561
  %v1563 = vld [vmem:[#allocation2 + $0x40] sm:$0xff]
  %v1564 = vld [vmem:[#allocation2 + $0x48] sm:$0xff]
  %v1565 = vld [vmem:[#allocation2 + $0x50] sm:$0xff]
  %v1566 = vld [vmem:[#allocation2 + $0x58] sm:$0xff]
  %1567 = vmatprep.subr.bf16.mxu0 %v1004
  %1568 = vmatpush1.bf16.msra.mxu0 %v1003
  %1569 = vmatprep.subr.bf16.mxu0 %v1008
  %1570 = vmatpush1.bf16.msra.mxu0 %v1007
  %1571 = vmatprep.subr.bf16.mxu0 %v1012
  %1572 = vmatpush1.bf16.msra.mxu0 %v1011
  %1573 = vmatprep.subr.bf16.mxu0 %v1016
  %1574 = vmatpush1.bf16.msra.mxu0 %v1015
  %1575 = vmatprep.subr.bf16.mxu0 %v1020
  %1576 = vmatpush1.bf16.msra.mxu0 %v1019
  %1577 = vmatprep.subr.bf16.mxu0 %v1024
  %1578 = vmatpush1.bf16.msra.mxu0 %v1023
  %1579 = vmatprep.subr.bf16.mxu0 %v1028
  %1580 = vmatpush1.bf16.msra.mxu0 %v1027
  %1581 = vmatprep.subr.bf16.mxu0 %v1032
  %1582 = vmatpush1.bf16.msra.mxu0 %v1031
  %1583 = vmatprep.subr.bf16.mxu0 0
  %1584 = vmatpush1.bf16.msra.mxu0 0
  %1585 = vmatprep.subr.bf16.mxu0 0
  %1586 = vmatpush1.bf16.msra.mxu0 0
  %1587 = vmatprep.subr.bf16.mxu0 0
  %1588 = vmatpush1.bf16.msra.mxu0 0
  %1589 = vmatprep.subr.bf16.mxu0 0
  %1590 = vmatpush1.bf16.msra.mxu0 0
  %1591 = vmatprep.subr.bf16.mxu0 0
  %1592 = vmatpush1.bf16.msra.mxu0 0
  %1593 = vmatprep.subr.bf16.mxu0 0
  %1594 = vmatpush1.bf16.msra.mxu0 0
  %1595 = vmatprep.subr.bf16.mxu0 0
  %1596 = vmatpush1.bf16.msra.mxu0 0
  %1597 = vmatprep.subr.bf16.mxu0 0
  %1598 = vmatpush1.bf16.msra.mxu0 0
  %1599 = vmatprep.mubr.bf16.mxu0 0
  %1600 = vmatmul.mubr.bf16.gmra.mrb[0].mxu0 %v1177
  %v1601 = vpop.f32.mrb[0].mxu0
  %v1602 = vadd.f32 0.0, %v1601
  %v1603 = vpop.f32.mrb[0].mxu0
  %v1604 = vadd.f32 0.0, %v1603
  %v1605 = vpop.f32.mrb[0].mxu0
  %v1606 = vpop.f32.mrb[0].mxu0
  %1607 = vdwg.mxu0
  %1608 = vmatprep.subr.bf16.mxu0 %v1006
  %1609 = vmatpush1.bf16.msra.mxu0 %v1005
  %1610 = vmatprep.subr.bf16.mxu0 %v1010
  %1611 = vmatpush1.bf16.msra.mxu0 %v1009
  %1612 = vmatprep.subr.bf16.mxu0 %v1014
  %1613 = vmatpush1.bf16.msra.mxu0 %v1013
  %1614 = vmatprep.subr.bf16.mxu0 %v1018
  %1615 = vmatpush1.bf16.msra.mxu0 %v1017
  %1616 = vmatprep.subr.bf16.mxu0 %v1022
  %1617 = vmatpush1.bf16.msra.mxu0 %v1021
  %1618 = vmatprep.subr.bf16.mxu0 %v1026
  %1619 = vmatpush1.bf16.msra.mxu0 %v1025
  %1620 = vmatprep.subr.bf16.mxu0 %v1030
  %1621 = vmatpush1.bf16.msra.mxu0 %v1029
  %1622 = vmatprep.subr.bf16.mxu0 %v1034
  %1623 = vmatpush1.bf16.msra.mxu0 %v1033
  %1624 = vmatprep.subr.bf16.mxu0 0
  %1625 = vmatpush1.bf16.msra.mxu0 0
  %1626 = vmatprep.subr.bf16.mxu0 0
  %1627 = vmatpush1.bf16.msra.mxu0 0
  %1628 = vmatprep.subr.bf16.mxu0 0
  %1629 = vmatpush1.bf16.msra.mxu0 0
  %1630 = vmatprep.subr.bf16.mxu0 0
  %1631 = vmatpush1.bf16.msra.mxu0 0
  %1632 = vmatprep.subr.bf16.mxu0 0
  %1633 = vmatpush1.bf16.msra.mxu0 0
  %1634 = vmatprep.subr.bf16.mxu0 0
  %1635 = vmatpush1.bf16.msra.mxu0 0
  %1636 = vmatprep.subr.bf16.mxu0 0
  %1637 = vmatpush1.bf16.msra.mxu0 0
  %1638 = vmatprep.subr.bf16.mxu0 0
  %1639 = vmatpush1.bf16.msra.mxu0 0
  %1640 = vmatprep.mubr.bf16.mxu0 0
  %1641 = vmatmul.mubr.bf16.gmra.mrb[0].mxu0 %v1177
  %v1642 = vpop.f32.mrb[0].mxu0
  %v1643 = vadd.f32 0.0, %v1642
  %v1644 = vpop.f32.mrb[0].mxu0
  %v1645 = vadd.f32 0.0, %v1644
  %v1646 = vpop.f32.mrb[0].mxu0
  %v1647 = vpop.f32.mrb[0].mxu0
  %1648 = vdwg.mxu0
  %v1649 = vadd.f32 %v1563, %v1602
  %v1650 = vadd.f32 %v1564, %v1604
  %v1651 = vadd.f32 %v1565, %v1643
  %v1652 = vadd.f32 %v1566, %v1645
  %v1653 = vxor.u32 %v1649, 2147483648
  %v1654 = vxor.u32 %v1650, 2147483648
  %v1655 = vxor.u32 %v1651, 2147483648
  %v1656 = vmul.f32 %v1653, 1.442695
  %v1657 = vpow.pop %v1656
  %v1658 = vmul.f32 %v1654, 1.442695
  %v1659 = vpow.pop %v1658
  %v1660 = vmul.f32 %v1655, 1.442695
  %v1661 = vpow.pop %v1660
  %v1662 = vadd.f32 %v1657, 1.0
  %v1663 = vadd.f32 %v1659, 1.0
  %v1664 = vadd.f32 %v1661, 1.0
  %v1665 = vrcp.pop %v1662
  %v1666 = vmul.f32 1.0, %v1665
  %v1667 = vrcp.pop %v1663
  %v1668 = vmul.f32 1.0, %v1667
  %v1669 = vrcp.pop %v1664
  %v1670 = vmul.f32 1.0, %v1669
  %v1671 = vtanh.pop %v1652
  %v1672 = vmul.f32 %v1668, %v1174
  %v1673 = vmul.f32 %v1666, %v1671
  %v1674 = vadd.f32 %v1672, %v1673
  %v1675 = vtanh.pop %v1674
  %v1676 = vmul.f32 %v1670, %v1675
  %v1677 = vpack.c.bf16 %v1676, %v1676
  %1678 = vmatprep.subr.bf16.mxu0 %v702
  %1679 = vmatpush1.bf16.msra.mxu0 %v701
  %1680 = vmatprep.subr.bf16.mxu0 %v706
  %1681 = vmatpush1.bf16.msra.mxu0 %v705
  %1682 = vmatprep.subr.bf16.mxu0 %v710
  %1683 = vmatpush1.bf16.msra.mxu0 %v709
  %1684 = vmatprep.subr.bf16.mxu0 %v714
  %1685 = vmatpush1.bf16.msra.mxu0 %v713
  %1686 = vmatprep.subr.bf16.mxu0 %v718
  %1687 = vmatpush1.bf16.msra.mxu0 %v717
  %1688 = vmatprep.subr.bf16.mxu0 %v722
  %1689 = vmatpush1.bf16.msra.mxu0 %v721
  %1690 = vmatprep.subr.bf16.mxu0 %v726
  %1691 = vmatpush1.bf16.msra.mxu0 %v725
  %1692 = vmatprep.subr.bf16.mxu0 %v730
  %1693 = vmatpush1.bf16.msra.mxu0 %v729
  %1694 = vmatprep.subr.bf16.mxu0 0
  %1695 = vmatpush1.bf16.msra.mxu0 0
  %1696 = vmatprep.subr.bf16.mxu0 0
  %1697 = vmatpush1.bf16.msra.mxu0 0
  %1698 = vmatprep.subr.bf16.mxu0 0
  %1699 = vmatpush1.bf16.msra.mxu0 0
  %1700 = vmatprep.subr.bf16.mxu0 0
  %1701 = vmatpush1.bf16.msra.mxu0 0
  %1702 = vmatprep.subr.bf16.mxu0 0
  %1703 = vmatpush1.bf16.msra.mxu0 0
  %1704 = vmatprep.subr.bf16.mxu0 0
  %1705 = vmatpush1.bf16.msra.mxu0 0
  %1706 = vmatprep.subr.bf16.mxu0 0
  %1707 = vmatpush1.bf16.msra.mxu0 0
  %1708 = vmatprep.subr.bf16.mxu0 0
  %1709 = vmatpush1.bf16.msra.mxu0 0
  %1710 = vmatprep.mubr.bf16.mxu0 0
  %1711 = vmatmul.mubr.bf16.gmra.mrb[0].mxu0 %v1677
  %v1712 = vpop.f32.mrb[0].mxu0
  %v1713 = vadd.f32 %v527, %v1712
  %v1714 = vpop.f32.mrb[0].mxu0
  %v1715 = vadd.f32 %v531, %v1714
  %v1716 = vpop.f32.mrb[0].mxu0
  %v1717 = vpop.f32.mrb[0].mxu0
  %1718 = vdwg.mxu0
  %1719 = vmatprep.subr.bf16.mxu0 %v704
  %1720 = vmatpush1.bf16.msra.mxu0 %v703
  %1721 = vmatprep.subr.bf16.mxu0 %v708
  %1722 = vmatpush1.bf16.msra.mxu0 %v707
  %1723 = vmatprep.subr.bf16.mxu0 %v712
  %1724 = vmatpush1.bf16.msra.mxu0 %v711
  %1725 = vmatprep.subr.bf16.mxu0 %v716
  %1726 = vmatpush1.bf16.msra.mxu0 %v715
  %1727 = vmatprep.subr.bf16.mxu0 %v720
  %1728 = vmatpush1.bf16.msra.mxu0 %v719
  %1729 = vmatprep.subr.bf16.mxu0 %v724
  %1730 = vmatpush1.bf16.msra.mxu0 %v723
  %1731 = vmatprep.subr.bf16.mxu0 %v728
  %1732 = vmatpush1.bf16.msra.mxu0 %v727
  %1733 = vmatprep.subr.bf16.mxu0 %v732
  %1734 = vmatpush1.bf16.msra.mxu0 %v731
  %1735 = vmatprep.subr.bf16.mxu0 0
  %1736 = vmatpush1.bf16.msra.mxu0 0
  %1737 = vmatprep.subr.bf16.mxu0 0
  %1738 = vmatpush1.bf16.msra.mxu0 0
  %1739 = vmatprep.subr.bf16.mxu0 0
  %1740 = vmatpush1.bf16.msra.mxu0 0
  %1741 = vmatprep.subr.bf16.mxu0 0
  %1742 = vmatpush1.bf16.msra.mxu0 0
  %1743 = vmatprep.subr.bf16.mxu0 0
  %1744 = vmatpush1.bf16.msra.mxu0 0
  %1745 = vmatprep.subr.bf16.mxu0 0
  %1746 = vmatpush1.bf16.msra.mxu0 0
  %1747 = vmatprep.subr.bf16.mxu0 0
  %1748 = vmatpush1.bf16.msra.mxu0 0
  %1749 = vmatprep.subr.bf16.mxu0 0
  %1750 = vmatpush1.bf16.msra.mxu0 0
  %1751 = vmatprep.mubr.bf16.mxu0 0
  %1752 = vmatmul.mubr.bf16.gmra.mrb[0].mxu0 %v1677
  %v1753 = vpop.f32.mrb[0].mxu0
  %v1754 = vadd.f32 %v535, %v1753
  %v1755 = vpop.f32.mrb[0].mxu0
  %v1756 = vadd.f32 %v539, %v1755
  %v1757 = vpop.f32.mrb[0].mxu0
  %v1758 = vpop.f32.mrb[0].mxu0
  %1759 = vdwg.mxu0
  %v1760 = vpack.c.bf16 %v1562, %v1562
  %1761 = vmatprep.subr.bf16.mxu0 %v1390
  %1762 = vmatpush1.bf16.msra.mxu0 %v1389
  %1763 = vmatprep.subr.bf16.mxu0 %v1394
  %1764 = vmatpush1.bf16.msra.mxu0 %v1393
  %1765 = vmatprep.subr.bf16.mxu0 %v1398
  %1766 = vmatpush1.bf16.msra.mxu0 %v1397
  %1767 = vmatprep.subr.bf16.mxu0 %v1402
  %1768 = vmatpush1.bf16.msra.mxu0 %v1401
  %1769 = vmatprep.subr.bf16.mxu0 %v1406
  %1770 = vmatpush1.bf16.msra.mxu0 %v1405
  %1771 = vmatprep.subr.bf16.mxu0 %v1410
  %1772 = vmatpush1.bf16.msra.mxu0 %v1409
  %1773 = vmatprep.subr.bf16.mxu0 %v1414
  %1774 = vmatpush1.bf16.msra.mxu0 %v1413
  %1775 = vmatprep.subr.bf16.mxu0 %v1418
  %1776 = vmatpush1.bf16.msra.mxu0 %v1417
  %1777 = vmatprep.subr.bf16.mxu0 0
  %1778 = vmatpush1.bf16.msra.mxu0 0
  %1779 = vmatprep.subr.bf16.mxu0 0
  %1780 = vmatpush1.bf16.msra.mxu0 0
  %1781 = vmatprep.subr.bf16.mxu0 0
  %1782 = vmatpush1.bf16.msra.mxu0 0
  %1783 = vmatprep.subr.bf16.mxu0 0
  %1784 = vmatpush1.bf16.msra.mxu0 0
  %1785 = vmatprep.subr.bf16.mxu0 0
  %1786 = vmatpush1.bf16.msra.mxu0 0
  %1787 = vmatprep.subr.bf16.mxu0 0
  %1788 = vmatpush1.bf16.msra.mxu0 0
  %1789 = vmatprep.subr.bf16.mxu0 0
  %1790 = vmatpush1.bf16.msra.mxu0 0
  %1791 = vmatprep.subr.bf16.mxu0 0
  %1792 = vmatpush1.bf16.msra.mxu0 0
  %1793 = vmatprep.mubr.bf16.mxu0 0
  %1794 = vmatmul.mubr.bf16.gmra.mrb[0].mxu0 %v1760
  %v1795 = vpop.f32.mrb[0].mxu0
  %v1796 = vadd.f32 0.0, %v1795
  %v1797 = vpop.f32.mrb[0].mxu0
  %v1798 = vadd.f32 0.0, %v1797
  %v1799 = vpop.f32.mrb[0].mxu0
  %v1800 = vpop.f32.mrb[0].mxu0
  %1801 = vdwg.mxu0
  %1802 = vmatprep.subr.bf16.mxu0 %v1392
  %1803 = vmatpush1.bf16.msra.mxu0 %v1391
  %1804 = vmatprep.subr.bf16.mxu0 %v1396
  %1805 = vmatpush1.bf16.msra.mxu0 %v1395
  %1806 = vmatprep.subr.bf16.mxu0 %v1400
  %1807 = vmatpush1.bf16.msra.mxu0 %v1399
  %1808 = vmatprep.subr.bf16.mxu0 %v1404
  %1809 = vmatpush1.bf16.msra.mxu0 %v1403
  %1810 = vmatprep.subr.bf16.mxu0 %v1408
  %1811 = vmatpush1.bf16.msra.mxu0 %v1407
  %1812 = vmatprep.subr.bf16.mxu0 %v1412
  %1813 = vmatpush1.bf16.msra.mxu0 %v1411
  %1814 = vmatprep.subr.bf16.mxu0 %v1416
  %1815 = vmatpush1.bf16.msra.mxu0 %v1415
  %1816 = vmatprep.subr.bf16.mxu0 %v1420
  %1817 = vmatpush1.bf16.msra.mxu0 %v1419
  %1818 = vmatprep.subr.bf16.mxu0 0
  %1819 = vmatpush1.bf16.msra.mxu0 0
  %1820 = vmatprep.subr.bf16.mxu0 0
  %1821 = vmatpush1.bf16.msra.mxu0 0
  %1822 = vmatprep.subr.bf16.mxu0 0
  %1823 = vmatpush1.bf16.msra.mxu0 0
  %1824 = vmatprep.subr.bf16.mxu0 0
  %1825 = vmatpush1.bf16.msra.mxu0 0
  %1826 = vmatprep.subr.bf16.mxu0 0
  %1827 = vmatpush1.bf16.msra.mxu0 0
  %1828 = vmatprep.subr.bf16.mxu0 0
  %1829 = vmatpush1.bf16.msra.mxu0 0
  %1830 = vmatprep.subr.bf16.mxu0 0
  %1831 = vmatpush1.bf16.msra.mxu0 0
  %1832 = vmatprep.subr.bf16.mxu0 0
  %1833 = vmatpush1.bf16.msra.mxu0 0
  %1834 = vmatprep.mubr.bf16.mxu0 0
  %1835 = vmatmul.mubr.bf16.gmra.mrb[0].mxu0 %v1760
  %v1836 = vpop.f32.mrb[0].mxu0
  %v1837 = vadd.f32 0.0, %v1836
  %v1838 = vpop.f32.mrb[0].mxu0
  %v1839 = vadd.f32 0.0, %v1838
  %v1840 = vpop.f32.mrb[0].mxu0
  %v1841 = vpop.f32.mrb[0].mxu0
  %1842 = vdwg.mxu0
  %v1843 = vadd.f32 %v1713, %v1796
  %v1844 = vadd.f32 %v1715, %v1798
  %v1845 = vadd.f32 %v1754, %v1837
  %v1846 = vadd.f32 %v1756, %v1839
  %v1847 = vxor.u32 %v1843, 2147483648
  %v1848 = vxor.u32 %v1844, 2147483648
  %v1849 = vxor.u32 %v1845, 2147483648
  %v1850 = vmul.f32 %v1847, 1.442695
  %v1851 = vpow.pop %v1850
  %v1852 = vmul.f32 %v1848, 1.442695
  %v1853 = vpow.pop %v1852
  %v1854 = vmul.f32 %v1849, 1.442695
  %v1855 = vpow.pop %v1854
  %v1856 = vadd.f32 %v1851, 1.0
  %v1857 = vadd.f32 %v1853, 1.0
  %v1858 = vadd.f32 %v1855, 1.0
  %v1859 = vrcp.pop %v1856
  %v1860 = vmul.f32 1.0, %v1859
  %v1861 = vrcp.pop %v1857
  %v1862 = vmul.f32 1.0, %v1861
  %v1863 = vrcp.pop %v1858
  %v1864 = vmul.f32 1.0, %v1863
  %v1865 = vtanh.pop %v1846
  %v1866 = vmul.f32 %v1862, %v1560
  %v1867 = vmul.f32 %v1860, %v1865
  %v1868 = vadd.f32 %v1866, %v1867
  %v1869 = vtanh.pop %v1868
  %v1870 = vmul.f32 %v1864, %v1869
  %v1871 = vld [vmem:[#allocation2 + $0x60] sm:$0xff]
  %v1872 = vld [vmem:[#allocation2 + $0x68] sm:$0xff]
  %v1873 = vld [vmem:[#allocation2 + $0x70] sm:$0xff]
  %v1874 = vld [vmem:[#allocation2 + $0x78] sm:$0xff]
  %1875 = vmatprep.subr.bf16.mxu0 %v1004
  %1876 = vmatpush1.bf16.msra.mxu0 %v1003
  %1877 = vmatprep.subr.bf16.mxu0 %v1008
  %1878 = vmatpush1.bf16.msra.mxu0 %v1007
  %1879 = vmatprep.subr.bf16.mxu0 %v1012
  %1880 = vmatpush1.bf16.msra.mxu0 %v1011
  %1881 = vmatprep.subr.bf16.mxu0 %v1016
  %1882 = vmatpush1.bf16.msra.mxu0 %v1015
  %1883 = vmatprep.subr.bf16.mxu0 %v1020
  %1884 = vmatpush1.bf16.msra.mxu0 %v1019
  %1885 = vmatprep.subr.bf16.mxu0 %v1024
  %1886 = vmatpush1.bf16.msra.mxu0 %v1023
  %1887 = vmatprep.subr.bf16.mxu0 %v1028
  %1888 = vmatpush1.bf16.msra.mxu0 %v1027
  %1889 = vmatprep.subr.bf16.mxu0 %v1032
  %1890 = vmatpush1.bf16.msra.mxu0 %v1031
  %1891 = vmatprep.subr.bf16.mxu0 0
  %1892 = vmatpush1.bf16.msra.mxu0 0
  %1893 = vmatprep.subr.bf16.mxu0 0
  %1894 = vmatpush1.bf16.msra.mxu0 0
  %1895 = vmatprep.subr.bf16.mxu0 0
  %1896 = vmatpush1.bf16.msra.mxu0 0
  %1897 = vmatprep.subr.bf16.mxu0 0
  %1898 = vmatpush1.bf16.msra.mxu0 0
  %1899 = vmatprep.subr.bf16.mxu0 0
  %1900 = vmatpush1.bf16.msra.mxu0 0
  %1901 = vmatprep.subr.bf16.mxu0 0
  %1902 = vmatpush1.bf16.msra.mxu0 0
  %1903 = vmatprep.subr.bf16.mxu0 0
  %1904 = vmatpush1.bf16.msra.mxu0 0
  %1905 = vmatprep.subr.bf16.mxu0 0
  %1906 = vmatpush1.bf16.msra.mxu0 0
  %1907 = vmatprep.mubr.bf16.mxu0 0
  %1908 = vmatmul.mubr.bf16.gmra.mrb[0].mxu0 %v1677
  %v1909 = vpop.f32.mrb[0].mxu0
  %v1910 = vadd.f32 0.0, %v1909
  %v1911 = vpop.f32.mrb[0].mxu0
  %v1912 = vadd.f32 0.0, %v1911
  %v1913 = vpop.f32.mrb[0].mxu0
  %v1914 = vpop.f32.mrb[0].mxu0
  %1915 = vdwg.mxu0
  %1916 = vmatprep.subr.bf16.mxu0 %v1006
  %1917 = vmatpush1.bf16.msra.mxu0 %v1005
  %1918 = vmatprep.subr.bf16.mxu0 %v1010
  %1919 = vmatpush1.bf16.msra.mxu0 %v1009
  %1920 = vmatprep.subr.bf16.mxu0 %v1014
  %1921 = vmatpush1.bf16.msra.mxu0 %v1013
  %1922 = vmatprep.subr.bf16.mxu0 %v1018
  %1923 = vmatpush1.bf16.msra.mxu0 %v1017
  %1924 = vmatprep.subr.bf16.mxu0 %v1022
  %1925 = vmatpush1.bf16.msra.mxu0 %v1021
  %1926 = vmatprep.subr.bf16.mxu0 %v1026
  %1927 = vmatpush1.bf16.msra.mxu0 %v1025
  %1928 = vmatprep.subr.bf16.mxu0 %v1030
  %1929 = vmatpush1.bf16.msra.mxu0 %v1029
  %1930 = vmatprep.subr.bf16.mxu0 %v1034
  %1931 = vmatpush1.bf16.msra.mxu0 %v1033
  %1932 = vmatprep.subr.bf16.mxu0 0
  %1933 = vmatpush1.bf16.msra.mxu0 0
  %1934 = vmatprep.subr.bf16.mxu0 0
  %1935 = vmatpush1.bf16.msra.mxu0 0
  %1936 = vmatprep.subr.bf16.mxu0 0
  %1937 = vmatpush1.bf16.msra.mxu0 0
  %1938 = vmatprep.subr.bf16.mxu0 0
  %1939 = vmatpush1.bf16.msra.mxu0 0
  %1940 = vmatprep.subr.bf16.mxu0 0
  %1941 = vmatpush1.bf16.msra.mxu0 0
  %1942 = vmatprep.subr.bf16.mxu0 0
  %1943 = vmatpush1.bf16.msra.mxu0 0
  %1944 = vmatprep.subr.bf16.mxu0 0
  %1945 = vmatpush1.bf16.msra.mxu0 0
  %1946 = vmatprep.subr.bf16.mxu0 0
  %1947 = vmatpush1.bf16.msra.mxu0 0
  %1948 = vmatprep.mubr.bf16.mxu0 0
  %1949 = vmatmul.mubr.bf16.gmra.mrb[0].mxu0 %v1677
  %v1950 = vpop.f32.mrb[0].mxu0
  %v1951 = vadd.f32 0.0, %v1950
  %v1952 = vpop.f32.mrb[0].mxu0
  %v1953 = vadd.f32 0.0, %v1952
  %v1954 = vpop.f32.mrb[0].mxu0
  %v1955 = vpop.f32.mrb[0].mxu0
  %1956 = vdwg.mxu0
  %v1957 = vadd.f32 %v1871, %v1910
  %v1958 = vadd.f32 %v1872, %v1912
  %v1959 = vadd.f32 %v1873, %v1951
  %v1960 = vadd.f32 %v1874, %v1953
  %v1961 = vxor.u32 %v1957, 2147483648
  %v1962 = vxor.u32 %v1958, 2147483648
  %v1963 = vxor.u32 %v1959, 2147483648
  %v1964 = vmul.f32 %v1961, 1.442695
  %v1965 = vpow.pop %v1964
  %v1966 = vmul.f32 %v1962, 1.442695
  %v1967 = vpow.pop %v1966
  %v1968 = vmul.f32 %v1963, 1.442695
  %v1969 = vpow.pop %v1968
  %v1970 = vadd.f32 %v1965, 1.0
  %v1971 = vadd.f32 %v1967, 1.0
  %v1972 = vadd.f32 %v1969, 1.0
  %v1973 = vrcp.pop %v1970
  %v1974 = vmul.f32 1.0, %v1973
  %v1975 = vrcp.pop %v1971
  %v1976 = vmul.f32 1.0, %v1975
  %v1977 = vrcp.pop %v1972
  %v1978 = vmul.f32 1.0, %v1977
  %v1979 = vtanh.pop %v1960
  %v1980 = vmul.f32 %v1976, %v1674
  %v1981 = vmul.f32 %v1974, %v1979
  %v1982 = vadd.f32 %v1980, %v1981
  %v1983 = vtanh.pop %v1982
  %v1984 = vmul.f32 %v1978, %v1983
  %v1985 = vpack.c.bf16 %v1984, %v1984
  %1986 = vmatprep.subr.bf16.mxu0 %v702
  %1987 = vmatpush1.bf16.msra.mxu0 %v701
  %1988 = vmatprep.subr.bf16.mxu0 %v706
  %1989 = vmatpush1.bf16.msra.mxu0 %v705
  %1990 = vmatprep.subr.bf16.mxu0 %v710
  %1991 = vmatpush1.bf16.msra.mxu0 %v709
  %1992 = vmatprep.subr.bf16.mxu0 %v714
  %1993 = vmatpush1.bf16.msra.mxu0 %v713
  %1994 = vmatprep.subr.bf16.mxu0 %v718
  %1995 = vmatpush1.bf16.msra.mxu0 %v717
  %1996 = vmatprep.subr.bf16.mxu0 %v722
  %1997 = vmatpush1.bf16.msra.mxu0 %v721
  %1998 = vmatprep.subr.bf16.mxu0 %v726
  %1999 = vmatpush1.bf16.msra.mxu0 %v725
  %2000 = vmatprep.subr.bf16.mxu0 %v730
  %2001 = vmatpush1.bf16.msra.mxu0 %v729
  %2002 = vmatprep.subr.bf16.mxu0 0
  %2003 = vmatpush1.bf16.msra.mxu0 0
  %2004 = vmatprep.subr.bf16.mxu0 0
  %2005 = vmatpush1.bf16.msra.mxu0 0
  %2006 = vmatprep.subr.bf16.mxu0 0
  %2007 = vmatpush1.bf16.msra.mxu0 0
  %2008 = vmatprep.subr.bf16.mxu0 0
  %2009 = vmatpush1.bf16.msra.mxu0 0
  %2010 = vmatprep.subr.bf16.mxu0 0
  %2011 = vmatpush1.bf16.msra.mxu0 0
  %2012 = vmatprep.subr.bf16.mxu0 0
  %2013 = vmatpush1.bf16.msra.mxu0 0
  %2014 = vmatprep.subr.bf16.mxu0 0
  %2015 = vmatpush1.bf16.msra.mxu0 0
  %2016 = vmatprep.subr.bf16.mxu0 0
  %2017 = vmatpush1.bf16.msra.mxu0 0
  %2018 = vmatprep.mubr.bf16.mxu0 0
  %2019 = vmatmul.mubr.bf16.gmra.mrb[0].mxu0 %v1985
  %v2020 = vpop.f32.mrb[0].mxu0
  %v2021 = vadd.f32 %v527, %v2020
  %v2022 = vpop.f32.mrb[0].mxu0
  %v2023 = vadd.f32 %v531, %v2022
  %v2024 = vpop.f32.mrb[0].mxu0
  %v2025 = vpop.f32.mrb[0].mxu0
  %2026 = vdwg.mxu0
  %2027 = vmatprep.subr.bf16.mxu0 %v704
  %2028 = vmatpush1.bf16.msra.mxu0 %v703
  %2029 = vmatprep.subr.bf16.mxu0 %v708
  %2030 = vmatpush1.bf16.msra.mxu0 %v707
  %2031 = vmatprep.subr.bf16.mxu0 %v712
  %2032 = vmatpush1.bf16.msra.mxu0 %v711
  %2033 = vmatprep.subr.bf16.mxu0 %v716
  %2034 = vmatpush1.bf16.msra.mxu0 %v715
  %2035 = vmatprep.subr.bf16.mxu0 %v720
  %2036 = vmatpush1.bf16.msra.mxu0 %v719
  %2037 = vmatprep.subr.bf16.mxu0 %v724
  %2038 = vmatpush1.bf16.msra.mxu0 %v723
  %2039 = vmatprep.subr.bf16.mxu0 %v728
  %2040 = vmatpush1.bf16.msra.mxu0 %v727
  %2041 = vmatprep.subr.bf16.mxu0 %v732
  %2042 = vmatpush1.bf16.msra.mxu0 %v731
  %2043 = vmatprep.subr.bf16.mxu0 0
  %2044 = vmatpush1.bf16.msra.mxu0 0
  %2045 = vmatprep.subr.bf16.mxu0 0
  %2046 = vmatpush1.bf16.msra.mxu0 0
  %2047 = vmatprep.subr.bf16.mxu0 0
  %2048 = vmatpush1.bf16.msra.mxu0 0
  %2049 = vmatprep.subr.bf16.mxu0 0
  %2050 = vmatpush1.bf16.msra.mxu0 0
  %2051 = vmatprep.subr.bf16.mxu0 0
  %2052 = vmatpush1.bf16.msra.mxu0 0
  %2053 = vmatprep.subr.bf16.mxu0 0
  %2054 = vmatpush1.bf16.msra.mxu0 0
  %2055 = vmatprep.subr.bf16.mxu0 0
  %2056 = vmatpush1.bf16.msra.mxu0 0
  %2057 = vmatprep.subr.bf16.mxu0 0
  %2058 = vmatpush1.bf16.msra.mxu0 0
  %2059 = vmatprep.mubr.bf16.mxu0 0
  %2060 = vmatmul.mubr.bf16.gmra.mrb[0].mxu0 %v1985
  %v2061 = vpop.f32.mrb[0].mxu0
  %v2062 = vadd.f32 %v535, %v2061
  %v2063 = vpop.f32.mrb[0].mxu0
  %v2064 = vadd.f32 %v539, %v2063
  %v2065 = vpop.f32.mrb[0].mxu0
  %v2066 = vpop.f32.mrb[0].mxu0
  %2067 = vdwg.mxu0
  %v2068 = vpack.c.bf16 %v1870, %v1870
  %2069 = vmatprep.subr.bf16.mxu0 %v1390
  %2070 = vmatpush1.bf16.msra.mxu0 %v1389
  %2071 = vmatprep.subr.bf16.mxu0 %v1394
  %2072 = vmatpush1.bf16.msra.mxu0 %v1393
  %2073 = vmatprep.subr.bf16.mxu0 %v1398
  %2074 = vmatpush1.bf16.msra.mxu0 %v1397
  %2075 = vmatprep.subr.bf16.mxu0 %v1402
  %2076 = vmatpush1.bf16.msra.mxu0 %v1401
  %2077 = vmatprep.subr.bf16.mxu0 %v1406
  %2078 = vmatpush1.bf16.msra.mxu0 %v1405
  %2079 = vmatprep.subr.bf16.mxu0 %v1410
  %2080 = vmatpush1.bf16.msra.mxu0 %v1409
  %2081 = vmatprep.subr.bf16.mxu0 %v1414
  %2082 = vmatpush1.bf16.msra.mxu0 %v1413
  %2083 = vmatprep.subr.bf16.mxu0 %v1418
  %2084 = vmatpush1.bf16.msra.mxu0 %v1417
  %2085 = vmatprep.subr.bf16.mxu0 0
  %2086 = vmatpush1.bf16.msra.mxu0 0
  %2087 = vmatprep.subr.bf16.mxu0 0
  %2088 = vmatpush1.bf16.msra.mxu0 0
  %2089 = vmatprep.subr.bf16.mxu0 0
  %2090 = vmatpush1.bf16.msra.mxu0 0
  %2091 = vmatprep.subr.bf16.mxu0 0
  %2092 = vmatpush1.bf16.msra.mxu0 0
  %2093 = vmatprep.subr.bf16.mxu0 0
  %2094 = vmatpush1.bf16.msra.mxu0 0
  %2095 = vmatprep.subr.bf16.mxu0 0
  %2096 = vmatpush1.bf16.msra.mxu0 0
  %2097 = vmatprep.subr.bf16.mxu0 0
  %2098 = vmatpush1.bf16.msra.mxu0 0
  %2099 = vmatprep.subr.bf16.mxu0 0
  %2100 = vmatpush1.bf16.msra.mxu0 0
  %2101 = vmatprep.mubr.bf16.mxu0 0
  %2102 = vmatmul.mubr.bf16.gmra.mrb[0].mxu0 %v2068
  %v2103 = vpop.f32.mrb[0].mxu0
  %v2104 = vadd.f32 0.0, %v2103
  %v2105 = vpop.f32.mrb[0].mxu0
  %v2106 = vadd.f32 0.0, %v2105
  %v2107 = vpop.f32.mrb[0].mxu0
  %v2108 = vpop.f32.mrb[0].mxu0
  %2109 = vdwg.mxu0
  %2110 = vmatprep.subr.bf16.mxu0 %v1392
  %2111 = vmatpush1.bf16.msra.mxu0 %v1391
  %2112 = vmatprep.subr.bf16.mxu0 %v1396
  %2113 = vmatpush1.bf16.msra.mxu0 %v1395
  %2114 = vmatprep.subr.bf16.mxu0 %v1400
  %2115 = vmatpush1.bf16.msra.mxu0 %v1399
  %2116 = vmatprep.subr.bf16.mxu0 %v1404
  %2117 = vmatpush1.bf16.msra.mxu0 %v1403
  %2118 = vmatprep.subr.bf16.mxu0 %v1408
  %2119 = vmatpush1.bf16.msra.mxu0 %v1407
  %2120 = vmatprep.subr.bf16.mxu0 %v1412
  %2121 = vmatpush1.bf16.msra.mxu0 %v1411
  %2122 = vmatprep.subr.bf16.mxu0 %v1416
  %2123 = vmatpush1.bf16.msra.mxu0 %v1415
  %2124 = vmatprep.subr.bf16.mxu0 %v1420
  %2125 = vmatpush1.bf16.msra.mxu0 %v1419
  %2126 = vmatprep.subr.bf16.mxu0 0
  %2127 = vmatpush1.bf16.msra.mxu0 0
  %2128 = vmatprep.subr.bf16.mxu0 0
  %2129 = vmatpush1.bf16.msra.mxu0 0
  %2130 = vmatprep.subr.bf16.mxu0 0
  %2131 = vmatpush1.bf16.msra.mxu0 0
  %2132 = vmatprep.subr.bf16.mxu0 0
  %2133 = vmatpush1.bf16.msra.mxu0 0
  %2134 = vmatprep.subr.bf16.mxu0 0
  %2135 = vmatpush1.bf16.msra.mxu0 0
  %2136 = vmatprep.subr.bf16.mxu0 0
  %2137 = vmatpush1.bf16.msra.mxu0 0
  %2138 = vmatprep.subr.bf16.mxu0 0
  %2139 = vmatpush1.bf16.msra.mxu0 0
  %2140 = vmatprep.subr.bf16.mxu0 0
  %2141 = vmatpush1.bf16.msra.mxu0 0
  %2142 = vmatprep.mubr.bf16.mxu0 0
  %2143 = vmatmul.mubr.bf16.gmra.mrb[0].mxu0 %v2068
  %v2144 = vpop.f32.mrb[0].mxu0
  %v2145 = vadd.f32 0.0, %v2144
  %v2146 = vpop.f32.mrb[0].mxu0
  %v2147 = vadd.f32 0.0, %v2146
  %v2148 = vpop.f32.mrb[0].mxu0
  %v2149 = vpop.f32.mrb[0].mxu0
  %2150 = vdwg.mxu0
  %v2151 = vadd.f32 %v2021, %v2104
  %v2152 = vadd.f32 %v2023, %v2106
  %v2153 = vadd.f32 %v2062, %v2145
  %v2154 = vadd.f32 %v2064, %v2147
  %v2155 = vxor.u32 %v2151, 2147483648
  %v2156 = vxor.u32 %v2152, 2147483648
  %v2157 = vxor.u32 %v2153, 2147483648
  %v2158 = vmul.f32 %v2155, 1.442695
  %v2159 = vpow.pop %v2158
  %v2160 = vmul.f32 %v2156, 1.442695
  %v2161 = vpow.pop %v2160
  %v2162 = vmul.f32 %v2157, 1.442695
  %v2163 = vpow.pop %v2162
  %v2164 = vadd.f32 %v2159, 1.0
  %v2165 = vadd.f32 %v2161, 1.0
  %v2166 = vadd.f32 %v2163, 1.0
  %v2167 = vrcp.pop %v2164
  %v2168 = vmul.f32 1.0, %v2167
  %v2169 = vrcp.pop %v2165
  %v2170 = vmul.f32 1.0, %v2169
  %v2171 = vrcp.pop %v2166
  %v2172 = vmul.f32 1.0, %v2171
  %v2173 = vtanh.pop %v2154
  %v2174 = vmul.f32 %v2170, %v1868
  %v2175 = vmul.f32 %v2168, %v2173
  %v2176 = vadd.f32 %v2174, %v2175
  %v2177 = vtanh.pop %v2176
  %v2178 = vmul.f32 %v2172, %v2177
  %v2179 = vld [vmem:[#allocation2 + $0x80] sm:$0xff]
  %v2180 = vld [vmem:[#allocation2 + $0x88] sm:$0xff]
  %v2181 = vld [vmem:[#allocation2 + $0x90] sm:$0xff]
  %v2182 = vld [vmem:[#allocation2 + $0x98] sm:$0xff]
  %2183 = vmatprep.subr.bf16.mxu0 %v1004
  %2184 = vmatpush1.bf16.msra.mxu0 %v1003
  %2185 = vmatprep.subr.bf16.mxu0 %v1008
  %2186 = vmatpush1.bf16.msra.mxu0 %v1007
  %2187 = vmatprep.subr.bf16.mxu0 %v1012
  %2188 = vmatpush1.bf16.msra.mxu0 %v1011
  %2189 = vmatprep.subr.bf16.mxu0 %v1016
  %2190 = vmatpush1.bf16.msra.mxu0 %v1015
  %2191 = vmatprep.subr.bf16.mxu0 %v1020
  %2192 = vmatpush1.bf16.msra.mxu0 %v1019
  %2193 = vmatprep.subr.bf16.mxu0 %v1024
  %2194 = vmatpush1.bf16.msra.mxu0 %v1023
  %2195 = vmatprep.subr.bf16.mxu0 %v1028
  %2196 = vmatpush1.bf16.msra.mxu0 %v1027
  %2197 = vmatprep.subr.bf16.mxu0 %v1032
  %2198 = vmatpush1.bf16.msra.mxu0 %v1031
  %2199 = vmatprep.subr.bf16.mxu0 0
  %2200 = vmatpush1.bf16.msra.mxu0 0
  %2201 = vmatprep.subr.bf16.mxu0 0
  %2202 = vmatpush1.bf16.msra.mxu0 0
  %2203 = vmatprep.subr.bf16.mxu0 0
  %2204 = vmatpush1.bf16.msra.mxu0 0
  %2205 = vmatprep.subr.bf16.mxu0 0
  %2206 = vmatpush1.bf16.msra.mxu0 0
  %2207 = vmatprep.subr.bf16.mxu0 0
  %2208 = vmatpush1.bf16.msra.mxu0 0
  %2209 = vmatprep.subr.bf16.mxu0 0
  %2210 = vmatpush1.bf16.msra.mxu0 0
  %2211 = vmatprep.subr.bf16.mxu0 0
  %2212 = vmatpush1.bf16.msra.mxu0 0
  %2213 = vmatprep.subr.bf16.mxu0 0
  %2214 = vmatpush1.bf16.msra.mxu0 0
  %2215 = vmatprep.mubr.bf16.mxu0 0
  %2216 = vmatmul.mubr.bf16.gmra.mrb[0].mxu0 %v1985
  %v2217 = vpop.f32.mrb[0].mxu0
  %v2218 = vadd.f32 0.0, %v2217
  %v2219 = vpop.f32.mrb[0].mxu0
  %v2220 = vadd.f32 0.0, %v2219
  %v2221 = vpop.f32.mrb[0].mxu0
  %v2222 = vpop.f32.mrb[0].mxu0
  %2223 = vdwg.mxu0
  %2224 = vmatprep.subr.bf16.mxu0 %v1006
  %2225 = vmatpush1.bf16.msra.mxu0 %v1005
  %2226 = vmatprep.subr.bf16.mxu0 %v1010
  %2227 = vmatpush1.bf16.msra.mxu0 %v1009
  %2228 = vmatprep.subr.bf16.mxu0 %v1014
  %2229 = vmatpush1.bf16.msra.mxu0 %v1013
  %2230 = vmatprep.subr.bf16.mxu0 %v1018
  %2231 = vmatpush1.bf16.msra.mxu0 %v1017
  %2232 = vmatprep.subr.bf16.mxu0 %v1022
  %2233 = vmatpush1.bf16.msra.mxu0 %v1021
  %2234 = vmatprep.subr.bf16.mxu0 %v1026
  %2235 = vmatpush1.bf16.msra.mxu0 %v1025
  %2236 = vmatprep.subr.bf16.mxu0 %v1030
  %2237 = vmatpush1.bf16.msra.mxu0 %v1029
  %2238 = vmatprep.subr.bf16.mxu0 %v1034
  %2239 = vmatpush1.bf16.msra.mxu0 %v1033
  %2240 = vmatprep.subr.bf16.mxu0 0
  %2241 = vmatpush1.bf16.msra.mxu0 0
  %2242 = vmatprep.subr.bf16.mxu0 0
  %2243 = vmatpush1.bf16.msra.mxu0 0
  %2244 = vmatprep.subr.bf16.mxu0 0
  %2245 = vmatpush1.bf16.msra.mxu0 0
  %2246 = vmatprep.subr.bf16.mxu0 0
  %2247 = vmatpush1.bf16.msra.mxu0 0
  %2248 = vmatprep.subr.bf16.mxu0 0
  %2249 = vmatpush1.bf16.msra.mxu0 0
  %2250 = vmatprep.subr.bf16.mxu0 0
  %2251 = vmatpush1.bf16.msra.mxu0 0
  %2252 = vmatprep.subr.bf16.mxu0 0
  %2253 = vmatpush1.bf16.msra.mxu0 0
  %2254 = vmatprep.subr.bf16.mxu0 0
  %2255 = vmatpush1.bf16.msra.mxu0 0
  %2256 = vmatprep.mubr.bf16.mxu0 0
  %2257 = vmatmul.mubr.bf16.gmra.mrb[0].mxu0 %v1985
  %v2258 = vpop.f32.mrb[0].mxu0
  %v2259 = vadd.f32 0.0, %v2258
  %v2260 = vpop.f32.mrb[0].mxu0
  %v2261 = vadd.f32 0.0, %v2260
  %v2262 = vpop.f32.mrb[0].mxu0
  %v2263 = vpop.f32.mrb[0].mxu0
  %2264 = vdwg.mxu0
  %v2265 = vadd.f32 %v2179, %v2218
  %v2266 = vadd.f32 %v2180, %v2220
  %v2267 = vadd.f32 %v2181, %v2259
  %v2268 = vadd.f32 %v2182, %v2261
  %v2269 = vxor.u32 %v2265, 2147483648
  %v2270 = vxor.u32 %v2266, 2147483648
  %v2271 = vxor.u32 %v2267, 2147483648
  %v2272 = vmul.f32 %v2269, 1.442695
  %v2273 = vpow.pop %v2272
  %v2274 = vmul.f32 %v2270, 1.442695
  %v2275 = vpow.pop %v2274
  %v2276 = vmul.f32 %v2271, 1.442695
  %v2277 = vpow.pop %v2276
  %v2278 = vadd.f32 %v2273, 1.0
  %v2279 = vadd.f32 %v2275, 1.0
  %v2280 = vadd.f32 %v2277, 1.0
  %v2281 = vrcp.pop %v2278
  %v2282 = vmul.f32 1.0, %v2281
  %v2283 = vrcp.pop %v2279
  %v2284 = vmul.f32 1.0, %v2283
  %v2285 = vrcp.pop %v2280
  %v2286 = vmul.f32 1.0, %v2285
  %v2287 = vtanh.pop %v2268
  %v2288 = vmul.f32 %v2284, %v1982
  %v2289 = vmul.f32 %v2282, %v2287
  %v2290 = vadd.f32 %v2288, %v2289
  %v2291 = vtanh.pop %v2290
  %v2292 = vmul.f32 %v2286, %v2291
  %v2293 = vpack.c.bf16 %v2292, %v2292
  %2294 = vmatprep.subr.bf16.mxu0 %v702
  %2295 = vmatpush1.bf16.msra.mxu0 %v701
  %2296 = vmatprep.subr.bf16.mxu0 %v706
  %2297 = vmatpush1.bf16.msra.mxu0 %v705
  %2298 = vmatprep.subr.bf16.mxu0 %v710
  %2299 = vmatpush1.bf16.msra.mxu0 %v709
  %2300 = vmatprep.subr.bf16.mxu0 %v714
  %2301 = vmatpush1.bf16.msra.mxu0 %v713
  %2302 = vmatprep.subr.bf16.mxu0 %v718
  %2303 = vmatpush1.bf16.msra.mxu0 %v717
  %2304 = vmatprep.subr.bf16.mxu0 %v722
  %2305 = vmatpush1.bf16.msra.mxu0 %v721
  %2306 = vmatprep.subr.bf16.mxu0 %v726
  %2307 = vmatpush1.bf16.msra.mxu0 %v725
  %2308 = vmatprep.subr.bf16.mxu0 %v730
  %2309 = vmatpush1.bf16.msra.mxu0 %v729
  %2310 = vmatprep.subr.bf16.mxu0 0
  %2311 = vmatpush1.bf16.msra.mxu0 0
  %2312 = vmatprep.subr.bf16.mxu0 0
  %2313 = vmatpush1.bf16.msra.mxu0 0
  %2314 = vmatprep.subr.bf16.mxu0 0
  %2315 = vmatpush1.bf16.msra.mxu0 0
  %2316 = vmatprep.subr.bf16.mxu0 0
  %2317 = vmatpush1.bf16.msra.mxu0 0
  %2318 = vmatprep.subr.bf16.mxu0 0
  %2319 = vmatpush1.bf16.msra.mxu0 0
  %2320 = vmatprep.subr.bf16.mxu0 0
  %2321 = vmatpush1.bf16.msra.mxu0 0
  %2322 = vmatprep.subr.bf16.mxu0 0
  %2323 = vmatpush1.bf16.msra.mxu0 0
  %2324 = vmatprep.subr.bf16.mxu0 0
  %2325 = vmatpush1.bf16.msra.mxu0 0
  %2326 = vmatprep.mubr.bf16.mxu0 0
  %2327 = vmatmul.mubr.bf16.gmra.mrb[0].mxu0 %v2293
  %v2328 = vpop.f32.mrb[0].mxu0
  %v2329 = vadd.f32 %v527, %v2328
  %v2330 = vpop.f32.mrb[0].mxu0
  %v2331 = vadd.f32 %v531, %v2330
  %v2332 = vpop.f32.mrb[0].mxu0
  %v2333 = vpop.f32.mrb[0].mxu0
  %2334 = vdwg.mxu0
  %2335 = vmatprep.subr.bf16.mxu0 %v704
  %2336 = vmatpush1.bf16.msra.mxu0 %v703
  %2337 = vmatprep.subr.bf16.mxu0 %v708
  %2338 = vmatpush1.bf16.msra.mxu0 %v707
  %2339 = vmatprep.subr.bf16.mxu0 %v712
  %2340 = vmatpush1.bf16.msra.mxu0 %v711
  %2341 = vmatprep.subr.bf16.mxu0 %v716
  %2342 = vmatpush1.bf16.msra.mxu0 %v715
  %2343 = vmatprep.subr.bf16.mxu0 %v720
  %2344 = vmatpush1.bf16.msra.mxu0 %v719
  %2345 = vmatprep.subr.bf16.mxu0 %v724
  %2346 = vmatpush1.bf16.msra.mxu0 %v723
  %2347 = vmatprep.subr.bf16.mxu0 %v728
  %2348 = vmatpush1.bf16.msra.mxu0 %v727
  %2349 = vmatprep.subr.bf16.mxu0 %v732
  %2350 = vmatpush1.bf16.msra.mxu0 %v731
  %2351 = vmatprep.subr.bf16.mxu0 0
  %2352 = vmatpush1.bf16.msra.mxu0 0
  %2353 = vmatprep.subr.bf16.mxu0 0
  %2354 = vmatpush1.bf16.msra.mxu0 0
  %2355 = vmatprep.subr.bf16.mxu0 0
  %2356 = vmatpush1.bf16.msra.mxu0 0
  %2357 = vmatprep.subr.bf16.mxu0 0
  %2358 = vmatpush1.bf16.msra.mxu0 0
  %2359 = vmatprep.subr.bf16.mxu0 0
  %2360 = vmatpush1.bf16.msra.mxu0 0
  %2361 = vmatprep.subr.bf16.mxu0 0
  %2362 = vmatpush1.bf16.msra.mxu0 0
  %2363 = vmatprep.subr.bf16.mxu0 0
  %2364 = vmatpush1.bf16.msra.mxu0 0
  %2365 = vmatprep.subr.bf16.mxu0 0
  %2366 = vmatpush1.bf16.msra.mxu0 0
  %2367 = vmatprep.mubr.bf16.mxu0 0
  %2368 = vmatmul.mubr.bf16.gmra.mrb[0].mxu0 %v2293
  %v2369 = vpop.f32.mrb[0].mxu0
  %v2370 = vadd.f32 %v535, %v2369
  %v2371 = vpop.f32.mrb[0].mxu0
  %v2372 = vadd.f32 %v539, %v2371
  %v2373 = vpop.f32.mrb[0].mxu0
  %v2374 = vpop.f32.mrb[0].mxu0
  %2375 = vdwg.mxu0
  %v2376 = vpack.c.bf16 %v2178, %v2178
  %2377 = vmatprep.subr.bf16.mxu0 %v1390
  %2378 = vmatpush1.bf16.msra.mxu0 %v1389
  %2379 = vmatprep.subr.bf16.mxu0 %v1394
  %2380 = vmatpush1.bf16.msra.mxu0 %v1393
  %2381 = vmatprep.subr.bf16.mxu0 %v1398
  %2382 = vmatpush1.bf16.msra.mxu0 %v1397
  %2383 = vmatprep.subr.bf16.mxu0 %v1402
  %2384 = vmatpush1.bf16.msra.mxu0 %v1401
  %2385 = vmatprep.subr.bf16.mxu0 %v1406
  %2386 = vmatpush1.bf16.msra.mxu0 %v1405
  %2387 = vmatprep.subr.bf16.mxu0 %v1410
  %2388 = vmatpush1.bf16.msra.mxu0 %v1409
  %2389 = vmatprep.subr.bf16.mxu0 %v1414
  %2390 = vmatpush1.bf16.msra.mxu0 %v1413
  %2391 = vmatprep.subr.bf16.mxu0 %v1418
  %2392 = vmatpush1.bf16.msra.mxu0 %v1417
  %2393 = vmatprep.subr.bf16.mxu0 0
  %2394 = vmatpush1.bf16.msra.mxu0 0
  %2395 = vmatprep.subr.bf16.mxu0 0
  %2396 = vmatpush1.bf16.msra.mxu0 0
  %2397 = vmatprep.subr.bf16.mxu0 0
  %2398 = vmatpush1.bf16.msra.mxu0 0
  %2399 = vmatprep.subr.bf16.mxu0 0
  %2400 = vmatpush1.bf16.msra.mxu0 0
  %2401 = vmatprep.subr.bf16.mxu0 0
  %2402 = vmatpush1.bf16.msra.mxu0 0
  %2403 = vmatprep.subr.bf16.mxu0 0
  %2404 = vmatpush1.bf16.msra.mxu0 0
  %2405 = vmatprep.subr.bf16.mxu0 0
  %2406 = vmatpush1.bf16.msra.mxu0 0
  %2407 = vmatprep.subr.bf16.mxu0 0
  %2408 = vmatpush1.bf16.msra.mxu0 0
  %2409 = vmatprep.mubr.bf16.mxu0 0
  %2410 = vmatmul.mubr.bf16.gmra.mrb[0].mxu0 %v2376
  %v2411 = vpop.f32.mrb[0].mxu0
  %v2412 = vadd.f32 0.0, %v2411
  %v2413 = vpop.f32.mrb[0].mxu0
  %v2414 = vadd.f32 0.0, %v2413
  %v2415 = vpop.f32.mrb[0].mxu0
  %v2416 = vpop.f32.mrb[0].mxu0
  %2417 = vdwg.mxu0
  %2418 = vmatprep.subr.bf16.mxu0 %v1392
  %2419 = vmatpush1.bf16.msra.mxu0 %v1391
  %2420 = vmatprep.subr.bf16.mxu0 %v1396
  %2421 = vmatpush1.bf16.msra.mxu0 %v1395
  %2422 = vmatprep.subr.bf16.mxu0 %v1400
  %2423 = vmatpush1.bf16.msra.mxu0 %v1399
  %2424 = vmatprep.subr.bf16.mxu0 %v1404
  %2425 = vmatpush1.bf16.msra.mxu0 %v1403
  %2426 = vmatprep.subr.bf16.mxu0 %v1408
  %2427 = vmatpush1.bf16.msra.mxu0 %v1407
  %2428 = vmatprep.subr.bf16.mxu0 %v1412
  %2429 = vmatpush1.bf16.msra.mxu0 %v1411
  %2430 = vmatprep.subr.bf16.mxu0 %v1416
  %2431 = vmatpush1.bf16.msra.mxu0 %v1415
  %2432 = vmatprep.subr.bf16.mxu0 %v1420
  %2433 = vmatpush1.bf16.msra.mxu0 %v1419
  %2434 = vmatprep.subr.bf16.mxu0 0
  %2435 = vmatpush1.bf16.msra.mxu0 0
  %2436 = vmatprep.subr.bf16.mxu0 0
  %2437 = vmatpush1.bf16.msra.mxu0 0
  %2438 = vmatprep.subr.bf16.mxu0 0
  %2439 = vmatpush1.bf16.msra.mxu0 0
  %2440 = vmatprep.subr.bf16.mxu0 0
  %2441 = vmatpush1.bf16.msra.mxu0 0
  %2442 = vmatprep.subr.bf16.mxu0 0
  %2443 = vmatpush1.bf16.msra.mxu0 0
  %2444 = vmatprep.subr.bf16.mxu0 0
  %2445 = vmatpush1.bf16.msra.mxu0 0
  %2446 = vmatprep.subr.bf16.mxu0 0
  %2447 = vmatpush1.bf16.msra.mxu0 0
  %2448 = vmatprep.subr.bf16.mxu0 0
  %2449 = vmatpush1.bf16.msra.mxu0 0
  %2450 = vmatprep.mubr.bf16.mxu0 0
  %2451 = vmatmul.mubr.bf16.gmra.mrb[0].mxu0 %v2376
  %v2452 = vpop.f32.mrb[0].mxu0
  %v2453 = vadd.f32 0.0, %v2452
  %v2454 = vpop.f32.mrb[0].mxu0
  %v2455 = vadd.f32 0.0, %v2454
  %v2456 = vpop.f32.mrb[0].mxu0
  %v2457 = vpop.f32.mrb[0].mxu0
  %2458 = vdwg.mxu0
  %v2459 = vadd.f32 %v2329, %v2412
  %v2460 = vadd.f32 %v2331, %v2414
  %v2461 = vadd.f32 %v2370, %v2453
  %v2462 = vadd.f32 %v2372, %v2455
  %v2463 = vxor.u32 %v2459, 2147483648
  %v2464 = vxor.u32 %v2460, 2147483648
  %v2465 = vxor.u32 %v2461, 2147483648
  %v2466 = vmul.f32 %v2463, 1.442695
  %v2467 = vpow.pop %v2466
  %v2468 = vmul.f32 %v2464, 1.442695
  %v2469 = vpow.pop %v2468
  %v2470 = vmul.f32 %v2465, 1.442695
  %v2471 = vpow.pop %v2470
  %v2472 = vadd.f32 %v2467, 1.0
  %v2473 = vadd.f32 %v2469, 1.0
  %v2474 = vadd.f32 %v2471, 1.0
  %v2475 = vrcp.pop %v2472
  %v2476 = vmul.f32 1.0, %v2475
  %v2477 = vrcp.pop %v2473
  %v2478 = vmul.f32 1.0, %v2477
  %v2479 = vrcp.pop %v2474
  %v2480 = vmul.f32 1.0, %v2479
  %v2481 = vtanh.pop %v2462
  %v2482 = vmul.f32 %v2478, %v2176
  %v2483 = vmul.f32 %v2476, %v2481
  %v2484 = vadd.f32 %v2482, %v2483
  %v2485 = vtanh.pop %v2484
  %v2486 = vmul.f32 %v2480, %v2485
  %v2487 = vld [vmem:[#allocation2 + $0xa0] sm:$0xff]
  %v2488 = vld [vmem:[#allocation2 + $0xa8] sm:$0xff]
  %v2489 = vld [vmem:[#allocation2 + $0xb0] sm:$0xff]
  %v2490 = vld [vmem:[#allocation2 + $0xb8] sm:$0xff]
  %2491 = vmatprep.subr.bf16.mxu0 %v1004
  %2492 = vmatpush1.bf16.msra.mxu0 %v1003
  %2493 = vmatprep.subr.bf16.mxu0 %v1008
  %2494 = vmatpush1.bf16.msra.mxu0 %v1007
  %2495 = vmatprep.subr.bf16.mxu0 %v1012
  %2496 = vmatpush1.bf16.msra.mxu0 %v1011
  %2497 = vmatprep.subr.bf16.mxu0 %v1016
  %2498 = vmatpush1.bf16.msra.mxu0 %v1015
  %2499 = vmatprep.subr.bf16.mxu0 %v1020
  %2500 = vmatpush1.bf16.msra.mxu0 %v1019
  %2501 = vmatprep.subr.bf16.mxu0 %v1024
  %2502 = vmatpush1.bf16.msra.mxu0 %v1023
  %2503 = vmatprep.subr.bf16.mxu0 %v1028
  %2504 = vmatpush1.bf16.msra.mxu0 %v1027
  %2505 = vmatprep.subr.bf16.mxu0 %v1032
  %2506 = vmatpush1.bf16.msra.mxu0 %v1031
  %2507 = vmatprep.subr.bf16.mxu0 0
  %2508 = vmatpush1.bf16.msra.mxu0 0
  %2509 = vmatprep.subr.bf16.mxu0 0
  %2510 = vmatpush1.bf16.msra.mxu0 0
  %2511 = vmatprep.subr.bf16.mxu0 0
  %2512 = vmatpush1.bf16.msra.mxu0 0
  %2513 = vmatprep.subr.bf16.mxu0 0
  %2514 = vmatpush1.bf16.msra.mxu0 0
  %2515 = vmatprep.subr.bf16.mxu0 0
  %2516 = vmatpush1.bf16.msra.mxu0 0
  %2517 = vmatprep.subr.bf16.mxu0 0
  %2518 = vmatpush1.bf16.msra.mxu0 0
  %2519 = vmatprep.subr.bf16.mxu0 0
  %2520 = vmatpush1.bf16.msra.mxu0 0
  %2521 = vmatprep.subr.bf16.mxu0 0
  %2522 = vmatpush1.bf16.msra.mxu0 0
  %2523 = vmatprep.mubr.bf16.mxu0 0
  %2524 = vmatmul.mubr.bf16.gmra.mrb[0].mxu0 %v2293
  %v2525 = vpop.f32.mrb[0].mxu0
  %v2526 = vadd.f32 0.0, %v2525
  %v2527 = vpop.f32.mrb[0].mxu0
  %v2528 = vadd.f32 0.0, %v2527
  %v2529 = vpop.f32.mrb[0].mxu0
  %v2530 = vpop.f32.mrb[0].mxu0
  %2531 = vdwg.mxu0
  %2532 = vmatprep.subr.bf16.mxu0 %v1006
  %2533 = vmatpush1.bf16.msra.mxu0 %v1005
  %2534 = vmatprep.subr.bf16.mxu0 %v1010
  %2535 = vmatpush1.bf16.msra.mxu0 %v1009
  %2536 = vmatprep.subr.bf16.mxu0 %v1014
  %2537 = vmatpush1.bf16.msra.mxu0 %v1013
  %2538 = vmatprep.subr.bf16.mxu0 %v1018
  %2539 = vmatpush1.bf16.msra.mxu0 %v1017
  %2540 = vmatprep.subr.bf16.mxu0 %v1022
  %2541 = vmatpush1.bf16.msra.mxu0 %v1021
  %2542 = vmatprep.subr.bf16.mxu0 %v1026
  %2543 = vmatpush1.bf16.msra.mxu0 %v1025
  %2544 = vmatprep.subr.bf16.mxu0 %v1030
  %2545 = vmatpush1.bf16.msra.mxu0 %v1029
  %2546 = vmatprep.subr.bf16.mxu0 %v1034
  %2547 = vmatpush1.bf16.msra.mxu0 %v1033
  %2548 = vmatprep.subr.bf16.mxu0 0
  %2549 = vmatpush1.bf16.msra.mxu0 0
  %2550 = vmatprep.subr.bf16.mxu0 0
  %2551 = vmatpush1.bf16.msra.mxu0 0
  %2552 = vmatprep.subr.bf16.mxu0 0
  %2553 = vmatpush1.bf16.msra.mxu0 0
  %2554 = vmatprep.subr.bf16.mxu0 0
  %2555 = vmatpush1.bf16.msra.mxu0 0
  %2556 = vmatprep.subr.bf16.mxu0 0
  %2557 = vmatpush1.bf16.msra.mxu0 0
  %2558 = vmatprep.subr.bf16.mxu0 0
  %2559 = vmatpush1.bf16.msra.mxu0 0
  %2560 = vmatprep.subr.bf16.mxu0 0
  %2561 = vmatpush1.bf16.msra.mxu0 0
  %2562 = vmatprep.subr.bf16.mxu0 0
  %2563 = vmatpush1.bf16.msra.mxu0 0
  %2564 = vmatprep.mubr.bf16.mxu0 0
  %2565 = vmatmul.mubr.bf16.gmra.mrb[0].mxu0 %v2293
  %v2566 = vpop.f32.mrb[0].mxu0
  %v2567 = vadd.f32 0.0, %v2566
  %v2568 = vpop.f32.mrb[0].mxu0
  %v2569 = vadd.f32 0.0, %v2568
  %v2570 = vpop.f32.mrb[0].mxu0
  %v2571 = vpop.f32.mrb[0].mxu0
  %2572 = vdwg.mxu0
  %v2573 = vadd.f32 %v2487, %v2526
  %v2574 = vadd.f32 %v2488, %v2528
  %v2575 = vadd.f32 %v2489, %v2567
  %v2576 = vadd.f32 %v2490, %v2569
  %v2577 = vxor.u32 %v2573, 2147483648
  %v2578 = vxor.u32 %v2574, 2147483648
  %v2579 = vxor.u32 %v2575, 2147483648
  %v2580 = vmul.f32 %v2577, 1.442695
  %v2581 = vpow.pop %v2580
  %v2582 = vmul.f32 %v2578, 1.442695
  %v2583 = vpow.pop %v2582
  %v2584 = vmul.f32 %v2579, 1.442695
  %v2585 = vpow.pop %v2584
  %v2586 = vadd.f32 %v2581, 1.0
  %v2587 = vadd.f32 %v2583, 1.0
  %v2588 = vadd.f32 %v2585, 1.0
  %v2589 = vrcp.pop %v2586
  %v2590 = vmul.f32 1.0, %v2589
  %v2591 = vrcp.pop %v2587
  %v2592 = vmul.f32 1.0, %v2591
  %v2593 = vrcp.pop %v2588
  %v2594 = vmul.f32 1.0, %v2593
  %v2595 = vtanh.pop %v2576
  %v2596 = vmul.f32 %v2592, %v2290
  %v2597 = vmul.f32 %v2590, %v2595
  %v2598 = vadd.f32 %v2596, %v2597
  %v2599 = vtanh.pop %v2598
  %v2600 = vmul.f32 %v2594, %v2599
  %v2601 = vpack.c.bf16 %v2600, %v2600
  %2602 = vmatprep.subr.bf16.mxu0 %v702
  %2603 = vmatpush1.bf16.msra.mxu0 %v701
  %2604 = vmatprep.subr.bf16.mxu0 %v706
  %2605 = vmatpush1.bf16.msra.mxu0 %v705
  %2606 = vmatprep.subr.bf16.mxu0 %v710
  %2607 = vmatpush1.bf16.msra.mxu0 %v709
  %2608 = vmatprep.subr.bf16.mxu0 %v714
  %2609 = vmatpush1.bf16.msra.mxu0 %v713
  %2610 = vmatprep.subr.bf16.mxu0 %v718
  %2611 = vmatpush1.bf16.msra.mxu0 %v717
  %2612 = vmatprep.subr.bf16.mxu0 %v722
  %2613 = vmatpush1.bf16.msra.mxu0 %v721
  %2614 = vmatprep.subr.bf16.mxu0 %v726
  %2615 = vmatpush1.bf16.msra.mxu0 %v725
  %2616 = vmatprep.subr.bf16.mxu0 %v730
  %2617 = vmatpush1.bf16.msra.mxu0 %v729
  %2618 = vmatprep.subr.bf16.mxu0 0
  %2619 = vmatpush1.bf16.msra.mxu0 0
  %2620 = vmatprep.subr.bf16.mxu0 0
  %2621 = vmatpush1.bf16.msra.mxu0 0
  %2622 = vmatprep.subr.bf16.mxu0 0
  %2623 = vmatpush1.bf16.msra.mxu0 0
  %2624 = vmatprep.subr.bf16.mxu0 0
  %2625 = vmatpush1.bf16.msra.mxu0 0
  %2626 = vmatprep.subr.bf16.mxu0 0
  %2627 = vmatpush1.bf16.msra.mxu0 0
  %2628 = vmatprep.subr.bf16.mxu0 0
  %2629 = vmatpush1.bf16.msra.mxu0 0
  %2630 = vmatprep.subr.bf16.mxu0 0
  %2631 = vmatpush1.bf16.msra.mxu0 0
  %2632 = vmatprep.subr.bf16.mxu0 0
  %2633 = vmatpush1.bf16.msra.mxu0 0
  %2634 = vmatprep.mubr.bf16.mxu0 0
  %2635 = vmatmul.mubr.bf16.gmra.mrb[0].mxu0 %v2601
  %v2636 = vpop.f32.mrb[0].mxu0
  %v2637 = vadd.f32 %v527, %v2636
  %v2638 = vpop.f32.mrb[0].mxu0
  %v2639 = vadd.f32 %v531, %v2638
  %v2640 = vpop.f32.mrb[0].mxu0
  %v2641 = vpop.f32.mrb[0].mxu0
  %2642 = vdwg.mxu0
  %2643 = vmatprep.subr.bf16.mxu0 %v704
  %2644 = vmatpush1.bf16.msra.mxu0 %v703
  %2645 = vmatprep.subr.bf16.mxu0 %v708
  %2646 = vmatpush1.bf16.msra.mxu0 %v707
  %2647 = vmatprep.subr.bf16.mxu0 %v712
  %2648 = vmatpush1.bf16.msra.mxu0 %v711
  %2649 = vmatprep.subr.bf16.mxu0 %v716
  %2650 = vmatpush1.bf16.msra.mxu0 %v715
  %2651 = vmatprep.subr.bf16.mxu0 %v720
  %2652 = vmatpush1.bf16.msra.mxu0 %v719
  %2653 = vmatprep.subr.bf16.mxu0 %v724
  %2654 = vmatpush1.bf16.msra.mxu0 %v723
  %2655 = vmatprep.subr.bf16.mxu0 %v728
  %2656 = vmatpush1.bf16.msra.mxu0 %v727
  %2657 = vmatprep.subr.bf16.mxu0 %v732
  %2658 = vmatpush1.bf16.msra.mxu0 %v731
  %2659 = vmatprep.subr.bf16.mxu0 0
  %2660 = vmatpush1.bf16.msra.mxu0 0
  %2661 = vmatprep.subr.bf16.mxu0 0
  %2662 = vmatpush1.bf16.msra.mxu0 0
  %2663 = vmatprep.subr.bf16.mxu0 0
  %2664 = vmatpush1.bf16.msra.mxu0 0
  %2665 = vmatprep.subr.bf16.mxu0 0
  %2666 = vmatpush1.bf16.msra.mxu0 0
  %2667 = vmatprep.subr.bf16.mxu0 0
  %2668 = vmatpush1.bf16.msra.mxu0 0
  %2669 = vmatprep.subr.bf16.mxu0 0
  %2670 = vmatpush1.bf16.msra.mxu0 0
  %2671 = vmatprep.subr.bf16.mxu0 0
  %2672 = vmatpush1.bf16.msra.mxu0 0
  %2673 = vmatprep.subr.bf16.mxu0 0
  %2674 = vmatpush1.bf16.msra.mxu0 0
  %2675 = vmatprep.mubr.bf16.mxu0 0
  %2676 = vmatmul.mubr.bf16.gmra.mrb[0].mxu0 %v2601
  %v2677 = vpop.f32.mrb[0].mxu0
  %v2678 = vadd.f32 %v535, %v2677
  %v2679 = vpop.f32.mrb[0].mxu0
  %v2680 = vadd.f32 %v539, %v2679
  %v2681 = vpop.f32.mrb[0].mxu0
  %v2682 = vpop.f32.mrb[0].mxu0
  %2683 = vdwg.mxu0
  %v2684 = vpack.c.bf16 %v2486, %v2486
  %2685 = vmatprep.subr.bf16.mxu0 %v1390
  %2686 = vmatpush1.bf16.msra.mxu0 %v1389
  %2687 = vmatprep.subr.bf16.mxu0 %v1394
  %2688 = vmatpush1.bf16.msra.mxu0 %v1393
  %2689 = vmatprep.subr.bf16.mxu0 %v1398
  %2690 = vmatpush1.bf16.msra.mxu0 %v1397
  %2691 = vmatprep.subr.bf16.mxu0 %v1402
  %2692 = vmatpush1.bf16.msra.mxu0 %v1401
  %2693 = vmatprep.subr.bf16.mxu0 %v1406
  %2694 = vmatpush1.bf16.msra.mxu0 %v1405
  %2695 = vmatprep.subr.bf16.mxu0 %v1410
  %2696 = vmatpush1.bf16.msra.mxu0 %v1409
  %2697 = vmatprep.subr.bf16.mxu0 %v1414
  %2698 = vmatpush1.bf16.msra.mxu0 %v1413
  %2699 = vmatprep.subr.bf16.mxu0 %v1418
  %2700 = vmatpush1.bf16.msra.mxu0 %v1417
  %2701 = vmatprep.subr.bf16.mxu0 0
  %2702 = vmatpush1.bf16.msra.mxu0 0
  %2703 = vmatprep.subr.bf16.mxu0 0
  %2704 = vmatpush1.bf16.msra.mxu0 0
  %2705 = vmatprep.subr.bf16.mxu0 0
  %2706 = vmatpush1.bf16.msra.mxu0 0
  %2707 = vmatprep.subr.bf16.mxu0 0
  %2708 = vmatpush1.bf16.msra.mxu0 0
  %2709 = vmatprep.subr.bf16.mxu0 0
  %2710 = vmatpush1.bf16.msra.mxu0 0
  %2711 = vmatprep.subr.bf16.mxu0 0
  %2712 = vmatpush1.bf16.msra.mxu0 0
  %2713 = vmatprep.subr.bf16.mxu0 0
  %2714 = vmatpush1.bf16.msra.mxu0 0
  %2715 = vmatprep.subr.bf16.mxu0 0
  %2716 = vmatpush1.bf16.msra.mxu0 0
  %2717 = vmatprep.mubr.bf16.mxu0 0
  %2718 = vmatmul.mubr.bf16.gmra.mrb[0].mxu0 %v2684
  %v2719 = vpop.f32.mrb[0].mxu0
  %v2720 = vadd.f32 0.0, %v2719
  %v2721 = vpop.f32.mrb[0].mxu0
  %v2722 = vadd.f32 0.0, %v2721
  %v2723 = vpop.f32.mrb[0].mxu0
  %v2724 = vpop.f32.mrb[0].mxu0
  %2725 = vdwg.mxu0
  %2726 = vmatprep.subr.bf16.mxu0 %v1392
  %2727 = vmatpush1.bf16.msra.mxu0 %v1391
  %2728 = vmatprep.subr.bf16.mxu0 %v1396
  %2729 = vmatpush1.bf16.msra.mxu0 %v1395
  %2730 = vmatprep.subr.bf16.mxu0 %v1400
  %2731 = vmatpush1.bf16.msra.mxu0 %v1399
  %2732 = vmatprep.subr.bf16.mxu0 %v1404
  %2733 = vmatpush1.bf16.msra.mxu0 %v1403
  %2734 = vmatprep.subr.bf16.mxu0 %v1408
  %2735 = vmatpush1.bf16.msra.mxu0 %v1407
  %2736 = vmatprep.subr.bf16.mxu0 %v1412
  %2737 = vmatpush1.bf16.msra.mxu0 %v1411
  %2738 = vmatprep.subr.bf16.mxu0 %v1416
  %2739 = vmatpush1.bf16.msra.mxu0 %v1415
  %2740 = vmatprep.subr.bf16.mxu0 %v1420
  %2741 = vmatpush1.bf16.msra.mxu0 %v1419
  %2742 = vmatprep.subr.bf16.mxu0 0
  %2743 = vmatpush1.bf16.msra.mxu0 0
  %2744 = vmatprep.subr.bf16.mxu0 0
  %2745 = vmatpush1.bf16.msra.mxu0 0
  %2746 = vmatprep.subr.bf16.mxu0 0
  %2747 = vmatpush1.bf16.msra.mxu0 0
  %2748 = vmatprep.subr.bf16.mxu0 0
  %2749 = vmatpush1.bf16.msra.mxu0 0
  %2750 = vmatprep.subr.bf16.mxu0 0
  %2751 = vmatpush1.bf16.msra.mxu0 0
  %2752 = vmatprep.subr.bf16.mxu0 0
  %2753 = vmatpush1.bf16.msra.mxu0 0
  %2754 = vmatprep.subr.bf16.mxu0 0
  %2755 = vmatpush1.bf16.msra.mxu0 0
  %2756 = vmatprep.subr.bf16.mxu0 0
  %2757 = vmatpush1.bf16.msra.mxu0 0
  %2758 = vmatprep.mubr.bf16.mxu0 0
  %2759 = vmatmul.mubr.bf16.gmra.mrb[0].mxu0 %v2684
  %v2760 = vpop.f32.mrb[0].mxu0
  %v2761 = vadd.f32 0.0, %v2760
  %v2762 = vpop.f32.mrb[0].mxu0
  %v2763 = vadd.f32 0.0, %v2762
  %v2764 = vpop.f32.mrb[0].mxu0
  %v2765 = vpop.f32.mrb[0].mxu0
  %2766 = vdwg.mxu0
  %v2767 = vadd.f32 %v2637, %v2720
  %v2768 = vadd.f32 %v2639, %v2722
  %v2769 = vadd.f32 %v2678, %v2761
  %v2770 = vadd.f32 %v2680, %v2763
  %v2771 = vxor.u32 %v2767, 2147483648
  %v2772 = vxor.u32 %v2768, 2147483648
  %v2773 = vxor.u32 %v2769, 2147483648
  %v2774 = vmul.f32 %v2771, 1.442695
  %v2775 = vpow.pop %v2774
  %v2776 = vmul.f32 %v2772, 1.442695
  %v2777 = vpow.pop %v2776
  %v2778 = vmul.f32 %v2773, 1.442695
  %v2779 = vpow.pop %v2778
  %v2780 = vadd.f32 %v2775, 1.0
  %v2781 = vadd.f32 %v2777, 1.0
  %v2782 = vadd.f32 %v2779, 1.0
  %v2783 = vrcp.pop %v2780
  %v2784 = vmul.f32 1.0, %v2783
  %v2785 = vrcp.pop %v2781
  %v2786 = vmul.f32 1.0, %v2785
  %v2787 = vrcp.pop %v2782
  %v2788 = vmul.f32 1.0, %v2787
  %v2789 = vtanh.pop %v2770
  %v2790 = vmul.f32 %v2786, %v2484
  %v2791 = vmul.f32 %v2784, %v2789
  %v2792 = vadd.f32 %v2790, %v2791
  %v2793 = vtanh.pop %v2792
  %v2794 = vmul.f32 %v2788, %v2793
  %v2795 = vld [vmem:[#allocation2 + $0xc0] sm:$0xff]
  %v2796 = vld [vmem:[#allocation2 + $0xc8] sm:$0xff]
  %v2797 = vld [vmem:[#allocation2 + $0xd0] sm:$0xff]
  %v2798 = vld [vmem:[#allocation2 + $0xd8] sm:$0xff]
  %2799 = vmatprep.subr.bf16.mxu0 %v1004
  %2800 = vmatpush1.bf16.msra.mxu0 %v1003
  %2801 = vmatprep.subr.bf16.mxu0 %v1008
  %2802 = vmatpush1.bf16.msra.mxu0 %v1007
  %2803 = vmatprep.subr.bf16.mxu0 %v1012
  %2804 = vmatpush1.bf16.msra.mxu0 %v1011
  %2805 = vmatprep.subr.bf16.mxu0 %v1016
  %2806 = vmatpush1.bf16.msra.mxu0 %v1015
  %2807 = vmatprep.subr.bf16.mxu0 %v1020
  %2808 = vmatpush1.bf16.msra.mxu0 %v1019
  %2809 = vmatprep.subr.bf16.mxu0 %v1024
  %2810 = vmatpush1.bf16.msra.mxu0 %v1023
  %2811 = vmatprep.subr.bf16.mxu0 %v1028
  %2812 = vmatpush1.bf16.msra.mxu0 %v1027
  %2813 = vmatprep.subr.bf16.mxu0 %v1032
  %2814 = vmatpush1.bf16.msra.mxu0 %v1031
  %2815 = vmatprep.subr.bf16.mxu0 0
  %2816 = vmatpush1.bf16.msra.mxu0 0
  %2817 = vmatprep.subr.bf16.mxu0 0
  %2818 = vmatpush1.bf16.msra.mxu0 0
  %2819 = vmatprep.subr.bf16.mxu0 0
  %2820 = vmatpush1.bf16.msra.mxu0 0
  %2821 = vmatprep.subr.bf16.mxu0 0
  %2822 = vmatpush1.bf16.msra.mxu0 0
  %2823 = vmatprep.subr.bf16.mxu0 0
  %2824 = vmatpush1.bf16.msra.mxu0 0
  %2825 = vmatprep.subr.bf16.mxu0 0
  %2826 = vmatpush1.bf16.msra.mxu0 0
  %2827 = vmatprep.subr.bf16.mxu0 0
  %2828 = vmatpush1.bf16.msra.mxu0 0
  %2829 = vmatprep.subr.bf16.mxu0 0
  %2830 = vmatpush1.bf16.msra.mxu0 0
  %2831 = vmatprep.mubr.bf16.mxu0 0
  %2832 = vmatmul.mubr.bf16.gmra.mrb[0].mxu0 %v2601
  %v2833 = vpop.f32.mrb[0].mxu0
  %v2834 = vadd.f32 0.0, %v2833
  %v2835 = vpop.f32.mrb[0].mxu0
  %v2836 = vadd.f32 0.0, %v2835
  %v2837 = vpop.f32.mrb[0].mxu0
  %v2838 = vpop.f32.mrb[0].mxu0
  %2839 = vdwg.mxu0
  %2840 = vmatprep.subr.bf16.mxu0 %v1006
  %2841 = vmatpush1.bf16.msra.mxu0 %v1005
  %2842 = vmatprep.subr.bf16.mxu0 %v1010
  %2843 = vmatpush1.bf16.msra.mxu0 %v1009
  %2844 = vmatprep.subr.bf16.mxu0 %v1014
  %2845 = vmatpush1.bf16.msra.mxu0 %v1013
  %2846 = vmatprep.subr.bf16.mxu0 %v1018
  %2847 = vmatpush1.bf16.msra.mxu0 %v1017
  %2848 = vmatprep.subr.bf16.mxu0 %v1022
  %2849 = vmatpush1.bf16.msra.mxu0 %v1021
  %2850 = vmatprep.subr.bf16.mxu0 %v1026
  %2851 = vmatpush1.bf16.msra.mxu0 %v1025
  %2852 = vmatprep.subr.bf16.mxu0 %v1030
  %2853 = vmatpush1.bf16.msra.mxu0 %v1029
  %2854 = vmatprep.subr.bf16.mxu0 %v1034
  %2855 = vmatpush1.bf16.msra.mxu0 %v1033
  %2856 = vmatprep.subr.bf16.mxu0 0
  %2857 = vmatpush1.bf16.msra.mxu0 0
  %2858 = vmatprep.subr.bf16.mxu0 0
  %2859 = vmatpush1.bf16.msra.mxu0 0
  %2860 = vmatprep.subr.bf16.mxu0 0
  %2861 = vmatpush1.bf16.msra.mxu0 0
  %2862 = vmatprep.subr.bf16.mxu0 0
  %2863 = vmatpush1.bf16.msra.mxu0 0
  %2864 = vmatprep.subr.bf16.mxu0 0
  %2865 = vmatpush1.bf16.msra.mxu0 0
  %2866 = vmatprep.subr.bf16.mxu0 0
  %2867 = vmatpush1.bf16.msra.mxu0 0
  %2868 = vmatprep.subr.bf16.mxu0 0
  %2869 = vmatpush1.bf16.msra.mxu0 0
  %2870 = vmatprep.subr.bf16.mxu0 0
  %2871 = vmatpush1.bf16.msra.mxu0 0
  %2872 = vmatprep.mubr.bf16.mxu0 0
  %2873 = vmatmul.mubr.bf16.gmra.mrb[0].mxu0 %v2601
  %v2874 = vpop.f32.mrb[0].mxu0
  %v2875 = vadd.f32 0.0, %v2874
  %v2876 = vpop.f32.mrb[0].mxu0
  %v2877 = vadd.f32 0.0, %v2876
  %v2878 = vpop.f32.mrb[0].mxu0
  %v2879 = vpop.f32.mrb[0].mxu0
  %2880 = vdwg.mxu0
  %v2881 = vadd.f32 %v2795, %v2834
  %v2882 = vadd.f32 %v2796, %v2836
  %v2883 = vadd.f32 %v2797, %v2875
  %v2884 = vadd.f32 %v2798, %v2877
  %v2885 = vxor.u32 %v2881, 2147483648
  %v2886 = vxor.u32 %v2882, 2147483648
  %v2887 = vxor.u32 %v2883, 2147483648
  %v2888 = vmul.f32 %v2885, 1.442695
  %v2889 = vpow.pop %v2888
  %v2890 = vmul.f32 %v2886, 1.442695
  %v2891 = vpow.pop %v2890
  %v2892 = vmul.f32 %v2887, 1.442695
  %v2893 = vpow.pop %v2892
  %v2894 = vadd.f32 %v2889, 1.0
  %v2895 = vadd.f32 %v2891, 1.0
  %v2896 = vadd.f32 %v2893, 1.0
  %v2897 = vrcp.pop %v2894
  %v2898 = vmul.f32 1.0, %v2897
  %v2899 = vrcp.pop %v2895
  %v2900 = vmul.f32 1.0, %v2899
  %v2901 = vrcp.pop %v2896
  %v2902 = vmul.f32 1.0, %v2901
  %v2903 = vtanh.pop %v2884
  %v2904 = vmul.f32 %v2900, %v2598
  %v2905 = vmul.f32 %v2898, %v2903
  %v2906 = vadd.f32 %v2904, %v2905
  %v2907 = vtanh.pop %v2906
  %v2908 = vmul.f32 %v2902, %v2907
  %v2909 = vpack.c.bf16 %v2908, %v2908
  %2910 = vmatprep.subr.bf16.mxu0 %v702
  %2911 = vmatpush1.bf16.msra.mxu0 %v701
  %2912 = vmatprep.subr.bf16.mxu0 %v706
  %2913 = vmatpush1.bf16.msra.mxu0 %v705
  %2914 = vmatprep.subr.bf16.mxu0 %v710
  %2915 = vmatpush1.bf16.msra.mxu0 %v709
  %2916 = vmatprep.subr.bf16.mxu0 %v714
  %2917 = vmatpush1.bf16.msra.mxu0 %v713
  %2918 = vmatprep.subr.bf16.mxu0 %v718
  %2919 = vmatpush1.bf16.msra.mxu0 %v717
  %2920 = vmatprep.subr.bf16.mxu0 %v722
  %2921 = vmatpush1.bf16.msra.mxu0 %v721
  %2922 = vmatprep.subr.bf16.mxu0 %v726
  %2923 = vmatpush1.bf16.msra.mxu0 %v725
  %2924 = vmatprep.subr.bf16.mxu0 %v730
  %2925 = vmatpush1.bf16.msra.mxu0 %v729
  %2926 = vmatprep.subr.bf16.mxu0 0
  %2927 = vmatpush1.bf16.msra.mxu0 0
  %2928 = vmatprep.subr.bf16.mxu0 0
  %2929 = vmatpush1.bf16.msra.mxu0 0
  %2930 = vmatprep.subr.bf16.mxu0 0
  %2931 = vmatpush1.bf16.msra.mxu0 0
  %2932 = vmatprep.subr.bf16.mxu0 0
  %2933 = vmatpush1.bf16.msra.mxu0 0
  %2934 = vmatprep.subr.bf16.mxu0 0
  %2935 = vmatpush1.bf16.msra.mxu0 0
  %2936 = vmatprep.subr.bf16.mxu0 0
  %2937 = vmatpush1.bf16.msra.mxu0 0
  %2938 = vmatprep.subr.bf16.mxu0 0
  %2939 = vmatpush1.bf16.msra.mxu0 0
  %2940 = vmatprep.subr.bf16.mxu0 0
  %2941 = vmatpush1.bf16.msra.mxu0 0
  %2942 = vmatprep.mubr.bf16.mxu0 0
  %2943 = vmatmul.mubr.bf16.gmra.mrb[0].mxu0 %v2909
  %v2944 = vpop.f32.mrb[0].mxu0
  %v2945 = vadd.f32 %v527, %v2944
  %v2946 = vpop.f32.mrb[0].mxu0
  %v2947 = vadd.f32 %v531, %v2946
  %v2948 = vpop.f32.mrb[0].mxu0
  %v2949 = vpop.f32.mrb[0].mxu0
  %2950 = vdwg.mxu0
  %2951 = vmatprep.subr.bf16.mxu0 %v704
  %2952 = vmatpush1.bf16.msra.mxu0 %v703
  %2953 = vmatprep.subr.bf16.mxu0 %v708
  %2954 = vmatpush1.bf16.msra.mxu0 %v707
  %2955 = vmatprep.subr.bf16.mxu0 %v712
  %2956 = vmatpush1.bf16.msra.mxu0 %v711
  %2957 = vmatprep.subr.bf16.mxu0 %v716
  %2958 = vmatpush1.bf16.msra.mxu0 %v715
  %2959 = vmatprep.subr.bf16.mxu0 %v720
  %2960 = vmatpush1.bf16.msra.mxu0 %v719
  %2961 = vmatprep.subr.bf16.mxu0 %v724
  %2962 = vmatpush1.bf16.msra.mxu0 %v723
  %2963 = vmatprep.subr.bf16.mxu0 %v728
  %2964 = vmatpush1.bf16.msra.mxu0 %v727
  %2965 = vmatprep.subr.bf16.mxu0 %v732
  %2966 = vmatpush1.bf16.msra.mxu0 %v731
  %2967 = vmatprep.subr.bf16.mxu0 0
  %2968 = vmatpush1.bf16.msra.mxu0 0
  %2969 = vmatprep.subr.bf16.mxu0 0
  %2970 = vmatpush1.bf16.msra.mxu0 0
  %2971 = vmatprep.subr.bf16.mxu0 0
  %2972 = vmatpush1.bf16.msra.mxu0 0
  %2973 = vmatprep.subr.bf16.mxu0 0
  %2974 = vmatpush1.bf16.msra.mxu0 0
  %2975 = vmatprep.subr.bf16.mxu0 0
  %2976 = vmatpush1.bf16.msra.mxu0 0
  %2977 = vmatprep.subr.bf16.mxu0 0
  %2978 = vmatpush1.bf16.msra.mxu0 0
  %2979 = vmatprep.subr.bf16.mxu0 0
  %2980 = vmatpush1.bf16.msra.mxu0 0
  %2981 = vmatprep.subr.bf16.mxu0 0
  %2982 = vmatpush1.bf16.msra.mxu0 0
  %2983 = vmatprep.mubr.bf16.mxu0 0
  %2984 = vmatmul.mubr.bf16.gmra.mrb[0].mxu0 %v2909
  %v2985 = vpop.f32.mrb[0].mxu0
  %v2986 = vadd.f32 %v535, %v2985
  %v2987 = vpop.f32.mrb[0].mxu0
  %v2988 = vadd.f32 %v539, %v2987
  %v2989 = vpop.f32.mrb[0].mxu0
  %v2990 = vpop.f32.mrb[0].mxu0
  %2991 = vdwg.mxu0
  %v2992 = vpack.c.bf16 %v2794, %v2794
  %2993 = vmatprep.subr.bf16.mxu0 %v1390
  %2994 = vmatpush1.bf16.msra.mxu0 %v1389
  %2995 = vmatprep.subr.bf16.mxu0 %v1394
  %2996 = vmatpush1.bf16.msra.mxu0 %v1393
  %2997 = vmatprep.subr.bf16.mxu0 %v1398
  %2998 = vmatpush1.bf16.msra.mxu0 %v1397
  %2999 = vmatprep.subr.bf16.mxu0 %v1402
  %3000 = vmatpush1.bf16.msra.mxu0 %v1401
  %3001 = vmatprep.subr.bf16.mxu0 %v1406
  %3002 = vmatpush1.bf16.msra.mxu0 %v1405
  %3003 = vmatprep.subr.bf16.mxu0 %v1410
  %3004 = vmatpush1.bf16.msra.mxu0 %v1409
  %3005 = vmatprep.subr.bf16.mxu0 %v1414
  %3006 = vmatpush1.bf16.msra.mxu0 %v1413
  %3007 = vmatprep.subr.bf16.mxu0 %v1418
  %3008 = vmatpush1.bf16.msra.mxu0 %v1417
  %3009 = vmatprep.subr.bf16.mxu0 0
  %3010 = vmatpush1.bf16.msra.mxu0 0
  %3011 = vmatprep.subr.bf16.mxu0 0
  %3012 = vmatpush1.bf16.msra.mxu0 0
  %3013 = vmatprep.subr.bf16.mxu0 0
  %3014 = vmatpush1.bf16.msra.mxu0 0
  %3015 = vmatprep.subr.bf16.mxu0 0
  %3016 = vmatpush1.bf16.msra.mxu0 0
  %3017 = vmatprep.subr.bf16.mxu0 0
  %3018 = vmatpush1.bf16.msra.mxu0 0
  %3019 = vmatprep.subr.bf16.mxu0 0
  %3020 = vmatpush1.bf16.msra.mxu0 0
  %3021 = vmatprep.subr.bf16.mxu0 0
  %3022 = vmatpush1.bf16.msra.mxu0 0
  %3023 = vmatprep.subr.bf16.mxu0 0
  %3024 = vmatpush1.bf16.msra.mxu0 0
  %3025 = vmatprep.mubr.bf16.mxu0 0
  %3026 = vmatmul.mubr.bf16.gmra.mrb[0].mxu0 %v2992
  %v3027 = vpop.f32.mrb[0].mxu0
  %v3028 = vadd.f32 0.0, %v3027
  %v3029 = vpop.f32.mrb[0].mxu0
  %v3030 = vadd.f32 0.0, %v3029
  %v3031 = vpop.f32.mrb[0].mxu0
  %v3032 = vpop.f32.mrb[0].mxu0
  %3033 = vdwg.mxu0
  %3034 = vmatprep.subr.bf16.mxu0 %v1392
  %3035 = vmatpush1.bf16.msra.mxu0 %v1391
  %3036 = vmatprep.subr.bf16.mxu0 %v1396
  %3037 = vmatpush1.bf16.msra.mxu0 %v1395
  %3038 = vmatprep.subr.bf16.mxu0 %v1400
  %3039 = vmatpush1.bf16.msra.mxu0 %v1399
  %3040 = vmatprep.subr.bf16.mxu0 %v1404
  %3041 = vmatpush1.bf16.msra.mxu0 %v1403
  %3042 = vmatprep.subr.bf16.mxu0 %v1408
  %3043 = vmatpush1.bf16.msra.mxu0 %v1407
  %3044 = vmatprep.subr.bf16.mxu0 %v1412
  %3045 = vmatpush1.bf16.msra.mxu0 %v1411
  %3046 = vmatprep.subr.bf16.mxu0 %v1416
  %3047 = vmatpush1.bf16.msra.mxu0 %v1415
  %3048 = vmatprep.subr.bf16.mxu0 %v1420
  %3049 = vmatpush1.bf16.msra.mxu0 %v1419
  %3050 = vmatprep.subr.bf16.mxu0 0
  %3051 = vmatpush1.bf16.msra.mxu0 0
  %3052 = vmatprep.subr.bf16.mxu0 0
  %3053 = vmatpush1.bf16.msra.mxu0 0
  %3054 = vmatprep.subr.bf16.mxu0 0
  %3055 = vmatpush1.bf16.msra.mxu0 0
  %3056 = vmatprep.subr.bf16.mxu0 0
  %3057 = vmatpush1.bf16.msra.mxu0 0
  %3058 = vmatprep.subr.bf16.mxu0 0
  %3059 = vmatpush1.bf16.msra.mxu0 0
  %3060 = vmatprep.subr.bf16.mxu0 0
  %3061 = vmatpush1.bf16.msra.mxu0 0
  %3062 = vmatprep.subr.bf16.mxu0 0
  %3063 = vmatpush1.bf16.msra.mxu0 0
  %3064 = vmatprep.subr.bf16.mxu0 0
  %3065 = vmatpush1.bf16.msra.mxu0 0
  %3066 = vmatprep.mubr.bf16.mxu0 0
  %3067 = vmatmul.mubr.bf16.gmra.mrb[0].mxu0 %v2992
  %v3068 = vpop.f32.mrb[0].mxu0
  %v3069 = vadd.f32 0.0, %v3068
  %v3070 = vpop.f32.mrb[0].mxu0
  %v3071 = vadd.f32 0.0, %v3070
  %v3072 = vpop.f32.mrb[0].mxu0
  %v3073 = vpop.f32.mrb[0].mxu0
  %3074 = vdwg.mxu0
  %v3075 = vadd.f32 %v2945, %v3028
  %v3076 = vadd.f32 %v2947, %v3030
  %v3077 = vadd.f32 %v2986, %v3069
  %v3078 = vadd.f32 %v2988, %v3071
  %v3079 = vxor.u32 %v3075, 2147483648
  %v3080 = vxor.u32 %v3076, 2147483648
  %v3081 = vxor.u32 %v3077, 2147483648
  %v3082 = vmul.f32 %v3079, 1.442695
  %v3083 = vpow.pop %v3082
  %v3084 = vmul.f32 %v3080, 1.442695
  %v3085 = vpow.pop %v3084
  %v3086 = vmul.f32 %v3081, 1.442695
  %v3087 = vpow.pop %v3086
  %v3088 = vadd.f32 %v3083, 1.0
  %v3089 = vadd.f32 %v3085, 1.0
  %v3090 = vadd.f32 %v3087, 1.0
  %v3091 = vrcp.pop %v3088
  %v3092 = vmul.f32 1.0, %v3091
  %v3093 = vrcp.pop %v3089
  %v3094 = vmul.f32 1.0, %v3093
  %v3095 = vrcp.pop %v3090
  %v3096 = vmul.f32 1.0, %v3095
  %v3097 = vtanh.pop %v3078
  %v3098 = vmul.f32 %v3094, %v2792
  %v3099 = vmul.f32 %v3092, %v3097
  %v3100 = vadd.f32 %v3098, %v3099
  %v3101 = vtanh.pop %v3100
  %v3102 = vmul.f32 %v3096, %v3101
  %v3103 = vld [vmem:[#allocation2 + $0xe0] sm:$0xff]
  %v3104 = vld [vmem:[#allocation2 + $0xe8] sm:$0xff]
  %v3105 = vld [vmem:[#allocation2 + $0xf0] sm:$0xff]
  %v3106 = vld [vmem:[#allocation2 + $0xf8] sm:$0xff]
  %3107 = vmatprep.subr.bf16.mxu0 %v1004
  %3108 = vmatpush1.bf16.msra.mxu0 %v1003
  %3109 = vmatprep.subr.bf16.mxu0 %v1008
  %3110 = vmatpush1.bf16.msra.mxu0 %v1007
  %3111 = vmatprep.subr.bf16.mxu0 %v1012
  %3112 = vmatpush1.bf16.msra.mxu0 %v1011
  %3113 = vmatprep.subr.bf16.mxu0 %v1016
  %3114 = vmatpush1.bf16.msra.mxu0 %v1015
  %3115 = vmatprep.subr.bf16.mxu0 %v1020
  %3116 = vmatpush1.bf16.msra.mxu0 %v1019
  %3117 = vmatprep.subr.bf16.mxu0 %v1024
  %3118 = vmatpush1.bf16.msra.mxu0 %v1023
  %3119 = vmatprep.subr.bf16.mxu0 %v1028
  %3120 = vmatpush1.bf16.msra.mxu0 %v1027
  %3121 = vmatprep.subr.bf16.mxu0 %v1032
  %3122 = vmatpush1.bf16.msra.mxu0 %v1031
  %3123 = vmatprep.subr.bf16.mxu0 0
  %3124 = vmatpush1.bf16.msra.mxu0 0
  %3125 = vmatprep.subr.bf16.mxu0 0
  %3126 = vmatpush1.bf16.msra.mxu0 0
  %3127 = vmatprep.subr.bf16.mxu0 0
  %3128 = vmatpush1.bf16.msra.mxu0 0
  %3129 = vmatprep.subr.bf16.mxu0 0
  %3130 = vmatpush1.bf16.msra.mxu0 0
  %3131 = vmatprep.subr.bf16.mxu0 0
  %3132 = vmatpush1.bf16.msra.mxu0 0
  %3133 = vmatprep.subr.bf16.mxu0 0
  %3134 = vmatpush1.bf16.msra.mxu0 0
  %3135 = vmatprep.subr.bf16.mxu0 0
  %3136 = vmatpush1.bf16.msra.mxu0 0
  %3137 = vmatprep.subr.bf16.mxu0 0
  %3138 = vmatpush1.bf16.msra.mxu0 0
  %3139 = vmatprep.mubr.bf16.mxu0 0
  %3140 = vmatmul.mubr.bf16.gmra.mrb[0].mxu0 %v2909
  %v3141 = vpop.f32.mrb[0].mxu0
  %v3142 = vadd.f32 0.0, %v3141
  %v3143 = vpop.f32.mrb[0].mxu0
  %v3144 = vadd.f32 0.0, %v3143
  %v3145 = vpop.f32.mrb[0].mxu0
  %v3146 = vpop.f32.mrb[0].mxu0
  %3147 = vdwg.mxu0
  %3148 = vmatprep.subr.bf16.mxu0 %v1006
  %3149 = vmatpush1.bf16.msra.mxu0 %v1005
  %3150 = vmatprep.subr.bf16.mxu0 %v1010
  %3151 = vmatpush1.bf16.msra.mxu0 %v1009
  %3152 = vmatprep.subr.bf16.mxu0 %v1014
  %3153 = vmatpush1.bf16.msra.mxu0 %v1013
  %3154 = vmatprep.subr.bf16.mxu0 %v1018
  %3155 = vmatpush1.bf16.msra.mxu0 %v1017
  %3156 = vmatprep.subr.bf16.mxu0 %v1022
  %3157 = vmatpush1.bf16.msra.mxu0 %v1021
  %3158 = vmatprep.subr.bf16.mxu0 %v1026
  %3159 = vmatpush1.bf16.msra.mxu0 %v1025
  %3160 = vmatprep.subr.bf16.mxu0 %v1030
  %3161 = vmatpush1.bf16.msra.mxu0 %v1029
  %3162 = vmatprep.subr.bf16.mxu0 %v1034
  %3163 = vmatpush1.bf16.msra.mxu0 %v1033
  %3164 = vmatprep.subr.bf16.mxu0 0
  %3165 = vmatpush1.bf16.msra.mxu0 0
  %3166 = vmatprep.subr.bf16.mxu0 0
  %3167 = vmatpush1.bf16.msra.mxu0 0
  %3168 = vmatprep.subr.bf16.mxu0 0
  %3169 = vmatpush1.bf16.msra.mxu0 0
  %3170 = vmatprep.subr.bf16.mxu0 0
  %3171 = vmatpush1.bf16.msra.mxu0 0
  %3172 = vmatprep.subr.bf16.mxu0 0
  %3173 = vmatpush1.bf16.msra.mxu0 0
  %3174 = vmatprep.subr.bf16.mxu0 0
  %3175 = vmatpush1.bf16.msra.mxu0 0
  %3176 = vmatprep.subr.bf16.mxu0 0
  %3177 = vmatpush1.bf16.msra.mxu0 0
  %3178 = vmatprep.subr.bf16.mxu0 0
  %3179 = vmatpush1.bf16.msra.mxu0 0
  %3180 = vmatprep.mubr.bf16.mxu0 0
  %3181 = vmatmul.mubr.bf16.gmra.mrb[0].mxu0 %v2909
  %v3182 = vpop.f32.mrb[0].mxu0
  %v3183 = vadd.f32 0.0, %v3182
  %v3184 = vpop.f32.mrb[0].mxu0
  %v3185 = vadd.f32 0.0, %v3184
  %v3186 = vpop.f32.mrb[0].mxu0
  %v3187 = vpop.f32.mrb[0].mxu0
  %3188 = vdwg.mxu0
  %v3189 = vadd.f32 %v3103, %v3142
  %v3190 = vadd.f32 %v3104, %v3144
  %v3191 = vadd.f32 %v3105, %v3183
  %v3192 = vadd.f32 %v3106, %v3185
  %v3193 = vxor.u32 %v3189, 2147483648
  %v3194 = vxor.u32 %v3190, 2147483648
  %v3195 = vxor.u32 %v3191, 2147483648
  %v3196 = vmul.f32 %v3193, 1.442695
  %v3197 = vpow.pop %v3196
  %v3198 = vmul.f32 %v3194, 1.442695
  %v3199 = vpow.pop %v3198
  %v3200 = vmul.f32 %v3195, 1.442695
  %v3201 = vpow.pop %v3200
  %v3202 = vadd.f32 %v3197, 1.0
  %v3203 = vadd.f32 %v3199, 1.0
  %v3204 = vadd.f32 %v3201, 1.0
  %v3205 = vrcp.pop %v3202
  %v3206 = vmul.f32 1.0, %v3205
  %v3207 = vrcp.pop %v3203
  %v3208 = vmul.f32 1.0, %v3207
  %v3209 = vrcp.pop %v3204
  %v3210 = vmul.f32 1.0, %v3209
  %v3211 = vtanh.pop %v3192
  %v3212 = vmul.f32 %v3208, %v2906
  %v3213 = vmul.f32 %v3206, %v3211
  %v3214 = vadd.f32 %v3212, %v3213
  %v3215 = vtanh.pop %v3214
  %v3216 = vmul.f32 %v3210, %v3215
  %v3217 = vpack.c.bf16 %v3216, %v3216
  %3218 = vmatprep.subr.bf16.mxu0 %v702
  %3219 = vmatpush1.bf16.msra.mxu0 %v701
  %3220 = vmatprep.subr.bf16.mxu0 %v706
  %3221 = vmatpush1.bf16.msra.mxu0 %v705
  %3222 = vmatprep.subr.bf16.mxu0 %v710
  %3223 = vmatpush1.bf16.msra.mxu0 %v709
  %3224 = vmatprep.subr.bf16.mxu0 %v714
  %3225 = vmatpush1.bf16.msra.mxu0 %v713
  %3226 = vmatprep.subr.bf16.mxu0 %v718
  %3227 = vmatpush1.bf16.msra.mxu0 %v717
  %3228 = vmatprep.subr.bf16.mxu0 %v722
  %3229 = vmatpush1.bf16.msra.mxu0 %v721
  %3230 = vmatprep.subr.bf16.mxu0 %v726
  %3231 = vmatpush1.bf16.msra.mxu0 %v725
  %3232 = vmatprep.subr.bf16.mxu0 %v730
  %3233 = vmatpush1.bf16.msra.mxu0 %v729
  %3234 = vmatprep.subr.bf16.mxu0 0
  %3235 = vmatpush1.bf16.msra.mxu0 0
  %3236 = vmatprep.subr.bf16.mxu0 0
  %3237 = vmatpush1.bf16.msra.mxu0 0
  %3238 = vmatprep.subr.bf16.mxu0 0
  %3239 = vmatpush1.bf16.msra.mxu0 0
  %3240 = vmatprep.subr.bf16.mxu0 0
  %3241 = vmatpush1.bf16.msra.mxu0 0
  %3242 = vmatprep.subr.bf16.mxu0 0
  %3243 = vmatpush1.bf16.msra.mxu0 0
  %3244 = vmatprep.subr.bf16.mxu0 0
  %3245 = vmatpush1.bf16.msra.mxu0 0
  %3246 = vmatprep.subr.bf16.mxu0 0
  %3247 = vmatpush1.bf16.msra.mxu0 0
  %3248 = vmatprep.subr.bf16.mxu0 0
  %3249 = vmatpush1.bf16.msra.mxu0 0
  %3250 = vmatprep.mubr.bf16.mxu0 0
  %3251 = vmatmul.mubr.bf16.gmra.mrb[0].mxu0 %v3217
  %v3252 = vpop.f32.mrb[0].mxu0
  %v3253 = vadd.f32 %v527, %v3252
  %v3254 = vpop.f32.mrb[0].mxu0
  %v3255 = vadd.f32 %v531, %v3254
  %v3256 = vpop.f32.mrb[0].mxu0
  %v3257 = vpop.f32.mrb[0].mxu0
  %3258 = vdwg.mxu0
  %3259 = vmatprep.subr.bf16.mxu0 %v704
  %3260 = vmatpush1.bf16.msra.mxu0 %v703
  %3261 = vmatprep.subr.bf16.mxu0 %v708
  %3262 = vmatpush1.bf16.msra.mxu0 %v707
  %3263 = vmatprep.subr.bf16.mxu0 %v712
  %3264 = vmatpush1.bf16.msra.mxu0 %v711
  %3265 = vmatprep.subr.bf16.mxu0 %v716
  %3266 = vmatpush1.bf16.msra.mxu0 %v715
  %3267 = vmatprep.subr.bf16.mxu0 %v720
  %3268 = vmatpush1.bf16.msra.mxu0 %v719
  %3269 = vmatprep.subr.bf16.mxu0 %v724
  %3270 = vmatpush1.bf16.msra.mxu0 %v723
  %3271 = vmatprep.subr.bf16.mxu0 %v728
  %3272 = vmatpush1.bf16.msra.mxu0 %v727
  %3273 = vmatprep.subr.bf16.mxu0 %v732
  %3274 = vmatpush1.bf16.msra.mxu0 %v731
  %3275 = vmatprep.subr.bf16.mxu0 0
  %3276 = vmatpush1.bf16.msra.mxu0 0
  %3277 = vmatprep.subr.bf16.mxu0 0
  %3278 = vmatpush1.bf16.msra.mxu0 0
  %3279 = vmatprep.subr.bf16.mxu0 0
  %3280 = vmatpush1.bf16.msra.mxu0 0
  %3281 = vmatprep.subr.bf16.mxu0 0
  %3282 = vmatpush1.bf16.msra.mxu0 0
  %3283 = vmatprep.subr.bf16.mxu0 0
  %3284 = vmatpush1.bf16.msra.mxu0 0
  %3285 = vmatprep.subr.bf16.mxu0 0
  %3286 = vmatpush1.bf16.msra.mxu0 0
  %3287 = vmatprep.subr.bf16.mxu0 0
  %3288 = vmatpush1.bf16.msra.mxu0 0
  %3289 = vmatprep.subr.bf16.mxu0 0
  %3290 = vmatpush1.bf16.msra.mxu0 0
  %3291 = vmatprep.mubr.bf16.mxu0 0
  %3292 = vmatmul.mubr.bf16.gmra.mrb[0].mxu0 %v3217
  %v3293 = vpop.f32.mrb[0].mxu0
  %v3294 = vadd.f32 %v535, %v3293
  %v3295 = vpop.f32.mrb[0].mxu0
  %v3296 = vadd.f32 %v539, %v3295
  %v3297 = vpop.f32.mrb[0].mxu0
  %v3298 = vpop.f32.mrb[0].mxu0
  %3299 = vdwg.mxu0
  %v3300 = vpack.c.bf16 %v3102, %v3102
  %3301 = vmatprep.subr.bf16.mxu0 %v1390
  %3302 = vmatpush1.bf16.msra.mxu0 %v1389
  %3303 = vmatprep.subr.bf16.mxu0 %v1394
  %3304 = vmatpush1.bf16.msra.mxu0 %v1393
  %3305 = vmatprep.subr.bf16.mxu0 %v1398
  %3306 = vmatpush1.bf16.msra.mxu0 %v1397
  %3307 = vmatprep.subr.bf16.mxu0 %v1402
  %3308 = vmatpush1.bf16.msra.mxu0 %v1401
  %3309 = vmatprep.subr.bf16.mxu0 %v1406
  %3310 = vmatpush1.bf16.msra.mxu0 %v1405
  %3311 = vmatprep.subr.bf16.mxu0 %v1410
  %3312 = vmatpush1.bf16.msra.mxu0 %v1409
  %3313 = vmatprep.subr.bf16.mxu0 %v1414
  %3314 = vmatpush1.bf16.msra.mxu0 %v1413
  %3315 = vmatprep.subr.bf16.mxu0 %v1418
  %3316 = vmatpush1.bf16.msra.mxu0 %v1417
  %3317 = vmatprep.subr.bf16.mxu0 0
  %3318 = vmatpush1.bf16.msra.mxu0 0
  %3319 = vmatprep.subr.bf16.mxu0 0
  %3320 = vmatpush1.bf16.msra.mxu0 0
  %3321 = vmatprep.subr.bf16.mxu0 0
  %3322 = vmatpush1.bf16.msra.mxu0 0
  %3323 = vmatprep.subr.bf16.mxu0 0
  %3324 = vmatpush1.bf16.msra.mxu0 0
  %3325 = vmatprep.subr.bf16.mxu0 0
  %3326 = vmatpush1.bf16.msra.mxu0 0
  %3327 = vmatprep.subr.bf16.mxu0 0
  %3328 = vmatpush1.bf16.msra.mxu0 0
  %3329 = vmatprep.subr.bf16.mxu0 0
  %3330 = vmatpush1.bf16.msra.mxu0 0
  %3331 = vmatprep.subr.bf16.mxu0 0
  %3332 = vmatpush1.bf16.msra.mxu0 0
  %3333 = vmatprep.mubr.bf16.mxu0 0
  %3334 = vmatmul.mubr.bf16.gmra.mrb[0].mxu0 %v3300
  %v3335 = vpop.f32.mrb[0].mxu0
  %v3336 = vadd.f32 0.0, %v3335
  %v3337 = vpop.f32.mrb[0].mxu0
  %v3338 = vadd.f32 0.0, %v3337
  %v3339 = vpop.f32.mrb[0].mxu0
  %v3340 = vpop.f32.mrb[0].mxu0
  %3341 = vdwg.mxu0
  %3342 = vmatprep.subr.bf16.mxu0 %v1392
  %3343 = vmatpush1.bf16.msra.mxu0 %v1391
  %3344 = vmatprep.subr.bf16.mxu0 %v1396
  %3345 = vmatpush1.bf16.msra.mxu0 %v1395
  %3346 = vmatprep.subr.bf16.mxu0 %v1400
  %3347 = vmatpush1.bf16.msra.mxu0 %v1399
  %3348 = vmatprep.subr.bf16.mxu0 %v1404
  %3349 = vmatpush1.bf16.msra.mxu0 %v1403
  %3350 = vmatprep.subr.bf16.mxu0 %v1408
  %3351 = vmatpush1.bf16.msra.mxu0 %v1407
  %3352 = vmatprep.subr.bf16.mxu0 %v1412
  %3353 = vmatpush1.bf16.msra.mxu0 %v1411
  %3354 = vmatprep.subr.bf16.mxu0 %v1416
  %3355 = vmatpush1.bf16.msra.mxu0 %v1415
  %3356 = vmatprep.subr.bf16.mxu0 %v1420
  %3357 = vmatpush1.bf16.msra.mxu0 %v1419
  %3358 = vmatprep.subr.bf16.mxu0 0
  %3359 = vmatpush1.bf16.msra.mxu0 0
  %3360 = vmatprep.subr.bf16.mxu0 0
  %3361 = vmatpush1.bf16.msra.mxu0 0
  %3362 = vmatprep.subr.bf16.mxu0 0
  %3363 = vmatpush1.bf16.msra.mxu0 0
  %3364 = vmatprep.subr.bf16.mxu0 0
  %3365 = vmatpush1.bf16.msra.mxu0 0
  %3366 = vmatprep.subr.bf16.mxu0 0
  %3367 = vmatpush1.bf16.msra.mxu0 0
  %3368 = vmatprep.subr.bf16.mxu0 0
  %3369 = vmatpush1.bf16.msra.mxu0 0
  %3370 = vmatprep.subr.bf16.mxu0 0
  %3371 = vmatpush1.bf16.msra.mxu0 0
  %3372 = vmatprep.subr.bf16.mxu0 0
  %3373 = vmatpush1.bf16.msra.mxu0 0
  %3374 = vmatprep.mubr.bf16.mxu0 0
  %3375 = vmatmul.mubr.bf16.gmra.mrb[0].mxu0 %v3300
  %v3376 = vpop.f32.mrb[0].mxu0
  %v3377 = vadd.f32 0.0, %v3376
  %v3378 = vpop.f32.mrb[0].mxu0
  %v3379 = vadd.f32 0.0, %v3378
  %v3380 = vpop.f32.mrb[0].mxu0
  %v3381 = vpop.f32.mrb[0].mxu0
  %3382 = vdwg.mxu0
  %v3383 = vadd.f32 %v3253, %v3336
  %v3384 = vadd.f32 %v3255, %v3338
  %v3385 = vadd.f32 %v3294, %v3377
  %v3386 = vadd.f32 %v3296, %v3379
  %v3387 = vxor.u32 %v3383, 2147483648
  %v3388 = vxor.u32 %v3384, 2147483648
  %v3389 = vxor.u32 %v3385, 2147483648
  %v3390 = vmul.f32 %v3387, 1.442695
  %v3391 = vpow.pop %v3390
  %v3392 = vmul.f32 %v3388, 1.442695
  %v3393 = vpow.pop %v3392
  %v3394 = vmul.f32 %v3389, 1.442695
  %v3395 = vpow.pop %v3394
  %v3396 = vadd.f32 %v3391, 1.0
  %v3397 = vadd.f32 %v3393, 1.0
  %v3398 = vadd.f32 %v3395, 1.0
  %v3399 = vrcp.pop %v3396
  %v3400 = vmul.f32 1.0, %v3399
  %v3401 = vrcp.pop %v3397
  %v3402 = vmul.f32 1.0, %v3401
  %v3403 = vrcp.pop %v3398
  %v3404 = vmul.f32 1.0, %v3403
  %v3405 = vtanh.pop %v3386
  %v3406 = vmul.f32 %v3402, %v3100
  %v3407 = vmul.f32 %v3400, %v3405
  %v3408 = vadd.f32 %v3406, %v3407
  %v3409 = vtanh.pop %v3408
  %v3410 = vmul.f32 %v3404, %v3409
  %v3411 = vld [vmem:[#allocation2 + $0x100] sm:$0xff]
  %v3412 = vld [vmem:[#allocation2 + $0x108] sm:$0xff]
  %v3413 = vld [vmem:[#allocation2 + $0x110] sm:$0xff]
  %v3414 = vld [vmem:[#allocation2 + $0x118] sm:$0xff]
  %3415 = vmatprep.subr.bf16.mxu0 %v1004
  %3416 = vmatpush1.bf16.msra.mxu0 %v1003
  %3417 = vmatprep.subr.bf16.mxu0 %v1008
  %3418 = vmatpush1.bf16.msra.mxu0 %v1007
  %3419 = vmatprep.subr.bf16.mxu0 %v1012
  %3420 = vmatpush1.bf16.msra.mxu0 %v1011
  %3421 = vmatprep.subr.bf16.mxu0 %v1016
  %3422 = vmatpush1.bf16.msra.mxu0 %v1015
  %3423 = vmatprep.subr.bf16.mxu0 %v1020
  %3424 = vmatpush1.bf16.msra.mxu0 %v1019
  %3425 = vmatprep.subr.bf16.mxu0 %v1024
  %3426 = vmatpush1.bf16.msra.mxu0 %v1023
  %3427 = vmatprep.subr.bf16.mxu0 %v1028
  %3428 = vmatpush1.bf16.msra.mxu0 %v1027
  %3429 = vmatprep.subr.bf16.mxu0 %v1032
  %3430 = vmatpush1.bf16.msra.mxu0 %v1031
  %3431 = vmatprep.subr.bf16.mxu0 0
  %3432 = vmatpush1.bf16.msra.mxu0 0
  %3433 = vmatprep.subr.bf16.mxu0 0
  %3434 = vmatpush1.bf16.msra.mxu0 0
  %3435 = vmatprep.subr.bf16.mxu0 0
  %3436 = vmatpush1.bf16.msra.mxu0 0
  %3437 = vmatprep.subr.bf16.mxu0 0
  %3438 = vmatpush1.bf16.msra.mxu0 0
  %3439 = vmatprep.subr.bf16.mxu0 0
  %3440 = vmatpush1.bf16.msra.mxu0 0
  %3441 = vmatprep.subr.bf16.mxu0 0
  %3442 = vmatpush1.bf16.msra.mxu0 0
  %3443 = vmatprep.subr.bf16.mxu0 0
  %3444 = vmatpush1.bf16.msra.mxu0 0
  %3445 = vmatprep.subr.bf16.mxu0 0
  %3446 = vmatpush1.bf16.msra.mxu0 0
  %3447 = vmatprep.mubr.bf16.mxu0 0
  %3448 = vmatmul.mubr.bf16.gmra.mrb[0].mxu0 %v3217
  %v3449 = vpop.f32.mrb[0].mxu0
  %v3450 = vadd.f32 0.0, %v3449
  %v3451 = vpop.f32.mrb[0].mxu0
  %v3452 = vadd.f32 0.0, %v3451
  %v3453 = vpop.f32.mrb[0].mxu0
  %v3454 = vpop.f32.mrb[0].mxu0
  %3455 = vdwg.mxu0
  %3456 = vmatprep.subr.bf16.mxu0 %v1006
  %3457 = vmatpush1.bf16.msra.mxu0 %v1005
  %3458 = vmatprep.subr.bf16.mxu0 %v1010
  %3459 = vmatpush1.bf16.msra.mxu0 %v1009
  %3460 = vmatprep.subr.bf16.mxu0 %v1014
  %3461 = vmatpush1.bf16.msra.mxu0 %v1013
  %3462 = vmatprep.subr.bf16.mxu0 %v1018
  %3463 = vmatpush1.bf16.msra.mxu0 %v1017
  %3464 = vmatprep.subr.bf16.mxu0 %v1022
  %3465 = vmatpush1.bf16.msra.mxu0 %v1021
  %3466 = vmatprep.subr.bf16.mxu0 %v1026
  %3467 = vmatpush1.bf16.msra.mxu0 %v1025
  %3468 = vmatprep.subr.bf16.mxu0 %v1030
  %3469 = vmatpush1.bf16.msra.mxu0 %v1029
  %3470 = vmatprep.subr.bf16.mxu0 %v1034
  %3471 = vmatpush1.bf16.msra.mxu0 %v1033
  %3472 = vmatprep.subr.bf16.mxu0 0
  %3473 = vmatpush1.bf16.msra.mxu0 0
  %3474 = vmatprep.subr.bf16.mxu0 0
  %3475 = vmatpush1.bf16.msra.mxu0 0
  %3476 = vmatprep.subr.bf16.mxu0 0
  %3477 = vmatpush1.bf16.msra.mxu0 0
  %3478 = vmatprep.subr.bf16.mxu0 0
  %3479 = vmatpush1.bf16.msra.mxu0 0
  %3480 = vmatprep.subr.bf16.mxu0 0
  %3481 = vmatpush1.bf16.msra.mxu0 0
  %3482 = vmatprep.subr.bf16.mxu0 0
  %3483 = vmatpush1.bf16.msra.mxu0 0
  %3484 = vmatprep.subr.bf16.mxu0 0
  %3485 = vmatpush1.bf16.msra.mxu0 0
  %3486 = vmatprep.subr.bf16.mxu0 0
  %3487 = vmatpush1.bf16.msra.mxu0 0
  %3488 = vmatprep.mubr.bf16.mxu0 0
  %3489 = vmatmul.mubr.bf16.gmra.mrb[0].mxu0 %v3217
  %v3490 = vpop.f32.mrb[0].mxu0
  %v3491 = vadd.f32 0.0, %v3490
  %v3492 = vpop.f32.mrb[0].mxu0
  %v3493 = vadd.f32 0.0, %v3492
  %v3494 = vpop.f32.mrb[0].mxu0
  %v3495 = vpop.f32.mrb[0].mxu0
  %3496 = vdwg.mxu0
  %v3497 = vadd.f32 %v3411, %v3450
  %v3498 = vadd.f32 %v3412, %v3452
  %v3499 = vadd.f32 %v3413, %v3491
  %v3500 = vadd.f32 %v3414, %v3493
  %v3501 = vxor.u32 %v3497, 2147483648
  %v3502 = vxor.u32 %v3498, 2147483648
  %v3503 = vxor.u32 %v3499, 2147483648
  %v3504 = vmul.f32 %v3501, 1.442695
  %v3505 = vpow.pop %v3504
  %v3506 = vmul.f32 %v3502, 1.442695
  %v3507 = vpow.pop %v3506
  %v3508 = vmul.f32 %v3503, 1.442695
  %v3509 = vpow.pop %v3508
  %v3510 = vadd.f32 %v3505, 1.0
  %v3511 = vadd.f32 %v3507, 1.0
  %v3512 = vadd.f32 %v3509, 1.0
  %v3513 = vrcp.pop %v3510
  %v3514 = vmul.f32 1.0, %v3513
  %v3515 = vrcp.pop %v3511
  %v3516 = vmul.f32 1.0, %v3515
  %v3517 = vrcp.pop %v3512
  %v3518 = vmul.f32 1.0, %v3517
  %v3519 = vtanh.pop %v3500
  %v3520 = vmul.f32 %v3516, %v3214
  %v3521 = vmul.f32 %v3514, %v3519
  %v3522 = vadd.f32 %v3520, %v3521
  %v3523 = vtanh.pop %v3522
  %v3524 = vmul.f32 %v3518, %v3523
  %v3525 = vpack.c.bf16 %v3524, %v3524
  %3526 = vmatprep.subr.bf16.mxu0 %v702
  %3527 = vmatpush1.bf16.msra.mxu0 %v701
  %3528 = vmatprep.subr.bf16.mxu0 %v706
  %3529 = vmatpush1.bf16.msra.mxu0 %v705
  %3530 = vmatprep.subr.bf16.mxu0 %v710
  %3531 = vmatpush1.bf16.msra.mxu0 %v709
  %3532 = vmatprep.subr.bf16.mxu0 %v714
  %3533 = vmatpush1.bf16.msra.mxu0 %v713
  %3534 = vmatprep.subr.bf16.mxu0 %v718
  %3535 = vmatpush1.bf16.msra.mxu0 %v717
  %3536 = vmatprep.subr.bf16.mxu0 %v722
  %3537 = vmatpush1.bf16.msra.mxu0 %v721
  %3538 = vmatprep.subr.bf16.mxu0 %v726
  %3539 = vmatpush1.bf16.msra.mxu0 %v725
  %3540 = vmatprep.subr.bf16.mxu0 %v730
  %3541 = vmatpush1.bf16.msra.mxu0 %v729
  %3542 = vmatprep.subr.bf16.mxu0 0
  %3543 = vmatpush1.bf16.msra.mxu0 0
  %3544 = vmatprep.subr.bf16.mxu0 0
  %3545 = vmatpush1.bf16.msra.mxu0 0
  %3546 = vmatprep.subr.bf16.mxu0 0
  %3547 = vmatpush1.bf16.msra.mxu0 0
  %3548 = vmatprep.subr.bf16.mxu0 0
  %3549 = vmatpush1.bf16.msra.mxu0 0
  %3550 = vmatprep.subr.bf16.mxu0 0
  %3551 = vmatpush1.bf16.msra.mxu0 0
  %3552 = vmatprep.subr.bf16.mxu0 0
  %3553 = vmatpush1.bf16.msra.mxu0 0
  %3554 = vmatprep.subr.bf16.mxu0 0
  %3555 = vmatpush1.bf16.msra.mxu0 0
  %3556 = vmatprep.subr.bf16.mxu0 0
  %3557 = vmatpush1.bf16.msra.mxu0 0
  %3558 = vmatprep.mubr.bf16.mxu0 0
  %3559 = vmatmul.mubr.bf16.gmra.mrb[0].mxu0 %v3525
  %v3560 = vpop.f32.mrb[0].mxu0
  %v3561 = vadd.f32 %v527, %v3560
  %v3562 = vpop.f32.mrb[0].mxu0
  %v3563 = vadd.f32 %v531, %v3562
  %v3564 = vpop.f32.mrb[0].mxu0
  %v3565 = vpop.f32.mrb[0].mxu0
  %3566 = vdwg.mxu0
  %3567 = vmatprep.subr.bf16.mxu0 %v704
  %3568 = vmatpush1.bf16.msra.mxu0 %v703
  %3569 = vmatprep.subr.bf16.mxu0 %v708
  %3570 = vmatpush1.bf16.msra.mxu0 %v707
  %3571 = vmatprep.subr.bf16.mxu0 %v712
  %3572 = vmatpush1.bf16.msra.mxu0 %v711
  %3573 = vmatprep.subr.bf16.mxu0 %v716
  %3574 = vmatpush1.bf16.msra.mxu0 %v715
  %3575 = vmatprep.subr.bf16.mxu0 %v720
  %3576 = vmatpush1.bf16.msra.mxu0 %v719
  %3577 = vmatprep.subr.bf16.mxu0 %v724
  %3578 = vmatpush1.bf16.msra.mxu0 %v723
  %3579 = vmatprep.subr.bf16.mxu0 %v728
  %3580 = vmatpush1.bf16.msra.mxu0 %v727
  %3581 = vmatprep.subr.bf16.mxu0 %v732
  %3582 = vmatpush1.bf16.msra.mxu0 %v731
  %3583 = vmatprep.subr.bf16.mxu0 0
  %3584 = vmatpush1.bf16.msra.mxu0 0
  %3585 = vmatprep.subr.bf16.mxu0 0
  %3586 = vmatpush1.bf16.msra.mxu0 0
  %3587 = vmatprep.subr.bf16.mxu0 0
  %3588 = vmatpush1.bf16.msra.mxu0 0
  %3589 = vmatprep.subr.bf16.mxu0 0
  %3590 = vmatpush1.bf16.msra.mxu0 0
  %3591 = vmatprep.subr.bf16.mxu0 0
  %3592 = vmatpush1.bf16.msra.mxu0 0
  %3593 = vmatprep.subr.bf16.mxu0 0
  %3594 = vmatpush1.bf16.msra.mxu0 0
  %3595 = vmatprep.subr.bf16.mxu0 0
  %3596 = vmatpush1.bf16.msra.mxu0 0
  %3597 = vmatprep.subr.bf16.mxu0 0
  %3598 = vmatpush1.bf16.msra.mxu0 0
  %3599 = vmatprep.mubr.bf16.mxu0 0
  %3600 = vmatmul.mubr.bf16.gmra.mrb[0].mxu0 %v3525
  %v3601 = vpop.f32.mrb[0].mxu0
  %v3602 = vadd.f32 %v535, %v3601
  %v3603 = vpop.f32.mrb[0].mxu0
  %v3604 = vadd.f32 %v539, %v3603
  %v3605 = vpop.f32.mrb[0].mxu0
  %v3606 = vpop.f32.mrb[0].mxu0
  %3607 = vdwg.mxu0
  %v3608 = vpack.c.bf16 %v3410, %v3410
  %3609 = vmatprep.subr.bf16.mxu0 %v1390
  %3610 = vmatpush1.bf16.msra.mxu0 %v1389
  %3611 = vmatprep.subr.bf16.mxu0 %v1394
  %3612 = vmatpush1.bf16.msra.mxu0 %v1393
  %3613 = vmatprep.subr.bf16.mxu0 %v1398
  %3614 = vmatpush1.bf16.msra.mxu0 %v1397
  %3615 = vmatprep.subr.bf16.mxu0 %v1402
  %3616 = vmatpush1.bf16.msra.mxu0 %v1401
  %3617 = vmatprep.subr.bf16.mxu0 %v1406
  %3618 = vmatpush1.bf16.msra.mxu0 %v1405
  %3619 = vmatprep.subr.bf16.mxu0 %v1410
  %3620 = vmatpush1.bf16.msra.mxu0 %v1409
  %3621 = vmatprep.subr.bf16.mxu0 %v1414
  %3622 = vmatpush1.bf16.msra.mxu0 %v1413
  %3623 = vmatprep.subr.bf16.mxu0 %v1418
  %3624 = vmatpush1.bf16.msra.mxu0 %v1417
  %3625 = vmatprep.subr.bf16.mxu0 0
  %3626 = vmatpush1.bf16.msra.mxu0 0
  %3627 = vmatprep.subr.bf16.mxu0 0
  %3628 = vmatpush1.bf16.msra.mxu0 0
  %3629 = vmatprep.subr.bf16.mxu0 0
  %3630 = vmatpush1.bf16.msra.mxu0 0
  %3631 = vmatprep.subr.bf16.mxu0 0
  %3632 = vmatpush1.bf16.msra.mxu0 0
  %3633 = vmatprep.subr.bf16.mxu0 0
  %3634 = vmatpush1.bf16.msra.mxu0 0
  %3635 = vmatprep.subr.bf16.mxu0 0
  %3636 = vmatpush1.bf16.msra.mxu0 0
  %3637 = vmatprep.subr.bf16.mxu0 0
  %3638 = vmatpush1.bf16.msra.mxu0 0
  %3639 = vmatprep.subr.bf16.mxu0 0
  %3640 = vmatpush1.bf16.msra.mxu0 0
  %3641 = vmatprep.mubr.bf16.mxu0 0
  %3642 = vmatmul.mubr.bf16.gmra.mrb[0].mxu0 %v3608
  %v3643 = vpop.f32.mrb[0].mxu0
  %v3644 = vadd.f32 0.0, %v3643
  %v3645 = vpop.f32.mrb[0].mxu0
  %v3646 = vadd.f32 0.0, %v3645
  %v3647 = vpop.f32.mrb[0].mxu0
  %v3648 = vpop.f32.mrb[0].mxu0
  %3649 = vdwg.mxu0
  %3650 = vmatprep.subr.bf16.mxu0 %v1392
  %3651 = vmatpush1.bf16.msra.mxu0 %v1391
  %3652 = vmatprep.subr.bf16.mxu0 %v1396
  %3653 = vmatpush1.bf16.msra.mxu0 %v1395
  %3654 = vmatprep.subr.bf16.mxu0 %v1400
  %3655 = vmatpush1.bf16.msra.mxu0 %v1399
  %3656 = vmatprep.subr.bf16.mxu0 %v1404
  %3657 = vmatpush1.bf16.msra.mxu0 %v1403
  %3658 = vmatprep.subr.bf16.mxu0 %v1408
  %3659 = vmatpush1.bf16.msra.mxu0 %v1407
  %3660 = vmatprep.subr.bf16.mxu0 %v1412
  %3661 = vmatpush1.bf16.msra.mxu0 %v1411
  %3662 = vmatprep.subr.bf16.mxu0 %v1416
  %3663 = vmatpush1.bf16.msra.mxu0 %v1415
  %3664 = vmatprep.subr.bf16.mxu0 %v1420
  %3665 = vmatpush1.bf16.msra.mxu0 %v1419
  %3666 = vmatprep.subr.bf16.mxu0 0
  %3667 = vmatpush1.bf16.msra.mxu0 0
  %3668 = vmatprep.subr.bf16.mxu0 0
  %3669 = vmatpush1.bf16.msra.mxu0 0
  %3670 = vmatprep.subr.bf16.mxu0 0
  %3671 = vmatpush1.bf16.msra.mxu0 0
  %3672 = vmatprep.subr.bf16.mxu0 0
  %3673 = vmatpush1.bf16.msra.mxu0 0
  %3674 = vmatprep.subr.bf16.mxu0 0
  %3675 = vmatpush1.bf16.msra.mxu0 0
  %3676 = vmatprep.subr.bf16.mxu0 0
  %3677 = vmatpush1.bf16.msra.mxu0 0
  %3678 = vmatprep.subr.bf16.mxu0 0
  %3679 = vmatpush1.bf16.msra.mxu0 0
  %3680 = vmatprep.subr.bf16.mxu0 0
  %3681 = vmatpush1.bf16.msra.mxu0 0
  %3682 = vmatprep.mubr.bf16.mxu0 0
  %3683 = vmatmul.mubr.bf16.gmra.mrb[0].mxu0 %v3608
  %v3684 = vpop.f32.mrb[0].mxu0
  %v3685 = vadd.f32 0.0, %v3684
  %v3686 = vpop.f32.mrb[0].mxu0
  %v3687 = vadd.f32 0.0, %v3686
  %v3688 = vpop.f32.mrb[0].mxu0
  %v3689 = vpop.f32.mrb[0].mxu0
  %3690 = vdwg.mxu0
  %v3691 = vadd.f32 %v3561, %v3644
  %v3692 = vadd.f32 %v3563, %v3646
  %v3693 = vadd.f32 %v3602, %v3685
  %v3694 = vadd.f32 %v3604, %v3687
  %v3695 = vxor.u32 %v3691, 2147483648
  %v3696 = vxor.u32 %v3692, 2147483648
  %v3697 = vxor.u32 %v3693, 2147483648
  %v3698 = vmul.f32 %v3695, 1.442695
  %v3699 = vpow.pop %v3698
  %v3700 = vmul.f32 %v3696, 1.442695
  %v3701 = vpow.pop %v3700
  %v3702 = vmul.f32 %v3697, 1.442695
  %v3703 = vpow.pop %v3702
  %v3704 = vadd.f32 %v3699, 1.0
  %v3705 = vadd.f32 %v3701, 1.0
  %v3706 = vadd.f32 %v3703, 1.0
  %v3707 = vrcp.pop %v3704
  %v3708 = vmul.f32 1.0, %v3707
  %v3709 = vrcp.pop %v3705
  %v3710 = vmul.f32 1.0, %v3709
  %v3711 = vrcp.pop %v3706
  %v3712 = vmul.f32 1.0, %v3711
  %v3713 = vtanh.pop %v3694
  %v3714 = vmul.f32 %v3710, %v3408
  %v3715 = vmul.f32 %v3708, %v3713
  %v3716 = vadd.f32 %v3714, %v3715
  %v3717 = vtanh.pop %v3716
  %v3718 = vmul.f32 %v3712, %v3717
  %v3719 = vld [vmem:[#allocation2 + $0x120] sm:$0xff]
  %v3720 = vld [vmem:[#allocation2 + $0x128] sm:$0xff]
  %v3721 = vld [vmem:[#allocation2 + $0x130] sm:$0xff]
  %v3722 = vld [vmem:[#allocation2 + $0x138] sm:$0xff]
  %3723 = vmatprep.subr.bf16.mxu0 %v1004
  %3724 = vmatpush1.bf16.msra.mxu0 %v1003
  %3725 = vmatprep.subr.bf16.mxu0 %v1008
  %3726 = vmatpush1.bf16.msra.mxu0 %v1007
  %3727 = vmatprep.subr.bf16.mxu0 %v1012
  %3728 = vmatpush1.bf16.msra.mxu0 %v1011
  %3729 = vmatprep.subr.bf16.mxu0 %v1016
  %3730 = vmatpush1.bf16.msra.mxu0 %v1015
  %3731 = vmatprep.subr.bf16.mxu0 %v1020
  %3732 = vmatpush1.bf16.msra.mxu0 %v1019
  %3733 = vmatprep.subr.bf16.mxu0 %v1024
  %3734 = vmatpush1.bf16.msra.mxu0 %v1023
  %3735 = vmatprep.subr.bf16.mxu0 %v1028
  %3736 = vmatpush1.bf16.msra.mxu0 %v1027
  %3737 = vmatprep.subr.bf16.mxu0 %v1032
  %3738 = vmatpush1.bf16.msra.mxu0 %v1031
  %3739 = vmatprep.subr.bf16.mxu0 0
  %3740 = vmatpush1.bf16.msra.mxu0 0
  %3741 = vmatprep.subr.bf16.mxu0 0
  %3742 = vmatpush1.bf16.msra.mxu0 0
  %3743 = vmatprep.subr.bf16.mxu0 0
  %3744 = vmatpush1.bf16.msra.mxu0 0
  %3745 = vmatprep.subr.bf16.mxu0 0
  %3746 = vmatpush1.bf16.msra.mxu0 0
  %3747 = vmatprep.subr.bf16.mxu0 0
  %3748 = vmatpush1.bf16.msra.mxu0 0
  %3749 = vmatprep.subr.bf16.mxu0 0
  %3750 = vmatpush1.bf16.msra.mxu0 0
  %3751 = vmatprep.subr.bf16.mxu0 0
  %3752 = vmatpush1.bf16.msra.mxu0 0
  %3753 = vmatprep.subr.bf16.mxu0 0
  %3754 = vmatpush1.bf16.msra.mxu0 0
  %3755 = vmatprep.mubr.bf16.mxu0 0
  %3756 = vmatmul.mubr.bf16.gmra.mrb[0].mxu0 %v3525
  %v3757 = vpop.f32.mrb[0].mxu0
  %v3758 = vadd.f32 0.0, %v3757
  %v3759 = vpop.f32.mrb[0].mxu0
  %v3760 = vadd.f32 0.0, %v3759
  %v3761 = vpop.f32.mrb[0].mxu0
  %v3762 = vpop.f32.mrb[0].mxu0
  %3763 = vdwg.mxu0
  %3764 = vmatprep.subr.bf16.mxu0 %v1006
  %3765 = vmatpush1.bf16.msra.mxu0 %v1005
  %3766 = vmatprep.subr.bf16.mxu0 %v1010
  %3767 = vmatpush1.bf16.msra.mxu0 %v1009
  %3768 = vmatprep.subr.bf16.mxu0 %v1014
  %3769 = vmatpush1.bf16.msra.mxu0 %v1013
  %3770 = vmatprep.subr.bf16.mxu0 %v1018
  %3771 = vmatpush1.bf16.msra.mxu0 %v1017
  %3772 = vmatprep.subr.bf16.mxu0 %v1022
  %3773 = vmatpush1.bf16.msra.mxu0 %v1021
  %3774 = vmatprep.subr.bf16.mxu0 %v1026
  %3775 = vmatpush1.bf16.msra.mxu0 %v1025
  %3776 = vmatprep.subr.bf16.mxu0 %v1030
  %3777 = vmatpush1.bf16.msra.mxu0 %v1029
  %3778 = vmatprep.subr.bf16.mxu0 %v1034
  %3779 = vmatpush1.bf16.msra.mxu0 %v1033
  %3780 = vmatprep.subr.bf16.mxu0 0
  %3781 = vmatpush1.bf16.msra.mxu0 0
  %3782 = vmatprep.subr.bf16.mxu0 0
  %3783 = vmatpush1.bf16.msra.mxu0 0
  %3784 = vmatprep.subr.bf16.mxu0 0
  %3785 = vmatpush1.bf16.msra.mxu0 0
  %3786 = vmatprep.subr.bf16.mxu0 0
  %3787 = vmatpush1.bf16.msra.mxu0 0
  %3788 = vmatprep.subr.bf16.mxu0 0
  %3789 = vmatpush1.bf16.msra.mxu0 0
  %3790 = vmatprep.subr.bf16.mxu0 0
  %3791 = vmatpush1.bf16.msra.mxu0 0
  %3792 = vmatprep.subr.bf16.mxu0 0
  %3793 = vmatpush1.bf16.msra.mxu0 0
  %3794 = vmatprep.subr.bf16.mxu0 0
  %3795 = vmatpush1.bf16.msra.mxu0 0
  %3796 = vmatprep.mubr.bf16.mxu0 0
  %3797 = vmatmul.mubr.bf16.gmra.mrb[0].mxu0 %v3525
  %v3798 = vpop.f32.mrb[0].mxu0
  %v3799 = vadd.f32 0.0, %v3798
  %v3800 = vpop.f32.mrb[0].mxu0
  %v3801 = vadd.f32 0.0, %v3800
  %v3802 = vpop.f32.mrb[0].mxu0
  %v3803 = vpop.f32.mrb[0].mxu0
  %3804 = vdwg.mxu0
  %v3805 = vadd.f32 %v3719, %v3758
  %v3806 = vadd.f32 %v3720, %v3760
  %v3807 = vadd.f32 %v3721, %v3799
  %v3808 = vadd.f32 %v3722, %v3801
  %v3809 = vxor.u32 %v3805, 2147483648
  %v3810 = vxor.u32 %v3806, 2147483648
  %v3811 = vxor.u32 %v3807, 2147483648
  %v3812 = vmul.f32 %v3809, 1.442695
  %v3813 = vpow.pop %v3812
  %v3814 = vmul.f32 %v3810, 1.442695
  %v3815 = vpow.pop %v3814
  %v3816 = vmul.f32 %v3811, 1.442695
  %v3817 = vpow.pop %v3816
  %v3818 = vadd.f32 %v3813, 1.0
  %v3819 = vadd.f32 %v3815, 1.0
  %v3820 = vadd.f32 %v3817, 1.0
  %v3821 = vrcp.pop %v3818
  %v3822 = vmul.f32 1.0, %v3821
  %v3823 = vrcp.pop %v3819
  %v3824 = vmul.f32 1.0, %v3823
  %v3825 = vrcp.pop %v3820
  %v3826 = vmul.f32 1.0, %v3825
  %v3827 = vtanh.pop %v3808
  %v3828 = vmul.f32 %v3824, %v3522
  %v3829 = vmul.f32 %v3822, %v3827
  %v3830 = vadd.f32 %v3828, %v3829
  %v3831 = vtanh.pop %v3830
  %v3832 = vmul.f32 %v3826, %v3831
  %v3833 = vpack.c.bf16 %v3832, %v3832
  %3834 = vmatprep.subr.bf16.mxu0 %v702
  %3835 = vmatpush1.bf16.msra.mxu0 %v701
  %3836 = vmatprep.subr.bf16.mxu0 %v706
  %3837 = vmatpush1.bf16.msra.mxu0 %v705
  %3838 = vmatprep.subr.bf16.mxu0 %v710
  %3839 = vmatpush1.bf16.msra.mxu0 %v709
  %3840 = vmatprep.subr.bf16.mxu0 %v714
  %3841 = vmatpush1.bf16.msra.mxu0 %v713
  %3842 = vmatprep.subr.bf16.mxu0 %v718
  %3843 = vmatpush1.bf16.msra.mxu0 %v717
  %3844 = vmatprep.subr.bf16.mxu0 %v722
  %3845 = vmatpush1.bf16.msra.mxu0 %v721
  %3846 = vmatprep.subr.bf16.mxu0 %v726
  %3847 = vmatpush1.bf16.msra.mxu0 %v725
  %3848 = vmatprep.subr.bf16.mxu0 %v730
  %3849 = vmatpush1.bf16.msra.mxu0 %v729
  %3850 = vmatprep.subr.bf16.mxu0 0
  %3851 = vmatpush1.bf16.msra.mxu0 0
  %3852 = vmatprep.subr.bf16.mxu0 0
  %3853 = vmatpush1.bf16.msra.mxu0 0
  %3854 = vmatprep.subr.bf16.mxu0 0
  %3855 = vmatpush1.bf16.msra.mxu0 0
  %3856 = vmatprep.subr.bf16.mxu0 0
  %3857 = vmatpush1.bf16.msra.mxu0 0
  %3858 = vmatprep.subr.bf16.mxu0 0
  %3859 = vmatpush1.bf16.msra.mxu0 0
  %3860 = vmatprep.subr.bf16.mxu0 0
  %3861 = vmatpush1.bf16.msra.mxu0 0
  %3862 = vmatprep.subr.bf16.mxu0 0
  %3863 = vmatpush1.bf16.msra.mxu0 0
  %3864 = vmatprep.subr.bf16.mxu0 0
  %3865 = vmatpush1.bf16.msra.mxu0 0
  %3866 = vmatprep.mubr.bf16.mxu0 0
  %3867 = vmatmul.mubr.bf16.gmra.mrb[0].mxu0 %v3833
  %v3868 = vpop.f32.mrb[0].mxu0
  %v3869 = vadd.f32 %v527, %v3868
  %v3870 = vpop.f32.mrb[0].mxu0
  %v3871 = vadd.f32 %v531, %v3870
  %v3872 = vpop.f32.mrb[0].mxu0
  %v3873 = vpop.f32.mrb[0].mxu0
  %3874 = vdwg.mxu0
  %3875 = vmatprep.subr.bf16.mxu0 %v704
  %3876 = vmatpush1.bf16.msra.mxu0 %v703
  %3877 = vmatprep.subr.bf16.mxu0 %v708
  %3878 = vmatpush1.bf16.msra.mxu0 %v707
  %3879 = vmatprep.subr.bf16.mxu0 %v712
  %3880 = vmatpush1.bf16.msra.mxu0 %v711
  %3881 = vmatprep.subr.bf16.mxu0 %v716
  %3882 = vmatpush1.bf16.msra.mxu0 %v715
  %3883 = vmatprep.subr.bf16.mxu0 %v720
  %3884 = vmatpush1.bf16.msra.mxu0 %v719
  %3885 = vmatprep.subr.bf16.mxu0 %v724
  %3886 = vmatpush1.bf16.msra.mxu0 %v723
  %3887 = vmatprep.subr.bf16.mxu0 %v728
  %3888 = vmatpush1.bf16.msra.mxu0 %v727
  %3889 = vmatprep.subr.bf16.mxu0 %v732
  %3890 = vmatpush1.bf16.msra.mxu0 %v731
  %3891 = vmatprep.subr.bf16.mxu0 0
  %3892 = vmatpush1.bf16.msra.mxu0 0
  %3893 = vmatprep.subr.bf16.mxu0 0
  %3894 = vmatpush1.bf16.msra.mxu0 0
  %3895 = vmatprep.subr.bf16.mxu0 0
  %3896 = vmatpush1.bf16.msra.mxu0 0
  %3897 = vmatprep.subr.bf16.mxu0 0
  %3898 = vmatpush1.bf16.msra.mxu0 0
  %3899 = vmatprep.subr.bf16.mxu0 0
  %3900 = vmatpush1.bf16.msra.mxu0 0
  %3901 = vmatprep.subr.bf16.mxu0 0
  %3902 = vmatpush1.bf16.msra.mxu0 0
  %3903 = vmatprep.subr.bf16.mxu0 0
  %3904 = vmatpush1.bf16.msra.mxu0 0
  %3905 = vmatprep.subr.bf16.mxu0 0
  %3906 = vmatpush1.bf16.msra.mxu0 0
  %3907 = vmatprep.mubr.bf16.mxu0 0
  %3908 = vmatmul.mubr.bf16.gmra.mrb[0].mxu0 %v3833
  %v3909 = vpop.f32.mrb[0].mxu0
  %v3910 = vadd.f32 %v535, %v3909
  %v3911 = vpop.f32.mrb[0].mxu0
  %v3912 = vadd.f32 %v539, %v3911
  %v3913 = vpop.f32.mrb[0].mxu0
  %v3914 = vpop.f32.mrb[0].mxu0
  %3915 = vdwg.mxu0
  %v3916 = vpack.c.bf16 %v3718, %v3718
  %3917 = vmatprep.subr.bf16.mxu0 %v1390
  %3918 = vmatpush1.bf16.msra.mxu0 %v1389
  %3919 = vmatprep.subr.bf16.mxu0 %v1394
  %3920 = vmatpush1.bf16.msra.mxu0 %v1393
  %3921 = vmatprep.subr.bf16.mxu0 %v1398
  %3922 = vmatpush1.bf16.msra.mxu0 %v1397
  %3923 = vmatprep.subr.bf16.mxu0 %v1402
  %3924 = vmatpush1.bf16.msra.mxu0 %v1401
  %3925 = vmatprep.subr.bf16.mxu0 %v1406
  %3926 = vmatpush1.bf16.msra.mxu0 %v1405
  %3927 = vmatprep.subr.bf16.mxu0 %v1410
  %3928 = vmatpush1.bf16.msra.mxu0 %v1409
  %3929 = vmatprep.subr.bf16.mxu0 %v1414
  %3930 = vmatpush1.bf16.msra.mxu0 %v1413
  %3931 = vmatprep.subr.bf16.mxu0 %v1418
  %3932 = vmatpush1.bf16.msra.mxu0 %v1417
  %3933 = vmatprep.subr.bf16.mxu0 0
  %3934 = vmatpush1.bf16.msra.mxu0 0
  %3935 = vmatprep.subr.bf16.mxu0 0
  %3936 = vmatpush1.bf16.msra.mxu0 0
  %3937 = vmatprep.subr.bf16.mxu0 0
  %3938 = vmatpush1.bf16.msra.mxu0 0
  %3939 = vmatprep.subr.bf16.mxu0 0
  %3940 = vmatpush1.bf16.msra.mxu0 0
  %3941 = vmatprep.subr.bf16.mxu0 0
  %3942 = vmatpush1.bf16.msra.mxu0 0
  %3943 = vmatprep.subr.bf16.mxu0 0
  %3944 = vmatpush1.bf16.msra.mxu0 0
  %3945 = vmatprep.subr.bf16.mxu0 0
  %3946 = vmatpush1.bf16.msra.mxu0 0
  %3947 = vmatprep.subr.bf16.mxu0 0
  %3948 = vmatpush1.bf16.msra.mxu0 0
  %3949 = vmatprep.mubr.bf16.mxu0 0
  %3950 = vmatmul.mubr.bf16.gmra.mrb[0].mxu0 %v3916
  %v3951 = vpop.f32.mrb[0].mxu0
  %v3952 = vadd.f32 0.0, %v3951
  %v3953 = vpop.f32.mrb[0].mxu0
  %v3954 = vadd.f32 0.0, %v3953
  %v3955 = vpop.f32.mrb[0].mxu0
  %v3956 = vpop.f32.mrb[0].mxu0
  %3957 = vdwg.mxu0
  %3958 = vmatprep.subr.bf16.mxu0 %v1392
  %3959 = vmatpush1.bf16.msra.mxu0 %v1391
  %3960 = vmatprep.subr.bf16.mxu0 %v1396
  %3961 = vmatpush1.bf16.msra.mxu0 %v1395
  %3962 = vmatprep.subr.bf16.mxu0 %v1400
  %3963 = vmatpush1.bf16.msra.mxu0 %v1399
  %3964 = vmatprep.subr.bf16.mxu0 %v1404
  %3965 = vmatpush1.bf16.msra.mxu0 %v1403
  %3966 = vmatprep.subr.bf16.mxu0 %v1408
  %3967 = vmatpush1.bf16.msra.mxu0 %v1407
  %3968 = vmatprep.subr.bf16.mxu0 %v1412
  %3969 = vmatpush1.bf16.msra.mxu0 %v1411
  %3970 = vmatprep.subr.bf16.mxu0 %v1416
  %3971 = vmatpush1.bf16.msra.mxu0 %v1415
  %3972 = vmatprep.subr.bf16.mxu0 %v1420
  %3973 = vmatpush1.bf16.msra.mxu0 %v1419
  %3974 = vmatprep.subr.bf16.mxu0 0
  %3975 = vmatpush1.bf16.msra.mxu0 0
  %3976 = vmatprep.subr.bf16.mxu0 0
  %3977 = vmatpush1.bf16.msra.mxu0 0
  %3978 = vmatprep.subr.bf16.mxu0 0
  %3979 = vmatpush1.bf16.msra.mxu0 0
  %3980 = vmatprep.subr.bf16.mxu0 0
  %3981 = vmatpush1.bf16.msra.mxu0 0
  %3982 = vmatprep.subr.bf16.mxu0 0
  %3983 = vmatpush1.bf16.msra.mxu0 0
  %3984 = vmatprep.subr.bf16.mxu0 0
  %3985 = vmatpush1.bf16.msra.mxu0 0
  %3986 = vmatprep.subr.bf16.mxu0 0
  %3987 = vmatpush1.bf16.msra.mxu0 0
  %3988 = vmatprep.subr.bf16.mxu0 0
  %3989 = vmatpush1.bf16.msra.mxu0 0
  %3990 = vmatprep.mubr.bf16.mxu0 0
  %3991 = vmatmul.mubr.bf16.gmra.mrb[0].mxu0 %v3916
  %v3992 = vpop.f32.mrb[0].mxu0
  %v3993 = vadd.f32 0.0, %v3992
  %v3994 = vpop.f32.mrb[0].mxu0
  %v3995 = vadd.f32 0.0, %v3994
  %v3996 = vpop.f32.mrb[0].mxu0
  %v3997 = vpop.f32.mrb[0].mxu0
  %3998 = vdwg.mxu0
  %v3999 = vadd.f32 %v3869, %v3952
  %v4000 = vadd.f32 %v3871, %v3954
  %v4001 = vadd.f32 %v3910, %v3993
  %v4002 = vadd.f32 %v3912, %v3995
  %v4003 = vxor.u32 %v3999, 2147483648
  %v4004 = vxor.u32 %v4000, 2147483648
  %v4005 = vxor.u32 %v4001, 2147483648
  %v4006 = vmul.f32 %v4003, 1.442695
  %v4007 = vpow.pop %v4006
  %v4008 = vmul.f32 %v4004, 1.442695
  %v4009 = vpow.pop %v4008
  %v4010 = vmul.f32 %v4005, 1.442695
  %v4011 = vpow.pop %v4010
  %v4012 = vadd.f32 %v4007, 1.0
  %v4013 = vadd.f32 %v4009, 1.0
  %v4014 = vadd.f32 %v4011, 1.0
  %v4015 = vrcp.pop %v4012
  %v4016 = vmul.f32 1.0, %v4015
  %v4017 = vrcp.pop %v4013
  %v4018 = vmul.f32 1.0, %v4017
  %v4019 = vrcp.pop %v4014
  %v4020 = vmul.f32 1.0, %v4019
  %v4021 = vtanh.pop %v4002
  %v4022 = vmul.f32 %v4018, %v3716
  %v4023 = vmul.f32 %v4016, %v4021
  %v4024 = vadd.f32 %v4022, %v4023
  %v4025 = vtanh.pop %v4024
  %v4026 = vmul.f32 %v4020, %v4025
  %v4027 = vld [vmem:[#allocation2 + $0x140] sm:$0xff]
  %v4028 = vld [vmem:[#allocation2 + $0x148] sm:$0xff]
  %v4029 = vld [vmem:[#allocation2 + $0x150] sm:$0xff]
  %v4030 = vld [vmem:[#allocation2 + $0x158] sm:$0xff]
  %4031 = vmatprep.subr.bf16.mxu0 %v1004
  %4032 = vmatpush1.bf16.msra.mxu0 %v1003
  %4033 = vmatprep.subr.bf16.mxu0 %v1008
  %4034 = vmatpush1.bf16.msra.mxu0 %v1007
  %4035 = vmatprep.subr.bf16.mxu0 %v1012
  %4036 = vmatpush1.bf16.msra.mxu0 %v1011
  %4037 = vmatprep.subr.bf16.mxu0 %v1016
  %4038 = vmatpush1.bf16.msra.mxu0 %v1015
  %4039 = vmatprep.subr.bf16.mxu0 %v1020
  %4040 = vmatpush1.bf16.msra.mxu0 %v1019
  %4041 = vmatprep.subr.bf16.mxu0 %v1024
  %4042 = vmatpush1.bf16.msra.mxu0 %v1023
  %4043 = vmatprep.subr.bf16.mxu0 %v1028
  %4044 = vmatpush1.bf16.msra.mxu0 %v1027
  %4045 = vmatprep.subr.bf16.mxu0 %v1032
  %4046 = vmatpush1.bf16.msra.mxu0 %v1031
  %4047 = vmatprep.subr.bf16.mxu0 0
  %4048 = vmatpush1.bf16.msra.mxu0 0
  %4049 = vmatprep.subr.bf16.mxu0 0
  %4050 = vmatpush1.bf16.msra.mxu0 0
  %4051 = vmatprep.subr.bf16.mxu0 0
  %4052 = vmatpush1.bf16.msra.mxu0 0
  %4053 = vmatprep.subr.bf16.mxu0 0
  %4054 = vmatpush1.bf16.msra.mxu0 0
  %4055 = vmatprep.subr.bf16.mxu0 0
  %4056 = vmatpush1.bf16.msra.mxu0 0
  %4057 = vmatprep.subr.bf16.mxu0 0
  %4058 = vmatpush1.bf16.msra.mxu0 0
  %4059 = vmatprep.subr.bf16.mxu0 0
  %4060 = vmatpush1.bf16.msra.mxu0 0
  %4061 = vmatprep.subr.bf16.mxu0 0
  %4062 = vmatpush1.bf16.msra.mxu0 0
  %4063 = vmatprep.mubr.bf16.mxu0 0
  %4064 = vmatmul.mubr.bf16.gmra.mrb[0].mxu0 %v3833
  %v4065 = vpop.f32.mrb[0].mxu0
  %v4066 = vadd.f32 0.0, %v4065
  %v4067 = vpop.f32.mrb[0].mxu0
  %v4068 = vadd.f32 0.0, %v4067
  %v4069 = vpop.f32.mrb[0].mxu0
  %v4070 = vpop.f32.mrb[0].mxu0
  %4071 = vdwg.mxu0
  %4072 = vmatprep.subr.bf16.mxu0 %v1006
  %4073 = vmatpush1.bf16.msra.mxu0 %v1005
  %4074 = vmatprep.subr.bf16.mxu0 %v1010
  %4075 = vmatpush1.bf16.msra.mxu0 %v1009
  %4076 = vmatprep.subr.bf16.mxu0 %v1014
  %4077 = vmatpush1.bf16.msra.mxu0 %v1013
  %4078 = vmatprep.subr.bf16.mxu0 %v1018
  %4079 = vmatpush1.bf16.msra.mxu0 %v1017
  %4080 = vmatprep.subr.bf16.mxu0 %v1022
  %4081 = vmatpush1.bf16.msra.mxu0 %v1021
  %4082 = vmatprep.subr.bf16.mxu0 %v1026
  %4083 = vmatpush1.bf16.msra.mxu0 %v1025
  %4084 = vmatprep.subr.bf16.mxu0 %v1030
  %4085 = vmatpush1.bf16.msra.mxu0 %v1029
  %4086 = vmatprep.subr.bf16.mxu0 %v1034
  %4087 = vmatpush1.bf16.msra.mxu0 %v1033
  %4088 = vmatprep.subr.bf16.mxu0 0
  %4089 = vmatpush1.bf16.msra.mxu0 0
  %4090 = vmatprep.subr.bf16.mxu0 0
  %4091 = vmatpush1.bf16.msra.mxu0 0
  %4092 = vmatprep.subr.bf16.mxu0 0
  %4093 = vmatpush1.bf16.msra.mxu0 0
  %4094 = vmatprep.subr.bf16.mxu0 0
  %4095 = vmatpush1.bf16.msra.mxu0 0
  %4096 = vmatprep.subr.bf16.mxu0 0
  %4097 = vmatpush1.bf16.msra.mxu0 0
  %4098 = vmatprep.subr.bf16.mxu0 0
  %4099 = vmatpush1.bf16.msra.mxu0 0
  %4100 = vmatprep.subr.bf16.mxu0 0
  %4101 = vmatpush1.bf16.msra.mxu0 0
  %4102 = vmatprep.subr.bf16.mxu0 0
  %4103 = vmatpush1.bf16.msra.mxu0 0
  %4104 = vmatprep.mubr.bf16.mxu0 0
  %4105 = vmatmul.mubr.bf16.gmra.mrb[0].mxu0 %v3833
  %v4106 = vpop.f32.mrb[0].mxu0
  %v4107 = vadd.f32 0.0, %v4106
  %v4108 = vpop.f32.mrb[0].mxu0
  %v4109 = vadd.f32 0.0, %v4108
  %v4110 = vpop.f32.mrb[0].mxu0
  %v4111 = vpop.f32.mrb[0].mxu0
  %4112 = vdwg.mxu0
  %v4113 = vadd.f32 %v4027, %v4066
  %v4114 = vadd.f32 %v4028, %v4068
  %v4115 = vadd.f32 %v4029, %v4107
  %v4116 = vadd.f32 %v4030, %v4109
  %v4117 = vxor.u32 %v4113, 2147483648
  %v4118 = vxor.u32 %v4114, 2147483648
  %v4119 = vxor.u32 %v4115, 2147483648
  %v4120 = vmul.f32 %v4117, 1.442695
  %v4121 = vpow.pop %v4120
  %v4122 = vmul.f32 %v4118, 1.442695
  %v4123 = vpow.pop %v4122
  %v4124 = vmul.f32 %v4119, 1.442695
  %v4125 = vpow.pop %v4124
  %v4126 = vadd.f32 %v4121, 1.0
  %v4127 = vadd.f32 %v4123, 1.0
  %v4128 = vadd.f32 %v4125, 1.0
  %v4129 = vrcp.pop %v4126
  %v4130 = vmul.f32 1.0, %v4129
  %v4131 = vrcp.pop %v4127
  %v4132 = vmul.f32 1.0, %v4131
  %v4133 = vrcp.pop %v4128
  %v4134 = vmul.f32 1.0, %v4133
  %v4135 = vtanh.pop %v4116
  %v4136 = vmul.f32 %v4132, %v3830
  %v4137 = vmul.f32 %v4130, %v4135
  %v4138 = vadd.f32 %v4136, %v4137
  %v4139 = vtanh.pop %v4138
  %v4140 = vmul.f32 %v4134, %v4139
  %v4141 = vpack.c.bf16 %v4140, %v4140
  %4142 = vmatprep.subr.bf16.mxu0 %v702
  %4143 = vmatpush1.bf16.msra.mxu0 %v701
  %4144 = vmatprep.subr.bf16.mxu0 %v706
  %4145 = vmatpush1.bf16.msra.mxu0 %v705
  %4146 = vmatprep.subr.bf16.mxu0 %v710
  %4147 = vmatpush1.bf16.msra.mxu0 %v709
  %4148 = vmatprep.subr.bf16.mxu0 %v714
  %4149 = vmatpush1.bf16.msra.mxu0 %v713
  %4150 = vmatprep.subr.bf16.mxu0 %v718
  %4151 = vmatpush1.bf16.msra.mxu0 %v717
  %4152 = vmatprep.subr.bf16.mxu0 %v722
  %4153 = vmatpush1.bf16.msra.mxu0 %v721
  %4154 = vmatprep.subr.bf16.mxu0 %v726
  %4155 = vmatpush1.bf16.msra.mxu0 %v725
  %4156 = vmatprep.subr.bf16.mxu0 %v730
  %4157 = vmatpush1.bf16.msra.mxu0 %v729
  %4158 = vmatprep.subr.bf16.mxu0 0
  %4159 = vmatpush1.bf16.msra.mxu0 0
  %4160 = vmatprep.subr.bf16.mxu0 0
  %4161 = vmatpush1.bf16.msra.mxu0 0
  %4162 = vmatprep.subr.bf16.mxu0 0
  %4163 = vmatpush1.bf16.msra.mxu0 0
  %4164 = vmatprep.subr.bf16.mxu0 0
  %4165 = vmatpush1.bf16.msra.mxu0 0
  %4166 = vmatprep.subr.bf16.mxu0 0
  %4167 = vmatpush1.bf16.msra.mxu0 0
  %4168 = vmatprep.subr.bf16.mxu0 0
  %4169 = vmatpush1.bf16.msra.mxu0 0
  %4170 = vmatprep.subr.bf16.mxu0 0
  %4171 = vmatpush1.bf16.msra.mxu0 0
  %4172 = vmatprep.subr.bf16.mxu0 0
  %4173 = vmatpush1.bf16.msra.mxu0 0
  %4174 = vmatprep.mubr.bf16.mxu0 0
  %4175 = vmatmul.mubr.bf16.gmra.mrb[0].mxu0 %v4141
  %v4176 = vpop.f32.mrb[0].mxu0
  %v4177 = vadd.f32 %v527, %v4176
  %v4178 = vpop.f32.mrb[0].mxu0
  %v4179 = vadd.f32 %v531, %v4178
  %v4180 = vpop.f32.mrb[0].mxu0
  %v4181 = vpop.f32.mrb[0].mxu0
  %4182 = vdwg.mxu0
  %4183 = vmatprep.subr.bf16.mxu0 %v704
  %4184 = vmatpush1.bf16.msra.mxu0 %v703
  %4185 = vmatprep.subr.bf16.mxu0 %v708
  %4186 = vmatpush1.bf16.msra.mxu0 %v707
  %4187 = vmatprep.subr.bf16.mxu0 %v712
  %4188 = vmatpush1.bf16.msra.mxu0 %v711
  %4189 = vmatprep.subr.bf16.mxu0 %v716
  %4190 = vmatpush1.bf16.msra.mxu0 %v715
  %4191 = vmatprep.subr.bf16.mxu0 %v720
  %4192 = vmatpush1.bf16.msra.mxu0 %v719
  %4193 = vmatprep.subr.bf16.mxu0 %v724
  %4194 = vmatpush1.bf16.msra.mxu0 %v723
  %4195 = vmatprep.subr.bf16.mxu0 %v728
  %4196 = vmatpush1.bf16.msra.mxu0 %v727
  %4197 = vmatprep.subr.bf16.mxu0 %v732
  %4198 = vmatpush1.bf16.msra.mxu0 %v731
  %4199 = vmatprep.subr.bf16.mxu0 0
  %4200 = vmatpush1.bf16.msra.mxu0 0
  %4201 = vmatprep.subr.bf16.mxu0 0
  %4202 = vmatpush1.bf16.msra.mxu0 0
  %4203 = vmatprep.subr.bf16.mxu0 0
  %4204 = vmatpush1.bf16.msra.mxu0 0
  %4205 = vmatprep.subr.bf16.mxu0 0
  %4206 = vmatpush1.bf16.msra.mxu0 0
  %4207 = vmatprep.subr.bf16.mxu0 0
  %4208 = vmatpush1.bf16.msra.mxu0 0
  %4209 = vmatprep.subr.bf16.mxu0 0
  %4210 = vmatpush1.bf16.msra.mxu0 0
  %4211 = vmatprep.subr.bf16.mxu0 0
  %4212 = vmatpush1.bf16.msra.mxu0 0
  %4213 = vmatprep.subr.bf16.mxu0 0
  %4214 = vmatpush1.bf16.msra.mxu0 0
  %4215 = vmatprep.mubr.bf16.mxu0 0
  %4216 = vmatmul.mubr.bf16.gmra.mrb[0].mxu0 %v4141
  %v4217 = vpop.f32.mrb[0].mxu0
  %v4218 = vadd.f32 %v535, %v4217
  %v4219 = vpop.f32.mrb[0].mxu0
  %v4220 = vadd.f32 %v539, %v4219
  %v4221 = vpop.f32.mrb[0].mxu0
  %v4222 = vpop.f32.mrb[0].mxu0
  %4223 = vdwg.mxu0
  %v4224 = vpack.c.bf16 %v4026, %v4026
  %4225 = vmatprep.subr.bf16.mxu0 %v1390
  %4226 = vmatpush1.bf16.msra.mxu0 %v1389
  %4227 = vmatprep.subr.bf16.mxu0 %v1394
  %4228 = vmatpush1.bf16.msra.mxu0 %v1393
  %4229 = vmatprep.subr.bf16.mxu0 %v1398
  %4230 = vmatpush1.bf16.msra.mxu0 %v1397
  %4231 = vmatprep.subr.bf16.mxu0 %v1402
  %4232 = vmatpush1.bf16.msra.mxu0 %v1401
  %4233 = vmatprep.subr.bf16.mxu0 %v1406
  %4234 = vmatpush1.bf16.msra.mxu0 %v1405
  %4235 = vmatprep.subr.bf16.mxu0 %v1410
  %4236 = vmatpush1.bf16.msra.mxu0 %v1409
  %4237 = vmatprep.subr.bf16.mxu0 %v1414
  %4238 = vmatpush1.bf16.msra.mxu0 %v1413
  %4239 = vmatprep.subr.bf16.mxu0 %v1418
  %4240 = vmatpush1.bf16.msra.mxu0 %v1417
  %4241 = vmatprep.subr.bf16.mxu0 0
  %4242 = vmatpush1.bf16.msra.mxu0 0
  %4243 = vmatprep.subr.bf16.mxu0 0
  %4244 = vmatpush1.bf16.msra.mxu0 0
  %4245 = vmatprep.subr.bf16.mxu0 0
  %4246 = vmatpush1.bf16.msra.mxu0 0
  %4247 = vmatprep.subr.bf16.mxu0 0
  %4248 = vmatpush1.bf16.msra.mxu0 0
  %4249 = vmatprep.subr.bf16.mxu0 0
  %4250 = vmatpush1.bf16.msra.mxu0 0
  %4251 = vmatprep.subr.bf16.mxu0 0
  %4252 = vmatpush1.bf16.msra.mxu0 0
  %4253 = vmatprep.subr.bf16.mxu0 0
  %4254 = vmatpush1.bf16.msra.mxu0 0
  %4255 = vmatprep.subr.bf16.mxu0 0
  %4256 = vmatpush1.bf16.msra.mxu0 0
  %4257 = vmatprep.mubr.bf16.mxu0 0
  %4258 = vmatmul.mubr.bf16.gmra.mrb[0].mxu0 %v4224
  %v4259 = vpop.f32.mrb[0].mxu0
  %v4260 = vadd.f32 0.0, %v4259
  %v4261 = vpop.f32.mrb[0].mxu0
  %v4262 = vadd.f32 0.0, %v4261
  %v4263 = vpop.f32.mrb[0].mxu0
  %v4264 = vpop.f32.mrb[0].mxu0
  %4265 = vdwg.mxu0
  %4266 = vmatprep.subr.bf16.mxu0 %v1392
  %4267 = vmatpush1.bf16.msra.mxu0 %v1391
  %4268 = vmatprep.subr.bf16.mxu0 %v1396
  %4269 = vmatpush1.bf16.msra.mxu0 %v1395
  %4270 = vmatprep.subr.bf16.mxu0 %v1400
  %4271 = vmatpush1.bf16.msra.mxu0 %v1399
  %4272 = vmatprep.subr.bf16.mxu0 %v1404
  %4273 = vmatpush1.bf16.msra.mxu0 %v1403
  %4274 = vmatprep.subr.bf16.mxu0 %v1408
  %4275 = vmatpush1.bf16.msra.mxu0 %v1407
  %4276 = vmatprep.subr.bf16.mxu0 %v1412
  %4277 = vmatpush1.bf16.msra.mxu0 %v1411
  %4278 = vmatprep.subr.bf16.mxu0 %v1416
  %4279 = vmatpush1.bf16.msra.mxu0 %v1415
  %4280 = vmatprep.subr.bf16.mxu0 %v1420
  %4281 = vmatpush1.bf16.msra.mxu0 %v1419
  %4282 = vmatprep.subr.bf16.mxu0 0
  %4283 = vmatpush1.bf16.msra.mxu0 0
  %4284 = vmatprep.subr.bf16.mxu0 0
  %4285 = vmatpush1.bf16.msra.mxu0 0
  %4286 = vmatprep.subr.bf16.mxu0 0
  %4287 = vmatpush1.bf16.msra.mxu0 0
  %4288 = vmatprep.subr.bf16.mxu0 0
  %4289 = vmatpush1.bf16.msra.mxu0 0
  %4290 = vmatprep.subr.bf16.mxu0 0
  %4291 = vmatpush1.bf16.msra.mxu0 0
  %4292 = vmatprep.subr.bf16.mxu0 0
  %4293 = vmatpush1.bf16.msra.mxu0 0
  %4294 = vmatprep.subr.bf16.mxu0 0
  %4295 = vmatpush1.bf16.msra.mxu0 0
  %4296 = vmatprep.subr.bf16.mxu0 0
  %4297 = vmatpush1.bf16.msra.mxu0 0
  %4298 = vmatprep.mubr.bf16.mxu0 0
  %4299 = vmatmul.mubr.bf16.gmra.mrb[0].mxu0 %v4224
  %v4300 = vpop.f32.mrb[0].mxu0
  %v4301 = vadd.f32 0.0, %v4300
  %v4302 = vpop.f32.mrb[0].mxu0
  %v4303 = vadd.f32 0.0, %v4302
  %v4304 = vpop.f32.mrb[0].mxu0
  %v4305 = vpop.f32.mrb[0].mxu0
  %4306 = vdwg.mxu0
  %v4307 = vadd.f32 %v4177, %v4260
  %v4308 = vadd.f32 %v4179, %v4262
  %v4309 = vadd.f32 %v4218, %v4301
  %v4310 = vadd.f32 %v4220, %v4303
  %v4311 = vxor.u32 %v4307, 2147483648
  %v4312 = vxor.u32 %v4308, 2147483648
  %v4313 = vxor.u32 %v4309, 2147483648
  %v4314 = vmul.f32 %v4311, 1.442695
  %v4315 = vpow.pop %v4314
  %v4316 = vmul.f32 %v4312, 1.442695
  %v4317 = vpow.pop %v4316
  %v4318 = vmul.f32 %v4313, 1.442695
  %v4319 = vpow.pop %v4318
  %v4320 = vadd.f32 %v4315, 1.0
  %v4321 = vadd.f32 %v4317, 1.0
  %v4322 = vadd.f32 %v4319, 1.0
  %v4323 = vrcp.pop %v4320
  %v4324 = vmul.f32 1.0, %v4323
  %v4325 = vrcp.pop %v4321
  %v4326 = vmul.f32 1.0, %v4325
  %v4327 = vrcp.pop %v4322
  %v4328 = vmul.f32 1.0, %v4327
  %v4329 = vtanh.pop %v4310
  %v4330 = vmul.f32 %v4326, %v4024
  %v4331 = vmul.f32 %v4324, %v4329
  %v4332 = vadd.f32 %v4330, %v4331
  %v4333 = vtanh.pop %v4332
  %v4334 = vmul.f32 %v4328, %v4333
  %v4335 = vld [vmem:[#allocation2 + $0x160] sm:$0xff]
  %v4336 = vld [vmem:[#allocation2 + $0x168] sm:$0xff]
  %v4337 = vld [vmem:[#allocation2 + $0x170] sm:$0xff]
  %v4338 = vld [vmem:[#allocation2 + $0x178] sm:$0xff]
  %4339 = vmatprep.subr.bf16.mxu0 %v1004
  %4340 = vmatpush1.bf16.msra.mxu0 %v1003
  %4341 = vmatprep.subr.bf16.mxu0 %v1008
  %4342 = vmatpush1.bf16.msra.mxu0 %v1007
  %4343 = vmatprep.subr.bf16.mxu0 %v1012
  %4344 = vmatpush1.bf16.msra.mxu0 %v1011
  %4345 = vmatprep.subr.bf16.mxu0 %v1016
  %4346 = vmatpush1.bf16.msra.mxu0 %v1015
  %4347 = vmatprep.subr.bf16.mxu0 %v1020
  %4348 = vmatpush1.bf16.msra.mxu0 %v1019
  %4349 = vmatprep.subr.bf16.mxu0 %v1024
  %4350 = vmatpush1.bf16.msra.mxu0 %v1023
  %4351 = vmatprep.subr.bf16.mxu0 %v1028
  %4352 = vmatpush1.bf16.msra.mxu0 %v1027
  %4353 = vmatprep.subr.bf16.mxu0 %v1032
  %4354 = vmatpush1.bf16.msra.mxu0 %v1031
  %4355 = vmatprep.subr.bf16.mxu0 0
  %4356 = vmatpush1.bf16.msra.mxu0 0
  %4357 = vmatprep.subr.bf16.mxu0 0
  %4358 = vmatpush1.bf16.msra.mxu0 0
  %4359 = vmatprep.subr.bf16.mxu0 0
  %4360 = vmatpush1.bf16.msra.mxu0 0
  %4361 = vmatprep.subr.bf16.mxu0 0
  %4362 = vmatpush1.bf16.msra.mxu0 0
  %4363 = vmatprep.subr.bf16.mxu0 0
  %4364 = vmatpush1.bf16.msra.mxu0 0
  %4365 = vmatprep.subr.bf16.mxu0 0
  %4366 = vmatpush1.bf16.msra.mxu0 0
  %4367 = vmatprep.subr.bf16.mxu0 0
  %4368 = vmatpush1.bf16.msra.mxu0 0
  %4369 = vmatprep.subr.bf16.mxu0 0
  %4370 = vmatpush1.bf16.msra.mxu0 0
  %4371 = vmatprep.mubr.bf16.mxu0 0
  %4372 = vmatmul.mubr.bf16.gmra.mrb[0].mxu0 %v4141
  %v4373 = vpop.f32.mrb[0].mxu0
  %v4374 = vadd.f32 0.0, %v4373
  %v4375 = vpop.f32.mrb[0].mxu0
  %v4376 = vadd.f32 0.0, %v4375
  %v4377 = vpop.f32.mrb[0].mxu0
  %v4378 = vpop.f32.mrb[0].mxu0
  %4379 = vdwg.mxu0
  %4380 = vmatprep.subr.bf16.mxu0 %v1006
  %4381 = vmatpush1.bf16.msra.mxu0 %v1005
  %4382 = vmatprep.subr.bf16.mxu0 %v1010
  %4383 = vmatpush1.bf16.msra.mxu0 %v1009
  %4384 = vmatprep.subr.bf16.mxu0 %v1014
  %4385 = vmatpush1.bf16.msra.mxu0 %v1013
  %4386 = vmatprep.subr.bf16.mxu0 %v1018
  %4387 = vmatpush1.bf16.msra.mxu0 %v1017
  %4388 = vmatprep.subr.bf16.mxu0 %v1022
  %4389 = vmatpush1.bf16.msra.mxu0 %v1021
  %4390 = vmatprep.subr.bf16.mxu0 %v1026
  %4391 = vmatpush1.bf16.msra.mxu0 %v1025
  %4392 = vmatprep.subr.bf16.mxu0 %v1030
  %4393 = vmatpush1.bf16.msra.mxu0 %v1029
  %4394 = vmatprep.subr.bf16.mxu0 %v1034
  %4395 = vmatpush1.bf16.msra.mxu0 %v1033
  %4396 = vmatprep.subr.bf16.mxu0 0
  %4397 = vmatpush1.bf16.msra.mxu0 0
  %4398 = vmatprep.subr.bf16.mxu0 0
  %4399 = vmatpush1.bf16.msra.mxu0 0
  %4400 = vmatprep.subr.bf16.mxu0 0
  %4401 = vmatpush1.bf16.msra.mxu0 0
  %4402 = vmatprep.subr.bf16.mxu0 0
  %4403 = vmatpush1.bf16.msra.mxu0 0
  %4404 = vmatprep.subr.bf16.mxu0 0
  %4405 = vmatpush1.bf16.msra.mxu0 0
  %4406 = vmatprep.subr.bf16.mxu0 0
  %4407 = vmatpush1.bf16.msra.mxu0 0
  %4408 = vmatprep.subr.bf16.mxu0 0
  %4409 = vmatpush1.bf16.msra.mxu0 0
  %4410 = vmatprep.subr.bf16.mxu0 0
  %4411 = vmatpush1.bf16.msra.mxu0 0
  %4412 = vmatprep.mubr.bf16.mxu0 0
  %4413 = vmatmul.mubr.bf16.gmra.mrb[0].mxu0 %v4141
  %v4414 = vpop.f32.mrb[0].mxu0
  %v4415 = vadd.f32 0.0, %v4414
  %v4416 = vpop.f32.mrb[0].mxu0
  %v4417 = vadd.f32 0.0, %v4416
  %v4418 = vpop.f32.mrb[0].mxu0
  %v4419 = vpop.f32.mrb[0].mxu0
  %4420 = vdwg.mxu0
  %v4421 = vadd.f32 %v4335, %v4374
  %v4422 = vadd.f32 %v4336, %v4376
  %v4423 = vadd.f32 %v4337, %v4415
  %v4424 = vadd.f32 %v4338, %v4417
  %v4425 = vxor.u32 %v4421, 2147483648
  %v4426 = vxor.u32 %v4422, 2147483648
  %v4427 = vxor.u32 %v4423, 2147483648
  %v4428 = vmul.f32 %v4425, 1.442695
  %v4429 = vpow.pop %v4428
  %v4430 = vmul.f32 %v4426, 1.442695
  %v4431 = vpow.pop %v4430
  %v4432 = vmul.f32 %v4427, 1.442695
  %v4433 = vpow.pop %v4432
  %v4434 = vadd.f32 %v4429, 1.0
  %v4435 = vadd.f32 %v4431, 1.0
  %v4436 = vadd.f32 %v4433, 1.0
  %v4437 = vrcp.pop %v4434
  %v4438 = vmul.f32 1.0, %v4437
  %v4439 = vrcp.pop %v4435
  %v4440 = vmul.f32 1.0, %v4439
  %v4441 = vrcp.pop %v4436
  %v4442 = vmul.f32 1.0, %v4441
  %v4443 = vtanh.pop %v4424
  %v4444 = vmul.f32 %v4440, %v4138
  %v4445 = vmul.f32 %v4438, %v4443
  %v4446 = vadd.f32 %v4444, %v4445
  %v4447 = vtanh.pop %v4446
  %v4448 = vmul.f32 %v4442, %v4447
  %v4449 = vpack.c.bf16 %v4448, %v4448
  %4450 = vmatprep.subr.bf16.mxu0 %v702
  %4451 = vmatpush1.bf16.msra.mxu0 %v701
  %4452 = vmatprep.subr.bf16.mxu0 %v706
  %4453 = vmatpush1.bf16.msra.mxu0 %v705
  %4454 = vmatprep.subr.bf16.mxu0 %v710
  %4455 = vmatpush1.bf16.msra.mxu0 %v709
  %4456 = vmatprep.subr.bf16.mxu0 %v714
  %4457 = vmatpush1.bf16.msra.mxu0 %v713
  %4458 = vmatprep.subr.bf16.mxu0 %v718
  %4459 = vmatpush1.bf16.msra.mxu0 %v717
  %4460 = vmatprep.subr.bf16.mxu0 %v722
  %4461 = vmatpush1.bf16.msra.mxu0 %v721
  %4462 = vmatprep.subr.bf16.mxu0 %v726
  %4463 = vmatpush1.bf16.msra.mxu0 %v725
  %4464 = vmatprep.subr.bf16.mxu0 %v730
  %4465 = vmatpush1.bf16.msra.mxu0 %v729
  %4466 = vmatprep.subr.bf16.mxu0 0
  %4467 = vmatpush1.bf16.msra.mxu0 0
  %4468 = vmatprep.subr.bf16.mxu0 0
  %4469 = vmatpush1.bf16.msra.mxu0 0
  %4470 = vmatprep.subr.bf16.mxu0 0
  %4471 = vmatpush1.bf16.msra.mxu0 0
  %4472 = vmatprep.subr.bf16.mxu0 0
  %4473 = vmatpush1.bf16.msra.mxu0 0
  %4474 = vmatprep.subr.bf16.mxu0 0
  %4475 = vmatpush1.bf16.msra.mxu0 0
  %4476 = vmatprep.subr.bf16.mxu0 0
  %4477 = vmatpush1.bf16.msra.mxu0 0
  %4478 = vmatprep.subr.bf16.mxu0 0
  %4479 = vmatpush1.bf16.msra.mxu0 0
  %4480 = vmatprep.subr.bf16.mxu0 0
  %4481 = vmatpush1.bf16.msra.mxu0 0
  %4482 = vmatprep.mubr.bf16.mxu0 0
  %4483 = vmatmul.mubr.bf16.gmra.mrb[0].mxu0 %v4449
  %v4484 = vpop.f32.mrb[0].mxu0
  %v4485 = vadd.f32 %v527, %v4484
  %v4486 = vpop.f32.mrb[0].mxu0
  %v4487 = vadd.f32 %v531, %v4486
  %v4488 = vpop.f32.mrb[0].mxu0
  %v4489 = vpop.f32.mrb[0].mxu0
  %4490 = vdwg.mxu0
  %4491 = vmatprep.subr.bf16.mxu0 %v704
  %4492 = vmatpush1.bf16.msra.mxu0 %v703
  %4493 = vmatprep.subr.bf16.mxu0 %v708
  %4494 = vmatpush1.bf16.msra.mxu0 %v707
  %4495 = vmatprep.subr.bf16.mxu0 %v712
  %4496 = vmatpush1.bf16.msra.mxu0 %v711
  %4497 = vmatprep.subr.bf16.mxu0 %v716
  %4498 = vmatpush1.bf16.msra.mxu0 %v715
  %4499 = vmatprep.subr.bf16.mxu0 %v720
  %4500 = vmatpush1.bf16.msra.mxu0 %v719
  %4501 = vmatprep.subr.bf16.mxu0 %v724
  %4502 = vmatpush1.bf16.msra.mxu0 %v723
  %4503 = vmatprep.subr.bf16.mxu0 %v728
  %4504 = vmatpush1.bf16.msra.mxu0 %v727
  %4505 = vmatprep.subr.bf16.mxu0 %v732
  %4506 = vmatpush1.bf16.msra.mxu0 %v731
  %4507 = vmatprep.subr.bf16.mxu0 0
  %4508 = vmatpush1.bf16.msra.mxu0 0
  %4509 = vmatprep.subr.bf16.mxu0 0
  %4510 = vmatpush1.bf16.msra.mxu0 0
  %4511 = vmatprep.subr.bf16.mxu0 0
  %4512 = vmatpush1.bf16.msra.mxu0 0
  %4513 = vmatprep.subr.bf16.mxu0 0
  %4514 = vmatpush1.bf16.msra.mxu0 0
  %4515 = vmatprep.subr.bf16.mxu0 0
  %4516 = vmatpush1.bf16.msra.mxu0 0
  %4517 = vmatprep.subr.bf16.mxu0 0
  %4518 = vmatpush1.bf16.msra.mxu0 0
  %4519 = vmatprep.subr.bf16.mxu0 0
  %4520 = vmatpush1.bf16.msra.mxu0 0
  %4521 = vmatprep.subr.bf16.mxu0 0
  %4522 = vmatpush1.bf16.msra.mxu0 0
  %4523 = vmatprep.mubr.bf16.mxu0 0
  %4524 = vmatmul.mubr.bf16.gmra.mrb[0].mxu0 %v4449
  %v4525 = vpop.f32.mrb[0].mxu0
  %v4526 = vadd.f32 %v535, %v4525
  %v4527 = vpop.f32.mrb[0].mxu0
  %v4528 = vadd.f32 %v539, %v4527
  %v4529 = vpop.f32.mrb[0].mxu0
  %v4530 = vpop.f32.mrb[0].mxu0
  %4531 = vdwg.mxu0
  %v4532 = vpack.c.bf16 %v4334, %v4334
  %4533 = vmatprep.subr.bf16.mxu0 %v1390
  %4534 = vmatpush1.bf16.msra.mxu0 %v1389
  %4535 = vmatprep.subr.bf16.mxu0 %v1394
  %4536 = vmatpush1.bf16.msra.mxu0 %v1393
  %4537 = vmatprep.subr.bf16.mxu0 %v1398
  %4538 = vmatpush1.bf16.msra.mxu0 %v1397
  %4539 = vmatprep.subr.bf16.mxu0 %v1402
  %4540 = vmatpush1.bf16.msra.mxu0 %v1401
  %4541 = vmatprep.subr.bf16.mxu0 %v1406
  %4542 = vmatpush1.bf16.msra.mxu0 %v1405
  %4543 = vmatprep.subr.bf16.mxu0 %v1410
  %4544 = vmatpush1.bf16.msra.mxu0 %v1409
  %4545 = vmatprep.subr.bf16.mxu0 %v1414
  %4546 = vmatpush1.bf16.msra.mxu0 %v1413
  %4547 = vmatprep.subr.bf16.mxu0 %v1418
  %4548 = vmatpush1.bf16.msra.mxu0 %v1417
  %4549 = vmatprep.subr.bf16.mxu0 0
  %4550 = vmatpush1.bf16.msra.mxu0 0
  %4551 = vmatprep.subr.bf16.mxu0 0
  %4552 = vmatpush1.bf16.msra.mxu0 0
  %4553 = vmatprep.subr.bf16.mxu0 0
  %4554 = vmatpush1.bf16.msra.mxu0 0
  %4555 = vmatprep.subr.bf16.mxu0 0
  %4556 = vmatpush1.bf16.msra.mxu0 0
  %4557 = vmatprep.subr.bf16.mxu0 0
  %4558 = vmatpush1.bf16.msra.mxu0 0
  %4559 = vmatprep.subr.bf16.mxu0 0
  %4560 = vmatpush1.bf16.msra.mxu0 0
  %4561 = vmatprep.subr.bf16.mxu0 0
  %4562 = vmatpush1.bf16.msra.mxu0 0
  %4563 = vmatprep.subr.bf16.mxu0 0
  %4564 = vmatpush1.bf16.msra.mxu0 0
  %4565 = vmatprep.mubr.bf16.mxu0 0
  %4566 = vmatmul.mubr.bf16.gmra.mrb[0].mxu0 %v4532
  %v4567 = vpop.f32.mrb[0].mxu0
  %v4568 = vadd.f32 0.0, %v4567
  %v4569 = vpop.f32.mrb[0].mxu0
  %v4570 = vadd.f32 0.0, %v4569
  %v4571 = vpop.f32.mrb[0].mxu0
  %v4572 = vpop.f32.mrb[0].mxu0
  %4573 = vdwg.mxu0
  %4574 = vmatprep.subr.bf16.mxu0 %v1392
  %4575 = vmatpush1.bf16.msra.mxu0 %v1391
  %4576 = vmatprep.subr.bf16.mxu0 %v1396
  %4577 = vmatpush1.bf16.msra.mxu0 %v1395
  %4578 = vmatprep.subr.bf16.mxu0 %v1400
  %4579 = vmatpush1.bf16.msra.mxu0 %v1399
  %4580 = vmatprep.subr.bf16.mxu0 %v1404
  %4581 = vmatpush1.bf16.msra.mxu0 %v1403
  %4582 = vmatprep.subr.bf16.mxu0 %v1408
  %4583 = vmatpush1.bf16.msra.mxu0 %v1407
  %4584 = vmatprep.subr.bf16.mxu0 %v1412
  %4585 = vmatpush1.bf16.msra.mxu0 %v1411
  %4586 = vmatprep.subr.bf16.mxu0 %v1416
  %4587 = vmatpush1.bf16.msra.mxu0 %v1415
  %4588 = vmatprep.subr.bf16.mxu0 %v1420
  %4589 = vmatpush1.bf16.msra.mxu0 %v1419
  %4590 = vmatprep.subr.bf16.mxu0 0
  %4591 = vmatpush1.bf16.msra.mxu0 0
  %4592 = vmatprep.subr.bf16.mxu0 0
  %4593 = vmatpush1.bf16.msra.mxu0 0
  %4594 = vmatprep.subr.bf16.mxu0 0
  %4595 = vmatpush1.bf16.msra.mxu0 0
  %4596 = vmatprep.subr.bf16.mxu0 0
  %4597 = vmatpush1.bf16.msra.mxu0 0
  %4598 = vmatprep.subr.bf16.mxu0 0
  %4599 = vmatpush1.bf16.msra.mxu0 0
  %4600 = vmatprep.subr.bf16.mxu0 0
  %4601 = vmatpush1.bf16.msra.mxu0 0
  %4602 = vmatprep.subr.bf16.mxu0 0
  %4603 = vmatpush1.bf16.msra.mxu0 0
  %4604 = vmatprep.subr.bf16.mxu0 0
  %4605 = vmatpush1.bf16.msra.mxu0 0
  %4606 = vmatprep.mubr.bf16.mxu0 0
  %4607 = vmatmul.mubr.bf16.gmra.mrb[0].mxu0 %v4532
  %v4608 = vpop.f32.mrb[0].mxu0
  %v4609 = vadd.f32 0.0, %v4608
  %v4610 = vpop.f32.mrb[0].mxu0
  %v4611 = vadd.f32 0.0, %v4610
  %v4612 = vpop.f32.mrb[0].mxu0
  %v4613 = vpop.f32.mrb[0].mxu0
  %4614 = vdwg.mxu0
  %v4615 = vadd.f32 %v4485, %v4568
  %v4616 = vadd.f32 %v4487, %v4570
  %v4617 = vadd.f32 %v4526, %v4609
  %v4618 = vadd.f32 %v4528, %v4611
  %v4619 = vxor.u32 %v4615, 2147483648
  %v4620 = vxor.u32 %v4616, 2147483648
  %v4621 = vxor.u32 %v4617, 2147483648
  %v4622 = vmul.f32 %v4619, 1.442695
  %v4623 = vpow.pop %v4622
  %v4624 = vmul.f32 %v4620, 1.442695
  %v4625 = vpow.pop %v4624
  %v4626 = vmul.f32 %v4621, 1.442695
  %v4627 = vpow.pop %v4626
  %v4628 = vadd.f32 %v4623, 1.0
  %v4629 = vadd.f32 %v4625, 1.0
  %v4630 = vadd.f32 %v4627, 1.0
  %v4631 = vrcp.pop %v4628
  %v4632 = vmul.f32 1.0, %v4631
  %v4633 = vrcp.pop %v4629
  %v4634 = vmul.f32 1.0, %v4633
  %v4635 = vrcp.pop %v4630
  %v4636 = vmul.f32 1.0, %v4635
  %v4637 = vtanh.pop %v4618
  %v4638 = vmul.f32 %v4634, %v4332
  %v4639 = vmul.f32 %v4632, %v4637
  %v4640 = vadd.f32 %v4638, %v4639
  %v4641 = vtanh.pop %v4640
  %v4642 = vmul.f32 %v4636, %v4641
  %v4643 = vld [vmem:[#allocation2 + $0x180] sm:$0xff]
  %v4644 = vld [vmem:[#allocation2 + $0x188] sm:$0xff]
  %v4645 = vld [vmem:[#allocation2 + $0x190] sm:$0xff]
  %v4646 = vld [vmem:[#allocation2 + $0x198] sm:$0xff]
  %4647 = vmatprep.subr.bf16.mxu0 %v1004
  %4648 = vmatpush1.bf16.msra.mxu0 %v1003
  %4649 = vmatprep.subr.bf16.mxu0 %v1008
  %4650 = vmatpush1.bf16.msra.mxu0 %v1007
  %4651 = vmatprep.subr.bf16.mxu0 %v1012
  %4652 = vmatpush1.bf16.msra.mxu0 %v1011
  %4653 = vmatprep.subr.bf16.mxu0 %v1016
  %4654 = vmatpush1.bf16.msra.mxu0 %v1015
  %4655 = vmatprep.subr.bf16.mxu0 %v1020
  %4656 = vmatpush1.bf16.msra.mxu0 %v1019
  %4657 = vmatprep.subr.bf16.mxu0 %v1024
  %4658 = vmatpush1.bf16.msra.mxu0 %v1023
  %4659 = vmatprep.subr.bf16.mxu0 %v1028
  %4660 = vmatpush1.bf16.msra.mxu0 %v1027
  %4661 = vmatprep.subr.bf16.mxu0 %v1032
  %4662 = vmatpush1.bf16.msra.mxu0 %v1031
  %4663 = vmatprep.subr.bf16.mxu0 0
  %4664 = vmatpush1.bf16.msra.mxu0 0
  %4665 = vmatprep.subr.bf16.mxu0 0
  %4666 = vmatpush1.bf16.msra.mxu0 0
  %4667 = vmatprep.subr.bf16.mxu0 0
  %4668 = vmatpush1.bf16.msra.mxu0 0
  %4669 = vmatprep.subr.bf16.mxu0 0
  %4670 = vmatpush1.bf16.msra.mxu0 0
  %4671 = vmatprep.subr.bf16.mxu0 0
  %4672 = vmatpush1.bf16.msra.mxu0 0
  %4673 = vmatprep.subr.bf16.mxu0 0
  %4674 = vmatpush1.bf16.msra.mxu0 0
  %4675 = vmatprep.subr.bf16.mxu0 0
  %4676 = vmatpush1.bf16.msra.mxu0 0
  %4677 = vmatprep.subr.bf16.mxu0 0
  %4678 = vmatpush1.bf16.msra.mxu0 0
  %4679 = vmatprep.mubr.bf16.mxu0 0
  %4680 = vmatmul.mubr.bf16.gmra.mrb[0].mxu0 %v4449
  %v4681 = vpop.f32.mrb[0].mxu0
  %v4682 = vadd.f32 0.0, %v4681
  %v4683 = vpop.f32.mrb[0].mxu0
  %v4684 = vadd.f32 0.0, %v4683
  %v4685 = vpop.f32.mrb[0].mxu0
  %v4686 = vpop.f32.mrb[0].mxu0
  %4687 = vdwg.mxu0
  %4688 = vmatprep.subr.bf16.mxu0 %v1006
  %4689 = vmatpush1.bf16.msra.mxu0 %v1005
  %4690 = vmatprep.subr.bf16.mxu0 %v1010
  %4691 = vmatpush1.bf16.msra.mxu0 %v1009
  %4692 = vmatprep.subr.bf16.mxu0 %v1014
  %4693 = vmatpush1.bf16.msra.mxu0 %v1013
  %4694 = vmatprep.subr.bf16.mxu0 %v1018
  %4695 = vmatpush1.bf16.msra.mxu0 %v1017
  %4696 = vmatprep.subr.bf16.mxu0 %v1022
  %4697 = vmatpush1.bf16.msra.mxu0 %v1021
  %4698 = vmatprep.subr.bf16.mxu0 %v1026
  %4699 = vmatpush1.bf16.msra.mxu0 %v1025
  %4700 = vmatprep.subr.bf16.mxu0 %v1030
  %4701 = vmatpush1.bf16.msra.mxu0 %v1029
  %4702 = vmatprep.subr.bf16.mxu0 %v1034
  %4703 = vmatpush1.bf16.msra.mxu0 %v1033
  %4704 = vmatprep.subr.bf16.mxu0 0
  %4705 = vmatpush1.bf16.msra.mxu0 0
  %4706 = vmatprep.subr.bf16.mxu0 0
  %4707 = vmatpush1.bf16.msra.mxu0 0
  %4708 = vmatprep.subr.bf16.mxu0 0
  %4709 = vmatpush1.bf16.msra.mxu0 0
  %4710 = vmatprep.subr.bf16.mxu0 0
  %4711 = vmatpush1.bf16.msra.mxu0 0
  %4712 = vmatprep.subr.bf16.mxu0 0
  %4713 = vmatpush1.bf16.msra.mxu0 0
  %4714 = vmatprep.subr.bf16.mxu0 0
  %4715 = vmatpush1.bf16.msra.mxu0 0
  %4716 = vmatprep.subr.bf16.mxu0 0
  %4717 = vmatpush1.bf16.msra.mxu0 0
  %4718 = vmatprep.subr.bf16.mxu0 0
  %4719 = vmatpush1.bf16.msra.mxu0 0
  %4720 = vmatprep.mubr.bf16.mxu0 0
  %4721 = vmatmul.mubr.bf16.gmra.mrb[0].mxu0 %v4449
  %v4722 = vpop.f32.mrb[0].mxu0
  %v4723 = vadd.f32 0.0, %v4722
  %v4724 = vpop.f32.mrb[0].mxu0
  %v4725 = vadd.f32 0.0, %v4724
  %v4726 = vpop.f32.mrb[0].mxu0
  %v4727 = vpop.f32.mrb[0].mxu0
  %4728 = vdwg.mxu0
  %v4729 = vadd.f32 %v4643, %v4682
  %v4730 = vadd.f32 %v4644, %v4684
  %v4731 = vadd.f32 %v4645, %v4723
  %v4732 = vadd.f32 %v4646, %v4725
  %v4733 = vxor.u32 %v4729, 2147483648
  %v4734 = vxor.u32 %v4730, 2147483648
  %v4735 = vxor.u32 %v4731, 2147483648
  %v4736 = vmul.f32 %v4733, 1.442695
  %v4737 = vpow.pop %v4736
  %v4738 = vmul.f32 %v4734, 1.442695
  %v4739 = vpow.pop %v4738
  %v4740 = vmul.f32 %v4735, 1.442695
  %v4741 = vpow.pop %v4740
  %v4742 = vadd.f32 %v4737, 1.0
  %v4743 = vadd.f32 %v4739, 1.0
  %v4744 = vadd.f32 %v4741, 1.0
  %v4745 = vrcp.pop %v4742
  %v4746 = vmul.f32 1.0, %v4745
  %v4747 = vrcp.pop %v4743
  %v4748 = vmul.f32 1.0, %v4747
  %v4749 = vrcp.pop %v4744
  %v4750 = vmul.f32 1.0, %v4749
  %v4751 = vtanh.pop %v4732
  %v4752 = vmul.f32 %v4748, %v4446
  %v4753 = vmul.f32 %v4746, %v4751
  %v4754 = vadd.f32 %v4752, %v4753
  %v4755 = vtanh.pop %v4754
  %v4756 = vmul.f32 %v4750, %v4755
  %v4757 = vpack.c.bf16 %v4756, %v4756
  %4758 = vmatprep.subr.bf16.mxu0 %v702
  %4759 = vmatpush1.bf16.msra.mxu0 %v701
  %4760 = vmatprep.subr.bf16.mxu0 %v706
  %4761 = vmatpush1.bf16.msra.mxu0 %v705
  %4762 = vmatprep.subr.bf16.mxu0 %v710
  %4763 = vmatpush1.bf16.msra.mxu0 %v709
  %4764 = vmatprep.subr.bf16.mxu0 %v714
  %4765 = vmatpush1.bf16.msra.mxu0 %v713
  %4766 = vmatprep.subr.bf16.mxu0 %v718
  %4767 = vmatpush1.bf16.msra.mxu0 %v717
  %4768 = vmatprep.subr.bf16.mxu0 %v722
  %4769 = vmatpush1.bf16.msra.mxu0 %v721
  %4770 = vmatprep.subr.bf16.mxu0 %v726
  %4771 = vmatpush1.bf16.msra.mxu0 %v725
  %4772 = vmatprep.subr.bf16.mxu0 %v730
  %4773 = vmatpush1.bf16.msra.mxu0 %v729
  %4774 = vmatprep.subr.bf16.mxu0 0
  %4775 = vmatpush1.bf16.msra.mxu0 0
  %4776 = vmatprep.subr.bf16.mxu0 0
  %4777 = vmatpush1.bf16.msra.mxu0 0
  %4778 = vmatprep.subr.bf16.mxu0 0
  %4779 = vmatpush1.bf16.msra.mxu0 0
  %4780 = vmatprep.subr.bf16.mxu0 0
  %4781 = vmatpush1.bf16.msra.mxu0 0
  %4782 = vmatprep.subr.bf16.mxu0 0
  %4783 = vmatpush1.bf16.msra.mxu0 0
  %4784 = vmatprep.subr.bf16.mxu0 0
  %4785 = vmatpush1.bf16.msra.mxu0 0
  %4786 = vmatprep.subr.bf16.mxu0 0
  %4787 = vmatpush1.bf16.msra.mxu0 0
  %4788 = vmatprep.subr.bf16.mxu0 0
  %4789 = vmatpush1.bf16.msra.mxu0 0
  %4790 = vmatprep.mubr.bf16.mxu0 0
  %4791 = vmatmul.mubr.bf16.gmra.mrb[0].mxu0 %v4757
  %v4792 = vpop.f32.mrb[0].mxu0
  %v4793 = vadd.f32 %v527, %v4792
  %v4794 = vpop.f32.mrb[0].mxu0
  %v4795 = vadd.f32 %v531, %v4794
  %v4796 = vpop.f32.mrb[0].mxu0
  %v4797 = vpop.f32.mrb[0].mxu0
  %4798 = vdwg.mxu0
  %4799 = vmatprep.subr.bf16.mxu0 %v704
  %4800 = vmatpush1.bf16.msra.mxu0 %v703
  %4801 = vmatprep.subr.bf16.mxu0 %v708
  %4802 = vmatpush1.bf16.msra.mxu0 %v707
  %4803 = vmatprep.subr.bf16.mxu0 %v712
  %4804 = vmatpush1.bf16.msra.mxu0 %v711
  %4805 = vmatprep.subr.bf16.mxu0 %v716
  %4806 = vmatpush1.bf16.msra.mxu0 %v715
  %4807 = vmatprep.subr.bf16.mxu0 %v720
  %4808 = vmatpush1.bf16.msra.mxu0 %v719
  %4809 = vmatprep.subr.bf16.mxu0 %v724
  %4810 = vmatpush1.bf16.msra.mxu0 %v723
  %4811 = vmatprep.subr.bf16.mxu0 %v728
  %4812 = vmatpush1.bf16.msra.mxu0 %v727
  %4813 = vmatprep.subr.bf16.mxu0 %v732
  %4814 = vmatpush1.bf16.msra.mxu0 %v731
  %4815 = vmatprep.subr.bf16.mxu0 0
  %4816 = vmatpush1.bf16.msra.mxu0 0
  %4817 = vmatprep.subr.bf16.mxu0 0
  %4818 = vmatpush1.bf16.msra.mxu0 0
  %4819 = vmatprep.subr.bf16.mxu0 0
  %4820 = vmatpush1.bf16.msra.mxu0 0
  %4821 = vmatprep.subr.bf16.mxu0 0
  %4822 = vmatpush1.bf16.msra.mxu0 0
  %4823 = vmatprep.subr.bf16.mxu0 0
  %4824 = vmatpush1.bf16.msra.mxu0 0
  %4825 = vmatprep.subr.bf16.mxu0 0
  %4826 = vmatpush1.bf16.msra.mxu0 0
  %4827 = vmatprep.subr.bf16.mxu0 0
  %4828 = vmatpush1.bf16.msra.mxu0 0
  %4829 = vmatprep.subr.bf16.mxu0 0
  %4830 = vmatpush1.bf16.msra.mxu0 0
  %4831 = vmatprep.mubr.bf16.mxu0 0
  %4832 = vmatmul.mubr.bf16.gmra.mrb[0].mxu0 %v4757
  %v4833 = vpop.f32.mrb[0].mxu0
  %v4834 = vadd.f32 %v535, %v4833
  %v4835 = vpop.f32.mrb[0].mxu0
  %v4836 = vadd.f32 %v539, %v4835
  %v4837 = vpop.f32.mrb[0].mxu0
  %v4838 = vpop.f32.mrb[0].mxu0
  %4839 = vdwg.mxu0
  %v4840 = vpack.c.bf16 %v4642, %v4642
  %4841 = vmatprep.subr.bf16.mxu0 %v1390
  %4842 = vmatpush1.bf16.msra.mxu0 %v1389
  %4843 = vmatprep.subr.bf16.mxu0 %v1394
  %4844 = vmatpush1.bf16.msra.mxu0 %v1393
  %4845 = vmatprep.subr.bf16.mxu0 %v1398
  %4846 = vmatpush1.bf16.msra.mxu0 %v1397
  %4847 = vmatprep.subr.bf16.mxu0 %v1402
  %4848 = vmatpush1.bf16.msra.mxu0 %v1401
  %4849 = vmatprep.subr.bf16.mxu0 %v1406
  %4850 = vmatpush1.bf16.msra.mxu0 %v1405
  %4851 = vmatprep.subr.bf16.mxu0 %v1410
  %4852 = vmatpush1.bf16.msra.mxu0 %v1409
  %4853 = vmatprep.subr.bf16.mxu0 %v1414
  %4854 = vmatpush1.bf16.msra.mxu0 %v1413
  %4855 = vmatprep.subr.bf16.mxu0 %v1418
  %4856 = vmatpush1.bf16.msra.mxu0 %v1417
  %4857 = vmatprep.subr.bf16.mxu0 0
  %4858 = vmatpush1.bf16.msra.mxu0 0
  %4859 = vmatprep.subr.bf16.mxu0 0
  %4860 = vmatpush1.bf16.msra.mxu0 0
  %4861 = vmatprep.subr.bf16.mxu0 0
  %4862 = vmatpush1.bf16.msra.mxu0 0
  %4863 = vmatprep.subr.bf16.mxu0 0
  %4864 = vmatpush1.bf16.msra.mxu0 0
  %4865 = vmatprep.subr.bf16.mxu0 0
  %4866 = vmatpush1.bf16.msra.mxu0 0
  %4867 = vmatprep.subr.bf16.mxu0 0
  %4868 = vmatpush1.bf16.msra.mxu0 0
  %4869 = vmatprep.subr.bf16.mxu0 0
  %4870 = vmatpush1.bf16.msra.mxu0 0
  %4871 = vmatprep.subr.bf16.mxu0 0
  %4872 = vmatpush1.bf16.msra.mxu0 0
  %4873 = vmatprep.mubr.bf16.mxu0 0
  %4874 = vmatmul.mubr.bf16.gmra.mrb[0].mxu0 %v4840
  %v4875 = vpop.f32.mrb[0].mxu0
  %v4876 = vadd.f32 0.0, %v4875
  %v4877 = vpop.f32.mrb[0].mxu0
  %v4878 = vadd.f32 0.0, %v4877
  %v4879 = vpop.f32.mrb[0].mxu0
  %v4880 = vpop.f32.mrb[0].mxu0
  %4881 = vdwg.mxu0
  %4882 = vmatprep.subr.bf16.mxu0 %v1392
  %4883 = vmatpush1.bf16.msra.mxu0 %v1391
  %4884 = vmatprep.subr.bf16.mxu0 %v1396
  %4885 = vmatpush1.bf16.msra.mxu0 %v1395
  %4886 = vmatprep.subr.bf16.mxu0 %v1400
  %4887 = vmatpush1.bf16.msra.mxu0 %v1399
  %4888 = vmatprep.subr.bf16.mxu0 %v1404
  %4889 = vmatpush1.bf16.msra.mxu0 %v1403
  %4890 = vmatprep.subr.bf16.mxu0 %v1408
  %4891 = vmatpush1.bf16.msra.mxu0 %v1407
  %4892 = vmatprep.subr.bf16.mxu0 %v1412
  %4893 = vmatpush1.bf16.msra.mxu0 %v1411
  %4894 = vmatprep.subr.bf16.mxu0 %v1416
  %4895 = vmatpush1.bf16.msra.mxu0 %v1415
  %4896 = vmatprep.subr.bf16.mxu0 %v1420
  %4897 = vmatpush1.bf16.msra.mxu0 %v1419
  %4898 = vmatprep.subr.bf16.mxu0 0
  %4899 = vmatpush1.bf16.msra.mxu0 0
  %4900 = vmatprep.subr.bf16.mxu0 0
  %4901 = vmatpush1.bf16.msra.mxu0 0
  %4902 = vmatprep.subr.bf16.mxu0 0
  %4903 = vmatpush1.bf16.msra.mxu0 0
  %4904 = vmatprep.subr.bf16.mxu0 0
  %4905 = vmatpush1.bf16.msra.mxu0 0
  %4906 = vmatprep.subr.bf16.mxu0 0
  %4907 = vmatpush1.bf16.msra.mxu0 0
  %4908 = vmatprep.subr.bf16.mxu0 0
  %4909 = vmatpush1.bf16.msra.mxu0 0
  %4910 = vmatprep.subr.bf16.mxu0 0
  %4911 = vmatpush1.bf16.msra.mxu0 0
  %4912 = vmatprep.subr.bf16.mxu0 0
  %4913 = vmatpush1.bf16.msra.mxu0 0
  %4914 = vmatprep.mubr.bf16.mxu0 0
  %4915 = vmatmul.mubr.bf16.gmra.mrb[0].mxu0 %v4840
  %v4916 = vpop.f32.mrb[0].mxu0
  %v4917 = vadd.f32 0.0, %v4916
  %v4918 = vpop.f32.mrb[0].mxu0
  %v4919 = vadd.f32 0.0, %v4918
  %v4920 = vpop.f32.mrb[0].mxu0
  %v4921 = vpop.f32.mrb[0].mxu0
  %4922 = vdwg.mxu0
  %v4923 = vadd.f32 %v4793, %v4876
  %v4924 = vadd.f32 %v4795, %v4878
  %v4925 = vadd.f32 %v4834, %v4917
  %v4926 = vadd.f32 %v4836, %v4919
  %v4927 = vxor.u32 %v4923, 2147483648
  %v4928 = vxor.u32 %v4924, 2147483648
  %v4929 = vxor.u32 %v4925, 2147483648
  %v4930 = vmul.f32 %v4927, 1.442695
  %v4931 = vpow.pop %v4930
  %v4932 = vmul.f32 %v4928, 1.442695
  %v4933 = vpow.pop %v4932
  %v4934 = vmul.f32 %v4929, 1.442695
  %v4935 = vpow.pop %v4934
  %v4936 = vadd.f32 %v4931, 1.0
  %v4937 = vadd.f32 %v4933, 1.0
  %v4938 = vadd.f32 %v4935, 1.0
  %v4939 = vrcp.pop %v4936
  %v4940 = vmul.f32 1.0, %v4939
  %v4941 = vrcp.pop %v4937
  %v4942 = vmul.f32 1.0, %v4941
  %v4943 = vrcp.pop %v4938
  %v4944 = vmul.f32 1.0, %v4943
  %v4945 = vtanh.pop %v4926
  %v4946 = vmul.f32 %v4942, %v4640
  %v4947 = vmul.f32 %v4940, %v4945
  %v4948 = vadd.f32 %v4946, %v4947
  %v4949 = vtanh.pop %v4948
  %v4950 = vmul.f32 %v4944, %v4949
  %v4951 = vld [vmem:[#allocation2 + $0x1a0] sm:$0xff]
  %v4952 = vld [vmem:[#allocation2 + $0x1a8] sm:$0xff]
  %v4953 = vld [vmem:[#allocation2 + $0x1b0] sm:$0xff]
  %v4954 = vld [vmem:[#allocation2 + $0x1b8] sm:$0xff]
  %4955 = vmatprep.subr.bf16.mxu0 %v1004
  %4956 = vmatpush1.bf16.msra.mxu0 %v1003
  %4957 = vmatprep.subr.bf16.mxu0 %v1008
  %4958 = vmatpush1.bf16.msra.mxu0 %v1007
  %4959 = vmatprep.subr.bf16.mxu0 %v1012
  %4960 = vmatpush1.bf16.msra.mxu0 %v1011
  %4961 = vmatprep.subr.bf16.mxu0 %v1016
  %4962 = vmatpush1.bf16.msra.mxu0 %v1015
  %4963 = vmatprep.subr.bf16.mxu0 %v1020
  %4964 = vmatpush1.bf16.msra.mxu0 %v1019
  %4965 = vmatprep.subr.bf16.mxu0 %v1024
  %4966 = vmatpush1.bf16.msra.mxu0 %v1023
  %4967 = vmatprep.subr.bf16.mxu0 %v1028
  %4968 = vmatpush1.bf16.msra.mxu0 %v1027
  %4969 = vmatprep.subr.bf16.mxu0 %v1032
  %4970 = vmatpush1.bf16.msra.mxu0 %v1031
  %4971 = vmatprep.subr.bf16.mxu0 0
  %4972 = vmatpush1.bf16.msra.mxu0 0
  %4973 = vmatprep.subr.bf16.mxu0 0
  %4974 = vmatpush1.bf16.msra.mxu0 0
  %4975 = vmatprep.subr.bf16.mxu0 0
  %4976 = vmatpush1.bf16.msra.mxu0 0
  %4977 = vmatprep.subr.bf16.mxu0 0
  %4978 = vmatpush1.bf16.msra.mxu0 0
  %4979 = vmatprep.subr.bf16.mxu0 0
  %4980 = vmatpush1.bf16.msra.mxu0 0
  %4981 = vmatprep.subr.bf16.mxu0 0
  %4982 = vmatpush1.bf16.msra.mxu0 0
  %4983 = vmatprep.subr.bf16.mxu0 0
  %4984 = vmatpush1.bf16.msra.mxu0 0
  %4985 = vmatprep.subr.bf16.mxu0 0
  %4986 = vmatpush1.bf16.msra.mxu0 0
  %4987 = vmatprep.mubr.bf16.mxu0 0
  %4988 = vmatmul.mubr.bf16.gmra.mrb[0].mxu0 %v4757
  %v4989 = vpop.f32.mrb[0].mxu0
  %v4990 = vadd.f32 0.0, %v4989
  %v4991 = vpop.f32.mrb[0].mxu0
  %v4992 = vadd.f32 0.0, %v4991
  %v4993 = vpop.f32.mrb[0].mxu0
  %v4994 = vpop.f32.mrb[0].mxu0
  %4995 = vdwg.mxu0
  %4996 = vmatprep.subr.bf16.mxu0 %v1006
  %4997 = vmatpush1.bf16.msra.mxu0 %v1005
  %4998 = vmatprep.subr.bf16.mxu0 %v1010
  %4999 = vmatpush1.bf16.msra.mxu0 %v1009
  %5000 = vmatprep.subr.bf16.mxu0 %v1014
  %5001 = vmatpush1.bf16.msra.mxu0 %v1013
  %5002 = vmatprep.subr.bf16.mxu0 %v1018
  %5003 = vmatpush1.bf16.msra.mxu0 %v1017
  %5004 = vmatprep.subr.bf16.mxu0 %v1022
  %5005 = vmatpush1.bf16.msra.mxu0 %v1021
  %5006 = vmatprep.subr.bf16.mxu0 %v1026
  %5007 = vmatpush1.bf16.msra.mxu0 %v1025
  %5008 = vmatprep.subr.bf16.mxu0 %v1030
  %5009 = vmatpush1.bf16.msra.mxu0 %v1029
  %5010 = vmatprep.subr.bf16.mxu0 %v1034
  %5011 = vmatpush1.bf16.msra.mxu0 %v1033
  %5012 = vmatprep.subr.bf16.mxu0 0
  %5013 = vmatpush1.bf16.msra.mxu0 0
  %5014 = vmatprep.subr.bf16.mxu0 0
  %5015 = vmatpush1.bf16.msra.mxu0 0
  %5016 = vmatprep.subr.bf16.mxu0 0
  %5017 = vmatpush1.bf16.msra.mxu0 0
  %5018 = vmatprep.subr.bf16.mxu0 0
  %5019 = vmatpush1.bf16.msra.mxu0 0
  %5020 = vmatprep.subr.bf16.mxu0 0
  %5021 = vmatpush1.bf16.msra.mxu0 0
  %5022 = vmatprep.subr.bf16.mxu0 0
  %5023 = vmatpush1.bf16.msra.mxu0 0
  %5024 = vmatprep.subr.bf16.mxu0 0
  %5025 = vmatpush1.bf16.msra.mxu0 0
  %5026 = vmatprep.subr.bf16.mxu0 0
  %5027 = vmatpush1.bf16.msra.mxu0 0
  %5028 = vmatprep.mubr.bf16.mxu0 0
  %5029 = vmatmul.mubr.bf16.gmra.mrb[0].mxu0 %v4757
  %v5030 = vpop.f32.mrb[0].mxu0
  %v5031 = vadd.f32 0.0, %v5030
  %v5032 = vpop.f32.mrb[0].mxu0
  %v5033 = vadd.f32 0.0, %v5032
  %v5034 = vpop.f32.mrb[0].mxu0
  %v5035 = vpop.f32.mrb[0].mxu0
  %5036 = vdwg.mxu0
  %v5037 = vadd.f32 %v4951, %v4990
  %v5038 = vadd.f32 %v4952, %v4992
  %v5039 = vadd.f32 %v4953, %v5031
  %v5040 = vadd.f32 %v4954, %v5033
  %v5041 = vxor.u32 %v5037, 2147483648
  %v5042 = vxor.u32 %v5038, 2147483648
  %v5043 = vxor.u32 %v5039, 2147483648
  %v5044 = vmul.f32 %v5041, 1.442695
  %v5045 = vpow.pop %v5044
  %v5046 = vmul.f32 %v5042, 1.442695
  %v5047 = vpow.pop %v5046
  %v5048 = vmul.f32 %v5043, 1.442695
  %v5049 = vpow.pop %v5048
  %v5050 = vadd.f32 %v5045, 1.0
  %v5051 = vadd.f32 %v5047, 1.0
  %v5052 = vadd.f32 %v5049, 1.0
  %v5053 = vrcp.pop %v5050
  %v5054 = vmul.f32 1.0, %v5053
  %v5055 = vrcp.pop %v5051
  %v5056 = vmul.f32 1.0, %v5055
  %v5057 = vrcp.pop %v5052
  %v5058 = vmul.f32 1.0, %v5057
  %v5059 = vtanh.pop %v5040
  %v5060 = vmul.f32 %v5056, %v4754
  %v5061 = vmul.f32 %v5054, %v5059
  %v5062 = vadd.f32 %v5060, %v5061
  %v5063 = vtanh.pop %v5062
  %v5064 = vmul.f32 %v5058, %v5063
  %v5065 = vpack.c.bf16 %v5064, %v5064
  %5066 = vmatprep.subr.bf16.mxu0 %v702
  %5067 = vmatpush1.bf16.msra.mxu0 %v701
  %5068 = vmatprep.subr.bf16.mxu0 %v706
  %5069 = vmatpush1.bf16.msra.mxu0 %v705
  %5070 = vmatprep.subr.bf16.mxu0 %v710
  %5071 = vmatpush1.bf16.msra.mxu0 %v709
  %5072 = vmatprep.subr.bf16.mxu0 %v714
  %5073 = vmatpush1.bf16.msra.mxu0 %v713
  %5074 = vmatprep.subr.bf16.mxu0 %v718
  %5075 = vmatpush1.bf16.msra.mxu0 %v717
  %5076 = vmatprep.subr.bf16.mxu0 %v722
  %5077 = vmatpush1.bf16.msra.mxu0 %v721
  %5078 = vmatprep.subr.bf16.mxu0 %v726
  %5079 = vmatpush1.bf16.msra.mxu0 %v725
  %5080 = vmatprep.subr.bf16.mxu0 %v730
  %5081 = vmatpush1.bf16.msra.mxu0 %v729
  %5082 = vmatprep.subr.bf16.mxu0 0
  %5083 = vmatpush1.bf16.msra.mxu0 0
  %5084 = vmatprep.subr.bf16.mxu0 0
  %5085 = vmatpush1.bf16.msra.mxu0 0
  %5086 = vmatprep.subr.bf16.mxu0 0
  %5087 = vmatpush1.bf16.msra.mxu0 0
  %5088 = vmatprep.subr.bf16.mxu0 0
  %5089 = vmatpush1.bf16.msra.mxu0 0
  %5090 = vmatprep.subr.bf16.mxu0 0
  %5091 = vmatpush1.bf16.msra.mxu0 0
  %5092 = vmatprep.subr.bf16.mxu0 0
  %5093 = vmatpush1.bf16.msra.mxu0 0
  %5094 = vmatprep.subr.bf16.mxu0 0
  %5095 = vmatpush1.bf16.msra.mxu0 0
  %5096 = vmatprep.subr.bf16.mxu0 0
  %5097 = vmatpush1.bf16.msra.mxu0 0
  %5098 = vmatprep.mubr.bf16.mxu0 0
  %5099 = vmatmul.mubr.bf16.gmra.mrb[0].mxu0 %v5065
  %v5100 = vpop.f32.mrb[0].mxu0
  %v5101 = vadd.f32 %v527, %v5100
  %v5102 = vpop.f32.mrb[0].mxu0
  %v5103 = vadd.f32 %v531, %v5102
  %v5104 = vpop.f32.mrb[0].mxu0
  %v5105 = vpop.f32.mrb[0].mxu0
  %5106 = vdwg.mxu0
  %5107 = vmatprep.subr.bf16.mxu0 %v704
  %5108 = vmatpush1.bf16.msra.mxu0 %v703
  %5109 = vmatprep.subr.bf16.mxu0 %v708
  %5110 = vmatpush1.bf16.msra.mxu0 %v707
  %5111 = vmatprep.subr.bf16.mxu0 %v712
  %5112 = vmatpush1.bf16.msra.mxu0 %v711
  %5113 = vmatprep.subr.bf16.mxu0 %v716
  %5114 = vmatpush1.bf16.msra.mxu0 %v715
  %5115 = vmatprep.subr.bf16.mxu0 %v720
  %5116 = vmatpush1.bf16.msra.mxu0 %v719
  %5117 = vmatprep.subr.bf16.mxu0 %v724
  %5118 = vmatpush1.bf16.msra.mxu0 %v723
  %5119 = vmatprep.subr.bf16.mxu0 %v728
  %5120 = vmatpush1.bf16.msra.mxu0 %v727
  %5121 = vmatprep.subr.bf16.mxu0 %v732
  %5122 = vmatpush1.bf16.msra.mxu0 %v731
  %5123 = vmatprep.subr.bf16.mxu0 0
  %5124 = vmatpush1.bf16.msra.mxu0 0
  %5125 = vmatprep.subr.bf16.mxu0 0
  %5126 = vmatpush1.bf16.msra.mxu0 0
  %5127 = vmatprep.subr.bf16.mxu0 0
  %5128 = vmatpush1.bf16.msra.mxu0 0
  %5129 = vmatprep.subr.bf16.mxu0 0
  %5130 = vmatpush1.bf16.msra.mxu0 0
  %5131 = vmatprep.subr.bf16.mxu0 0
  %5132 = vmatpush1.bf16.msra.mxu0 0
  %5133 = vmatprep.subr.bf16.mxu0 0
  %5134 = vmatpush1.bf16.msra.mxu0 0
  %5135 = vmatprep.subr.bf16.mxu0 0
  %5136 = vmatpush1.bf16.msra.mxu0 0
  %5137 = vmatprep.subr.bf16.mxu0 0
  %5138 = vmatpush1.bf16.msra.mxu0 0
  %5139 = vmatprep.mubr.bf16.mxu0 0
  %5140 = vmatmul.mubr.bf16.gmra.mrb[0].mxu0 %v5065
  %v5141 = vpop.f32.mrb[0].mxu0
  %v5142 = vadd.f32 %v535, %v5141
  %v5143 = vpop.f32.mrb[0].mxu0
  %v5144 = vadd.f32 %v539, %v5143
  %v5145 = vpop.f32.mrb[0].mxu0
  %v5146 = vpop.f32.mrb[0].mxu0
  %5147 = vdwg.mxu0
  %v5148 = vpack.c.bf16 %v4950, %v4950
  %5149 = vmatprep.subr.bf16.mxu0 %v1390
  %5150 = vmatpush1.bf16.msra.mxu0 %v1389
  %5151 = vmatprep.subr.bf16.mxu0 %v1394
  %5152 = vmatpush1.bf16.msra.mxu0 %v1393
  %5153 = vmatprep.subr.bf16.mxu0 %v1398
  %5154 = vmatpush1.bf16.msra.mxu0 %v1397
  %5155 = vmatprep.subr.bf16.mxu0 %v1402
  %5156 = vmatpush1.bf16.msra.mxu0 %v1401
  %5157 = vmatprep.subr.bf16.mxu0 %v1406
  %5158 = vmatpush1.bf16.msra.mxu0 %v1405
  %5159 = vmatprep.subr.bf16.mxu0 %v1410
  %5160 = vmatpush1.bf16.msra.mxu0 %v1409
  %5161 = vmatprep.subr.bf16.mxu0 %v1414
  %5162 = vmatpush1.bf16.msra.mxu0 %v1413
  %5163 = vmatprep.subr.bf16.mxu0 %v1418
  %5164 = vmatpush1.bf16.msra.mxu0 %v1417
  %5165 = vmatprep.subr.bf16.mxu0 0
  %5166 = vmatpush1.bf16.msra.mxu0 0
  %5167 = vmatprep.subr.bf16.mxu0 0
  %5168 = vmatpush1.bf16.msra.mxu0 0
  %5169 = vmatprep.subr.bf16.mxu0 0
  %5170 = vmatpush1.bf16.msra.mxu0 0
  %5171 = vmatprep.subr.bf16.mxu0 0
  %5172 = vmatpush1.bf16.msra.mxu0 0
  %5173 = vmatprep.subr.bf16.mxu0 0
  %5174 = vmatpush1.bf16.msra.mxu0 0
  %5175 = vmatprep.subr.bf16.mxu0 0
  %5176 = vmatpush1.bf16.msra.mxu0 0
  %5177 = vmatprep.subr.bf16.mxu0 0
  %5178 = vmatpush1.bf16.msra.mxu0 0
  %5179 = vmatprep.subr.bf16.mxu0 0
  %5180 = vmatpush1.bf16.msra.mxu0 0
  %5181 = vmatprep.mubr.bf16.mxu0 0
  %5182 = vmatmul.mubr.bf16.gmra.mrb[0].mxu0 %v5148
  %v5183 = vpop.f32.mrb[0].mxu0
  %v5184 = vadd.f32 0.0, %v5183
  %v5185 = vpop.f32.mrb[0].mxu0
  %v5186 = vadd.f32 0.0, %v5185
  %v5187 = vpop.f32.mrb[0].mxu0
  %v5188 = vpop.f32.mrb[0].mxu0
  %5189 = vdwg.mxu0
  %5190 = vmatprep.subr.bf16.mxu0 %v1392
  %5191 = vmatpush1.bf16.msra.mxu0 %v1391
  %5192 = vmatprep.subr.bf16.mxu0 %v1396
  %5193 = vmatpush1.bf16.msra.mxu0 %v1395
  %5194 = vmatprep.subr.bf16.mxu0 %v1400
  %5195 = vmatpush1.bf16.msra.mxu0 %v1399
  %5196 = vmatprep.subr.bf16.mxu0 %v1404
  %5197 = vmatpush1.bf16.msra.mxu0 %v1403
  %5198 = vmatprep.subr.bf16.mxu0 %v1408
  %5199 = vmatpush1.bf16.msra.mxu0 %v1407
  %5200 = vmatprep.subr.bf16.mxu0 %v1412
  %5201 = vmatpush1.bf16.msra.mxu0 %v1411
  %5202 = vmatprep.subr.bf16.mxu0 %v1416
  %5203 = vmatpush1.bf16.msra.mxu0 %v1415
  %5204 = vmatprep.subr.bf16.mxu0 %v1420
  %5205 = vmatpush1.bf16.msra.mxu0 %v1419
  %5206 = vmatprep.subr.bf16.mxu0 0
  %5207 = vmatpush1.bf16.msra.mxu0 0
  %5208 = vmatprep.subr.bf16.mxu0 0
  %5209 = vmatpush1.bf16.msra.mxu0 0
  %5210 = vmatprep.subr.bf16.mxu0 0
  %5211 = vmatpush1.bf16.msra.mxu0 0
  %5212 = vmatprep.subr.bf16.mxu0 0
  %5213 = vmatpush1.bf16.msra.mxu0 0
  %5214 = vmatprep.subr.bf16.mxu0 0
  %5215 = vmatpush1.bf16.msra.mxu0 0
  %5216 = vmatprep.subr.bf16.mxu0 0
  %5217 = vmatpush1.bf16.msra.mxu0 0
  %5218 = vmatprep.subr.bf16.mxu0 0
  %5219 = vmatpush1.bf16.msra.mxu0 0
  %5220 = vmatprep.subr.bf16.mxu0 0
  %5221 = vmatpush1.bf16.msra.mxu0 0
  %5222 = vmatprep.mubr.bf16.mxu0 0
  %5223 = vmatmul.mubr.bf16.gmra.mrb[0].mxu0 %v5148
  %v5224 = vpop.f32.mrb[0].mxu0
  %v5225 = vadd.f32 0.0, %v5224
  %v5226 = vpop.f32.mrb[0].mxu0
  %v5227 = vadd.f32 0.0, %v5226
  %v5228 = vpop.f32.mrb[0].mxu0
  %v5229 = vpop.f32.mrb[0].mxu0
  %5230 = vdwg.mxu0
  %v5231 = vadd.f32 %v5101, %v5184
  %v5232 = vadd.f32 %v5103, %v5186
  %v5233 = vadd.f32 %v5142, %v5225
  %v5234 = vadd.f32 %v5144, %v5227
  %v5235 = vxor.u32 %v5231, 2147483648
  %v5236 = vxor.u32 %v5232, 2147483648
  %v5237 = vxor.u32 %v5233, 2147483648
  %v5238 = vmul.f32 %v5235, 1.442695
  %v5239 = vpow.pop %v5238
  %v5240 = vmul.f32 %v5236, 1.442695
  %v5241 = vpow.pop %v5240
  %v5242 = vmul.f32 %v5237, 1.442695
  %v5243 = vpow.pop %v5242
  %v5244 = vadd.f32 %v5239, 1.0
  %v5245 = vadd.f32 %v5241, 1.0
  %v5246 = vadd.f32 %v5243, 1.0
  %v5247 = vrcp.pop %v5244
  %v5248 = vmul.f32 1.0, %v5247
  %v5249 = vrcp.pop %v5245
  %v5250 = vmul.f32 1.0, %v5249
  %v5251 = vrcp.pop %v5246
  %v5252 = vmul.f32 1.0, %v5251
  %v5253 = vtanh.pop %v5234
  %v5254 = vmul.f32 %v5250, %v4948
  %v5255 = vmul.f32 %v5248, %v5253
  %v5256 = vadd.f32 %v5254, %v5255
  %v5257 = vtanh.pop %v5256
  %v5258 = vmul.f32 %v5252, %v5257
  %v5259 = vld [vmem:[#allocation2 + $0x1c0] sm:$0xff]
  %v5260 = vld [vmem:[#allocation2 + $0x1c8] sm:$0xff]
  %v5261 = vld [vmem:[#allocation2 + $0x1d0] sm:$0xff]
  %v5262 = vld [vmem:[#allocation2 + $0x1d8] sm:$0xff]
  %5263 = vmatprep.subr.bf16.mxu0 %v1004
  %5264 = vmatpush1.bf16.msra.mxu0 %v1003
  %5265 = vmatprep.subr.bf16.mxu0 %v1008
  %5266 = vmatpush1.bf16.msra.mxu0 %v1007
  %5267 = vmatprep.subr.bf16.mxu0 %v1012
  %5268 = vmatpush1.bf16.msra.mxu0 %v1011
  %5269 = vmatprep.subr.bf16.mxu0 %v1016
  %5270 = vmatpush1.bf16.msra.mxu0 %v1015
  %5271 = vmatprep.subr.bf16.mxu0 %v1020
  %5272 = vmatpush1.bf16.msra.mxu0 %v1019
  %5273 = vmatprep.subr.bf16.mxu0 %v1024
  %5274 = vmatpush1.bf16.msra.mxu0 %v1023
  %5275 = vmatprep.subr.bf16.mxu0 %v1028
  %5276 = vmatpush1.bf16.msra.mxu0 %v1027
  %5277 = vmatprep.subr.bf16.mxu0 %v1032
  %5278 = vmatpush1.bf16.msra.mxu0 %v1031
  %5279 = vmatprep.subr.bf16.mxu0 0
  %5280 = vmatpush1.bf16.msra.mxu0 0
  %5281 = vmatprep.subr.bf16.mxu0 0
  %5282 = vmatpush1.bf16.msra.mxu0 0
  %5283 = vmatprep.subr.bf16.mxu0 0
  %5284 = vmatpush1.bf16.msra.mxu0 0
  %5285 = vmatprep.subr.bf16.mxu0 0
  %5286 = vmatpush1.bf16.msra.mxu0 0
  %5287 = vmatprep.subr.bf16.mxu0 0
  %5288 = vmatpush1.bf16.msra.mxu0 0
  %5289 = vmatprep.subr.bf16.mxu0 0
  %5290 = vmatpush1.bf16.msra.mxu0 0
  %5291 = vmatprep.subr.bf16.mxu0 0
  %5292 = vmatpush1.bf16.msra.mxu0 0
  %5293 = vmatprep.subr.bf16.mxu0 0
  %5294 = vmatpush1.bf16.msra.mxu0 0
  %5295 = vmatprep.mubr.bf16.mxu0 0
  %5296 = vmatmul.mubr.bf16.gmra.mrb[0].mxu0 %v5065
  %v5297 = vpop.f32.mrb[0].mxu0
  %v5298 = vadd.f32 0.0, %v5297
  %v5299 = vpop.f32.mrb[0].mxu0
  %v5300 = vadd.f32 0.0, %v5299
  %v5301 = vpop.f32.mrb[0].mxu0
  %v5302 = vpop.f32.mrb[0].mxu0
  %5303 = vdwg.mxu0
  %5304 = vmatprep.subr.bf16.mxu0 %v1006
  %5305 = vmatpush1.bf16.msra.mxu0 %v1005
  %5306 = vmatprep.subr.bf16.mxu0 %v1010
  %5307 = vmatpush1.bf16.msra.mxu0 %v1009
  %5308 = vmatprep.subr.bf16.mxu0 %v1014
  %5309 = vmatpush1.bf16.msra.mxu0 %v1013
  %5310 = vmatprep.subr.bf16.mxu0 %v1018
  %5311 = vmatpush1.bf16.msra.mxu0 %v1017
  %5312 = vmatprep.subr.bf16.mxu0 %v1022
  %5313 = vmatpush1.bf16.msra.mxu0 %v1021
  %5314 = vmatprep.subr.bf16.mxu0 %v1026
  %5315 = vmatpush1.bf16.msra.mxu0 %v1025
  %5316 = vmatprep.subr.bf16.mxu0 %v1030
  %5317 = vmatpush1.bf16.msra.mxu0 %v1029
  %5318 = vmatprep.subr.bf16.mxu0 %v1034
  %5319 = vmatpush1.bf16.msra.mxu0 %v1033
  %5320 = vmatprep.subr.bf16.mxu0 0
  %5321 = vmatpush1.bf16.msra.mxu0 0
  %5322 = vmatprep.subr.bf16.mxu0 0
  %5323 = vmatpush1.bf16.msra.mxu0 0
  %5324 = vmatprep.subr.bf16.mxu0 0
  %5325 = vmatpush1.bf16.msra.mxu0 0
  %5326 = vmatprep.subr.bf16.mxu0 0
  %5327 = vmatpush1.bf16.msra.mxu0 0
  %5328 = vmatprep.subr.bf16.mxu0 0
  %5329 = vmatpush1.bf16.msra.mxu0 0
  %5330 = vmatprep.subr.bf16.mxu0 0
  %5331 = vmatpush1.bf16.msra.mxu0 0
  %5332 = vmatprep.subr.bf16.mxu0 0
  %5333 = vmatpush1.bf16.msra.mxu0 0
  %5334 = vmatprep.subr.bf16.mxu0 0
  %5335 = vmatpush1.bf16.msra.mxu0 0
  %5336 = vmatprep.mubr.bf16.mxu0 0
  %5337 = vmatmul.mubr.bf16.gmra.mrb[0].mxu0 %v5065
  %v5338 = vpop.f32.mrb[0].mxu0
  %v5339 = vadd.f32 0.0, %v5338
  %v5340 = vpop.f32.mrb[0].mxu0
  %v5341 = vadd.f32 0.0, %v5340
  %v5342 = vpop.f32.mrb[0].mxu0
  %v5343 = vpop.f32.mrb[0].mxu0
  %5344 = vdwg.mxu0
  %v5345 = vadd.f32 %v5259, %v5298
  %v5346 = vadd.f32 %v5260, %v5300
  %v5347 = vadd.f32 %v5261, %v5339
  %v5348 = vadd.f32 %v5262, %v5341
  %v5349 = vxor.u32 %v5345, 2147483648
  %v5350 = vxor.u32 %v5346, 2147483648
  %v5351 = vxor.u32 %v5347, 2147483648
  %v5352 = vmul.f32 %v5349, 1.442695
  %v5353 = vpow.pop %v5352
  %v5354 = vmul.f32 %v5350, 1.442695
  %v5355 = vpow.pop %v5354
  %v5356 = vmul.f32 %v5351, 1.442695
  %v5357 = vpow.pop %v5356
  %v5358 = vadd.f32 %v5353, 1.0
  %v5359 = vadd.f32 %v5355, 1.0
  %v5360 = vadd.f32 %v5357, 1.0
  %v5361 = vrcp.pop %v5358
  %v5362 = vmul.f32 1.0, %v5361
  %v5363 = vrcp.pop %v5359
  %v5364 = vmul.f32 1.0, %v5363
  %v5365 = vrcp.pop %v5360
  %v5366 = vmul.f32 1.0, %v5365
  %v5367 = vtanh.pop %v5348
  %v5368 = vmul.f32 %v5364, %v5062
  %v5369 = vmul.f32 %v5362, %v5367
  %v5370 = vadd.f32 %v5368, %v5369
  %v5371 = vtanh.pop %v5370
  %v5372 = vmul.f32 %v5366, %v5371
  %v5373 = vpack.c.bf16 %v5372, %v5372
  %5374 = vmatprep.subr.bf16.mxu0 %v702
  %5375 = vmatpush1.bf16.msra.mxu0 %v701
  %5376 = vmatprep.subr.bf16.mxu0 %v706
  %5377 = vmatpush1.bf16.msra.mxu0 %v705
  %5378 = vmatprep.subr.bf16.mxu0 %v710
  %5379 = vmatpush1.bf16.msra.mxu0 %v709
  %5380 = vmatprep.subr.bf16.mxu0 %v714
  %5381 = vmatpush1.bf16.msra.mxu0 %v713
  %5382 = vmatprep.subr.bf16.mxu0 %v718
  %5383 = vmatpush1.bf16.msra.mxu0 %v717
  %5384 = vmatprep.subr.bf16.mxu0 %v722
  %5385 = vmatpush1.bf16.msra.mxu0 %v721
  %5386 = vmatprep.subr.bf16.mxu0 %v726
  %5387 = vmatpush1.bf16.msra.mxu0 %v725
  %5388 = vmatprep.subr.bf16.mxu0 %v730
  %5389 = vmatpush1.bf16.msra.mxu0 %v729
  %5390 = vmatprep.subr.bf16.mxu0 0
  %5391 = vmatpush1.bf16.msra.mxu0 0
  %5392 = vmatprep.subr.bf16.mxu0 0
  %5393 = vmatpush1.bf16.msra.mxu0 0
  %5394 = vmatprep.subr.bf16.mxu0 0
  %5395 = vmatpush1.bf16.msra.mxu0 0
  %5396 = vmatprep.subr.bf16.mxu0 0
  %5397 = vmatpush1.bf16.msra.mxu0 0
  %5398 = vmatprep.subr.bf16.mxu0 0
  %5399 = vmatpush1.bf16.msra.mxu0 0
  %5400 = vmatprep.subr.bf16.mxu0 0
  %5401 = vmatpush1.bf16.msra.mxu0 0
  %5402 = vmatprep.subr.bf16.mxu0 0
  %5403 = vmatpush1.bf16.msra.mxu0 0
  %5404 = vmatprep.subr.bf16.mxu0 0
  %5405 = vmatpush1.bf16.msra.mxu0 0
  %5406 = vmatprep.mubr.bf16.mxu0 0
  %5407 = vmatmul.mubr.bf16.gmra.mrb[0].mxu0 %v5373
  %v5408 = vpop.f32.mrb[0].mxu0
  %v5409 = vadd.f32 %v527, %v5408
  %v5410 = vpop.f32.mrb[0].mxu0
  %v5411 = vadd.f32 %v531, %v5410
  %v5412 = vpop.f32.mrb[0].mxu0
  %v5413 = vpop.f32.mrb[0].mxu0
  %5414 = vdwg.mxu0
  %5415 = vmatprep.subr.bf16.mxu0 %v704
  %5416 = vmatpush1.bf16.msra.mxu0 %v703
  %5417 = vmatprep.subr.bf16.mxu0 %v708
  %5418 = vmatpush1.bf16.msra.mxu0 %v707
  %5419 = vmatprep.subr.bf16.mxu0 %v712
  %5420 = vmatpush1.bf16.msra.mxu0 %v711
  %5421 = vmatprep.subr.bf16.mxu0 %v716
  %5422 = vmatpush1.bf16.msra.mxu0 %v715
  %5423 = vmatprep.subr.bf16.mxu0 %v720
  %5424 = vmatpush1.bf16.msra.mxu0 %v719
  %5425 = vmatprep.subr.bf16.mxu0 %v724
  %5426 = vmatpush1.bf16.msra.mxu0 %v723
  %5427 = vmatprep.subr.bf16.mxu0 %v728
  %5428 = vmatpush1.bf16.msra.mxu0 %v727
  %5429 = vmatprep.subr.bf16.mxu0 %v732
  %5430 = vmatpush1.bf16.msra.mxu0 %v731
  %5431 = vmatprep.subr.bf16.mxu0 0
  %5432 = vmatpush1.bf16.msra.mxu0 0
  %5433 = vmatprep.subr.bf16.mxu0 0
  %5434 = vmatpush1.bf16.msra.mxu0 0
  %5435 = vmatprep.subr.bf16.mxu0 0
  %5436 = vmatpush1.bf16.msra.mxu0 0
  %5437 = vmatprep.subr.bf16.mxu0 0
  %5438 = vmatpush1.bf16.msra.mxu0 0
  %5439 = vmatprep.subr.bf16.mxu0 0
  %5440 = vmatpush1.bf16.msra.mxu0 0
  %5441 = vmatprep.subr.bf16.mxu0 0
  %5442 = vmatpush1.bf16.msra.mxu0 0
  %5443 = vmatprep.subr.bf16.mxu0 0
  %5444 = vmatpush1.bf16.msra.mxu0 0
  %5445 = vmatprep.subr.bf16.mxu0 0
  %5446 = vmatpush1.bf16.msra.mxu0 0
  %5447 = vmatprep.mubr.bf16.mxu0 0
  %5448 = vmatmul.mubr.bf16.gmra.mrb[0].mxu0 %v5373
  %v5449 = vpop.f32.mrb[0].mxu0
  %v5450 = vadd.f32 %v535, %v5449
  %v5451 = vpop.f32.mrb[0].mxu0
  %v5452 = vadd.f32 %v539, %v5451
  %v5453 = vpop.f32.mrb[0].mxu0
  %v5454 = vpop.f32.mrb[0].mxu0
  %5455 = vdwg.mxu0
  %v5456 = vpack.c.bf16 %v5258, %v5258
  %5457 = vmatprep.subr.bf16.mxu0 %v1390
  %5458 = vmatpush1.bf16.msra.mxu0 %v1389
  %5459 = vmatprep.subr.bf16.mxu0 %v1394
  %5460 = vmatpush1.bf16.msra.mxu0 %v1393
  %5461 = vmatprep.subr.bf16.mxu0 %v1398
  %5462 = vmatpush1.bf16.msra.mxu0 %v1397
  %5463 = vmatprep.subr.bf16.mxu0 %v1402
  %5464 = vmatpush1.bf16.msra.mxu0 %v1401
  %5465 = vmatprep.subr.bf16.mxu0 %v1406
  %5466 = vmatpush1.bf16.msra.mxu0 %v1405
  %5467 = vmatprep.subr.bf16.mxu0 %v1410
  %5468 = vmatpush1.bf16.msra.mxu0 %v1409
  %5469 = vmatprep.subr.bf16.mxu0 %v1414
  %5470 = vmatpush1.bf16.msra.mxu0 %v1413
  %5471 = vmatprep.subr.bf16.mxu0 %v1418
  %5472 = vmatpush1.bf16.msra.mxu0 %v1417
  %5473 = vmatprep.subr.bf16.mxu0 0
  %5474 = vmatpush1.bf16.msra.mxu0 0
  %5475 = vmatprep.subr.bf16.mxu0 0
  %5476 = vmatpush1.bf16.msra.mxu0 0
  %5477 = vmatprep.subr.bf16.mxu0 0
  %5478 = vmatpush1.bf16.msra.mxu0 0
  %5479 = vmatprep.subr.bf16.mxu0 0
  %5480 = vmatpush1.bf16.msra.mxu0 0
  %5481 = vmatprep.subr.bf16.mxu0 0
  %5482 = vmatpush1.bf16.msra.mxu0 0
  %5483 = vmatprep.subr.bf16.mxu0 0
  %5484 = vmatpush1.bf16.msra.mxu0 0
  %5485 = vmatprep.subr.bf16.mxu0 0
  %5486 = vmatpush1.bf16.msra.mxu0 0
  %5487 = vmatprep.subr.bf16.mxu0 0
  %5488 = vmatpush1.bf16.msra.mxu0 0
  %5489 = vmatprep.mubr.bf16.mxu0 0
  %5490 = vmatmul.mubr.bf16.gmra.mrb[0].mxu0 %v5456
  %v5491 = vpop.f32.mrb[0].mxu0
  %v5492 = vadd.f32 0.0, %v5491
  %v5493 = vpop.f32.mrb[0].mxu0
  %v5494 = vadd.f32 0.0, %v5493
  %v5495 = vpop.f32.mrb[0].mxu0
  %v5496 = vpop.f32.mrb[0].mxu0
  %5497 = vdwg.mxu0
  %5498 = vmatprep.subr.bf16.mxu0 %v1392
  %5499 = vmatpush1.bf16.msra.mxu0 %v1391
  %5500 = vmatprep.subr.bf16.mxu0 %v1396
  %5501 = vmatpush1.bf16.msra.mxu0 %v1395
  %5502 = vmatprep.subr.bf16.mxu0 %v1400
  %5503 = vmatpush1.bf16.msra.mxu0 %v1399
  %5504 = vmatprep.subr.bf16.mxu0 %v1404
  %5505 = vmatpush1.bf16.msra.mxu0 %v1403
  %5506 = vmatprep.subr.bf16.mxu0 %v1408
  %5507 = vmatpush1.bf16.msra.mxu0 %v1407
  %5508 = vmatprep.subr.bf16.mxu0 %v1412
  %5509 = vmatpush1.bf16.msra.mxu0 %v1411
  %5510 = vmatprep.subr.bf16.mxu0 %v1416
  %5511 = vmatpush1.bf16.msra.mxu0 %v1415
  %5512 = vmatprep.subr.bf16.mxu0 %v1420
  %5513 = vmatpush1.bf16.msra.mxu0 %v1419
  %5514 = vmatprep.subr.bf16.mxu0 0
  %5515 = vmatpush1.bf16.msra.mxu0 0
  %5516 = vmatprep.subr.bf16.mxu0 0
  %5517 = vmatpush1.bf16.msra.mxu0 0
  %5518 = vmatprep.subr.bf16.mxu0 0
  %5519 = vmatpush1.bf16.msra.mxu0 0
  %5520 = vmatprep.subr.bf16.mxu0 0
  %5521 = vmatpush1.bf16.msra.mxu0 0
  %5522 = vmatprep.subr.bf16.mxu0 0
  %5523 = vmatpush1.bf16.msra.mxu0 0
  %5524 = vmatprep.subr.bf16.mxu0 0
  %5525 = vmatpush1.bf16.msra.mxu0 0
  %5526 = vmatprep.subr.bf16.mxu0 0
  %5527 = vmatpush1.bf16.msra.mxu0 0
  %5528 = vmatprep.subr.bf16.mxu0 0
  %5529 = vmatpush1.bf16.msra.mxu0 0
  %5530 = vmatprep.mubr.bf16.mxu0 0
  %5531 = vmatmul.mubr.bf16.gmra.mrb[0].mxu0 %v5456
  %v5532 = vpop.f32.mrb[0].mxu0
  %v5533 = vadd.f32 0.0, %v5532
  %v5534 = vpop.f32.mrb[0].mxu0
  %v5535 = vadd.f32 0.0, %v5534
  %v5536 = vpop.f32.mrb[0].mxu0
  %v5537 = vpop.f32.mrb[0].mxu0
  %5538 = vdwg.mxu0
  %v5539 = vadd.f32 %v5409, %v5492
  %v5540 = vadd.f32 %v5411, %v5494
  %v5541 = vadd.f32 %v5450, %v5533
  %v5542 = vadd.f32 %v5452, %v5535
  %v5543 = vxor.u32 %v5539, 2147483648
  %v5544 = vxor.u32 %v5540, 2147483648
  %v5545 = vxor.u32 %v5541, 2147483648
  %v5546 = vmul.f32 %v5543, 1.442695
  %v5547 = vpow.pop %v5546
  %v5548 = vmul.f32 %v5544, 1.442695
  %v5549 = vpow.pop %v5548
  %v5550 = vmul.f32 %v5545, 1.442695
  %v5551 = vpow.pop %v5550
  %v5552 = vadd.f32 %v5547, 1.0
  %v5553 = vadd.f32 %v5549, 1.0
  %v5554 = vadd.f32 %v5551, 1.0
  %v5555 = vrcp.pop %v5552
  %v5556 = vmul.f32 1.0, %v5555
  %v5557 = vrcp.pop %v5553
  %v5558 = vmul.f32 1.0, %v5557
  %v5559 = vrcp.pop %v5554
  %v5560 = vmul.f32 1.0, %v5559
  %v5561 = vtanh.pop %v5542
  %v5562 = vmul.f32 %v5558, %v5256
  %v5563 = vmul.f32 %v5556, %v5561
  %v5564 = vadd.f32 %v5562, %v5563
  %v5565 = vtanh.pop %v5564
  %v5566 = vmul.f32 %v5560, %v5565
  %v5567 = vld [vmem:[#allocation2 + $0x1e0] sm:$0xff]
  %v5568 = vld [vmem:[#allocation2 + $0x1e8] sm:$0xff]
  %v5569 = vld [vmem:[#allocation2 + $0x1f0] sm:$0xff]
  %v5570 = vld [vmem:[#allocation2 + $0x1f8] sm:$0xff]
  %5571 = vmatprep.subr.bf16.mxu0 %v1004
  %5572 = vmatpush1.bf16.msra.mxu0 %v1003
  %5573 = vmatprep.subr.bf16.mxu0 %v1008
  %5574 = vmatpush1.bf16.msra.mxu0 %v1007
  %5575 = vmatprep.subr.bf16.mxu0 %v1012
  %5576 = vmatpush1.bf16.msra.mxu0 %v1011
  %5577 = vmatprep.subr.bf16.mxu0 %v1016
  %5578 = vmatpush1.bf16.msra.mxu0 %v1015
  %5579 = vmatprep.subr.bf16.mxu0 %v1020
  %5580 = vmatpush1.bf16.msra.mxu0 %v1019
  %5581 = vmatprep.subr.bf16.mxu0 %v1024
  %5582 = vmatpush1.bf16.msra.mxu0 %v1023
  %5583 = vmatprep.subr.bf16.mxu0 %v1028
  %5584 = vmatpush1.bf16.msra.mxu0 %v1027
  %5585 = vmatprep.subr.bf16.mxu0 %v1032
  %5586 = vmatpush1.bf16.msra.mxu0 %v1031
  %5587 = vmatprep.subr.bf16.mxu0 0
  %5588 = vmatpush1.bf16.msra.mxu0 0
  %5589 = vmatprep.subr.bf16.mxu0 0
  %5590 = vmatpush1.bf16.msra.mxu0 0
  %5591 = vmatprep.subr.bf16.mxu0 0
  %5592 = vmatpush1.bf16.msra.mxu0 0
  %5593 = vmatprep.subr.bf16.mxu0 0
  %5594 = vmatpush1.bf16.msra.mxu0 0
  %5595 = vmatprep.subr.bf16.mxu0 0
  %5596 = vmatpush1.bf16.msra.mxu0 0
  %5597 = vmatprep.subr.bf16.mxu0 0
  %5598 = vmatpush1.bf16.msra.mxu0 0
  %5599 = vmatprep.subr.bf16.mxu0 0
  %5600 = vmatpush1.bf16.msra.mxu0 0
  %5601 = vmatprep.subr.bf16.mxu0 0
  %5602 = vmatpush1.bf16.msra.mxu0 0
  %5603 = vmatprep.mubr.bf16.mxu0 0
  %5604 = vmatmul.mubr.bf16.gmra.mrb[0].mxu0 %v5373
  %v5605 = vpop.f32.mrb[0].mxu0
  %v5606 = vadd.f32 0.0, %v5605
  %v5607 = vpop.f32.mrb[0].mxu0
  %v5608 = vadd.f32 0.0, %v5607
  %v5609 = vpop.f32.mrb[0].mxu0
  %v5610 = vpop.f32.mrb[0].mxu0
  %5611 = vdwg.mxu0
  %5612 = vmatprep.subr.bf16.mxu0 %v1006
  %5613 = vmatpush1.bf16.msra.mxu0 %v1005
  %5614 = vmatprep.subr.bf16.mxu0 %v1010
  %5615 = vmatpush1.bf16.msra.mxu0 %v1009
  %5616 = vmatprep.subr.bf16.mxu0 %v1014
  %5617 = vmatpush1.bf16.msra.mxu0 %v1013
  %5618 = vmatprep.subr.bf16.mxu0 %v1018
  %5619 = vmatpush1.bf16.msra.mxu0 %v1017
  %5620 = vmatprep.subr.bf16.mxu0 %v1022
  %5621 = vmatpush1.bf16.msra.mxu0 %v1021
  %5622 = vmatprep.subr.bf16.mxu0 %v1026
  %5623 = vmatpush1.bf16.msra.mxu0 %v1025
  %5624 = vmatprep.subr.bf16.mxu0 %v1030
  %5625 = vmatpush1.bf16.msra.mxu0 %v1029
  %5626 = vmatprep.subr.bf16.mxu0 %v1034
  %5627 = vmatpush1.bf16.msra.mxu0 %v1033
  %5628 = vmatprep.subr.bf16.mxu0 0
  %5629 = vmatpush1.bf16.msra.mxu0 0
  %5630 = vmatprep.subr.bf16.mxu0 0
  %5631 = vmatpush1.bf16.msra.mxu0 0
  %5632 = vmatprep.subr.bf16.mxu0 0
  %5633 = vmatpush1.bf16.msra.mxu0 0
  %5634 = vmatprep.subr.bf16.mxu0 0
  %5635 = vmatpush1.bf16.msra.mxu0 0
  %5636 = vmatprep.subr.bf16.mxu0 0
  %5637 = vmatpush1.bf16.msra.mxu0 0
  %5638 = vmatprep.subr.bf16.mxu0 0
  %5639 = vmatpush1.bf16.msra.mxu0 0
  %5640 = vmatprep.subr.bf16.mxu0 0
  %5641 = vmatpush1.bf16.msra.mxu0 0
  %5642 = vmatprep.subr.bf16.mxu0 0
  %5643 = vmatpush1.bf16.msra.mxu0 0
  %5644 = vmatprep.mubr.bf16.mxu0 0
  %5645 = vmatmul.mubr.bf16.gmra.mrb[0].mxu0 %v5373
  %v5646 = vpop.f32.mrb[0].mxu0
  %v5647 = vadd.f32 0.0, %v5646
  %v5648 = vpop.f32.mrb[0].mxu0
  %v5649 = vadd.f32 0.0, %v5648
  %v5650 = vpop.f32.mrb[0].mxu0
  %v5651 = vpop.f32.mrb[0].mxu0
  %5652 = vdwg.mxu0
  %v5653 = vadd.f32 %v5567, %v5606
  %v5654 = vadd.f32 %v5568, %v5608
  %v5655 = vadd.f32 %v5569, %v5647
  %v5656 = vadd.f32 %v5570, %v5649
  %v5657 = vxor.u32 %v5653, 2147483648
  %v5658 = vxor.u32 %v5654, 2147483648
  %v5659 = vxor.u32 %v5655, 2147483648
  %v5660 = vmul.f32 %v5657, 1.442695
  %v5661 = vpow.pop %v5660
  %v5662 = vmul.f32 %v5658, 1.442695
  %v5663 = vpow.pop %v5662
  %v5664 = vmul.f32 %v5659, 1.442695
  %v5665 = vpow.pop %v5664
  %v5666 = vadd.f32 %v5661, 1.0
  %v5667 = vadd.f32 %v5663, 1.0
  %v5668 = vadd.f32 %v5665, 1.0
  %v5669 = vrcp.pop %v5666
  %v5670 = vmul.f32 1.0, %v5669
  %v5671 = vrcp.pop %v5667
  %v5672 = vmul.f32 1.0, %v5671
  %v5673 = vrcp.pop %v5668
  %v5674 = vmul.f32 1.0, %v5673
  %v5675 = vtanh.pop %v5656
  %v5676 = vmul.f32 %v5672, %v5370
  %v5677 = vmul.f32 %v5670, %v5675
  %v5678 = vadd.f32 %v5676, %v5677
  %v5679 = vtanh.pop %v5678
  %v5680 = vmul.f32 %v5674, %v5679
  %v5681 = vpack.c.bf16 %v5680, %v5680
  %5682 = vmatprep.subr.bf16.mxu0 %v702
  %5683 = vmatpush1.bf16.msra.mxu0 %v701
  %5684 = vmatprep.subr.bf16.mxu0 %v706
  %5685 = vmatpush1.bf16.msra.mxu0 %v705
  %5686 = vmatprep.subr.bf16.mxu0 %v710
  %5687 = vmatpush1.bf16.msra.mxu0 %v709
  %5688 = vmatprep.subr.bf16.mxu0 %v714
  %5689 = vmatpush1.bf16.msra.mxu0 %v713
  %5690 = vmatprep.subr.bf16.mxu0 %v718
  %5691 = vmatpush1.bf16.msra.mxu0 %v717
  %5692 = vmatprep.subr.bf16.mxu0 %v722
  %5693 = vmatpush1.bf16.msra.mxu0 %v721
  %5694 = vmatprep.subr.bf16.mxu0 %v726
  %5695 = vmatpush1.bf16.msra.mxu0 %v725
  %5696 = vmatprep.subr.bf16.mxu0 %v730
  %5697 = vmatpush1.bf16.msra.mxu0 %v729
  %5698 = vmatprep.subr.bf16.mxu0 0
  %5699 = vmatpush1.bf16.msra.mxu0 0
  %5700 = vmatprep.subr.bf16.mxu0 0
  %5701 = vmatpush1.bf16.msra.mxu0 0
  %5702 = vmatprep.subr.bf16.mxu0 0
  %5703 = vmatpush1.bf16.msra.mxu0 0
  %5704 = vmatprep.subr.bf16.mxu0 0
  %5705 = vmatpush1.bf16.msra.mxu0 0
  %5706 = vmatprep.subr.bf16.mxu0 0
  %5707 = vmatpush1.bf16.msra.mxu0 0
  %5708 = vmatprep.subr.bf16.mxu0 0
  %5709 = vmatpush1.bf16.msra.mxu0 0
  %5710 = vmatprep.subr.bf16.mxu0 0
  %5711 = vmatpush1.bf16.msra.mxu0 0
  %5712 = vmatprep.subr.bf16.mxu0 0
  %5713 = vmatpush1.bf16.msra.mxu0 0
  %5714 = vmatprep.mubr.bf16.mxu0 0
  %5715 = vmatmul.mubr.bf16.gmra.mrb[0].mxu0 %v5681
  %v5716 = vpop.f32.mrb[0].mxu0
  %v5717 = vadd.f32 %v527, %v5716
  %v5718 = vpop.f32.mrb[0].mxu0
  %v5719 = vadd.f32 %v531, %v5718
  %v5720 = vpop.f32.mrb[0].mxu0
  %v5721 = vpop.f32.mrb[0].mxu0
  %5722 = vdwg.mxu0
  %5723 = vmatprep.subr.bf16.mxu0 %v704
  %5724 = vmatpush1.bf16.msra.mxu0 %v703
  %5725 = vmatprep.subr.bf16.mxu0 %v708
  %5726 = vmatpush1.bf16.msra.mxu0 %v707
  %5727 = vmatprep.subr.bf16.mxu0 %v712
  %5728 = vmatpush1.bf16.msra.mxu0 %v711
  %5729 = vmatprep.subr.bf16.mxu0 %v716
  %5730 = vmatpush1.bf16.msra.mxu0 %v715
  %5731 = vmatprep.subr.bf16.mxu0 %v720
  %5732 = vmatpush1.bf16.msra.mxu0 %v719
  %5733 = vmatprep.subr.bf16.mxu0 %v724
  %5734 = vmatpush1.bf16.msra.mxu0 %v723
  %5735 = vmatprep.subr.bf16.mxu0 %v728
  %5736 = vmatpush1.bf16.msra.mxu0 %v727
  %5737 = vmatprep.subr.bf16.mxu0 %v732
  %5738 = vmatpush1.bf16.msra.mxu0 %v731
  %5739 = vmatprep.subr.bf16.mxu0 0
  %5740 = vmatpush1.bf16.msra.mxu0 0
  %5741 = vmatprep.subr.bf16.mxu0 0
  %5742 = vmatpush1.bf16.msra.mxu0 0
  %5743 = vmatprep.subr.bf16.mxu0 0
  %5744 = vmatpush1.bf16.msra.mxu0 0
  %5745 = vmatprep.subr.bf16.mxu0 0
  %5746 = vmatpush1.bf16.msra.mxu0 0
  %5747 = vmatprep.subr.bf16.mxu0 0
  %5748 = vmatpush1.bf16.msra.mxu0 0
  %5749 = vmatprep.subr.bf16.mxu0 0
  %5750 = vmatpush1.bf16.msra.mxu0 0
  %5751 = vmatprep.subr.bf16.mxu0 0
  %5752 = vmatpush1.bf16.msra.mxu0 0
  %5753 = vmatprep.subr.bf16.mxu0 0
  %5754 = vmatpush1.bf16.msra.mxu0 0
  %5755 = vmatprep.mubr.bf16.mxu0 0
  %5756 = vmatmul.mubr.bf16.gmra.mrb[0].mxu0 %v5681
  %v5757 = vpop.f32.mrb[0].mxu0
  %v5758 = vadd.f32 %v535, %v5757
  %v5759 = vpop.f32.mrb[0].mxu0
  %v5760 = vadd.f32 %v539, %v5759
  %v5761 = vpop.f32.mrb[0].mxu0
  %v5762 = vpop.f32.mrb[0].mxu0
  %5763 = vdwg.mxu0
  %v5764 = vpack.c.bf16 %v5566, %v5566
  %5765 = vmatprep.subr.bf16.mxu0 %v1390
  %5766 = vmatpush1.bf16.msra.mxu0 %v1389
  %5767 = vmatprep.subr.bf16.mxu0 %v1394
  %5768 = vmatpush1.bf16.msra.mxu0 %v1393
  %5769 = vmatprep.subr.bf16.mxu0 %v1398
  %5770 = vmatpush1.bf16.msra.mxu0 %v1397
  %5771 = vmatprep.subr.bf16.mxu0 %v1402
  %5772 = vmatpush1.bf16.msra.mxu0 %v1401
  %5773 = vmatprep.subr.bf16.mxu0 %v1406
  %5774 = vmatpush1.bf16.msra.mxu0 %v1405
  %5775 = vmatprep.subr.bf16.mxu0 %v1410
  %5776 = vmatpush1.bf16.msra.mxu0 %v1409
  %5777 = vmatprep.subr.bf16.mxu0 %v1414
  %5778 = vmatpush1.bf16.msra.mxu0 %v1413
  %5779 = vmatprep.subr.bf16.mxu0 %v1418
  %5780 = vmatpush1.bf16.msra.mxu0 %v1417
  %5781 = vmatprep.subr.bf16.mxu0 0
  %5782 = vmatpush1.bf16.msra.mxu0 0
  %5783 = vmatprep.subr.bf16.mxu0 0
  %5784 = vmatpush1.bf16.msra.mxu0 0
  %5785 = vmatprep.subr.bf16.mxu0 0
  %5786 = vmatpush1.bf16.msra.mxu0 0
  %5787 = vmatprep.subr.bf16.mxu0 0
  %5788 = vmatpush1.bf16.msra.mxu0 0
  %5789 = vmatprep.subr.bf16.mxu0 0
  %5790 = vmatpush1.bf16.msra.mxu0 0
  %5791 = vmatprep.subr.bf16.mxu0 0
  %5792 = vmatpush1.bf16.msra.mxu0 0
  %5793 = vmatprep.subr.bf16.mxu0 0
  %5794 = vmatpush1.bf16.msra.mxu0 0
  %5795 = vmatprep.subr.bf16.mxu0 0
  %5796 = vmatpush1.bf16.msra.mxu0 0
  %5797 = vmatprep.mubr.bf16.mxu0 0
  %5798 = vmatmul.mubr.bf16.gmra.mrb[0].mxu0 %v5764
  %v5799 = vpop.f32.mrb[0].mxu0
  %v5800 = vadd.f32 0.0, %v5799
  %v5801 = vpop.f32.mrb[0].mxu0
  %v5802 = vadd.f32 0.0, %v5801
  %v5803 = vpop.f32.mrb[0].mxu0
  %v5804 = vpop.f32.mrb[0].mxu0
  %5805 = vdwg.mxu0
  %5806 = vmatprep.subr.bf16.mxu0 %v1392
  %5807 = vmatpush1.bf16.msra.mxu0 %v1391
  %5808 = vmatprep.subr.bf16.mxu0 %v1396
  %5809 = vmatpush1.bf16.msra.mxu0 %v1395
  %5810 = vmatprep.subr.bf16.mxu0 %v1400
  %5811 = vmatpush1.bf16.msra.mxu0 %v1399
  %5812 = vmatprep.subr.bf16.mxu0 %v1404
  %5813 = vmatpush1.bf16.msra.mxu0 %v1403
  %5814 = vmatprep.subr.bf16.mxu0 %v1408
  %5815 = vmatpush1.bf16.msra.mxu0 %v1407
  %5816 = vmatprep.subr.bf16.mxu0 %v1412
  %5817 = vmatpush1.bf16.msra.mxu0 %v1411
  %5818 = vmatprep.subr.bf16.mxu0 %v1416
  %5819 = vmatpush1.bf16.msra.mxu0 %v1415
  %5820 = vmatprep.subr.bf16.mxu0 %v1420
  %5821 = vmatpush1.bf16.msra.mxu0 %v1419
  %5822 = vmatprep.subr.bf16.mxu0 0
  %5823 = vmatpush1.bf16.msra.mxu0 0
  %5824 = vmatprep.subr.bf16.mxu0 0
  %5825 = vmatpush1.bf16.msra.mxu0 0
  %5826 = vmatprep.subr.bf16.mxu0 0
  %5827 = vmatpush1.bf16.msra.mxu0 0
  %5828 = vmatprep.subr.bf16.mxu0 0
  %5829 = vmatpush1.bf16.msra.mxu0 0
  %5830 = vmatprep.subr.bf16.mxu0 0
  %5831 = vmatpush1.bf16.msra.mxu0 0
  %5832 = vmatprep.subr.bf16.mxu0 0
  %5833 = vmatpush1.bf16.msra.mxu0 0
  %5834 = vmatprep.subr.bf16.mxu0 0
  %5835 = vmatpush1.bf16.msra.mxu0 0
  %5836 = vmatprep.subr.bf16.mxu0 0
  %5837 = vmatpush1.bf16.msra.mxu0 0
  %5838 = vmatprep.mubr.bf16.mxu0 0
  %5839 = vmatmul.mubr.bf16.gmra.mrb[0].mxu0 %v5764
  %v5840 = vpop.f32.mrb[0].mxu0
  %v5841 = vadd.f32 0.0, %v5840
  %v5842 = vpop.f32.mrb[0].mxu0
  %v5843 = vadd.f32 0.0, %v5842
  %v5844 = vpop.f32.mrb[0].mxu0
  %v5845 = vpop.f32.mrb[0].mxu0
  %5846 = vdwg.mxu0
  %v5847 = vadd.f32 %v5717, %v5800
  %v5848 = vadd.f32 %v5719, %v5802
  %v5849 = vadd.f32 %v5758, %v5841
  %v5850 = vadd.f32 %v5760, %v5843
  %v5851 = vxor.u32 %v5847, 2147483648
  %v5852 = vxor.u32 %v5848, 2147483648
  %v5853 = vxor.u32 %v5849, 2147483648
  %v5854 = vmul.f32 %v5851, 1.442695
  %v5855 = vpow.pop %v5854
  %v5856 = vmul.f32 %v5852, 1.442695
  %v5857 = vpow.pop %v5856
  %v5858 = vmul.f32 %v5853, 1.442695
  %v5859 = vpow.pop %v5858
  %v5860 = vadd.f32 %v5855, 1.0
  %v5861 = vadd.f32 %v5857, 1.0
  %v5862 = vadd.f32 %v5859, 1.0
  %v5863 = vrcp.pop %v5860
  %v5864 = vmul.f32 1.0, %v5863
  %v5865 = vrcp.pop %v5861
  %v5866 = vmul.f32 1.0, %v5865
  %v5867 = vrcp.pop %v5862
  %v5868 = vmul.f32 1.0, %v5867
  %v5869 = vtanh.pop %v5850
  %v5870 = vmul.f32 %v5866, %v5564
  %v5871 = vmul.f32 %v5864, %v5869
  %v5872 = vadd.f32 %v5870, %v5871
  %v5873 = vtanh.pop %v5872
  %v5874 = vmul.f32 %v5868, %v5873
  %v5875 = vpack.c.bf16 %v5874, %v5874
  %v5876 = vld [vmem:[%s7] sm:$0xf]
  %v5877 = vld [vmem:[%s7 + $0x4] sm:$0xf]
  %v5878 = vld [vmem:[%s7 + $0x8] sm:$0xf]
  %v5879 = vld [vmem:[%s7 + $0xc] sm:$0xf]
  %v5880 = vld [vmem:[%s7 + $0x10] sm:$0xf]
  %v5881 = vld [vmem:[%s7 + $0x14] sm:$0xf]
  %v5882 = vld [vmem:[%s7 + $0x18] sm:$0xf]
  %v5883 = vld [vmem:[%s7 + $0x1c] sm:$0xf]
  %v5884 = vld [vmem:[%s7 + $0x20] sm:$0xf]
  %v5885 = vld [vmem:[%s7 + $0x24] sm:$0xf]
  %v5886 = vld [vmem:[%s7 + $0x28] sm:$0xf]
  %v5887 = vld [vmem:[%s7 + $0x2c] sm:$0xf]
  %v5888 = vld [vmem:[%s7 + $0x30] sm:$0xf]
  %v5889 = vld [vmem:[%s7 + $0x34] sm:$0xf]
  %v5890 = vld [vmem:[%s7 + $0x38] sm:$0xf]
  %v5891 = vld [vmem:[%s7 + $0x3c] sm:$0xf]
  %v5892 = vld [vmem:[%s8] sm:$0x1]
  %v5894 = vlaneseq
  %v5895 = vshrl.u32 %v5894, 7
  %v5896 = vsub.s32 0, %v5895
  %v5897 = vrot.slane %v5892, %v5896
  %v5915 = vunpack.c.l.b16 %v5876
  %v5916 = vunpack.c.l.b16 %v5877
  %v5917 = vunpack.c.l.b16 %v5878
  %v5918 = vunpack.c.l.b16 %v5879
  %v5919 = vunpack.c.l.b16 %v5880
  %v5920 = vunpack.c.l.b16 %v5881
  %v5921 = vunpack.c.l.b16 %v5882
  %v5922 = vunpack.c.l.b16 %v5883
  %v5923 = vunpack.c.l.b16 %v5884
  %v5924 = vunpack.c.l.b16 %v5885
  %v5925 = vunpack.c.l.b16 %v5886
  %v5926 = vunpack.c.l.b16 %v5887
  %v5927 = vunpack.c.l.b16 %v5888
  %v5928 = vunpack.c.l.b16 %v5889
  %v5929 = vunpack.c.l.b16 %v5890
  %v5930 = vunpack.c.l.b16 %v5891
  %v5931 = vpack.c.b16 %v5916, %v5915
  %v5932 = vpack.c.b16 %v5918, %v5917
  %v5933 = vpack.c.b16 %v5920, %v5919
  %v5934 = vpack.c.b16 %v5922, %v5921
  %v5935 = vpack.c.b16 %v5924, %v5923
  %v5936 = vpack.c.b16 %v5926, %v5925
  %v5937 = vpack.c.b16 %v5928, %v5927
  %v5938 = vpack.c.b16 %v5930, %v5929
  %5947 = vmatprep.subr.bf16.mxu0 0
  %5948 = vmatpush1.bf16.msra.mxu0 %v5931
  %5949 = vmatprep.subr.bf16.mxu0 0
  %5950 = vmatpush1.bf16.msra.mxu0 %v5932
  %5951 = vmatprep.subr.bf16.mxu0 0
  %5952 = vmatpush1.bf16.msra.mxu0 %v5933
  %5953 = vmatprep.subr.bf16.mxu0 0
  %5954 = vmatpush1.bf16.msra.mxu0 %v5934
  %5955 = vmatprep.subr.bf16.mxu0 0
  %5956 = vmatpush1.bf16.msra.mxu0 %v5935
  %5957 = vmatprep.subr.bf16.mxu0 0
  %5958 = vmatpush1.bf16.msra.mxu0 %v5936
  %5959 = vmatprep.subr.bf16.mxu0 0
  %5960 = vmatpush1.bf16.msra.mxu0 %v5937
  %5961 = vmatprep.subr.bf16.mxu0 0
  %5962 = vmatpush1.bf16.msra.mxu0 %v5938
  %5963 = vmatprep.subr.bf16.mxu0 0
  %5964 = vmatpush1.bf16.msra.mxu0 0
  %5965 = vmatprep.subr.bf16.mxu0 0
  %5966 = vmatpush1.bf16.msra.mxu0 0
  %5967 = vmatprep.subr.bf16.mxu0 0
  %5968 = vmatpush1.bf16.msra.mxu0 0
  %5969 = vmatprep.subr.bf16.mxu0 0
  %5970 = vmatpush1.bf16.msra.mxu0 0
  %5971 = vmatprep.subr.bf16.mxu0 0
  %5972 = vmatpush1.bf16.msra.mxu0 0
  %5973 = vmatprep.subr.bf16.mxu0 0
  %5974 = vmatpush1.bf16.msra.mxu0 0
  %5975 = vmatprep.subr.bf16.mxu0 0
  %5976 = vmatpush1.bf16.msra.mxu0 0
  %5977 = vmatprep.subr.bf16.mxu0 0
  %5978 = vmatpush1.bf16.msra.mxu0 0
  %5979 = vmatprep.mubr.bf16.mxu0 0
  %5980 = vmatmul.mubr.bf16.gmra.mrb[0].mxu0 %v5875
  %v5981 = vpop.f32.mrb[0].mxu0
  %v5982 = vadd.f32 %v5897, %v5981
  %v5983 = vpop.f32.mrb[0].mxu0
  %v5984 = vpop.f32.mrb[0].mxu0
  %v5985 = vpop.f32.mrb[0].mxu0
  %5986 = vdwg.mxu0
  %5987 = vst [vmem:[%s9] sm:$0xff] %v5982
  // Predicated region
  $region38: #{lstm_forward.1} parent=0 // pred_check
    _
  $region39: #{lstm_forward.1} parent=0 // pred_check_branch
    %5989 = sbr.rel (0) target = $region41
  $region40: #{lstm_forward.1} parent=0 // pred_region
    _
  $region41: #{lstm_forward.1} parent=0 // pred_fallthru
    _
  // Predicated region
  $region42: #{lstm_forward.1} parent=0 // pred_check
    _
  $region43: #{lstm_forward.1} parent=0 // pred_check_branch
    %5991 = sbr.rel (0) target = $region45
  $region44: #{lstm_forward.1} parent=0 // pred_region
    _
  $region45: #{lstm_forward.1} parent=0 // pred_fallthru
    _

</llo_original>
